<compile_context>
chip_gen: v7x
topology: tpu7x:2x2x1
jax: 0.10.0
libtpu: 0.0.40
codegen_flags: <defaults>
</compile_context>

<pallas_src>
import jax
import jax.numpy as jnp
from jax import lax
from jax.experimental import pallas as pl
from jax.experimental.pallas import tpu as pltpu

DIMS = [1600, 800, 200, 20, 1]


def _ffn_kernel(x_ref,
                w1_ref, b1_ref,
                w2_ref, b2_ref,
                w3_ref, b3_ref,
                w4_ref, b4_ref,
                o_ref):
    # fc1 + ReLU  (MXU: bf16 x bf16 -> f32 accumulate; x already arrives bf16)
    h = jnp.dot(x_ref[...], w1_ref[...], preferred_element_type=jnp.float32)
    h = jnp.maximum(h + b1_ref[...], 0.0)
    # fc2 + ReLU
    h = jnp.dot(h.astype(jnp.bfloat16), w2_ref[...],
                preferred_element_type=jnp.float32)
    h = jnp.maximum(h + b2_ref[...], 0.0)
    # fc3 + ReLU
    h = jnp.dot(h.astype(jnp.bfloat16), w3_ref[...],
                preferred_element_type=jnp.float32)
    h = jnp.maximum(h + b3_ref[...], 0.0)                       # (tile_b, 20) f32
    # fc4 (20 -> 1) in the transposed orientation: (1,20) . (tile_b,20)^T
    # -> (1, tile_b).  N=tile_b fills the MXU lanes and the result is already
    # lane-dense, so the output store is an unmasked row, not a 1-lane column.
    logit = lax.dot_general(
        w4_ref[...].astype(jnp.bfloat16), h.astype(jnp.bfloat16),
        dimension_numbers=(((1,), (1,)), ((), ())),
        preferred_element_type=jnp.float32) + b4_ref[...]       # (1, tile_b)
    # ReLU then Sigmoid — matches the PyTorch module (F.relu(fc4(x)) -> Sigmoid).
    z = jnp.maximum(logit, 0.0)
    o_ref[...] = pl.reciprocal(1.0 + jnp.exp(-z), approx=True)  # EUP, not VPU divide


def _round_up(v, m):
    return (v + m - 1) // m * m


def ffn_forward(x, kparams, tile_b=1024):
    """x: (B, 1600), ideally already bf16 (f32 is cast here as a fallback).
    kparams: kernel-layout params (bf16 W^T for fc1-3; f32 fc4 row & biases)."""
    B, D = x.shape
    assert D == DIMS[0]
    if x.dtype != jnp.bfloat16:
        # Fallback only: callers should store/pass activations as bf16 so this
        # extra HBM pass never happens in the steady state.
        x = x.astype(jnp.bfloat16)

    w1, b1 = kparams["fc1"]
    w2, b2 = kparams["fc2"]
    w3, b3 = kparams["fc3"]
    w4, b4 = kparams["fc4"]

    if B <= tile_b:
        # Single tile: shrink the tile to the batch (16 rows = one bf16 vreg of
        # sublanes).  The tiny pad replaces the old full-array jnp.pad.
        tile_b = _round_up(B, 16)
        if tile_b != B:
            x = jnp.pad(x, ((0, tile_b - B), (0, 0)))
    else:
        # Multi-tile: tile must be a multiple of 128 so the (1, tile_b) output
        # block is lane-aligned.  The ragged last x block is handled by Pallas
        # (OOB rows compute garbage that is sliced off below) — no jnp.pad copy.
        tile_b = _round_up(tile_b, 128)
    num_tiles = pl.cdiv(B, tile_b)

    const = lambda i: (0, 0)  # same block every step -> weights stay VMEM-resident

    def call(resident_kwargs):
        resident = lambda shape: pl.BlockSpec(shape, const, **resident_kwargs)
        return pl.pallas_call(
            _ffn_kernel,
            out_shape=jax.ShapeDtypeStruct((1, num_tiles * tile_b), jnp.float32),
            grid=(num_tiles,),
            in_specs=[
                pl.BlockSpec((tile_b, DIMS[0]), lambda i: (i, 0)),  # x tile (bf16), pipelined
                resident((DIMS[0], DIMS[1])),                       # w1 (bf16)
                resident((1, DIMS[1])),                             # b1 (f32)
                resident((DIMS[1], DIMS[2])),                       # w2 (bf16)
                resident((1, DIMS[2])),                             # b2
                resident((DIMS[2], DIMS[3])),                       # w3 (bf16)
                resident((1, DIMS[3])),                             # b3
                resident((1, DIMS[3])),                             # w4 row (f32)
                resident((1, 1)),                                   # b4
            ],
            out_specs=pl.BlockSpec((1, tile_b), lambda i: (0, i)),  # lane-dense row
            compiler_params=pltpu.CompilerParams(
                # Batch tiles are independent; "parallel" lets the runtime shard
                # them across TensorCores.  On v7x, confirm via xprof that both
                # TCs are busy; if not, switch to pltpu.CORE_PARALLEL / core_map.
                dimension_semantics=("parallel",),
                vmem_limit_bytes=32 << 20,  # ~16 MiB used at tile_b=1024 w/ bf16 x
            ),
        )(x, w1, b1, w2, b2, w3, b3, w4, b4)

    try:
        # Single-buffer the grid-invariant weights/biases (saves ~3 MiB VMEM).
        out = call({"pipeline_mode": pl.Buffered(1)})
    except Exception:
        # pipeline_mode=pl.Buffered(1) is a VMEM optimization only; fall back to
        # default double-buffered resident weights if this JAX build rejects it.
        out = call({})
    return out.reshape(-1)[:B].reshape(B, 1)


def init_params(key):
    """PyTorch nn.Linear default init U(-1/sqrt(fan_in), +1/sqrt(fan_in)).
    Weights stored transposed as (in_features, out_features), f32."""
    names = ["fc1", "fc2", "fc3", "fc4"]
    params = {}
    for name, (fan_in, fan_out) in zip(names, zip(DIMS[:-1], DIMS[1:])):
        key, kw, kb = jax.random.split(key, 3)
        bound = 1.0 / float(fan_in) ** 0.5
        w_t = jax.random.uniform(kw, (fan_in, fan_out), jnp.float32,
                                 minval=-bound, maxval=bound)
        b = jax.random.uniform(kb, (1, fan_out), jnp.float32,
                               minval=-bound, maxval=bound)
        params[name] = (w_t, b)
    return params


def to_kernel_params(params):
    """bf16 MXU weights for fc1-fc3; fc4 as a (1, 20) f32 row."""
    kp = {}
    for name in ["fc1", "fc2", "fc3"]:
        w_t, b = params[name]
        kp[name] = (w_t.astype(jnp.bfloat16), b)
    w4, b4 = params["fc4"]          # (20, 1), (1, 1)
    kp["fc4"] = (w4.T, b4)          # -> (1, 20) f32
    return kp


def reference_forward(x, params):
    """Pure-JAX f32 reference mirroring the PyTorch module exactly."""
    h = x
    for name in ["fc1", "fc2", "fc3", "fc4"]:
        w_t, b = params[name]
        h = jnp.maximum(h @ w_t + b, 0.0)   # F.relu(linear(x)) — incl. fc4
    return jax.nn.sigmoid(h)


if __name__ == "__main__":
    key = jax.random.PRNGKey(0)
    key, kx = jax.random.split(key)
    params = init_params(key)
    kparams = to_kernel_params(params)

    # Small single-tile check (batch = 2).
    B = 2
    x = jax.random.normal(kx, (B, DIMS[0]), jnp.float32)
    out = jax.block_until_ready(ffn_forward(x.astype(jnp.bfloat16), kparams))
    ref = reference_forward(x, params)
    assert out.shape == (B, 1), out.shape
    # bf16 matmul inputs (f32 accumulation) vs. pure-f32 reference; sigmoid
    # outputs live in [0.5, 1], so a few-percent tolerance.
    assert jnp.allclose(out, ref, atol=3e-2, rtol=3e-2), (out, ref)

    # Multi-tile + ragged-last-block check (exercises the grid / no-pad path).
    key, kx2 = jax.random.split(key)
    B2 = 300
    x2 = jax.random.normal(kx2, (B2, DIMS[0]), jnp.float32)
    out2 = jax.block_until_ready(
        ffn_forward(x2.astype(jnp.bfloat16), kparams, tile_b=128))
    ref2 = reference_forward(x2, params)
    assert out2.shape == (B2, 1), out2.shape
    assert jnp.allclose(out2, ref2, atol=3e-2, rtol=3e-2), (out2, ref2)

    print("KERNEL_OK")
</pallas_src>

<mosaic_0001>
module attributes {stable_mosaic.version = 11 : i64} {
  func.func @_ffn_kernel(%arg0: i32, %arg1: memref<16x1600xbf16, #tpu.memory_space<vmem>>, %arg2: memref<1600x800xbf16, #tpu.memory_space<vmem>>, %arg3: memref<1x800xf32, #tpu.memory_space<vmem>>, %arg4: memref<800x200xbf16, #tpu.memory_space<vmem>>, %arg5: memref<1x200xf32, #tpu.memory_space<vmem>>, %arg6: memref<200x20xbf16, #tpu.memory_space<vmem>>, %arg7: memref<1x20xf32, #tpu.memory_space<vmem>>, %arg8: memref<1x20xf32, #tpu.memory_space<vmem>>, %arg9: memref<1x1xf32, #tpu.memory_space<vmem>>, %arg10: memref<1x16xf32, #tpu.memory_space<vmem>>) attributes {dimension_semantics = [#tpu.dimension_semantics<parallel>], iteration_bounds = array<i64: 1>, scalar_prefetch = 0 : i64, scratch_operands = 0 : i64, tpu.core_type = #tpu.core_type<tc>, window_params = [{transform_indices = @transform_0, window_bounds = array<i64: 16, 1600>}, {pipeline_mode = #tpu.pipeline_mode<synchronous>, transform_indices = @transform_1, window_bounds = array<i64: 1600, 800>}, {pipeline_mode = #tpu.pipeline_mode<synchronous>, transform_indices = @transform_2, window_bounds = array<i64: 1, 800>}, {pipeline_mode = #tpu.pipeline_mode<synchronous>, transform_indices = @transform_3, window_bounds = array<i64: 800, 200>}, {pipeline_mode = #tpu.pipeline_mode<synchronous>, transform_indices = @transform_4, window_bounds = array<i64: 1, 200>}, {pipeline_mode = #tpu.pipeline_mode<synchronous>, transform_indices = @transform_5, window_bounds = array<i64: 200, 20>}, {pipeline_mode = #tpu.pipeline_mode<synchronous>, transform_indices = @transform_6, window_bounds = array<i64: 1, 20>}, {pipeline_mode = #tpu.pipeline_mode<synchronous>, transform_indices = @transform_7, window_bounds = array<i64: 1, 20>}, {pipeline_mode = #tpu.pipeline_mode<synchronous>, transform_indices = @transform_8, window_bounds = array<i64: 1, 1>}, {transform_indices = @transform_9, window_bounds = array<i64: 1, 16>}]} {
    %c0 = arith.constant 0 : index
    %c0_0 = arith.constant 0 : index
    %0 = vector.load %arg1[%c0, %c0_0] : memref<16x1600xbf16, #tpu.memory_space<vmem>>, vector<16x1600xbf16>
    %c0_1 = arith.constant 0 : index
    %c0_2 = arith.constant 0 : index
    %1 = vector.load %arg2[%c0_1, %c0_2] : memref<1600x800xbf16, #tpu.memory_space<vmem>>, vector<1600x800xbf16>
    %cst = arith.constant dense<0.000000e+00> : vector<16x800xf32>
    %2 = tpu.matmul %0, %1, %cst {dimension_numbers = #tpu.dot_dimension_numbers<[1], [0], [0], [1], [0, 0, 1, 1], [], []>} : vector<16x1600xbf16>, vector<1600x800xbf16>, vector<16x800xf32> -> vector<16x800xf32>
    %c0_3 = arith.constant 0 : index
    %c0_4 = arith.constant 0 : index
    %3 = vector.load %arg3[%c0_3, %c0_4] : memref<1x800xf32, #tpu.memory_space<vmem>>, vector<1x800xf32>
    %4 = vector.broadcast %3 : vector<1x800xf32> to vector<16x800xf32>
    %5 = arith.addf %2, %4 : vector<16x800xf32>
    %cst_5 = arith.constant 0.000000e+00 : f32
    %6 = vector.broadcast %cst_5 : f32 to vector<16x800xf32>
    %7 = arith.maximumf %5, %6 : vector<16x800xf32>
    %8 = arith.truncf %7 : vector<16x800xf32> to vector<16x800xbf16>
    %c0_6 = arith.constant 0 : index
    %c0_7 = arith.constant 0 : index
    %9 = vector.load %arg4[%c0_6, %c0_7] : memref<800x200xbf16, #tpu.memory_space<vmem>>, vector<800x200xbf16>
    %cst_8 = arith.constant dense<0.000000e+00> : vector<16x200xf32>
    %10 = tpu.matmul %8, %9, %cst_8 {dimension_numbers = #tpu.dot_dimension_numbers<[1], [0], [0], [1], [0, 0, 1, 1], [], []>} : vector<16x800xbf16>, vector<800x200xbf16>, vector<16x200xf32> -> vector<16x200xf32>
    %c0_9 = arith.constant 0 : index
    %c0_10 = arith.constant 0 : index
    %11 = vector.load %arg5[%c0_9, %c0_10] : memref<1x200xf32, #tpu.memory_space<vmem>>, vector<1x200xf32>
    %12 = vector.broadcast %11 : vector<1x200xf32> to vector<16x200xf32>
    %13 = arith.addf %10, %12 : vector<16x200xf32>
    %cst_11 = arith.constant 0.000000e+00 : f32
    %14 = vector.broadcast %cst_11 : f32 to vector<16x200xf32>
    %15 = arith.maximumf %13, %14 : vector<16x200xf32>
    %16 = arith.truncf %15 : vector<16x200xf32> to vector<16x200xbf16>
    %c0_12 = arith.constant 0 : index
    %c0_13 = arith.constant 0 : index
    %17 = vector.load %arg6[%c0_12, %c0_13] : memref<200x20xbf16, #tpu.memory_space<vmem>>, vector<200x20xbf16>
    %cst_14 = arith.constant dense<0.000000e+00> : vector<16x20xf32>
    %18 = tpu.matmul %16, %17, %cst_14 {dimension_numbers = #tpu.dot_dimension_numbers<[1], [0], [0], [1], [0, 0, 1, 1], [], []>} : vector<16x200xbf16>, vector<200x20xbf16>, vector<16x20xf32> -> vector<16x20xf32>
    %c0_15 = arith.constant 0 : index
    %c0_16 = arith.constant 0 : index
    %19 = vector.load %arg7[%c0_15, %c0_16] : memref<1x20xf32, #tpu.memory_space<vmem>>, vector<1x20xf32>
    %20 = vector.broadcast %19 : vector<1x20xf32> to vector<16x20xf32>
    %21 = arith.addf %18, %20 : vector<16x20xf32>
    %cst_17 = arith.constant 0.000000e+00 : f32
    %22 = vector.broadcast %cst_17 : f32 to vector<16x20xf32>
    %23 = arith.maximumf %21, %22 : vector<16x20xf32>
    %c0_18 = arith.constant 0 : index
    %c0_19 = arith.constant 0 : index
    %24 = vector.load %arg8[%c0_18, %c0_19] : memref<1x20xf32, #tpu.memory_space<vmem>>, vector<1x20xf32>
    %25 = arith.truncf %24 : vector<1x20xf32> to vector<1x20xbf16>
    %26 = arith.truncf %23 : vector<16x20xf32> to vector<16x20xbf16>
    %cst_20 = arith.constant dense<0.000000e+00> : vector<1x16xf32>
    %27 = tpu.matmul %25, %26, %cst_20 {dimension_numbers = #tpu.dot_dimension_numbers<[1], [1], [0], [0], [0, 0, 1, 0], [], []>} : vector<1x20xbf16>, vector<16x20xbf16>, vector<1x16xf32> -> vector<1x16xf32>
    %c0_21 = arith.constant 0 : index
    %c0_22 = arith.constant 0 : index
    %28 = vector.load %arg9[%c0_21, %c0_22] : memref<1x1xf32, #tpu.memory_space<vmem>>, vector<1x1xf32>
    %29 = vector.broadcast %28 : vector<1x1xf32> to vector<1x16xf32>
    %30 = arith.addf %27, %29 : vector<1x16xf32>
    %cst_23 = arith.constant 0.000000e+00 : f32
    %31 = vector.broadcast %cst_23 : f32 to vector<1x16xf32>
    %32 = arith.maximumf %30, %31 : vector<1x16xf32>
    %cst_24 = arith.constant 0.000000e+00 : f32
    %33 = vector.broadcast %cst_24 : f32 to vector<1x16xf32>
    %34 = arith.subf %33, %32 : vector<1x16xf32>
    %35 = math.exp %34 : vector<1x16xf32>
    %cst_25 = arith.constant 1.000000e+00 : f32
    %36 = vector.broadcast %cst_25 : f32 to vector<1x16xf32>
    %37 = arith.addf %36, %35 : vector<1x16xf32>
    %38 = tpu.reciprocal %37 {approx = true} : vector<1x16xf32> -> vector<1x16xf32>
    %c0_26 = arith.constant 0 : index
    %c0_27 = arith.constant 0 : index
    %39 = vector.load %arg10[%c0_26, %c0_27] : memref<1x16xf32, #tpu.memory_space<vmem>>, vector<1x16xf32>
    tpu.vector_store %arg10[%c0_26, %c0_27], %38 {strides = array<i32>} : memref<1x16xf32, #tpu.memory_space<vmem>>, vector<1x16xf32>,
    return
  }
  func.func @transform_0(%arg0: i32) -> (i32, i32) {
    %c0_i32 = arith.constant 0 : i32
    %c0_i32_0 = arith.constant 0 : i32
    return %arg0, %c0_i32 : i32, i32
  }
  func.func @transform_1(%arg0: i32) -> (i32, i32) {
    %c0_i32 = arith.constant 0 : i32
    %c0_i32_0 = arith.constant 0 : i32
    %c0_i32_1 = arith.constant 0 : i32
    return %c0_i32, %c0_i32_0 : i32, i32
  }
  func.func @transform_2(%arg0: i32) -> (i32, i32) {
    %c0_i32 = arith.constant 0 : i32
    %c0_i32_0 = arith.constant 0 : i32
    %c0_i32_1 = arith.constant 0 : i32
    return %c0_i32, %c0_i32_0 : i32, i32
  }
  func.func @transform_3(%arg0: i32) -> (i32, i32) {
    %c0_i32 = arith.constant 0 : i32
    %c0_i32_0 = arith.constant 0 : i32
    %c0_i32_1 = arith.constant 0 : i32
    return %c0_i32, %c0_i32_0 : i32, i32
  }
  func.func @transform_4(%arg0: i32) -> (i32, i32) {
    %c0_i32 = arith.constant 0 : i32
    %c0_i32_0 = arith.constant 0 : i32
    %c0_i32_1 = arith.constant 0 : i32
    return %c0_i32, %c0_i32_0 : i32, i32
  }
  func.func @transform_5(%arg0: i32) -> (i32, i32) {
    %c0_i32 = arith.constant 0 : i32
    %c0_i32_0 = arith.constant 0 : i32
    %c0_i32_1 = arith.constant 0 : i32
    return %c0_i32, %c0_i32_0 : i32, i32
  }
  func.func @transform_6(%arg0: i32) -> (i32, i32) {
    %c0_i32 = arith.constant 0 : i32
    %c0_i32_0 = arith.constant 0 : i32
    %c0_i32_1 = arith.constant 0 : i32
    return %c0_i32, %c0_i32_0 : i32, i32
  }
  func.func @transform_7(%arg0: i32) -> (i32, i32) {
    %c0_i32 = arith.constant 0 : i32
    %c0_i32_0 = arith.constant 0 : i32
    %c0_i32_1 = arith.constant 0 : i32
    return %c0_i32, %c0_i32_0 : i32, i32
  }
  func.func @transform_8(%arg0: i32) -> (i32, i32) {
    %c0_i32 = arith.constant 0 : i32
    %c0_i32_0 = arith.constant 0 : i32
    %c0_i32_1 = arith.constant 0 : i32
    return %c0_i32, %c0_i32_0 : i32, i32
  }
  func.func @transform_9(%arg0: i32) -> (i32, i32) {
    %c0_i32 = arith.constant 0 : i32
    %c0_i32_0 = arith.constant 0 : i32
    return %c0_i32, %arg0 : i32, i32
  }
}

module attributes {stable_mosaic.version = 11 : i64} {
  func.func @_ffn_kernel(%arg0: i32, %arg1: memref<16x1600xbf16, #tpu.memory_space<vmem>>, %arg2: memref<1600x800xbf16, #tpu.memory_space<vmem>>, %arg3: memref<1x800xf32, #tpu.memory_space<vmem>>, %arg4: memref<800x200xbf16, #tpu.memory_space<vmem>>, %arg5: memref<1x200xf32, #tpu.memory_space<vmem>>, %arg6: memref<200x20xbf16, #tpu.memory_space<vmem>>, %arg7: memref<1x20xf32, #tpu.memory_space<vmem>>, %arg8: memref<1x20xf32, #tpu.memory_space<vmem>>, %arg9: memref<1x1xf32, #tpu.memory_space<vmem>>, %arg10: memref<1x16xf32, #tpu.memory_space<vmem>>) attributes {dimension_semantics = [#tpu.dimension_semantics<parallel>], iteration_bounds = array<i64: 1>, scalar_prefetch = 0 : i64, scratch_operands = 0 : i64, tpu.core_type = #tpu.core_type<tc>, window_params = [{transform_indices = @transform_0, window_bounds = array<i64: 16, 1600>}, {pipeline_mode = #tpu.pipeline_mode<synchronous>, transform_indices = @transform_1, window_bounds = array<i64: 1600, 800>}, {pipeline_mode = #tpu.pipeline_mode<synchronous>, transform_indices = @transform_2, window_bounds = array<i64: 1, 800>}, {pipeline_mode = #tpu.pipeline_mode<synchronous>, transform_indices = @transform_3, window_bounds = array<i64: 800, 200>}, {pipeline_mode = #tpu.pipeline_mode<synchronous>, transform_indices = @transform_4, window_bounds = array<i64: 1, 200>}, {pipeline_mode = #tpu.pipeline_mode<synchronous>, transform_indices = @transform_5, window_bounds = array<i64: 200, 20>}, {pipeline_mode = #tpu.pipeline_mode<synchronous>, transform_indices = @transform_6, window_bounds = array<i64: 1, 20>}, {pipeline_mode = #tpu.pipeline_mode<synchronous>, transform_indices = @transform_7, window_bounds = array<i64: 1, 20>}, {pipeline_mode = #tpu.pipeline_mode<synchronous>, transform_indices = @transform_8, window_bounds = array<i64: 1, 1>}, {transform_indices = @transform_9, window_bounds = array<i64: 1, 16>}]} {
    %c0 = arith.constant 0 : index
    %c0_0 = arith.constant 0 : index
    %0 = vector.load %arg1[%c0, %c0_0] : memref<16x1600xbf16, #tpu.memory_space<vmem>>, vector<16x1600xbf16>
    %c0_1 = arith.constant 0 : index
    %c0_2 = arith.constant 0 : index
    %1 = vector.load %arg2[%c0_1, %c0_2] : memref<1600x800xbf16, #tpu.memory_space<vmem>>, vector<1600x800xbf16>
    %cst = arith.constant dense<0.000000e+00> : vector<16x800xf32>
    %2 = tpu.matmul %0, %1, %cst {dimension_numbers = #tpu.dot_dimension_numbers<[1], [0], [0], [1], [0, 0, 1, 1], [], []>} : vector<16x1600xbf16>, vector<1600x800xbf16>, vector<16x800xf32> -> vector<16x800xf32>
    %c0_3 = arith.constant 0 : index
    %c0_4 = arith.constant 0 : index
    %3 = vector.load %arg3[%c0_3, %c0_4] : memref<1x800xf32, #tpu.memory_space<vmem>>, vector<1x800xf32>
    %4 = vector.broadcast %3 : vector<1x800xf32> to vector<16x800xf32>
    %5 = arith.addf %2, %4 : vector<16x800xf32>
    %cst_5 = arith.constant 0.000000e+00 : f32
    %6 = vector.broadcast %cst_5 : f32 to vector<16x800xf32>
    %7 = arith.maximumf %5, %6 : vector<16x800xf32>
    %8 = arith.truncf %7 : vector<16x800xf32> to vector<16x800xbf16>
    %c0_6 = arith.constant 0 : index
    %c0_7 = arith.constant 0 : index
    %9 = vector.load %arg4[%c0_6, %c0_7] : memref<800x200xbf16, #tpu.memory_space<vmem>>, vector<800x200xbf16>
    %cst_8 = arith.constant dense<0.000000e+00> : vector<16x200xf32>
    %10 = tpu.matmul %8, %9, %cst_8 {dimension_numbers = #tpu.dot_dimension_numbers<[1], [0], [0], [1], [0, 0, 1, 1], [], []>} : vector<16x800xbf16>, vector<800x200xbf16>, vector<16x200xf32> -> vector<16x200xf32>
    %c0_9 = arith.constant 0 : index
    %c0_10 = arith.constant 0 : index
    %11 = vector.load %arg5[%c0_9, %c0_10] : memref<1x200xf32, #tpu.memory_space<vmem>>, vector<1x200xf32>
    %12 = vector.broadcast %11 : vector<1x200xf32> to vector<16x200xf32>
    %13 = arith.addf %10, %12 : vector<16x200xf32>
    %cst_11 = arith.constant 0.000000e+00 : f32
    %14 = vector.broadcast %cst_11 : f32 to vector<16x200xf32>
    %15 = arith.maximumf %13, %14 : vector<16x200xf32>
    %16 = arith.truncf %15 : vector<16x200xf32> to vector<16x200xbf16>
    %c0_12 = arith.constant 0 : index
    %c0_13 = arith.constant 0 : index
    %17 = vector.load %arg6[%c0_12, %c0_13] : memref<200x20xbf16, #tpu.memory_space<vmem>>, vector<200x20xbf16>
    %cst_14 = arith.constant dense<0.000000e+00> : vector<16x20xf32>
    %18 = tpu.matmul %16, %17, %cst_14 {dimension_numbers = #tpu.dot_dimension_numbers<[1], [0], [0], [1], [0, 0, 1, 1], [], []>} : vector<16x200xbf16>, vector<200x20xbf16>, vector<16x20xf32> -> vector<16x20xf32>
    %c0_15 = arith.constant 0 : index
    %c0_16 = arith.constant 0 : index
    %19 = vector.load %arg7[%c0_15, %c0_16] : memref<1x20xf32, #tpu.memory_space<vmem>>, vector<1x20xf32>
    %20 = vector.broadcast %19 : vector<1x20xf32> to vector<16x20xf32>
    %21 = arith.addf %18, %20 : vector<16x20xf32>
    %cst_17 = arith.constant 0.000000e+00 : f32
    %22 = vector.broadcast %cst_17 : f32 to vector<16x20xf32>
    %23 = arith.maximumf %21, %22 : vector<16x20xf32>
    %c0_18 = arith.constant 0 : index
    %c0_19 = arith.constant 0 : index
    %24 = vector.load %arg8[%c0_18, %c0_19] : memref<1x20xf32, #tpu.memory_space<vmem>>, vector<1x20xf32>
    %25 = arith.truncf %24 : vector<1x20xf32> to vector<1x20xbf16>
    %26 = arith.truncf %23 : vector<16x20xf32> to vector<16x20xbf16>
    %cst_20 = arith.constant dense<0.000000e+00> : vector<1x16xf32>
    %27 = tpu.matmul %25, %26, %cst_20 {dimension_numbers = #tpu.dot_dimension_numbers<[1], [1], [0], [0], [0, 0, 1, 0], [], []>} : vector<1x20xbf16>, vector<16x20xbf16>, vector<1x16xf32> -> vector<1x16xf32>
    %c0_21 = arith.constant 0 : index
    %c0_22 = arith.constant 0 : index
    %28 = vector.load %arg9[%c0_21, %c0_22] : memref<1x1xf32, #tpu.memory_space<vmem>>, vector<1x1xf32>
    %29 = vector.broadcast %28 : vector<1x1xf32> to vector<1x16xf32>
    %30 = arith.addf %27, %29 : vector<1x16xf32>
    %cst_23 = arith.constant 0.000000e+00 : f32
    %31 = vector.broadcast %cst_23 : f32 to vector<1x16xf32>
    %32 = arith.maximumf %30, %31 : vector<1x16xf32>
    %cst_24 = arith.constant 0.000000e+00 : f32
    %33 = vector.broadcast %cst_24 : f32 to vector<1x16xf32>
    %34 = arith.subf %33, %32 : vector<1x16xf32>
    %35 = math.exp %34 : vector<1x16xf32>
    %cst_25 = arith.constant 1.000000e+00 : f32
    %36 = vector.broadcast %cst_25 : f32 to vector<1x16xf32>
    %37 = arith.addf %36, %35 : vector<1x16xf32>
    %38 = tpu.reciprocal %37 {approx = true} : vector<1x16xf32> -> vector<1x16xf32>
    %c0_26 = arith.constant 0 : index
    %c0_27 = arith.constant 0 : index
    %39 = vector.load %arg10[%c0_26, %c0_27] : memref<1x16xf32, #tpu.memory_space<vmem>>, vector<1x16xf32>
    tpu.vector_store %arg10[%c0_26, %c0_27], %38 {strides = array<i32>} : memref<1x16xf32, #tpu.memory_space<vmem>>, vector<1x16xf32>,
    return
  }
  func.func @transform_0(%arg0: i32) -> (i32, i32) {
    %c0_i32 = arith.constant 0 : i32
    %c0_i32_0 = arith.constant 0 : i32
    return %arg0, %c0_i32 : i32, i32
  }
  func.func @transform_1(%arg0: i32) -> (i32, i32) {
    %c0_i32 = arith.constant 0 : i32
    %c0_i32_0 = arith.constant 0 : i32
    %c0_i32_1 = arith.constant 0 : i32
    return %c0_i32, %c0_i32_0 : i32, i32
  }
  func.func @transform_2(%arg0: i32) -> (i32, i32) {
    %c0_i32 = arith.constant 0 : i32
    %c0_i32_0 = arith.constant 0 : i32
    %c0_i32_1 = arith.constant 0 : i32
    return %c0_i32, %c0_i32_0 : i32, i32
  }
  func.func @transform_3(%arg0: i32) -> (i32, i32) {
    %c0_i32 = arith.constant 0 : i32
    %c0_i32_0 = arith.constant 0 : i32
    %c0_i32_1 = arith.constant 0 : i32
    return %c0_i32, %c0_i32_0 : i32, i32
  }
  func.func @transform_4(%arg0: i32) -> (i32, i32) {
    %c0_i32 = arith.constant 0 : i32
    %c0_i32_0 = arith.constant 0 : i32
    %c0_i32_1 = arith.constant 0 : i32
    return %c0_i32, %c0_i32_0 : i32, i32
  }
  func.func @transform_5(%arg0: i32) -> (i32, i32) {
    %c0_i32 = arith.constant 0 : i32
    %c0_i32_0 = arith.constant 0 : i32
    %c0_i32_1 = arith.constant 0 : i32
    return %c0_i32, %c0_i32_0 : i32, i32
  }
  func.func @transform_6(%arg0: i32) -> (i32, i32) {
    %c0_i32 = arith.constant 0 : i32
    %c0_i32_0 = arith.constant 0 : i32
    %c0_i32_1 = arith.constant 0 : i32
    return %c0_i32, %c0_i32_0 : i32, i32
  }
  func.func @transform_7(%arg0: i32) -> (i32, i32) {
    %c0_i32 = arith.constant 0 : i32
    %c0_i32_0 = arith.constant 0 : i32
    %c0_i32_1 = arith.constant 0 : i32
    return %c0_i32, %c0_i32_0 : i32, i32
  }
  func.func @transform_8(%arg0: i32) -> (i32, i32) {
    %c0_i32 = arith.constant 0 : i32
    %c0_i32_0 = arith.constant 0 : i32
    %c0_i32_1 = arith.constant 0 : i32
    return %c0_i32, %c0_i32_0 : i32, i32
  }
  func.func @transform_9(%arg0: i32) -> (i32, i32) {
    %c0_i32 = arith.constant 0 : i32
    %c0_i32_0 = arith.constant 0 : i32
    return %c0_i32, %arg0 : i32, i32
  }
}

</mosaic_0001>

<llo_original>
// kernel: tpu_custom_call.1
$region0: #{tpu_custom_call.1}
  #allocation0 [shape = 'u32[]', space=smem, size = 0x4, offset = 0x4, fixed_abs, tag = 'smem constant byte address 0x4 - core index']
  #allocation1 [shape = 'u32[144,128]{1,0:T(1,128)}', space=vmem, size = 0x12000, scoped, tag = 'internal scratch']
  #allocation2 [shape = 'f32[1,1]{1,0:T(1,128)S(1)}', space=vmem, size = 0x200, scoped, tag = 'scoped memory for tpu_custom_call.1']
  %s0 = inlined_call_operand.vmem [shape: bf16[16,1600], index: 0, kind: input, shape index: {}]
  %s1 = inlined_call_operand.vmem [shape: bf16[1600,800], index: 1, kind: input, shape index: {}]
  %s2 = inlined_call_operand.vmem [shape: f32[1,800], index: 2, kind: input, shape index: {}]
  %s3 = inlined_call_operand.vmem [shape: bf16[800,200], index: 3, kind: input, shape index: {}]
  %s4 = inlined_call_operand.vmem [shape: f32[1,200], index: 4, kind: input, shape index: {}]
  %s5 = inlined_call_operand.vmem [shape: bf16[200,20], index: 5, kind: input, shape index: {}]
  %s6 = inlined_call_operand.vmem [shape: f32[1,20], index: 6, kind: input, shape index: {}]
  %s7 = inlined_call_operand.vmem [shape: f32[1,20], index: 7, kind: input, shape index: {}]
  %s8 = inlined_call_operand.<no memory space> [shape: f32[1,1], index: 8, kind: input, shape index: {}]
  %s9 = inlined_call_operand.hbm [shape: f32[1,16], index: 9, kind: output, shape index: {}]
  %s10 = sld [smem:[#allocation0]]
  $region46: #{tpu_custom_call.1} parent=0
    _
  %s12 = ssub.s32 1, %s10
  %s13 = scalar_select 0, %s12, %s10
  %v14 = vstv %s8
  %15 = vst [vmem:[#allocation2] sm:$0x1] %v14
  $region1: #{tpu_custom_call.1} parent=0
    #allocation3 [shape = 'u8[512]{0}', space=vmem, size = 0x400, scoped, tag = 'output window, operand 0, single buffered']
    #allocation4 [shape = 's32[1]{0}', space=sflag, size = 0x4, scoped, tag = 'scoped memory for tpu_custom_call.1']
    %16 = vsyncpa [#allocation4], 0
    // Predicated region
    $region2: #{tpu_custom_call.1} parent=1 // pred_check
      _
    $region3: #{tpu_custom_call.1} parent=1 // pred_check_branch
      %18 = sbr.rel (0) target = $region5
    $region4: #{tpu_custom_call.1} parent=1 // pred_region
      _
    $region5: #{tpu_custom_call.1} parent=1 // pred_fallthru
      _
    // Predicated region
    $region6: #{tpu_custom_call.1} parent=1 // pred_check
      _
    $region7: #{tpu_custom_call.1} parent=1 // pred_check_branch
      %20 = sbr.rel (0) target = $region9
    $region8: #{tpu_custom_call.1} parent=1 // pred_region
      _
    $region9: #{tpu_custom_call.1} parent=1 // pred_fallthru
      _
    // Predicated region
    $region10: #{tpu_custom_call.1} parent=1 // pred_check
      _
    $region11: #{tpu_custom_call.1} parent=1 // pred_check_branch
      %22 = sbr.rel (0) target = $region13
    $region12: #{tpu_custom_call.1} parent=1 // pred_region
      _
    $region13: #{tpu_custom_call.1} parent=1 // pred_fallthru
      _
    // Predicated region
    $region14: #{tpu_custom_call.1} parent=1 // pred_check
      _
    $region15: #{tpu_custom_call.1} parent=1 // pred_check_branch
      %24 = sbr.rel (0) target = $region17
    $region16: #{tpu_custom_call.1} parent=1 // pred_region
      _
    $region17: #{tpu_custom_call.1} parent=1 // pred_fallthru
      _
    // Predicated region
    $region18: #{tpu_custom_call.1} parent=1 // pred_check
      _
    $region19: #{tpu_custom_call.1} parent=1 // pred_check_branch
      %26 = sbr.rel (0) target = $region21
    $region20: #{tpu_custom_call.1} parent=1 // pred_region
      _
    $region21: #{tpu_custom_call.1} parent=1 // pred_fallthru
      _
    // Predicated region
    $region22: #{tpu_custom_call.1} parent=1 // pred_check
      _
    $region23: #{tpu_custom_call.1} parent=1 // pred_check_branch
      %28 = sbr.rel (0) target = $region25
    $region24: #{tpu_custom_call.1} parent=1 // pred_region
      _
    $region25: #{tpu_custom_call.1} parent=1 // pred_fallthru
      _
    // Predicated region
    $region26: #{tpu_custom_call.1} parent=1 // pred_check
      _
    $region27: #{tpu_custom_call.1} parent=1 // pred_check_branch
      %30 = sbr.rel (0) target = $region29
    $region28: #{tpu_custom_call.1} parent=1 // pred_region
      _
    $region29: #{tpu_custom_call.1} parent=1 // pred_fallthru
      _
    // Predicated region
    $region30: #{tpu_custom_call.1} parent=1 // pred_check
      _
    $region31: #{tpu_custom_call.1} parent=1 // pred_check_branch
      %32 = sbr.rel (0) target = $region33
    $region32: #{tpu_custom_call.1} parent=1 // pred_region
      _
    $region33: #{tpu_custom_call.1} parent=1 // pred_fallthru
      _
    // Predicated region
    $region34: #{tpu_custom_call.1} parent=1 // pred_check
      _
    $region35: #{tpu_custom_call.1} parent=1 // pred_check_branch
      %34 = sbr.rel (0) target = $region37
    $region36: #{tpu_custom_call.1} parent=1 // pred_region
      _
    $region37: #{tpu_custom_call.1} parent=1 // pred_fallthru
      _
    %v36 = vld [vmem:[%s0] sm:$0xff]
    %v37 = vld [vmem:[%s0 + $0x8] sm:$0xff]
    %v38 = vld [vmem:[%s0 + $0x10] sm:$0xff]
    %v39 = vld [vmem:[%s0 + $0x18] sm:$0xff]
    %v40 = vld [vmem:[%s0 + $0x20] sm:$0xff]
    %v41 = vld [vmem:[%s0 + $0x28] sm:$0xff]
    %v42 = vld [vmem:[%s0 + $0x30] sm:$0xf]
    %v43 = vld [vmem:[%s0 + $0x34] sm:$0xff]
    %v44 = vld [vmem:[%s0 + $0x3c] sm:$0xff]
    %v45 = vld [vmem:[%s0 + $0x44] sm:$0xff]
    %v46 = vld [vmem:[%s0 + $0x4c] sm:$0xff]
    %v47 = vld [vmem:[%s0 + $0x54] sm:$0xff]
    %v48 = vld [vmem:[%s0 + $0x5c] sm:$0xff]
    %v49 = vld [vmem:[%s0 + $0x64] sm:$0xf]
    %v50 = vld [vmem:[%s1] sm:$0xff]
    %v51 = vld [vmem:[%s1 + $0x8] sm:$0xff]
    %v52 = vld [vmem:[%s1 + $0x10] sm:$0xff]
    %v53 = vld [vmem:[%s1 + $0x18] sm:$0xf]
    %v54 = vld [vmem:[%s1 + $0x1c] sm:$0xff]
    %v55 = vld [vmem:[%s1 + $0x24] sm:$0xff]
    %v56 = vld [vmem:[%s1 + $0x2c] sm:$0xff]
    %v57 = vld [vmem:[%s1 + $0x34] sm:$0xf]
    %v58 = vld [vmem:[%s1 + $0x38] sm:$0xff]
    %v59 = vld [vmem:[%s1 + $0x40] sm:$0xff]
    %v60 = vld [vmem:[%s1 + $0x48] sm:$0xff]
    %v61 = vld [vmem:[%s1 + $0x50] sm:$0xf]
    %v62 = vld [vmem:[%s1 + $0x54] sm:$0xff]
    %v63 = vld [vmem:[%s1 + $0x5c] sm:$0xff]
    %v64 = vld [vmem:[%s1 + $0x64] sm:$0xff]
    %v65 = vld [vmem:[%s1 + $0x6c] sm:$0xf]
    %v66 = vld [vmem:[%s1 + $0x70] sm:$0xff]
    %v67 = vld [vmem:[%s1 + $0x78] sm:$0xff]
    %v68 = vld [vmem:[%s1 + $0x80] sm:$0xff]
    %v69 = vld [vmem:[%s1 + $0x88] sm:$0xf]
    %v70 = vld [vmem:[%s1 + $0x8c] sm:$0xff]
    %v71 = vld [vmem:[%s1 + $0x94] sm:$0xff]
    %v72 = vld [vmem:[%s1 + $0x9c] sm:$0xff]
    %v73 = vld [vmem:[%s1 + $0xa4] sm:$0xf]
    %v74 = vld [vmem:[%s1 + $0xa8] sm:$0xff]
    %v75 = vld [vmem:[%s1 + $0xb0] sm:$0xff]
    %v76 = vld [vmem:[%s1 + $0xb8] sm:$0xff]
    %v77 = vld [vmem:[%s1 + $0xc0] sm:$0xf]
    %v78 = vld [vmem:[%s1 + $0xc4] sm:$0xff]
    %v79 = vld [vmem:[%s1 + $0xcc] sm:$0xff]
    %v80 = vld [vmem:[%s1 + $0xd4] sm:$0xff]
    %v81 = vld [vmem:[%s1 + $0xdc] sm:$0xf]
    %v82 = vld [vmem:[%s1 + $0xe0] sm:$0xff]
    %v83 = vld [vmem:[%s1 + $0xe8] sm:$0xff]
    %v84 = vld [vmem:[%s1 + $0xf0] sm:$0xff]
    %v85 = vld [vmem:[%s1 + $0xf8] sm:$0xf]
    %v86 = vld [vmem:[%s1 + $0xfc] sm:$0xff]
    %v87 = vld [vmem:[%s1 + $0x104] sm:$0xff]
    %v88 = vld [vmem:[%s1 + $0x10c] sm:$0xff]
    %v89 = vld [vmem:[%s1 + $0x114] sm:$0xf]
    %v90 = vld [vmem:[%s1 + $0x118] sm:$0xff]
    %v91 = vld [vmem:[%s1 + $0x120] sm:$0xff]
    %v92 = vld [vmem:[%s1 + $0x128] sm:$0xff]
    %v93 = vld [vmem:[%s1 + $0x130] sm:$0xf]
    %v94 = vld [vmem:[%s1 + $0x134] sm:$0xff]
    %v95 = vld [vmem:[%s1 + $0x13c] sm:$0xff]
    %v96 = vld [vmem:[%s1 + $0x144] sm:$0xff]
    %v97 = vld [vmem:[%s1 + $0x14c] sm:$0xf]
    %v98 = vld [vmem:[%s1 + $0x150] sm:$0xff]
    %v99 = vld [vmem:[%s1 + $0x158] sm:$0xff]
    %v100 = vld [vmem:[%s1 + $0x160] sm:$0xff]
    %v101 = vld [vmem:[%s1 + $0x168] sm:$0xf]
    %v102 = vld [vmem:[%s1 + $0x16c] sm:$0xff]
    %v103 = vld [vmem:[%s1 + $0x174] sm:$0xff]
    %v104 = vld [vmem:[%s1 + $0x17c] sm:$0xff]
    %v105 = vld [vmem:[%s1 + $0x184] sm:$0xf]
    %v106 = vld [vmem:[%s1 + $0x188] sm:$0xff]
    %v107 = vld [vmem:[%s1 + $0x190] sm:$0xff]
    %v108 = vld [vmem:[%s1 + $0x198] sm:$0xff]
    %v109 = vld [vmem:[%s1 + $0x1a0] sm:$0xf]
    %v110 = vld [vmem:[%s1 + $0x1a4] sm:$0xff]
    %v111 = vld [vmem:[%s1 + $0x1ac] sm:$0xff]
    %v112 = vld [vmem:[%s1 + $0x1b4] sm:$0xff]
    %v113 = vld [vmem:[%s1 + $0x1bc] sm:$0xf]
    %v114 = vld [vmem:[%s1 + $0x1c0] sm:$0xff]
    %v115 = vld [vmem:[%s1 + $0x1c8] sm:$0xff]
    %v116 = vld [vmem:[%s1 + $0x1d0] sm:$0xff]
    %v117 = vld [vmem:[%s1 + $0x1d8] sm:$0xf]
    %v118 = vld [vmem:[%s1 + $0x1dc] sm:$0xff]
    %v119 = vld [vmem:[%s1 + $0x1e4] sm:$0xff]
    %v120 = vld [vmem:[%s1 + $0x1ec] sm:$0xff]
    %v121 = vld [vmem:[%s1 + $0x1f4] sm:$0xf]
    %v122 = vld [vmem:[%s1 + $0x1f8] sm:$0xff]
    %v123 = vld [vmem:[%s1 + $0x200] sm:$0xff]
    %v124 = vld [vmem:[%s1 + $0x208] sm:$0xff]
    %v125 = vld [vmem:[%s1 + $0x210] sm:$0xf]
    %v126 = vld [vmem:[%s1 + $0x214] sm:$0xff]
    %v127 = vld [vmem:[%s1 + $0x21c] sm:$0xff]
    %v128 = vld [vmem:[%s1 + $0x224] sm:$0xff]
    %v129 = vld [vmem:[%s1 + $0x22c] sm:$0xf]
    %v130 = vld [vmem:[%s1 + $0x230] sm:$0xff]
    %v131 = vld [vmem:[%s1 + $0x238] sm:$0xff]
    %v132 = vld [vmem:[%s1 + $0x240] sm:$0xff]
    %v133 = vld [vmem:[%s1 + $0x248] sm:$0xf]
    %v134 = vld [vmem:[%s1 + $0x24c] sm:$0xff]
    %v135 = vld [vmem:[%s1 + $0x254] sm:$0xff]
    %v136 = vld [vmem:[%s1 + $0x25c] sm:$0xff]
    %v137 = vld [vmem:[%s1 + $0x264] sm:$0xf]
    %v138 = vld [vmem:[%s1 + $0x268] sm:$0xff]
    %v139 = vld [vmem:[%s1 + $0x270] sm:$0xff]
    %v140 = vld [vmem:[%s1 + $0x278] sm:$0xff]
    %v141 = vld [vmem:[%s1 + $0x280] sm:$0xf]
    %v142 = vld [vmem:[%s1 + $0x284] sm:$0xff]
    %v143 = vld [vmem:[%s1 + $0x28c] sm:$0xff]
    %v144 = vld [vmem:[%s1 + $0x294] sm:$0xff]
    %v145 = vld [vmem:[%s1 + $0x29c] sm:$0xf]
    %v146 = vld [vmem:[%s1 + $0x2a0] sm:$0xff]
    %v147 = vld [vmem:[%s1 + $0x2a8] sm:$0xff]
    %v148 = vld [vmem:[%s1 + $0x2b0] sm:$0xff]
    %v149 = vld [vmem:[%s1 + $0x2b8] sm:$0xf]
    %v150 = vld [vmem:[%s1 + $0x2bc] sm:$0xff]
    %v151 = vld [vmem:[%s1 + $0x2c4] sm:$0xff]
    %v152 = vld [vmem:[%s1 + $0x2cc] sm:$0xff]
    %v153 = vld [vmem:[%s1 + $0x2d4] sm:$0xf]
    %v154 = vld [vmem:[%s1 + $0x2d8] sm:$0xff]
    %v155 = vld [vmem:[%s1 + $0x2e0] sm:$0xff]
    %v156 = vld [vmem:[%s1 + $0x2e8] sm:$0xff]
    %v157 = vld [vmem:[%s1 + $0x2f0] sm:$0xf]
    %v158 = vld [vmem:[%s1 + $0x2f4] sm:$0xff]
    %v159 = vld [vmem:[%s1 + $0x2fc] sm:$0xff]
    %v160 = vld [vmem:[%s1 + $0x304] sm:$0xff]
    %v161 = vld [vmem:[%s1 + $0x30c] sm:$0xf]
    %v162 = vld [vmem:[%s1 + $0x310] sm:$0xff]
    %v163 = vld [vmem:[%s1 + $0x318] sm:$0xff]
    %v164 = vld [vmem:[%s1 + $0x320] sm:$0xff]
    %v165 = vld [vmem:[%s1 + $0x328] sm:$0xf]
    %v166 = vld [vmem:[%s1 + $0x32c] sm:$0xff]
    %v167 = vld [vmem:[%s1 + $0x334] sm:$0xff]
    %v168 = vld [vmem:[%s1 + $0x33c] sm:$0xff]
    %v169 = vld [vmem:[%s1 + $0x344] sm:$0xf]
    %v170 = vld [vmem:[%s1 + $0x348] sm:$0xff]
    %v171 = vld [vmem:[%s1 + $0x350] sm:$0xff]
    %v172 = vld [vmem:[%s1 + $0x358] sm:$0xff]
    %v173 = vld [vmem:[%s1 + $0x360] sm:$0xf]
    %v174 = vld [vmem:[%s1 + $0x364] sm:$0xff]
    %v175 = vld [vmem:[%s1 + $0x36c] sm:$0xff]
    %v176 = vld [vmem:[%s1 + $0x374] sm:$0xff]
    %v177 = vld [vmem:[%s1 + $0x37c] sm:$0xf]
    %v178 = vld [vmem:[%s1 + $0x380] sm:$0xff]
    %v179 = vld [vmem:[%s1 + $0x388] sm:$0xff]
    %v180 = vld [vmem:[%s1 + $0x390] sm:$0xff]
    %v181 = vld [vmem:[%s1 + $0x398] sm:$0xf]
    %v182 = vld [vmem:[%s1 + $0x39c] sm:$0xff]
    %v183 = vld [vmem:[%s1 + $0x3a4] sm:$0xff]
    %v184 = vld [vmem:[%s1 + $0x3ac] sm:$0xff]
    %v185 = vld [vmem:[%s1 + $0x3b4] sm:$0xf]
    %v186 = vld [vmem:[%s1 + $0x3b8] sm:$0xff]
    %v187 = vld [vmem:[%s1 + $0x3c0] sm:$0xff]
    %v188 = vld [vmem:[%s1 + $0x3c8] sm:$0xff]
    %v189 = vld [vmem:[%s1 + $0x3d0] sm:$0xf]
    %v190 = vld [vmem:[%s1 + $0x3d4] sm:$0xff]
    %v191 = vld [vmem:[%s1 + $0x3dc] sm:$0xff]
    %v192 = vld [vmem:[%s1 + $0x3e4] sm:$0xff]
    %v193 = vld [vmem:[%s1 + $0x3ec] sm:$0xf]
    %v194 = vld [vmem:[%s1 + $0x3f0] sm:$0xff]
    %v195 = vld [vmem:[%s1 + $0x3f8] sm:$0xff]
    %v196 = vld [vmem:[%s1 + $0x400] sm:$0xff]
    %v197 = vld [vmem:[%s1 + $0x408] sm:$0xf]
    %v198 = vld [vmem:[%s1 + $0x40c] sm:$0xff]
    %v199 = vld [vmem:[%s1 + $0x414] sm:$0xff]
    %v200 = vld [vmem:[%s1 + $0x41c] sm:$0xff]
    %v201 = vld [vmem:[%s1 + $0x424] sm:$0xf]
    %v202 = vld [vmem:[%s1 + $0x428] sm:$0xff]
    %v203 = vld [vmem:[%s1 + $0x430] sm:$0xff]
    %v204 = vld [vmem:[%s1 + $0x438] sm:$0xff]
    %v205 = vld [vmem:[%s1 + $0x440] sm:$0xf]
    %v206 = vld [vmem:[%s1 + $0x444] sm:$0xff]
    %v207 = vld [vmem:[%s1 + $0x44c] sm:$0xff]
    %v208 = vld [vmem:[%s1 + $0x454] sm:$0xff]
    %v209 = vld [vmem:[%s1 + $0x45c] sm:$0xf]
    %v210 = vld [vmem:[%s1 + $0x460] sm:$0xff]
    %v211 = vld [vmem:[%s1 + $0x468] sm:$0xff]
    %v212 = vld [vmem:[%s1 + $0x470] sm:$0xff]
    %v213 = vld [vmem:[%s1 + $0x478] sm:$0xf]
    %v214 = vld [vmem:[%s1 + $0x47c] sm:$0xff]
    %v215 = vld [vmem:[%s1 + $0x484] sm:$0xff]
    %v216 = vld [vmem:[%s1 + $0x48c] sm:$0xff]
    %v217 = vld [vmem:[%s1 + $0x494] sm:$0xf]
    %v218 = vld [vmem:[%s1 + $0x498] sm:$0xff]
    %v219 = vld [vmem:[%s1 + $0x4a0] sm:$0xff]
    %v220 = vld [vmem:[%s1 + $0x4a8] sm:$0xff]
    %v221 = vld [vmem:[%s1 + $0x4b0] sm:$0xf]
    %v222 = vld [vmem:[%s1 + $0x4b4] sm:$0xff]
    %v223 = vld [vmem:[%s1 + $0x4bc] sm:$0xff]
    %v224 = vld [vmem:[%s1 + $0x4c4] sm:$0xff]
    %v225 = vld [vmem:[%s1 + $0x4cc] sm:$0xf]
    %v226 = vld [vmem:[%s1 + $0x4d0] sm:$0xff]
    %v227 = vld [vmem:[%s1 + $0x4d8] sm:$0xff]
    %v228 = vld [vmem:[%s1 + $0x4e0] sm:$0xff]
    %v229 = vld [vmem:[%s1 + $0x4e8] sm:$0xf]
    %v230 = vld [vmem:[%s1 + $0x4ec] sm:$0xff]
    %v231 = vld [vmem:[%s1 + $0x4f4] sm:$0xff]
    %v232 = vld [vmem:[%s1 + $0x4fc] sm:$0xff]
    %v233 = vld [vmem:[%s1 + $0x504] sm:$0xf]
    %v234 = vld [vmem:[%s1 + $0x508] sm:$0xff]
    %v235 = vld [vmem:[%s1 + $0x510] sm:$0xff]
    %v236 = vld [vmem:[%s1 + $0x518] sm:$0xff]
    %v237 = vld [vmem:[%s1 + $0x520] sm:$0xf]
    %v238 = vld [vmem:[%s1 + $0x524] sm:$0xff]
    %v239 = vld [vmem:[%s1 + $0x52c] sm:$0xff]
    %v240 = vld [vmem:[%s1 + $0x534] sm:$0xff]
    %v241 = vld [vmem:[%s1 + $0x53c] sm:$0xf]
    %v242 = vld [vmem:[%s1 + $0x540] sm:$0xff]
    %v243 = vld [vmem:[%s1 + $0x548] sm:$0xff]
    %v244 = vld [vmem:[%s1 + $0x550] sm:$0xff]
    %v245 = vld [vmem:[%s1 + $0x558] sm:$0xf]
    %v246 = vld [vmem:[%s1 + $0x55c] sm:$0xff]
    %v247 = vld [vmem:[%s1 + $0x564] sm:$0xff]
    %v248 = vld [vmem:[%s1 + $0x56c] sm:$0xff]
    %v249 = vld [vmem:[%s1 + $0x574] sm:$0xf]
    %v250 = vld [vmem:[%s1 + $0x578] sm:$0xff]
    %v251 = vld [vmem:[%s1 + $0x580] sm:$0xff]
    %v252 = vld [vmem:[%s1 + $0x588] sm:$0xff]
    %v253 = vld [vmem:[%s1 + $0x590] sm:$0xf]
    %v254 = vld [vmem:[%s1 + $0x594] sm:$0xff]
    %v255 = vld [vmem:[%s1 + $0x59c] sm:$0xff]
    %v256 = vld [vmem:[%s1 + $0x5a4] sm:$0xff]
    %v257 = vld [vmem:[%s1 + $0x5ac] sm:$0xf]
    %v258 = vld [vmem:[%s1 + $0x5b0] sm:$0xff]
    %v259 = vld [vmem:[%s1 + $0x5b8] sm:$0xff]
    %v260 = vld [vmem:[%s1 + $0x5c0] sm:$0xff]
    %v261 = vld [vmem:[%s1 + $0x5c8] sm:$0xf]
    %v262 = vld [vmem:[%s1 + $0x5cc] sm:$0xff]
    %v263 = vld [vmem:[%s1 + $0x5d4] sm:$0xff]
    %v264 = vld [vmem:[%s1 + $0x5dc] sm:$0xff]
    %v265 = vld [vmem:[%s1 + $0x5e4] sm:$0xf]
    %v266 = vld [vmem:[%s1 + $0x5e8] sm:$0xff]
    %v267 = vld [vmem:[%s1 + $0x5f0] sm:$0xff]
    %v268 = vld [vmem:[%s1 + $0x5f8] sm:$0xff]
    %v269 = vld [vmem:[%s1 + $0x600] sm:$0xf]
    %v270 = vld [vmem:[%s1 + $0x604] sm:$0xff]
    %v271 = vld [vmem:[%s1 + $0x60c] sm:$0xff]
    %v272 = vld [vmem:[%s1 + $0x614] sm:$0xff]
    %v273 = vld [vmem:[%s1 + $0x61c] sm:$0xf]
    %v274 = vld [vmem:[%s1 + $0x620] sm:$0xff]
    %v275 = vld [vmem:[%s1 + $0x628] sm:$0xff]
    %v276 = vld [vmem:[%s1 + $0x630] sm:$0xff]
    %v277 = vld [vmem:[%s1 + $0x638] sm:$0xf]
    %v278 = vld [vmem:[%s1 + $0x63c] sm:$0xff]
    %v279 = vld [vmem:[%s1 + $0x644] sm:$0xff]
    %v280 = vld [vmem:[%s1 + $0x64c] sm:$0xff]
    %v281 = vld [vmem:[%s1 + $0x654] sm:$0xf]
    %v282 = vld [vmem:[%s1 + $0x658] sm:$0xff]
    %v283 = vld [vmem:[%s1 + $0x660] sm:$0xff]
    %v284 = vld [vmem:[%s1 + $0x668] sm:$0xff]
    %v285 = vld [vmem:[%s1 + $0x670] sm:$0xf]
    %v286 = vld [vmem:[%s1 + $0x674] sm:$0xff]
    %v287 = vld [vmem:[%s1 + $0x67c] sm:$0xff]
    %v288 = vld [vmem:[%s1 + $0x684] sm:$0xff]
    %v289 = vld [vmem:[%s1 + $0x68c] sm:$0xf]
    %v290 = vld [vmem:[%s1 + $0x690] sm:$0xff]
    %v291 = vld [vmem:[%s1 + $0x698] sm:$0xff]
    %v292 = vld [vmem:[%s1 + $0x6a0] sm:$0xff]
    %v293 = vld [vmem:[%s1 + $0x6a8] sm:$0xf]
    %v294 = vld [vmem:[%s1 + $0x6ac] sm:$0xff]
    %v295 = vld [vmem:[%s1 + $0x6b4] sm:$0xff]
    %v296 = vld [vmem:[%s1 + $0x6bc] sm:$0xff]
    %v297 = vld [vmem:[%s1 + $0x6c4] sm:$0xf]
    %v298 = vld [vmem:[%s1 + $0x6c8] sm:$0xff]
    %v299 = vld [vmem:[%s1 + $0x6d0] sm:$0xff]
    %v300 = vld [vmem:[%s1 + $0x6d8] sm:$0xff]
    %v301 = vld [vmem:[%s1 + $0x6e0] sm:$0xf]
    %v302 = vld [vmem:[%s1 + $0x6e4] sm:$0xff]
    %v303 = vld [vmem:[%s1 + $0x6ec] sm:$0xff]
    %v304 = vld [vmem:[%s1 + $0x6f4] sm:$0xff]
    %v305 = vld [vmem:[%s1 + $0x6fc] sm:$0xf]
    %v306 = vld [vmem:[%s1 + $0x700] sm:$0xff]
    %v307 = vld [vmem:[%s1 + $0x708] sm:$0xff]
    %v308 = vld [vmem:[%s1 + $0x710] sm:$0xff]
    %v309 = vld [vmem:[%s1 + $0x718] sm:$0xf]
    %v310 = vld [vmem:[%s1 + $0x71c] sm:$0xff]
    %v311 = vld [vmem:[%s1 + $0x724] sm:$0xff]
    %v312 = vld [vmem:[%s1 + $0x72c] sm:$0xff]
    %v313 = vld [vmem:[%s1 + $0x734] sm:$0xf]
    %v314 = vld [vmem:[%s1 + $0x738] sm:$0xff]
    %v315 = vld [vmem:[%s1 + $0x740] sm:$0xff]
    %v316 = vld [vmem:[%s1 + $0x748] sm:$0xff]
    %v317 = vld [vmem:[%s1 + $0x750] sm:$0xf]
    %v318 = vld [vmem:[%s1 + $0x754] sm:$0xff]
    %v319 = vld [vmem:[%s1 + $0x75c] sm:$0xff]
    %v320 = vld [vmem:[%s1 + $0x764] sm:$0xff]
    %v321 = vld [vmem:[%s1 + $0x76c] sm:$0xf]
    %v322 = vld [vmem:[%s1 + $0x770] sm:$0xff]
    %v323 = vld [vmem:[%s1 + $0x778] sm:$0xff]
    %v324 = vld [vmem:[%s1 + $0x780] sm:$0xff]
    %v325 = vld [vmem:[%s1 + $0x788] sm:$0xf]
    %v326 = vld [vmem:[%s1 + $0x78c] sm:$0xff]
    %v327 = vld [vmem:[%s1 + $0x794] sm:$0xff]
    %v328 = vld [vmem:[%s1 + $0x79c] sm:$0xff]
    %v329 = vld [vmem:[%s1 + $0x7a4] sm:$0xf]
    %v330 = vld [vmem:[%s1 + $0x7a8] sm:$0xff]
    %v331 = vld [vmem:[%s1 + $0x7b0] sm:$0xff]
    %v332 = vld [vmem:[%s1 + $0x7b8] sm:$0xff]
    %v333 = vld [vmem:[%s1 + $0x7c0] sm:$0xf]
    %v334 = vld [vmem:[%s1 + $0x7c4] sm:$0xff]
    %v335 = vld [vmem:[%s1 + $0x7cc] sm:$0xff]
    %v336 = vld [vmem:[%s1 + $0x7d4] sm:$0xff]
    %v337 = vld [vmem:[%s1 + $0x7dc] sm:$0xf]
    %v338 = vld [vmem:[%s1 + $0x7e0] sm:$0xff]
    %v339 = vld [vmem:[%s1 + $0x7e8] sm:$0xff]
    %v340 = vld [vmem:[%s1 + $0x7f0] sm:$0xff]
    %v341 = vld [vmem:[%s1 + $0x7f8] sm:$0xf]
    %v342 = vld [vmem:[%s1 + $0x7fc] sm:$0xff]
    %v343 = vld [vmem:[%s1 + $0x804] sm:$0xff]
    %v344 = vld [vmem:[%s1 + $0x80c] sm:$0xff]
    %v345 = vld [vmem:[%s1 + $0x814] sm:$0xf]
    %v346 = vld [vmem:[%s1 + $0x818] sm:$0xff]
    %v347 = vld [vmem:[%s1 + $0x820] sm:$0xff]
    %v348 = vld [vmem:[%s1 + $0x828] sm:$0xff]
    %v349 = vld [vmem:[%s1 + $0x830] sm:$0xf]
    %v350 = vld [vmem:[%s1 + $0x834] sm:$0xff]
    %v351 = vld [vmem:[%s1 + $0x83c] sm:$0xff]
    %v352 = vld [vmem:[%s1 + $0x844] sm:$0xff]
    %v353 = vld [vmem:[%s1 + $0x84c] sm:$0xf]
    %v354 = vld [vmem:[%s1 + $0x850] sm:$0xff]
    %v355 = vld [vmem:[%s1 + $0x858] sm:$0xff]
    %v356 = vld [vmem:[%s1 + $0x860] sm:$0xff]
    %v357 = vld [vmem:[%s1 + $0x868] sm:$0xf]
    %v358 = vld [vmem:[%s1 + $0x86c] sm:$0xff]
    %v359 = vld [vmem:[%s1 + $0x874] sm:$0xff]
    %v360 = vld [vmem:[%s1 + $0x87c] sm:$0xff]
    %v361 = vld [vmem:[%s1 + $0x884] sm:$0xf]
    %v362 = vld [vmem:[%s1 + $0x888] sm:$0xff]
    %v363 = vld [vmem:[%s1 + $0x890] sm:$0xff]
    %v364 = vld [vmem:[%s1 + $0x898] sm:$0xff]
    %v365 = vld [vmem:[%s1 + $0x8a0] sm:$0xf]
    %v366 = vld [vmem:[%s1 + $0x8a4] sm:$0xff]
    %v367 = vld [vmem:[%s1 + $0x8ac] sm:$0xff]
    %v368 = vld [vmem:[%s1 + $0x8b4] sm:$0xff]
    %v369 = vld [vmem:[%s1 + $0x8bc] sm:$0xf]
    %v370 = vld [vmem:[%s1 + $0x8c0] sm:$0xff]
    %v371 = vld [vmem:[%s1 + $0x8c8] sm:$0xff]
    %v372 = vld [vmem:[%s1 + $0x8d0] sm:$0xff]
    %v373 = vld [vmem:[%s1 + $0x8d8] sm:$0xf]
    %v374 = vld [vmem:[%s1 + $0x8dc] sm:$0xff]
    %v375 = vld [vmem:[%s1 + $0x8e4] sm:$0xff]
    %v376 = vld [vmem:[%s1 + $0x8ec] sm:$0xff]
    %v377 = vld [vmem:[%s1 + $0x8f4] sm:$0xf]
    %v378 = vld [vmem:[%s1 + $0x8f8] sm:$0xff]
    %v379 = vld [vmem:[%s1 + $0x900] sm:$0xff]
    %v380 = vld [vmem:[%s1 + $0x908] sm:$0xff]
    %v381 = vld [vmem:[%s1 + $0x910] sm:$0xf]
    %v382 = vld [vmem:[%s1 + $0x914] sm:$0xff]
    %v383 = vld [vmem:[%s1 + $0x91c] sm:$0xff]
    %v384 = vld [vmem:[%s1 + $0x924] sm:$0xff]
    %v385 = vld [vmem:[%s1 + $0x92c] sm:$0xf]
    %v386 = vld [vmem:[%s1 + $0x930] sm:$0xff]
    %v387 = vld [vmem:[%s1 + $0x938] sm:$0xff]
    %v388 = vld [vmem:[%s1 + $0x940] sm:$0xff]
    %v389 = vld [vmem:[%s1 + $0x948] sm:$0xf]
    %v390 = vld [vmem:[%s1 + $0x94c] sm:$0xff]
    %v391 = vld [vmem:[%s1 + $0x954] sm:$0xff]
    %v392 = vld [vmem:[%s1 + $0x95c] sm:$0xff]
    %v393 = vld [vmem:[%s1 + $0x964] sm:$0xf]
    %v394 = vld [vmem:[%s1 + $0x968] sm:$0xff]
    %v395 = vld [vmem:[%s1 + $0x970] sm:$0xff]
    %v396 = vld [vmem:[%s1 + $0x978] sm:$0xff]
    %v397 = vld [vmem:[%s1 + $0x980] sm:$0xf]
    %v398 = vld [vmem:[%s1 + $0x984] sm:$0xff]
    %v399 = vld [vmem:[%s1 + $0x98c] sm:$0xff]
    %v400 = vld [vmem:[%s1 + $0x994] sm:$0xff]
    %v401 = vld [vmem:[%s1 + $0x99c] sm:$0xf]
    %v402 = vld [vmem:[%s1 + $0x9a0] sm:$0xff]
    %v403 = vld [vmem:[%s1 + $0x9a8] sm:$0xff]
    %v404 = vld [vmem:[%s1 + $0x9b0] sm:$0xff]
    %v405 = vld [vmem:[%s1 + $0x9b8] sm:$0xf]
    %v406 = vld [vmem:[%s1 + $0x9bc] sm:$0xff]
    %v407 = vld [vmem:[%s1 + $0x9c4] sm:$0xff]
    %v408 = vld [vmem:[%s1 + $0x9cc] sm:$0xff]
    %v409 = vld [vmem:[%s1 + $0x9d4] sm:$0xf]
    %v410 = vld [vmem:[%s1 + $0x9d8] sm:$0xff]
    %v411 = vld [vmem:[%s1 + $0x9e0] sm:$0xff]
    %v412 = vld [vmem:[%s1 + $0x9e8] sm:$0xff]
    %v413 = vld [vmem:[%s1 + $0x9f0] sm:$0xf]
    %v414 = vld [vmem:[%s1 + $0x9f4] sm:$0xff]
    %v415 = vld [vmem:[%s1 + $0x9fc] sm:$0xff]
    %v416 = vld [vmem:[%s1 + $0xa04] sm:$0xff]
    %v417 = vld [vmem:[%s1 + $0xa0c] sm:$0xf]
    %v418 = vld [vmem:[%s1 + $0xa10] sm:$0xff]
    %v419 = vld [vmem:[%s1 + $0xa18] sm:$0xff]
    %v420 = vld [vmem:[%s1 + $0xa20] sm:$0xff]
    %v421 = vld [vmem:[%s1 + $0xa28] sm:$0xf]
    %v422 = vld [vmem:[%s1 + $0xa2c] sm:$0xff]
    %v423 = vld [vmem:[%s1 + $0xa34] sm:$0xff]
    %v424 = vld [vmem:[%s1 + $0xa3c] sm:$0xff]
    %v425 = vld [vmem:[%s1 + $0xa44] sm:$0xf]
    %v426 = vld [vmem:[%s1 + $0xa48] sm:$0xff]
    %v427 = vld [vmem:[%s1 + $0xa50] sm:$0xff]
    %v428 = vld [vmem:[%s1 + $0xa58] sm:$0xff]
    %v429 = vld [vmem:[%s1 + $0xa60] sm:$0xf]
    %v430 = vld [vmem:[%s1 + $0xa64] sm:$0xff]
    %v431 = vld [vmem:[%s1 + $0xa6c] sm:$0xff]
    %v432 = vld [vmem:[%s1 + $0xa74] sm:$0xff]
    %v433 = vld [vmem:[%s1 + $0xa7c] sm:$0xf]
    %v434 = vld [vmem:[%s1 + $0xa80] sm:$0xff]
    %v435 = vld [vmem:[%s1 + $0xa88] sm:$0xff]
    %v436 = vld [vmem:[%s1 + $0xa90] sm:$0xff]
    %v437 = vld [vmem:[%s1 + $0xa98] sm:$0xf]
    %v438 = vld [vmem:[%s1 + $0xa9c] sm:$0xff]
    %v439 = vld [vmem:[%s1 + $0xaa4] sm:$0xff]
    %v440 = vld [vmem:[%s1 + $0xaac] sm:$0xff]
    %v441 = vld [vmem:[%s1 + $0xab4] sm:$0xf]
    %v442 = vld [vmem:[%s1 + $0xab8] sm:$0xff]
    %v443 = vld [vmem:[%s1 + $0xac0] sm:$0xff]
    %v444 = vld [vmem:[%s1 + $0xac8] sm:$0xff]
    %v445 = vld [vmem:[%s1 + $0xad0] sm:$0xf]
    %v446 = vld [vmem:[%s1 + $0xad4] sm:$0xff]
    %v447 = vld [vmem:[%s1 + $0xadc] sm:$0xff]
    %v448 = vld [vmem:[%s1 + $0xae4] sm:$0xff]
    %v449 = vld [vmem:[%s1 + $0xaec] sm:$0xf]
    %v450 = vld [vmem:[%s1 + $0xaf0] sm:$0xff]
    %v451 = vld [vmem:[%s1 + $0xaf8] sm:$0xff]
    %v452 = vld [vmem:[%s1 + $0xb00] sm:$0xff]
    %v453 = vld [vmem:[%s1 + $0xb08] sm:$0xf]
    %v454 = vld [vmem:[%s1 + $0xb0c] sm:$0xff]
    %v455 = vld [vmem:[%s1 + $0xb14] sm:$0xff]
    %v456 = vld [vmem:[%s1 + $0xb1c] sm:$0xff]
    %v457 = vld [vmem:[%s1 + $0xb24] sm:$0xf]
    %v458 = vld [vmem:[%s1 + $0xb28] sm:$0xff]
    %v459 = vld [vmem:[%s1 + $0xb30] sm:$0xff]
    %v460 = vld [vmem:[%s1 + $0xb38] sm:$0xff]
    %v461 = vld [vmem:[%s1 + $0xb40] sm:$0xf]
    %v462 = vld [vmem:[%s1 + $0xb44] sm:$0xff]
    %v463 = vld [vmem:[%s1 + $0xb4c] sm:$0xff]
    %v464 = vld [vmem:[%s1 + $0xb54] sm:$0xff]
    %v465 = vld [vmem:[%s1 + $0xb5c] sm:$0xf]
    %v466 = vld [vmem:[%s1 + $0xb60] sm:$0xff]
    %v467 = vld [vmem:[%s1 + $0xb68] sm:$0xff]
    %v468 = vld [vmem:[%s1 + $0xb70] sm:$0xff]
    %v469 = vld [vmem:[%s1 + $0xb78] sm:$0xf]
    %v470 = vld [vmem:[%s1 + $0xb7c] sm:$0xff]
    %v471 = vld [vmem:[%s1 + $0xb84] sm:$0xff]
    %v472 = vld [vmem:[%s1 + $0xb8c] sm:$0xff]
    %v473 = vld [vmem:[%s1 + $0xb94] sm:$0xf]
    %v474 = vld [vmem:[%s1 + $0xb98] sm:$0xff]
    %v475 = vld [vmem:[%s1 + $0xba0] sm:$0xff]
    %v476 = vld [vmem:[%s1 + $0xba8] sm:$0xff]
    %v477 = vld [vmem:[%s1 + $0xbb0] sm:$0xf]
    %v478 = vld [vmem:[%s1 + $0xbb4] sm:$0xff]
    %v479 = vld [vmem:[%s1 + $0xbbc] sm:$0xff]
    %v480 = vld [vmem:[%s1 + $0xbc4] sm:$0xff]
    %v481 = vld [vmem:[%s1 + $0xbcc] sm:$0xf]
    %v482 = vld [vmem:[%s1 + $0xbd0] sm:$0xff]
    %v483 = vld [vmem:[%s1 + $0xbd8] sm:$0xff]
    %v484 = vld [vmem:[%s1 + $0xbe0] sm:$0xff]
    %v485 = vld [vmem:[%s1 + $0xbe8] sm:$0xf]
    %v486 = vld [vmem:[%s1 + $0xbec] sm:$0xff]
    %v487 = vld [vmem:[%s1 + $0xbf4] sm:$0xff]
    %v488 = vld [vmem:[%s1 + $0xbfc] sm:$0xff]
    %v489 = vld [vmem:[%s1 + $0xc04] sm:$0xf]
    %v490 = vld [vmem:[%s1 + $0xc08] sm:$0xff]
    %v491 = vld [vmem:[%s1 + $0xc10] sm:$0xff]
    %v492 = vld [vmem:[%s1 + $0xc18] sm:$0xff]
    %v493 = vld [vmem:[%s1 + $0xc20] sm:$0xf]
    %v494 = vld [vmem:[%s1 + $0xc24] sm:$0xff]
    %v495 = vld [vmem:[%s1 + $0xc2c] sm:$0xff]
    %v496 = vld [vmem:[%s1 + $0xc34] sm:$0xff]
    %v497 = vld [vmem:[%s1 + $0xc3c] sm:$0xf]
    %v498 = vld [vmem:[%s1 + $0xc40] sm:$0xff]
    %v499 = vld [vmem:[%s1 + $0xc48] sm:$0xff]
    %v500 = vld [vmem:[%s1 + $0xc50] sm:$0xff]
    %v501 = vld [vmem:[%s1 + $0xc58] sm:$0xf]
    %v502 = vld [vmem:[%s1 + $0xc5c] sm:$0xff]
    %v503 = vld [vmem:[%s1 + $0xc64] sm:$0xff]
    %v504 = vld [vmem:[%s1 + $0xc6c] sm:$0xff]
    %v505 = vld [vmem:[%s1 + $0xc74] sm:$0xf]
    %v506 = vld [vmem:[%s1 + $0xc78] sm:$0xff]
    %v507 = vld [vmem:[%s1 + $0xc80] sm:$0xff]
    %v508 = vld [vmem:[%s1 + $0xc88] sm:$0xff]
    %v509 = vld [vmem:[%s1 + $0xc90] sm:$0xf]
    %v510 = vld [vmem:[%s1 + $0xc94] sm:$0xff]
    %v511 = vld [vmem:[%s1 + $0xc9c] sm:$0xff]
    %v512 = vld [vmem:[%s1 + $0xca4] sm:$0xff]
    %v513 = vld [vmem:[%s1 + $0xcac] sm:$0xf]
    %v514 = vld [vmem:[%s1 + $0xcb0] sm:$0xff]
    %v515 = vld [vmem:[%s1 + $0xcb8] sm:$0xff]
    %v516 = vld [vmem:[%s1 + $0xcc0] sm:$0xff]
    %v517 = vld [vmem:[%s1 + $0xcc8] sm:$0xf]
    %v518 = vld [vmem:[%s1 + $0xccc] sm:$0xff]
    %v519 = vld [vmem:[%s1 + $0xcd4] sm:$0xff]
    %v520 = vld [vmem:[%s1 + $0xcdc] sm:$0xff]
    %v521 = vld [vmem:[%s1 + $0xce4] sm:$0xf]
    %v522 = vld [vmem:[%s1 + $0xce8] sm:$0xff]
    %v523 = vld [vmem:[%s1 + $0xcf0] sm:$0xff]
    %v524 = vld [vmem:[%s1 + $0xcf8] sm:$0xff]
    %v525 = vld [vmem:[%s1 + $0xd00] sm:$0xf]
    %v526 = vld [vmem:[%s1 + $0xd04] sm:$0xff]
    %v527 = vld [vmem:[%s1 + $0xd0c] sm:$0xff]
    %v528 = vld [vmem:[%s1 + $0xd14] sm:$0xff]
    %v529 = vld [vmem:[%s1 + $0xd1c] sm:$0xf]
    %v530 = vld [vmem:[%s1 + $0xd20] sm:$0xff]
    %v531 = vld [vmem:[%s1 + $0xd28] sm:$0xff]
    %v532 = vld [vmem:[%s1 + $0xd30] sm:$0xff]
    %v533 = vld [vmem:[%s1 + $0xd38] sm:$0xf]
    %v534 = vld [vmem:[%s1 + $0xd3c] sm:$0xff]
    %v535 = vld [vmem:[%s1 + $0xd44] sm:$0xff]
    %v536 = vld [vmem:[%s1 + $0xd4c] sm:$0xff]
    %v537 = vld [vmem:[%s1 + $0xd54] sm:$0xf]
    %v538 = vld [vmem:[%s1 + $0xd58] sm:$0xff]
    %v539 = vld [vmem:[%s1 + $0xd60] sm:$0xff]
    %v540 = vld [vmem:[%s1 + $0xd68] sm:$0xff]
    %v541 = vld [vmem:[%s1 + $0xd70] sm:$0xf]
    %v542 = vld [vmem:[%s1 + $0xd74] sm:$0xff]
    %v543 = vld [vmem:[%s1 + $0xd7c] sm:$0xff]
    %v544 = vld [vmem:[%s1 + $0xd84] sm:$0xff]
    %v545 = vld [vmem:[%s1 + $0xd8c] sm:$0xf]
    %v546 = vld [vmem:[%s1 + $0xd90] sm:$0xff]
    %v547 = vld [vmem:[%s1 + $0xd98] sm:$0xff]
    %v548 = vld [vmem:[%s1 + $0xda0] sm:$0xff]
    %v549 = vld [vmem:[%s1 + $0xda8] sm:$0xf]
    %v550 = vld [vmem:[%s1 + $0xdac] sm:$0xff]
    %v551 = vld [vmem:[%s1 + $0xdb4] sm:$0xff]
    %v552 = vld [vmem:[%s1 + $0xdbc] sm:$0xff]
    %v553 = vld [vmem:[%s1 + $0xdc4] sm:$0xf]
    %v554 = vld [vmem:[%s1 + $0xdc8] sm:$0xff]
    %v555 = vld [vmem:[%s1 + $0xdd0] sm:$0xff]
    %v556 = vld [vmem:[%s1 + $0xdd8] sm:$0xff]
    %v557 = vld [vmem:[%s1 + $0xde0] sm:$0xf]
    %v558 = vld [vmem:[%s1 + $0xde4] sm:$0xff]
    %v559 = vld [vmem:[%s1 + $0xdec] sm:$0xff]
    %v560 = vld [vmem:[%s1 + $0xdf4] sm:$0xff]
    %v561 = vld [vmem:[%s1 + $0xdfc] sm:$0xf]
    %v562 = vld [vmem:[%s1 + $0xe00] sm:$0xff]
    %v563 = vld [vmem:[%s1 + $0xe08] sm:$0xff]
    %v564 = vld [vmem:[%s1 + $0xe10] sm:$0xff]
    %v565 = vld [vmem:[%s1 + $0xe18] sm:$0xf]
    %v566 = vld [vmem:[%s1 + $0xe1c] sm:$0xff]
    %v567 = vld [vmem:[%s1 + $0xe24] sm:$0xff]
    %v568 = vld [vmem:[%s1 + $0xe2c] sm:$0xff]
    %v569 = vld [vmem:[%s1 + $0xe34] sm:$0xf]
    %v570 = vld [vmem:[%s1 + $0xe38] sm:$0xff]
    %v571 = vld [vmem:[%s1 + $0xe40] sm:$0xff]
    %v572 = vld [vmem:[%s1 + $0xe48] sm:$0xff]
    %v573 = vld [vmem:[%s1 + $0xe50] sm:$0xf]
    %v574 = vld [vmem:[%s1 + $0xe54] sm:$0xff]
    %v575 = vld [vmem:[%s1 + $0xe5c] sm:$0xff]
    %v576 = vld [vmem:[%s1 + $0xe64] sm:$0xff]
    %v577 = vld [vmem:[%s1 + $0xe6c] sm:$0xf]
    %v578 = vld [vmem:[%s1 + $0xe70] sm:$0xff]
    %v579 = vld [vmem:[%s1 + $0xe78] sm:$0xff]
    %v580 = vld [vmem:[%s1 + $0xe80] sm:$0xff]
    %v581 = vld [vmem:[%s1 + $0xe88] sm:$0xf]
    %v582 = vld [vmem:[%s1 + $0xe8c] sm:$0xff]
    %v583 = vld [vmem:[%s1 + $0xe94] sm:$0xff]
    %v584 = vld [vmem:[%s1 + $0xe9c] sm:$0xff]
    %v585 = vld [vmem:[%s1 + $0xea4] sm:$0xf]
    %v586 = vld [vmem:[%s1 + $0xea8] sm:$0xff]
    %v587 = vld [vmem:[%s1 + $0xeb0] sm:$0xff]
    %v588 = vld [vmem:[%s1 + $0xeb8] sm:$0xff]
    %v589 = vld [vmem:[%s1 + $0xec0] sm:$0xf]
    %v590 = vld [vmem:[%s1 + $0xec4] sm:$0xff]
    %v591 = vld [vmem:[%s1 + $0xecc] sm:$0xff]
    %v592 = vld [vmem:[%s1 + $0xed4] sm:$0xff]
    %v593 = vld [vmem:[%s1 + $0xedc] sm:$0xf]
    %v594 = vld [vmem:[%s1 + $0xee0] sm:$0xff]
    %v595 = vld [vmem:[%s1 + $0xee8] sm:$0xff]
    %v596 = vld [vmem:[%s1 + $0xef0] sm:$0xff]
    %v597 = vld [vmem:[%s1 + $0xef8] sm:$0xf]
    %v598 = vld [vmem:[%s1 + $0xefc] sm:$0xff]
    %v599 = vld [vmem:[%s1 + $0xf04] sm:$0xff]
    %v600 = vld [vmem:[%s1 + $0xf0c] sm:$0xff]
    %v601 = vld [vmem:[%s1 + $0xf14] sm:$0xf]
    %v602 = vld [vmem:[%s1 + $0xf18] sm:$0xff]
    %v603 = vld [vmem:[%s1 + $0xf20] sm:$0xff]
    %v604 = vld [vmem:[%s1 + $0xf28] sm:$0xff]
    %v605 = vld [vmem:[%s1 + $0xf30] sm:$0xf]
    %v606 = vld [vmem:[%s1 + $0xf34] sm:$0xff]
    %v607 = vld [vmem:[%s1 + $0xf3c] sm:$0xff]
    %v608 = vld [vmem:[%s1 + $0xf44] sm:$0xff]
    %v609 = vld [vmem:[%s1 + $0xf4c] sm:$0xf]
    %v610 = vld [vmem:[%s1 + $0xf50] sm:$0xff]
    %v611 = vld [vmem:[%s1 + $0xf58] sm:$0xff]
    %v612 = vld [vmem:[%s1 + $0xf60] sm:$0xff]
    %v613 = vld [vmem:[%s1 + $0xf68] sm:$0xf]
    %v614 = vld [vmem:[%s1 + $0xf6c] sm:$0xff]
    %v615 = vld [vmem:[%s1 + $0xf74] sm:$0xff]
    %v616 = vld [vmem:[%s1 + $0xf7c] sm:$0xff]
    %v617 = vld [vmem:[%s1 + $0xf84] sm:$0xf]
    %v618 = vld [vmem:[%s1 + $0xf88] sm:$0xff]
    %v619 = vld [vmem:[%s1 + $0xf90] sm:$0xff]
    %v620 = vld [vmem:[%s1 + $0xf98] sm:$0xff]
    %v621 = vld [vmem:[%s1 + $0xfa0] sm:$0xf]
    %v622 = vld [vmem:[%s1 + $0xfa4] sm:$0xff]
    %v623 = vld [vmem:[%s1 + $0xfac] sm:$0xff]
    %v624 = vld [vmem:[%s1 + $0xfb4] sm:$0xff]
    %v625 = vld [vmem:[%s1 + $0xfbc] sm:$0xf]
    %v626 = vld [vmem:[%s1 + $0xfc0] sm:$0xff]
    %v627 = vld [vmem:[%s1 + $0xfc8] sm:$0xff]
    %v628 = vld [vmem:[%s1 + $0xfd0] sm:$0xff]
    %v629 = vld [vmem:[%s1 + $0xfd8] sm:$0xf]
    %v630 = vld [vmem:[%s1 + $0xfdc] sm:$0xff]
    %v631 = vld [vmem:[%s1 + $0xfe4] sm:$0xff]
    %v632 = vld [vmem:[%s1 + $0xfec] sm:$0xff]
    %v633 = vld [vmem:[%s1 + $0xff4] sm:$0xf]
    %v634 = vld [vmem:[%s1 + $0xff8] sm:$0xff]
    %v635 = vld [vmem:[%s1 + $0x1000] sm:$0xff]
    %v636 = vld [vmem:[%s1 + $0x1008] sm:$0xff]
    %v637 = vld [vmem:[%s1 + $0x1010] sm:$0xf]
    %v638 = vld [vmem:[%s1 + $0x1014] sm:$0xff]
    %v639 = vld [vmem:[%s1 + $0x101c] sm:$0xff]
    %v640 = vld [vmem:[%s1 + $0x1024] sm:$0xff]
    %v641 = vld [vmem:[%s1 + $0x102c] sm:$0xf]
    %v642 = vld [vmem:[%s1 + $0x1030] sm:$0xff]
    %v643 = vld [vmem:[%s1 + $0x1038] sm:$0xff]
    %v644 = vld [vmem:[%s1 + $0x1040] sm:$0xff]
    %v645 = vld [vmem:[%s1 + $0x1048] sm:$0xf]
    %v646 = vld [vmem:[%s1 + $0x104c] sm:$0xff]
    %v647 = vld [vmem:[%s1 + $0x1054] sm:$0xff]
    %v648 = vld [vmem:[%s1 + $0x105c] sm:$0xff]
    %v649 = vld [vmem:[%s1 + $0x1064] sm:$0xf]
    %v650 = vld [vmem:[%s1 + $0x1068] sm:$0xff]
    %v651 = vld [vmem:[%s1 + $0x1070] sm:$0xff]
    %v652 = vld [vmem:[%s1 + $0x1078] sm:$0xff]
    %v653 = vld [vmem:[%s1 + $0x1080] sm:$0xf]
    %v654 = vld [vmem:[%s1 + $0x1084] sm:$0xff]
    %v655 = vld [vmem:[%s1 + $0x108c] sm:$0xff]
    %v656 = vld [vmem:[%s1 + $0x1094] sm:$0xff]
    %v657 = vld [vmem:[%s1 + $0x109c] sm:$0xf]
    %v658 = vld [vmem:[%s1 + $0x10a0] sm:$0xff]
    %v659 = vld [vmem:[%s1 + $0x10a8] sm:$0xff]
    %v660 = vld [vmem:[%s1 + $0x10b0] sm:$0xff]
    %v661 = vld [vmem:[%s1 + $0x10b8] sm:$0xf]
    %v662 = vld [vmem:[%s1 + $0x10bc] sm:$0xff]
    %v663 = vld [vmem:[%s1 + $0x10c4] sm:$0xff]
    %v664 = vld [vmem:[%s1 + $0x10cc] sm:$0xff]
    %v665 = vld [vmem:[%s1 + $0x10d4] sm:$0xf]
    %v666 = vld [vmem:[%s1 + $0x10d8] sm:$0xff]
    %v667 = vld [vmem:[%s1 + $0x10e0] sm:$0xff]
    %v668 = vld [vmem:[%s1 + $0x10e8] sm:$0xff]
    %v669 = vld [vmem:[%s1 + $0x10f0] sm:$0xf]
    %v670 = vld [vmem:[%s1 + $0x10f4] sm:$0xff]
    %v671 = vld [vmem:[%s1 + $0x10fc] sm:$0xff]
    %v672 = vld [vmem:[%s1 + $0x1104] sm:$0xff]
    %v673 = vld [vmem:[%s1 + $0x110c] sm:$0xf]
    %v674 = vld [vmem:[%s1 + $0x1110] sm:$0xff]
    %v675 = vld [vmem:[%s1 + $0x1118] sm:$0xff]
    %v676 = vld [vmem:[%s1 + $0x1120] sm:$0xff]
    %v677 = vld [vmem:[%s1 + $0x1128] sm:$0xf]
    %v678 = vld [vmem:[%s1 + $0x112c] sm:$0xff]
    %v679 = vld [vmem:[%s1 + $0x1134] sm:$0xff]
    %v680 = vld [vmem:[%s1 + $0x113c] sm:$0xff]
    %v681 = vld [vmem:[%s1 + $0x1144] sm:$0xf]
    %v682 = vld [vmem:[%s1 + $0x1148] sm:$0xff]
    %v683 = vld [vmem:[%s1 + $0x1150] sm:$0xff]
    %v684 = vld [vmem:[%s1 + $0x1158] sm:$0xff]
    %v685 = vld [vmem:[%s1 + $0x1160] sm:$0xf]
    %v686 = vld [vmem:[%s1 + $0x1164] sm:$0xff]
    %v687 = vld [vmem:[%s1 + $0x116c] sm:$0xff]
    %v688 = vld [vmem:[%s1 + $0x1174] sm:$0xff]
    %v689 = vld [vmem:[%s1 + $0x117c] sm:$0xf]
    %v690 = vld [vmem:[%s1 + $0x1180] sm:$0xff]
    %v691 = vld [vmem:[%s1 + $0x1188] sm:$0xff]
    %v692 = vld [vmem:[%s1 + $0x1190] sm:$0xff]
    %v693 = vld [vmem:[%s1 + $0x1198] sm:$0xf]
    %v694 = vld [vmem:[%s1 + $0x119c] sm:$0xff]
    %v695 = vld [vmem:[%s1 + $0x11a4] sm:$0xff]
    %v696 = vld [vmem:[%s1 + $0x11ac] sm:$0xff]
    %v697 = vld [vmem:[%s1 + $0x11b4] sm:$0xf]
    %v698 = vld [vmem:[%s1 + $0x11b8] sm:$0xff]
    %v699 = vld [vmem:[%s1 + $0x11c0] sm:$0xff]
    %v700 = vld [vmem:[%s1 + $0x11c8] sm:$0xff]
    %v701 = vld [vmem:[%s1 + $0x11d0] sm:$0xf]
    %v702 = vld [vmem:[%s1 + $0x11d4] sm:$0xff]
    %v703 = vld [vmem:[%s1 + $0x11dc] sm:$0xff]
    %v704 = vld [vmem:[%s1 + $0x11e4] sm:$0xff]
    %v705 = vld [vmem:[%s1 + $0x11ec] sm:$0xf]
    %v706 = vld [vmem:[%s1 + $0x11f0] sm:$0xff]
    %v707 = vld [vmem:[%s1 + $0x11f8] sm:$0xff]
    %v708 = vld [vmem:[%s1 + $0x1200] sm:$0xff]
    %v709 = vld [vmem:[%s1 + $0x1208] sm:$0xf]
    %v710 = vld [vmem:[%s1 + $0x120c] sm:$0xff]
    %v711 = vld [vmem:[%s1 + $0x1214] sm:$0xff]
    %v712 = vld [vmem:[%s1 + $0x121c] sm:$0xff]
    %v713 = vld [vmem:[%s1 + $0x1224] sm:$0xf]
    %v714 = vld [vmem:[%s1 + $0x1228] sm:$0xff]
    %v715 = vld [vmem:[%s1 + $0x1230] sm:$0xff]
    %v716 = vld [vmem:[%s1 + $0x1238] sm:$0xff]
    %v717 = vld [vmem:[%s1 + $0x1240] sm:$0xf]
    %v718 = vld [vmem:[%s1 + $0x1244] sm:$0xff]
    %v719 = vld [vmem:[%s1 + $0x124c] sm:$0xff]
    %v720 = vld [vmem:[%s1 + $0x1254] sm:$0xff]
    %v721 = vld [vmem:[%s1 + $0x125c] sm:$0xf]
    %v722 = vld [vmem:[%s1 + $0x1260] sm:$0xff]
    %v723 = vld [vmem:[%s1 + $0x1268] sm:$0xff]
    %v724 = vld [vmem:[%s1 + $0x1270] sm:$0xff]
    %v725 = vld [vmem:[%s1 + $0x1278] sm:$0xf]
    %v726 = vld [vmem:[%s1 + $0x127c] sm:$0xff]
    %v727 = vld [vmem:[%s1 + $0x1284] sm:$0xff]
    %v728 = vld [vmem:[%s1 + $0x128c] sm:$0xff]
    %v729 = vld [vmem:[%s1 + $0x1294] sm:$0xf]
    %v730 = vld [vmem:[%s1 + $0x1298] sm:$0xff]
    %v731 = vld [vmem:[%s1 + $0x12a0] sm:$0xff]
    %v732 = vld [vmem:[%s1 + $0x12a8] sm:$0xff]
    %v733 = vld [vmem:[%s1 + $0x12b0] sm:$0xf]
    %v734 = vld [vmem:[%s1 + $0x12b4] sm:$0xff]
    %v735 = vld [vmem:[%s1 + $0x12bc] sm:$0xff]
    %v736 = vld [vmem:[%s1 + $0x12c4] sm:$0xff]
    %v737 = vld [vmem:[%s1 + $0x12cc] sm:$0xf]
    %v738 = vld [vmem:[%s1 + $0x12d0] sm:$0xff]
    %v739 = vld [vmem:[%s1 + $0x12d8] sm:$0xff]
    %v740 = vld [vmem:[%s1 + $0x12e0] sm:$0xff]
    %v741 = vld [vmem:[%s1 + $0x12e8] sm:$0xf]
    %v742 = vld [vmem:[%s1 + $0x12ec] sm:$0xff]
    %v743 = vld [vmem:[%s1 + $0x12f4] sm:$0xff]
    %v744 = vld [vmem:[%s1 + $0x12fc] sm:$0xff]
    %v745 = vld [vmem:[%s1 + $0x1304] sm:$0xf]
    %v746 = vld [vmem:[%s1 + $0x1308] sm:$0xff]
    %v747 = vld [vmem:[%s1 + $0x1310] sm:$0xff]
    %v748 = vld [vmem:[%s1 + $0x1318] sm:$0xff]
    %v749 = vld [vmem:[%s1 + $0x1320] sm:$0xf]
    %v750 = vld [vmem:[%s1 + $0x1324] sm:$0xff]
    %v751 = vld [vmem:[%s1 + $0x132c] sm:$0xff]
    %v752 = vld [vmem:[%s1 + $0x1334] sm:$0xff]
    %v753 = vld [vmem:[%s1 + $0x133c] sm:$0xf]
    %v754 = vld [vmem:[%s1 + $0x1340] sm:$0xff]
    %v755 = vld [vmem:[%s1 + $0x1348] sm:$0xff]
    %v756 = vld [vmem:[%s1 + $0x1350] sm:$0xff]
    %v757 = vld [vmem:[%s1 + $0x1358] sm:$0xf]
    %v758 = vld [vmem:[%s1 + $0x135c] sm:$0xff]
    %v759 = vld [vmem:[%s1 + $0x1364] sm:$0xff]
    %v760 = vld [vmem:[%s1 + $0x136c] sm:$0xff]
    %v761 = vld [vmem:[%s1 + $0x1374] sm:$0xf]
    %v762 = vld [vmem:[%s1 + $0x1378] sm:$0xff]
    %v763 = vld [vmem:[%s1 + $0x1380] sm:$0xff]
    %v764 = vld [vmem:[%s1 + $0x1388] sm:$0xff]
    %v765 = vld [vmem:[%s1 + $0x1390] sm:$0xf]
    %v766 = vld [vmem:[%s1 + $0x1394] sm:$0xff]
    %v767 = vld [vmem:[%s1 + $0x139c] sm:$0xff]
    %v768 = vld [vmem:[%s1 + $0x13a4] sm:$0xff]
    %v769 = vld [vmem:[%s1 + $0x13ac] sm:$0xf]
    %v770 = vld [vmem:[%s1 + $0x13b0] sm:$0xff]
    %v771 = vld [vmem:[%s1 + $0x13b8] sm:$0xff]
    %v772 = vld [vmem:[%s1 + $0x13c0] sm:$0xff]
    %v773 = vld [vmem:[%s1 + $0x13c8] sm:$0xf]
    %v774 = vld [vmem:[%s1 + $0x13cc] sm:$0xff]
    %v775 = vld [vmem:[%s1 + $0x13d4] sm:$0xff]
    %v776 = vld [vmem:[%s1 + $0x13dc] sm:$0xff]
    %v777 = vld [vmem:[%s1 + $0x13e4] sm:$0xf]
    %v778 = vld [vmem:[%s1 + $0x13e8] sm:$0xff]
    %v779 = vld [vmem:[%s1 + $0x13f0] sm:$0xff]
    %v780 = vld [vmem:[%s1 + $0x13f8] sm:$0xff]
    %v781 = vld [vmem:[%s1 + $0x1400] sm:$0xf]
    %v782 = vld [vmem:[%s1 + $0x1404] sm:$0xff]
    %v783 = vld [vmem:[%s1 + $0x140c] sm:$0xff]
    %v784 = vld [vmem:[%s1 + $0x1414] sm:$0xff]
    %v785 = vld [vmem:[%s1 + $0x141c] sm:$0xf]
    %v786 = vld [vmem:[%s1 + $0x1420] sm:$0xff]
    %v787 = vld [vmem:[%s1 + $0x1428] sm:$0xff]
    %v788 = vld [vmem:[%s1 + $0x1430] sm:$0xff]
    %v789 = vld [vmem:[%s1 + $0x1438] sm:$0xf]
    %v790 = vld [vmem:[%s1 + $0x143c] sm:$0xff]
    %v791 = vld [vmem:[%s1 + $0x1444] sm:$0xff]
    %v792 = vld [vmem:[%s1 + $0x144c] sm:$0xff]
    %v793 = vld [vmem:[%s1 + $0x1454] sm:$0xf]
    %v794 = vld [vmem:[%s1 + $0x1458] sm:$0xff]
    %v795 = vld [vmem:[%s1 + $0x1460] sm:$0xff]
    %v796 = vld [vmem:[%s1 + $0x1468] sm:$0xff]
    %v797 = vld [vmem:[%s1 + $0x1470] sm:$0xf]
    %v798 = vld [vmem:[%s1 + $0x1474] sm:$0xff]
    %v799 = vld [vmem:[%s1 + $0x147c] sm:$0xff]
    %v800 = vld [vmem:[%s1 + $0x1484] sm:$0xff]
    %v801 = vld [vmem:[%s1 + $0x148c] sm:$0xf]
    %v802 = vld [vmem:[%s1 + $0x1490] sm:$0xff]
    %v803 = vld [vmem:[%s1 + $0x1498] sm:$0xff]
    %v804 = vld [vmem:[%s1 + $0x14a0] sm:$0xff]
    %v805 = vld [vmem:[%s1 + $0x14a8] sm:$0xf]
    %v806 = vld [vmem:[%s1 + $0x14ac] sm:$0xff]
    %v807 = vld [vmem:[%s1 + $0x14b4] sm:$0xff]
    %v808 = vld [vmem:[%s1 + $0x14bc] sm:$0xff]
    %v809 = vld [vmem:[%s1 + $0x14c4] sm:$0xf]
    %v810 = vld [vmem:[%s1 + $0x14c8] sm:$0xff]
    %v811 = vld [vmem:[%s1 + $0x14d0] sm:$0xff]
    %v812 = vld [vmem:[%s1 + $0x14d8] sm:$0xff]
    %v813 = vld [vmem:[%s1 + $0x14e0] sm:$0xf]
    %v814 = vld [vmem:[%s1 + $0x14e4] sm:$0xff]
    %v815 = vld [vmem:[%s1 + $0x14ec] sm:$0xff]
    %v816 = vld [vmem:[%s1 + $0x14f4] sm:$0xff]
    %v817 = vld [vmem:[%s1 + $0x14fc] sm:$0xf]
    %v818 = vld [vmem:[%s1 + $0x1500] sm:$0xff]
    %v819 = vld [vmem:[%s1 + $0x1508] sm:$0xff]
    %v820 = vld [vmem:[%s1 + $0x1510] sm:$0xff]
    %v821 = vld [vmem:[%s1 + $0x1518] sm:$0xf]
    %v822 = vld [vmem:[%s1 + $0x151c] sm:$0xff]
    %v823 = vld [vmem:[%s1 + $0x1524] sm:$0xff]
    %v824 = vld [vmem:[%s1 + $0x152c] sm:$0xff]
    %v825 = vld [vmem:[%s1 + $0x1534] sm:$0xf]
    %v826 = vld [vmem:[%s1 + $0x1538] sm:$0xff]
    %v827 = vld [vmem:[%s1 + $0x1540] sm:$0xff]
    %v828 = vld [vmem:[%s1 + $0x1548] sm:$0xff]
    %v829 = vld [vmem:[%s1 + $0x1550] sm:$0xf]
    %v830 = vld [vmem:[%s1 + $0x1554] sm:$0xff]
    %v831 = vld [vmem:[%s1 + $0x155c] sm:$0xff]
    %v832 = vld [vmem:[%s1 + $0x1564] sm:$0xff]
    %v833 = vld [vmem:[%s1 + $0x156c] sm:$0xf]
    %v834 = vld [vmem:[%s1 + $0x1570] sm:$0xff]
    %v835 = vld [vmem:[%s1 + $0x1578] sm:$0xff]
    %v836 = vld [vmem:[%s1 + $0x1580] sm:$0xff]
    %v837 = vld [vmem:[%s1 + $0x1588] sm:$0xf]
    %v838 = vld [vmem:[%s1 + $0x158c] sm:$0xff]
    %v839 = vld [vmem:[%s1 + $0x1594] sm:$0xff]
    %v840 = vld [vmem:[%s1 + $0x159c] sm:$0xff]
    %v841 = vld [vmem:[%s1 + $0x15a4] sm:$0xf]
    %v842 = vld [vmem:[%s1 + $0x15a8] sm:$0xff]
    %v843 = vld [vmem:[%s1 + $0x15b0] sm:$0xff]
    %v844 = vld [vmem:[%s1 + $0x15b8] sm:$0xff]
    %v845 = vld [vmem:[%s1 + $0x15c0] sm:$0xf]
    %v846 = vld [vmem:[%s1 + $0x15c4] sm:$0xff]
    %v847 = vld [vmem:[%s1 + $0x15cc] sm:$0xff]
    %v848 = vld [vmem:[%s1 + $0x15d4] sm:$0xff]
    %v849 = vld [vmem:[%s1 + $0x15dc] sm:$0xf]
    %v850 = vld [vmem:[%s2] sm:$0x7f]
    %v852 = vlaneseq
    %v853 = vshrl.u32 %v852, 7
    %v854 = vsub.s32 0, %v853
    %v855 = vrot.slane %v850, %v854
    %v856 = vlaneseq
    %v857 = vshrl.u32 %v856, 7
    %v858 = vsub.s32 1, %v857
    %v859 = vrot.slane %v850, %v858
    %v860 = vlaneseq
    %v861 = vshrl.u32 %v860, 7
    %v862 = vsub.s32 2, %v861
    %v863 = vrot.slane %v850, %v862
    %v864 = vlaneseq
    %v865 = vshrl.u32 %v864, 7
    %v866 = vsub.s32 3, %v865
    %v867 = vrot.slane %v850, %v866
    %v868 = vlaneseq
    %v869 = vshrl.u32 %v868, 7
    %v870 = vsub.s32 4, %v869
    %v871 = vrot.slane %v850, %v870
    %v872 = vlaneseq
    %v873 = vshrl.u32 %v872, 7
    %v874 = vsub.s32 5, %v873
    %v875 = vrot.slane %v850, %v874
    %v876 = vlaneseq
    %v877 = vshrl.u32 %v876, 7
    %v878 = vsub.s32 6, %v877
    %v879 = vrot.slane %v850, %v878
    %v901 = vunpack.c.l.b16 %v36
    %v902 = vunpack.c.h.b16 %v36
    %v903 = vunpack.c.l.b16 %v37
    %v904 = vunpack.c.h.b16 %v37
    %v905 = vunpack.c.l.b16 %v38
    %v906 = vunpack.c.h.b16 %v38
    %v907 = vunpack.c.l.b16 %v39
    %v908 = vunpack.c.h.b16 %v39
    %v909 = vunpack.c.l.b16 %v40
    %v910 = vunpack.c.h.b16 %v40
    %v911 = vunpack.c.l.b16 %v41
    %v912 = vunpack.c.h.b16 %v41
    %v913 = vunpack.c.l.b16 %v42
    %v914 = vunpack.c.l.b16 %v43
    %v915 = vunpack.c.h.b16 %v43
    %v916 = vunpack.c.l.b16 %v44
    %v917 = vunpack.c.h.b16 %v44
    %v918 = vunpack.c.l.b16 %v45
    %v919 = vunpack.c.h.b16 %v45
    %v920 = vunpack.c.l.b16 %v46
    %v921 = vunpack.c.h.b16 %v46
    %v922 = vunpack.c.l.b16 %v47
    %v923 = vunpack.c.h.b16 %v47
    %v924 = vunpack.c.l.b16 %v48
    %v925 = vunpack.c.h.b16 %v48
    %v926 = vunpack.c.l.b16 %v49
    %v927 = vpack.c.b16 %v914, %v901
    %v928 = vpack.c.b16 %v915, %v902
    %v929 = vpack.c.b16 %v916, %v903
    %v930 = vpack.c.b16 %v917, %v904
    %v931 = vpack.c.b16 %v918, %v905
    %v932 = vpack.c.b16 %v919, %v906
    %v933 = vpack.c.b16 %v920, %v907
    %v934 = vpack.c.b16 %v921, %v908
    %v935 = vpack.c.b16 %v922, %v909
    %v936 = vpack.c.b16 %v923, %v910
    %v937 = vpack.c.b16 %v924, %v911
    %v938 = vpack.c.b16 %v925, %v912
    %v939 = vpack.c.b16 %v926, %v913
    %v1752 = vunpack.c.l.b16 %v50
    %v1753 = vunpack.c.h.b16 %v50
    %v1754 = vunpack.c.l.b16 %v51
    %v1755 = vunpack.c.h.b16 %v51
    %v1756 = vunpack.c.l.b16 %v52
    %v1757 = vunpack.c.h.b16 %v52
    %v1758 = vunpack.c.l.b16 %v53
    %v1759 = vunpack.c.l.b16 %v54
    %v1760 = vunpack.c.h.b16 %v54
    %v1761 = vunpack.c.l.b16 %v55
    %v1762 = vunpack.c.h.b16 %v55
    %v1763 = vunpack.c.l.b16 %v56
    %v1764 = vunpack.c.h.b16 %v56
    %v1765 = vunpack.c.l.b16 %v57
    %v1766 = vunpack.c.l.b16 %v58
    %v1767 = vunpack.c.h.b16 %v58
    %v1768 = vunpack.c.l.b16 %v59
    %v1769 = vunpack.c.h.b16 %v59
    %v1770 = vunpack.c.l.b16 %v60
    %v1771 = vunpack.c.h.b16 %v60
    %v1772 = vunpack.c.l.b16 %v61
    %v1773 = vunpack.c.l.b16 %v62
    %v1774 = vunpack.c.h.b16 %v62
    %v1775 = vunpack.c.l.b16 %v63
    %v1776 = vunpack.c.h.b16 %v63
    %v1777 = vunpack.c.l.b16 %v64
    %v1778 = vunpack.c.h.b16 %v64
    %v1779 = vunpack.c.l.b16 %v65
    %v1780 = vunpack.c.l.b16 %v66
    %v1781 = vunpack.c.h.b16 %v66
    %v1782 = vunpack.c.l.b16 %v67
    %v1783 = vunpack.c.h.b16 %v67
    %v1784 = vunpack.c.l.b16 %v68
    %v1785 = vunpack.c.h.b16 %v68
    %v1786 = vunpack.c.l.b16 %v69
    %v1787 = vunpack.c.l.b16 %v70
    %v1788 = vunpack.c.h.b16 %v70
    %v1789 = vunpack.c.l.b16 %v71
    %v1790 = vunpack.c.h.b16 %v71
    %v1791 = vunpack.c.l.b16 %v72
    %v1792 = vunpack.c.h.b16 %v72
    %v1793 = vunpack.c.l.b16 %v73
    %v1794 = vunpack.c.l.b16 %v74
    %v1795 = vunpack.c.h.b16 %v74
    %v1796 = vunpack.c.l.b16 %v75
    %v1797 = vunpack.c.h.b16 %v75
    %v1798 = vunpack.c.l.b16 %v76
    %v1799 = vunpack.c.h.b16 %v76
    %v1800 = vunpack.c.l.b16 %v77
    %v1801 = vunpack.c.l.b16 %v78
    %v1802 = vunpack.c.h.b16 %v78
    %v1803 = vunpack.c.l.b16 %v79
    %v1804 = vunpack.c.h.b16 %v79
    %v1805 = vunpack.c.l.b16 %v80
    %v1806 = vunpack.c.h.b16 %v80
    %v1807 = vunpack.c.l.b16 %v81
    %v1808 = vunpack.c.l.b16 %v82
    %v1809 = vunpack.c.h.b16 %v82
    %v1810 = vunpack.c.l.b16 %v83
    %v1811 = vunpack.c.h.b16 %v83
    %v1812 = vunpack.c.l.b16 %v84
    %v1813 = vunpack.c.h.b16 %v84
    %v1814 = vunpack.c.l.b16 %v85
    %v1815 = vunpack.c.l.b16 %v86
    %v1816 = vunpack.c.h.b16 %v86
    %v1817 = vunpack.c.l.b16 %v87
    %v1818 = vunpack.c.h.b16 %v87
    %v1819 = vunpack.c.l.b16 %v88
    %v1820 = vunpack.c.h.b16 %v88
    %v1821 = vunpack.c.l.b16 %v89
    %v1822 = vunpack.c.l.b16 %v90
    %v1823 = vunpack.c.h.b16 %v90
    %v1824 = vunpack.c.l.b16 %v91
    %v1825 = vunpack.c.h.b16 %v91
    %v1826 = vunpack.c.l.b16 %v92
    %v1827 = vunpack.c.h.b16 %v92
    %v1828 = vunpack.c.l.b16 %v93
    %v1829 = vunpack.c.l.b16 %v94
    %v1830 = vunpack.c.h.b16 %v94
    %v1831 = vunpack.c.l.b16 %v95
    %v1832 = vunpack.c.h.b16 %v95
    %v1833 = vunpack.c.l.b16 %v96
    %v1834 = vunpack.c.h.b16 %v96
    %v1835 = vunpack.c.l.b16 %v97
    %v1836 = vunpack.c.l.b16 %v98
    %v1837 = vunpack.c.h.b16 %v98
    %v1838 = vunpack.c.l.b16 %v99
    %v1839 = vunpack.c.h.b16 %v99
    %v1840 = vunpack.c.l.b16 %v100
    %v1841 = vunpack.c.h.b16 %v100
    %v1842 = vunpack.c.l.b16 %v101
    %v1843 = vunpack.c.l.b16 %v102
    %v1844 = vunpack.c.h.b16 %v102
    %v1845 = vunpack.c.l.b16 %v103
    %v1846 = vunpack.c.h.b16 %v103
    %v1847 = vunpack.c.l.b16 %v104
    %v1848 = vunpack.c.h.b16 %v104
    %v1849 = vunpack.c.l.b16 %v105
    %v1850 = vunpack.c.l.b16 %v106
    %v1851 = vunpack.c.h.b16 %v106
    %v1852 = vunpack.c.l.b16 %v107
    %v1853 = vunpack.c.h.b16 %v107
    %v1854 = vunpack.c.l.b16 %v108
    %v1855 = vunpack.c.h.b16 %v108
    %v1856 = vunpack.c.l.b16 %v109
    %v1857 = vunpack.c.l.b16 %v110
    %v1858 = vunpack.c.h.b16 %v110
    %v1859 = vunpack.c.l.b16 %v111
    %v1860 = vunpack.c.h.b16 %v111
    %v1861 = vunpack.c.l.b16 %v112
    %v1862 = vunpack.c.h.b16 %v112
    %v1863 = vunpack.c.l.b16 %v113
    %v1864 = vunpack.c.l.b16 %v114
    %v1865 = vunpack.c.h.b16 %v114
    %v1866 = vunpack.c.l.b16 %v115
    %v1867 = vunpack.c.h.b16 %v115
    %v1868 = vunpack.c.l.b16 %v116
    %v1869 = vunpack.c.h.b16 %v116
    %v1870 = vunpack.c.l.b16 %v117
    %v1871 = vunpack.c.l.b16 %v118
    %v1872 = vunpack.c.h.b16 %v118
    %v1873 = vunpack.c.l.b16 %v119
    %v1874 = vunpack.c.h.b16 %v119
    %v1875 = vunpack.c.l.b16 %v120
    %v1876 = vunpack.c.h.b16 %v120
    %v1877 = vunpack.c.l.b16 %v121
    %v1878 = vunpack.c.l.b16 %v122
    %v1879 = vunpack.c.h.b16 %v122
    %v1880 = vunpack.c.l.b16 %v123
    %v1881 = vunpack.c.h.b16 %v123
    %v1882 = vunpack.c.l.b16 %v124
    %v1883 = vunpack.c.h.b16 %v124
    %v1884 = vunpack.c.l.b16 %v125
    %v1885 = vunpack.c.l.b16 %v126
    %v1886 = vunpack.c.h.b16 %v126
    %v1887 = vunpack.c.l.b16 %v127
    %v1888 = vunpack.c.h.b16 %v127
    %v1889 = vunpack.c.l.b16 %v128
    %v1890 = vunpack.c.h.b16 %v128
    %v1891 = vunpack.c.l.b16 %v129
    %v1892 = vunpack.c.l.b16 %v130
    %v1893 = vunpack.c.h.b16 %v130
    %v1894 = vunpack.c.l.b16 %v131
    %v1895 = vunpack.c.h.b16 %v131
    %v1896 = vunpack.c.l.b16 %v132
    %v1897 = vunpack.c.h.b16 %v132
    %v1898 = vunpack.c.l.b16 %v133
    %v1899 = vunpack.c.l.b16 %v134
    %v1900 = vunpack.c.h.b16 %v134
    %v1901 = vunpack.c.l.b16 %v135
    %v1902 = vunpack.c.h.b16 %v135
    %v1903 = vunpack.c.l.b16 %v136
    %v1904 = vunpack.c.h.b16 %v136
    %v1905 = vunpack.c.l.b16 %v137
    %v1906 = vunpack.c.l.b16 %v138
    %v1907 = vunpack.c.h.b16 %v138
    %v1908 = vunpack.c.l.b16 %v139
    %v1909 = vunpack.c.h.b16 %v139
    %v1910 = vunpack.c.l.b16 %v140
    %v1911 = vunpack.c.h.b16 %v140
    %v1912 = vunpack.c.l.b16 %v141
    %v1913 = vunpack.c.l.b16 %v142
    %v1914 = vunpack.c.h.b16 %v142
    %v1915 = vunpack.c.l.b16 %v143
    %v1916 = vunpack.c.h.b16 %v143
    %v1917 = vunpack.c.l.b16 %v144
    %v1918 = vunpack.c.h.b16 %v144
    %v1919 = vunpack.c.l.b16 %v145
    %v1920 = vunpack.c.l.b16 %v146
    %v1921 = vunpack.c.h.b16 %v146
    %v1922 = vunpack.c.l.b16 %v147
    %v1923 = vunpack.c.h.b16 %v147
    %v1924 = vunpack.c.l.b16 %v148
    %v1925 = vunpack.c.h.b16 %v148
    %v1926 = vunpack.c.l.b16 %v149
    %v1927 = vunpack.c.l.b16 %v150
    %v1928 = vunpack.c.h.b16 %v150
    %v1929 = vunpack.c.l.b16 %v151
    %v1930 = vunpack.c.h.b16 %v151
    %v1931 = vunpack.c.l.b16 %v152
    %v1932 = vunpack.c.h.b16 %v152
    %v1933 = vunpack.c.l.b16 %v153
    %v1934 = vunpack.c.l.b16 %v154
    %v1935 = vunpack.c.h.b16 %v154
    %v1936 = vunpack.c.l.b16 %v155
    %v1937 = vunpack.c.h.b16 %v155
    %v1938 = vunpack.c.l.b16 %v156
    %v1939 = vunpack.c.h.b16 %v156
    %v1940 = vunpack.c.l.b16 %v157
    %v1941 = vunpack.c.l.b16 %v158
    %v1942 = vunpack.c.h.b16 %v158
    %v1943 = vunpack.c.l.b16 %v159
    %v1944 = vunpack.c.h.b16 %v159
    %v1945 = vunpack.c.l.b16 %v160
    %v1946 = vunpack.c.h.b16 %v160
    %v1947 = vunpack.c.l.b16 %v161
    %v1948 = vunpack.c.l.b16 %v162
    %v1949 = vunpack.c.h.b16 %v162
    %v1950 = vunpack.c.l.b16 %v163
    %v1951 = vunpack.c.h.b16 %v163
    %v1952 = vunpack.c.l.b16 %v164
    %v1953 = vunpack.c.h.b16 %v164
    %v1954 = vunpack.c.l.b16 %v165
    %v1955 = vunpack.c.l.b16 %v166
    %v1956 = vunpack.c.h.b16 %v166
    %v1957 = vunpack.c.l.b16 %v167
    %v1958 = vunpack.c.h.b16 %v167
    %v1959 = vunpack.c.l.b16 %v168
    %v1960 = vunpack.c.h.b16 %v168
    %v1961 = vunpack.c.l.b16 %v169
    %v1962 = vunpack.c.l.b16 %v170
    %v1963 = vunpack.c.h.b16 %v170
    %v1964 = vunpack.c.l.b16 %v171
    %v1965 = vunpack.c.h.b16 %v171
    %v1966 = vunpack.c.l.b16 %v172
    %v1967 = vunpack.c.h.b16 %v172
    %v1968 = vunpack.c.l.b16 %v173
    %v1969 = vunpack.c.l.b16 %v174
    %v1970 = vunpack.c.h.b16 %v174
    %v1971 = vunpack.c.l.b16 %v175
    %v1972 = vunpack.c.h.b16 %v175
    %v1973 = vunpack.c.l.b16 %v176
    %v1974 = vunpack.c.h.b16 %v176
    %v1975 = vunpack.c.l.b16 %v177
    %v1976 = vunpack.c.l.b16 %v178
    %v1977 = vunpack.c.h.b16 %v178
    %v1978 = vunpack.c.l.b16 %v179
    %v1979 = vunpack.c.h.b16 %v179
    %v1980 = vunpack.c.l.b16 %v180
    %v1981 = vunpack.c.h.b16 %v180
    %v1982 = vunpack.c.l.b16 %v181
    %v1983 = vunpack.c.l.b16 %v182
    %v1984 = vunpack.c.h.b16 %v182
    %v1985 = vunpack.c.l.b16 %v183
    %v1986 = vunpack.c.h.b16 %v183
    %v1987 = vunpack.c.l.b16 %v184
    %v1988 = vunpack.c.h.b16 %v184
    %v1989 = vunpack.c.l.b16 %v185
    %v1990 = vunpack.c.l.b16 %v186
    %v1991 = vunpack.c.h.b16 %v186
    %v1992 = vunpack.c.l.b16 %v187
    %v1993 = vunpack.c.h.b16 %v187
    %v1994 = vunpack.c.l.b16 %v188
    %v1995 = vunpack.c.h.b16 %v188
    %v1996 = vunpack.c.l.b16 %v189
    %v1997 = vunpack.c.l.b16 %v190
    %v1998 = vunpack.c.h.b16 %v190
    %v1999 = vunpack.c.l.b16 %v191
    %v2000 = vunpack.c.h.b16 %v191
    %v2001 = vunpack.c.l.b16 %v192
    %v2002 = vunpack.c.h.b16 %v192
    %v2003 = vunpack.c.l.b16 %v193
    %v2004 = vunpack.c.l.b16 %v194
    %v2005 = vunpack.c.h.b16 %v194
    %v2006 = vunpack.c.l.b16 %v195
    %v2007 = vunpack.c.h.b16 %v195
    %v2008 = vunpack.c.l.b16 %v196
    %v2009 = vunpack.c.h.b16 %v196
    %v2010 = vunpack.c.l.b16 %v197
    %v2011 = vunpack.c.l.b16 %v198
    %v2012 = vunpack.c.h.b16 %v198
    %v2013 = vunpack.c.l.b16 %v199
    %v2014 = vunpack.c.h.b16 %v199
    %v2015 = vunpack.c.l.b16 %v200
    %v2016 = vunpack.c.h.b16 %v200
    %v2017 = vunpack.c.l.b16 %v201
    %v2018 = vunpack.c.l.b16 %v202
    %v2019 = vunpack.c.h.b16 %v202
    %v2020 = vunpack.c.l.b16 %v203
    %v2021 = vunpack.c.h.b16 %v203
    %v2022 = vunpack.c.l.b16 %v204
    %v2023 = vunpack.c.h.b16 %v204
    %v2024 = vunpack.c.l.b16 %v205
    %v2025 = vunpack.c.l.b16 %v206
    %v2026 = vunpack.c.h.b16 %v206
    %v2027 = vunpack.c.l.b16 %v207
    %v2028 = vunpack.c.h.b16 %v207
    %v2029 = vunpack.c.l.b16 %v208
    %v2030 = vunpack.c.h.b16 %v208
    %v2031 = vunpack.c.l.b16 %v209
    %v2032 = vunpack.c.l.b16 %v210
    %v2033 = vunpack.c.h.b16 %v210
    %v2034 = vunpack.c.l.b16 %v211
    %v2035 = vunpack.c.h.b16 %v211
    %v2036 = vunpack.c.l.b16 %v212
    %v2037 = vunpack.c.h.b16 %v212
    %v2038 = vunpack.c.l.b16 %v213
    %v2039 = vunpack.c.l.b16 %v214
    %v2040 = vunpack.c.h.b16 %v214
    %v2041 = vunpack.c.l.b16 %v215
    %v2042 = vunpack.c.h.b16 %v215
    %v2043 = vunpack.c.l.b16 %v216
    %v2044 = vunpack.c.h.b16 %v216
    %v2045 = vunpack.c.l.b16 %v217
    %v2046 = vunpack.c.l.b16 %v218
    %v2047 = vunpack.c.h.b16 %v218
    %v2048 = vunpack.c.l.b16 %v219
    %v2049 = vunpack.c.h.b16 %v219
    %v2050 = vunpack.c.l.b16 %v220
    %v2051 = vunpack.c.h.b16 %v220
    %v2052 = vunpack.c.l.b16 %v221
    %v2053 = vunpack.c.l.b16 %v222
    %v2054 = vunpack.c.h.b16 %v222
    %v2055 = vunpack.c.l.b16 %v223
    %v2056 = vunpack.c.h.b16 %v223
    %v2057 = vunpack.c.l.b16 %v224
    %v2058 = vunpack.c.h.b16 %v224
    %v2059 = vunpack.c.l.b16 %v225
    %v2060 = vunpack.c.l.b16 %v226
    %v2061 = vunpack.c.h.b16 %v226
    %v2062 = vunpack.c.l.b16 %v227
    %v2063 = vunpack.c.h.b16 %v227
    %v2064 = vunpack.c.l.b16 %v228
    %v2065 = vunpack.c.h.b16 %v228
    %v2066 = vunpack.c.l.b16 %v229
    %v2067 = vunpack.c.l.b16 %v230
    %v2068 = vunpack.c.h.b16 %v230
    %v2069 = vunpack.c.l.b16 %v231
    %v2070 = vunpack.c.h.b16 %v231
    %v2071 = vunpack.c.l.b16 %v232
    %v2072 = vunpack.c.h.b16 %v232
    %v2073 = vunpack.c.l.b16 %v233
    %v2074 = vunpack.c.l.b16 %v234
    %v2075 = vunpack.c.h.b16 %v234
    %v2076 = vunpack.c.l.b16 %v235
    %v2077 = vunpack.c.h.b16 %v235
    %v2078 = vunpack.c.l.b16 %v236
    %v2079 = vunpack.c.h.b16 %v236
    %v2080 = vunpack.c.l.b16 %v237
    %v2081 = vunpack.c.l.b16 %v238
    %v2082 = vunpack.c.h.b16 %v238
    %v2083 = vunpack.c.l.b16 %v239
    %v2084 = vunpack.c.h.b16 %v239
    %v2085 = vunpack.c.l.b16 %v240
    %v2086 = vunpack.c.h.b16 %v240
    %v2087 = vunpack.c.l.b16 %v241
    %v2088 = vunpack.c.l.b16 %v242
    %v2089 = vunpack.c.h.b16 %v242
    %v2090 = vunpack.c.l.b16 %v243
    %v2091 = vunpack.c.h.b16 %v243
    %v2092 = vunpack.c.l.b16 %v244
    %v2093 = vunpack.c.h.b16 %v244
    %v2094 = vunpack.c.l.b16 %v245
    %v2095 = vunpack.c.l.b16 %v246
    %v2096 = vunpack.c.h.b16 %v246
    %v2097 = vunpack.c.l.b16 %v247
    %v2098 = vunpack.c.h.b16 %v247
    %v2099 = vunpack.c.l.b16 %v248
    %v2100 = vunpack.c.h.b16 %v248
    %v2101 = vunpack.c.l.b16 %v249
    %v2102 = vunpack.c.l.b16 %v250
    %v2103 = vunpack.c.h.b16 %v250
    %v2104 = vunpack.c.l.b16 %v251
    %v2105 = vunpack.c.h.b16 %v251
    %v2106 = vunpack.c.l.b16 %v252
    %v2107 = vunpack.c.h.b16 %v252
    %v2108 = vunpack.c.l.b16 %v253
    %v2109 = vunpack.c.l.b16 %v254
    %v2110 = vunpack.c.h.b16 %v254
    %v2111 = vunpack.c.l.b16 %v255
    %v2112 = vunpack.c.h.b16 %v255
    %v2113 = vunpack.c.l.b16 %v256
    %v2114 = vunpack.c.h.b16 %v256
    %v2115 = vunpack.c.l.b16 %v257
    %v2116 = vunpack.c.l.b16 %v258
    %v2117 = vunpack.c.h.b16 %v258
    %v2118 = vunpack.c.l.b16 %v259
    %v2119 = vunpack.c.h.b16 %v259
    %v2120 = vunpack.c.l.b16 %v260
    %v2121 = vunpack.c.h.b16 %v260
    %v2122 = vunpack.c.l.b16 %v261
    %v2123 = vunpack.c.l.b16 %v262
    %v2124 = vunpack.c.h.b16 %v262
    %v2125 = vunpack.c.l.b16 %v263
    %v2126 = vunpack.c.h.b16 %v263
    %v2127 = vunpack.c.l.b16 %v264
    %v2128 = vunpack.c.h.b16 %v264
    %v2129 = vunpack.c.l.b16 %v265
    %v2130 = vunpack.c.l.b16 %v266
    %v2131 = vunpack.c.h.b16 %v266
    %v2132 = vunpack.c.l.b16 %v267
    %v2133 = vunpack.c.h.b16 %v267
    %v2134 = vunpack.c.l.b16 %v268
    %v2135 = vunpack.c.h.b16 %v268
    %v2136 = vunpack.c.l.b16 %v269
    %v2137 = vunpack.c.l.b16 %v270
    %v2138 = vunpack.c.h.b16 %v270
    %v2139 = vunpack.c.l.b16 %v271
    %v2140 = vunpack.c.h.b16 %v271
    %v2141 = vunpack.c.l.b16 %v272
    %v2142 = vunpack.c.h.b16 %v272
    %v2143 = vunpack.c.l.b16 %v273
    %v2144 = vunpack.c.l.b16 %v274
    %v2145 = vunpack.c.h.b16 %v274
    %v2146 = vunpack.c.l.b16 %v275
    %v2147 = vunpack.c.h.b16 %v275
    %v2148 = vunpack.c.l.b16 %v276
    %v2149 = vunpack.c.h.b16 %v276
    %v2150 = vunpack.c.l.b16 %v277
    %v2151 = vunpack.c.l.b16 %v278
    %v2152 = vunpack.c.h.b16 %v278
    %v2153 = vunpack.c.l.b16 %v279
    %v2154 = vunpack.c.h.b16 %v279
    %v2155 = vunpack.c.l.b16 %v280
    %v2156 = vunpack.c.h.b16 %v280
    %v2157 = vunpack.c.l.b16 %v281
    %v2158 = vunpack.c.l.b16 %v282
    %v2159 = vunpack.c.h.b16 %v282
    %v2160 = vunpack.c.l.b16 %v283
    %v2161 = vunpack.c.h.b16 %v283
    %v2162 = vunpack.c.l.b16 %v284
    %v2163 = vunpack.c.h.b16 %v284
    %v2164 = vunpack.c.l.b16 %v285
    %v2165 = vunpack.c.l.b16 %v286
    %v2166 = vunpack.c.h.b16 %v286
    %v2167 = vunpack.c.l.b16 %v287
    %v2168 = vunpack.c.h.b16 %v287
    %v2169 = vunpack.c.l.b16 %v288
    %v2170 = vunpack.c.h.b16 %v288
    %v2171 = vunpack.c.l.b16 %v289
    %v2172 = vunpack.c.l.b16 %v290
    %v2173 = vunpack.c.h.b16 %v290
    %v2174 = vunpack.c.l.b16 %v291
    %v2175 = vunpack.c.h.b16 %v291
    %v2176 = vunpack.c.l.b16 %v292
    %v2177 = vunpack.c.h.b16 %v292
    %v2178 = vunpack.c.l.b16 %v293
    %v2179 = vunpack.c.l.b16 %v294
    %v2180 = vunpack.c.h.b16 %v294
    %v2181 = vunpack.c.l.b16 %v295
    %v2182 = vunpack.c.h.b16 %v295
    %v2183 = vunpack.c.l.b16 %v296
    %v2184 = vunpack.c.h.b16 %v296
    %v2185 = vunpack.c.l.b16 %v297
    %v2186 = vunpack.c.l.b16 %v298
    %v2187 = vunpack.c.h.b16 %v298
    %v2188 = vunpack.c.l.b16 %v299
    %v2189 = vunpack.c.h.b16 %v299
    %v2190 = vunpack.c.l.b16 %v300
    %v2191 = vunpack.c.h.b16 %v300
    %v2192 = vunpack.c.l.b16 %v301
    %v2193 = vunpack.c.l.b16 %v302
    %v2194 = vunpack.c.h.b16 %v302
    %v2195 = vunpack.c.l.b16 %v303
    %v2196 = vunpack.c.h.b16 %v303
    %v2197 = vunpack.c.l.b16 %v304
    %v2198 = vunpack.c.h.b16 %v304
    %v2199 = vunpack.c.l.b16 %v305
    %v2200 = vunpack.c.l.b16 %v306
    %v2201 = vunpack.c.h.b16 %v306
    %v2202 = vunpack.c.l.b16 %v307
    %v2203 = vunpack.c.h.b16 %v307
    %v2204 = vunpack.c.l.b16 %v308
    %v2205 = vunpack.c.h.b16 %v308
    %v2206 = vunpack.c.l.b16 %v309
    %v2207 = vunpack.c.l.b16 %v310
    %v2208 = vunpack.c.h.b16 %v310
    %v2209 = vunpack.c.l.b16 %v311
    %v2210 = vunpack.c.h.b16 %v311
    %v2211 = vunpack.c.l.b16 %v312
    %v2212 = vunpack.c.h.b16 %v312
    %v2213 = vunpack.c.l.b16 %v313
    %v2214 = vunpack.c.l.b16 %v314
    %v2215 = vunpack.c.h.b16 %v314
    %v2216 = vunpack.c.l.b16 %v315
    %v2217 = vunpack.c.h.b16 %v315
    %v2218 = vunpack.c.l.b16 %v316
    %v2219 = vunpack.c.h.b16 %v316
    %v2220 = vunpack.c.l.b16 %v317
    %v2221 = vunpack.c.l.b16 %v318
    %v2222 = vunpack.c.h.b16 %v318
    %v2223 = vunpack.c.l.b16 %v319
    %v2224 = vunpack.c.h.b16 %v319
    %v2225 = vunpack.c.l.b16 %v320
    %v2226 = vunpack.c.h.b16 %v320
    %v2227 = vunpack.c.l.b16 %v321
    %v2228 = vunpack.c.l.b16 %v322
    %v2229 = vunpack.c.h.b16 %v322
    %v2230 = vunpack.c.l.b16 %v323
    %v2231 = vunpack.c.h.b16 %v323
    %v2232 = vunpack.c.l.b16 %v324
    %v2233 = vunpack.c.h.b16 %v324
    %v2234 = vunpack.c.l.b16 %v325
    %v2235 = vunpack.c.l.b16 %v326
    %v2236 = vunpack.c.h.b16 %v326
    %v2237 = vunpack.c.l.b16 %v327
    %v2238 = vunpack.c.h.b16 %v327
    %v2239 = vunpack.c.l.b16 %v328
    %v2240 = vunpack.c.h.b16 %v328
    %v2241 = vunpack.c.l.b16 %v329
    %v2242 = vunpack.c.l.b16 %v330
    %v2243 = vunpack.c.h.b16 %v330
    %v2244 = vunpack.c.l.b16 %v331
    %v2245 = vunpack.c.h.b16 %v331
    %v2246 = vunpack.c.l.b16 %v332
    %v2247 = vunpack.c.h.b16 %v332
    %v2248 = vunpack.c.l.b16 %v333
    %v2249 = vunpack.c.l.b16 %v334
    %v2250 = vunpack.c.h.b16 %v334
    %v2251 = vunpack.c.l.b16 %v335
    %v2252 = vunpack.c.h.b16 %v335
    %v2253 = vunpack.c.l.b16 %v336
    %v2254 = vunpack.c.h.b16 %v336
    %v2255 = vunpack.c.l.b16 %v337
    %v2256 = vunpack.c.l.b16 %v338
    %v2257 = vunpack.c.h.b16 %v338
    %v2258 = vunpack.c.l.b16 %v339
    %v2259 = vunpack.c.h.b16 %v339
    %v2260 = vunpack.c.l.b16 %v340
    %v2261 = vunpack.c.h.b16 %v340
    %v2262 = vunpack.c.l.b16 %v341
    %v2263 = vunpack.c.l.b16 %v342
    %v2264 = vunpack.c.h.b16 %v342
    %v2265 = vunpack.c.l.b16 %v343
    %v2266 = vunpack.c.h.b16 %v343
    %v2267 = vunpack.c.l.b16 %v344
    %v2268 = vunpack.c.h.b16 %v344
    %v2269 = vunpack.c.l.b16 %v345
    %v2270 = vunpack.c.l.b16 %v346
    %v2271 = vunpack.c.h.b16 %v346
    %v2272 = vunpack.c.l.b16 %v347
    %v2273 = vunpack.c.h.b16 %v347
    %v2274 = vunpack.c.l.b16 %v348
    %v2275 = vunpack.c.h.b16 %v348
    %v2276 = vunpack.c.l.b16 %v349
    %v2277 = vunpack.c.l.b16 %v350
    %v2278 = vunpack.c.h.b16 %v350
    %v2279 = vunpack.c.l.b16 %v351
    %v2280 = vunpack.c.h.b16 %v351
    %v2281 = vunpack.c.l.b16 %v352
    %v2282 = vunpack.c.h.b16 %v352
    %v2283 = vunpack.c.l.b16 %v353
    %v2284 = vunpack.c.l.b16 %v354
    %v2285 = vunpack.c.h.b16 %v354
    %v2286 = vunpack.c.l.b16 %v355
    %v2287 = vunpack.c.h.b16 %v355
    %v2288 = vunpack.c.l.b16 %v356
    %v2289 = vunpack.c.h.b16 %v356
    %v2290 = vunpack.c.l.b16 %v357
    %v2291 = vunpack.c.l.b16 %v358
    %v2292 = vunpack.c.h.b16 %v358
    %v2293 = vunpack.c.l.b16 %v359
    %v2294 = vunpack.c.h.b16 %v359
    %v2295 = vunpack.c.l.b16 %v360
    %v2296 = vunpack.c.h.b16 %v360
    %v2297 = vunpack.c.l.b16 %v361
    %v2298 = vunpack.c.l.b16 %v362
    %v2299 = vunpack.c.h.b16 %v362
    %v2300 = vunpack.c.l.b16 %v363
    %v2301 = vunpack.c.h.b16 %v363
    %v2302 = vunpack.c.l.b16 %v364
    %v2303 = vunpack.c.h.b16 %v364
    %v2304 = vunpack.c.l.b16 %v365
    %v2305 = vunpack.c.l.b16 %v366
    %v2306 = vunpack.c.h.b16 %v366
    %v2307 = vunpack.c.l.b16 %v367
    %v2308 = vunpack.c.h.b16 %v367
    %v2309 = vunpack.c.l.b16 %v368
    %v2310 = vunpack.c.h.b16 %v368
    %v2311 = vunpack.c.l.b16 %v369
    %v2312 = vunpack.c.l.b16 %v370
    %v2313 = vunpack.c.h.b16 %v370
    %v2314 = vunpack.c.l.b16 %v371
    %v2315 = vunpack.c.h.b16 %v371
    %v2316 = vunpack.c.l.b16 %v372
    %v2317 = vunpack.c.h.b16 %v372
    %v2318 = vunpack.c.l.b16 %v373
    %v2319 = vunpack.c.l.b16 %v374
    %v2320 = vunpack.c.h.b16 %v374
    %v2321 = vunpack.c.l.b16 %v375
    %v2322 = vunpack.c.h.b16 %v375
    %v2323 = vunpack.c.l.b16 %v376
    %v2324 = vunpack.c.h.b16 %v376
    %v2325 = vunpack.c.l.b16 %v377
    %v2326 = vunpack.c.l.b16 %v378
    %v2327 = vunpack.c.h.b16 %v378
    %v2328 = vunpack.c.l.b16 %v379
    %v2329 = vunpack.c.h.b16 %v379
    %v2330 = vunpack.c.l.b16 %v380
    %v2331 = vunpack.c.h.b16 %v380
    %v2332 = vunpack.c.l.b16 %v381
    %v2333 = vunpack.c.l.b16 %v382
    %v2334 = vunpack.c.h.b16 %v382
    %v2335 = vunpack.c.l.b16 %v383
    %v2336 = vunpack.c.h.b16 %v383
    %v2337 = vunpack.c.l.b16 %v384
    %v2338 = vunpack.c.h.b16 %v384
    %v2339 = vunpack.c.l.b16 %v385
    %v2340 = vunpack.c.l.b16 %v386
    %v2341 = vunpack.c.h.b16 %v386
    %v2342 = vunpack.c.l.b16 %v387
    %v2343 = vunpack.c.h.b16 %v387
    %v2344 = vunpack.c.l.b16 %v388
    %v2345 = vunpack.c.h.b16 %v388
    %v2346 = vunpack.c.l.b16 %v389
    %v2347 = vunpack.c.l.b16 %v390
    %v2348 = vunpack.c.h.b16 %v390
    %v2349 = vunpack.c.l.b16 %v391
    %v2350 = vunpack.c.h.b16 %v391
    %v2351 = vunpack.c.l.b16 %v392
    %v2352 = vunpack.c.h.b16 %v392
    %v2353 = vunpack.c.l.b16 %v393
    %v2354 = vunpack.c.l.b16 %v394
    %v2355 = vunpack.c.h.b16 %v394
    %v2356 = vunpack.c.l.b16 %v395
    %v2357 = vunpack.c.h.b16 %v395
    %v2358 = vunpack.c.l.b16 %v396
    %v2359 = vunpack.c.h.b16 %v396
    %v2360 = vunpack.c.l.b16 %v397
    %v2361 = vunpack.c.l.b16 %v398
    %v2362 = vunpack.c.h.b16 %v398
    %v2363 = vunpack.c.l.b16 %v399
    %v2364 = vunpack.c.h.b16 %v399
    %v2365 = vunpack.c.l.b16 %v400
    %v2366 = vunpack.c.h.b16 %v400
    %v2367 = vunpack.c.l.b16 %v401
    %v2368 = vunpack.c.l.b16 %v402
    %v2369 = vunpack.c.h.b16 %v402
    %v2370 = vunpack.c.l.b16 %v403
    %v2371 = vunpack.c.h.b16 %v403
    %v2372 = vunpack.c.l.b16 %v404
    %v2373 = vunpack.c.h.b16 %v404
    %v2374 = vunpack.c.l.b16 %v405
    %v2375 = vunpack.c.l.b16 %v406
    %v2376 = vunpack.c.h.b16 %v406
    %v2377 = vunpack.c.l.b16 %v407
    %v2378 = vunpack.c.h.b16 %v407
    %v2379 = vunpack.c.l.b16 %v408
    %v2380 = vunpack.c.h.b16 %v408
    %v2381 = vunpack.c.l.b16 %v409
    %v2382 = vunpack.c.l.b16 %v410
    %v2383 = vunpack.c.h.b16 %v410
    %v2384 = vunpack.c.l.b16 %v411
    %v2385 = vunpack.c.h.b16 %v411
    %v2386 = vunpack.c.l.b16 %v412
    %v2387 = vunpack.c.h.b16 %v412
    %v2388 = vunpack.c.l.b16 %v413
    %v2389 = vunpack.c.l.b16 %v414
    %v2390 = vunpack.c.h.b16 %v414
    %v2391 = vunpack.c.l.b16 %v415
    %v2392 = vunpack.c.h.b16 %v415
    %v2393 = vunpack.c.l.b16 %v416
    %v2394 = vunpack.c.h.b16 %v416
    %v2395 = vunpack.c.l.b16 %v417
    %v2396 = vunpack.c.l.b16 %v418
    %v2397 = vunpack.c.h.b16 %v418
    %v2398 = vunpack.c.l.b16 %v419
    %v2399 = vunpack.c.h.b16 %v419
    %v2400 = vunpack.c.l.b16 %v420
    %v2401 = vunpack.c.h.b16 %v420
    %v2402 = vunpack.c.l.b16 %v421
    %v2403 = vunpack.c.l.b16 %v422
    %v2404 = vunpack.c.h.b16 %v422
    %v2405 = vunpack.c.l.b16 %v423
    %v2406 = vunpack.c.h.b16 %v423
    %v2407 = vunpack.c.l.b16 %v424
    %v2408 = vunpack.c.h.b16 %v424
    %v2409 = vunpack.c.l.b16 %v425
    %v2410 = vunpack.c.l.b16 %v426
    %v2411 = vunpack.c.h.b16 %v426
    %v2412 = vunpack.c.l.b16 %v427
    %v2413 = vunpack.c.h.b16 %v427
    %v2414 = vunpack.c.l.b16 %v428
    %v2415 = vunpack.c.h.b16 %v428
    %v2416 = vunpack.c.l.b16 %v429
    %v2417 = vunpack.c.l.b16 %v430
    %v2418 = vunpack.c.h.b16 %v430
    %v2419 = vunpack.c.l.b16 %v431
    %v2420 = vunpack.c.h.b16 %v431
    %v2421 = vunpack.c.l.b16 %v432
    %v2422 = vunpack.c.h.b16 %v432
    %v2423 = vunpack.c.l.b16 %v433
    %v2424 = vunpack.c.l.b16 %v434
    %v2425 = vunpack.c.h.b16 %v434
    %v2426 = vunpack.c.l.b16 %v435
    %v2427 = vunpack.c.h.b16 %v435
    %v2428 = vunpack.c.l.b16 %v436
    %v2429 = vunpack.c.h.b16 %v436
    %v2430 = vunpack.c.l.b16 %v437
    %v2431 = vunpack.c.l.b16 %v438
    %v2432 = vunpack.c.h.b16 %v438
    %v2433 = vunpack.c.l.b16 %v439
    %v2434 = vunpack.c.h.b16 %v439
    %v2435 = vunpack.c.l.b16 %v440
    %v2436 = vunpack.c.h.b16 %v440
    %v2437 = vunpack.c.l.b16 %v441
    %v2438 = vunpack.c.l.b16 %v442
    %v2439 = vunpack.c.h.b16 %v442
    %v2440 = vunpack.c.l.b16 %v443
    %v2441 = vunpack.c.h.b16 %v443
    %v2442 = vunpack.c.l.b16 %v444
    %v2443 = vunpack.c.h.b16 %v444
    %v2444 = vunpack.c.l.b16 %v445
    %v2445 = vunpack.c.l.b16 %v446
    %v2446 = vunpack.c.h.b16 %v446
    %v2447 = vunpack.c.l.b16 %v447
    %v2448 = vunpack.c.h.b16 %v447
    %v2449 = vunpack.c.l.b16 %v448
    %v2450 = vunpack.c.h.b16 %v448
    %v2451 = vunpack.c.l.b16 %v449
    %v2452 = vunpack.c.l.b16 %v450
    %v2453 = vunpack.c.h.b16 %v450
    %v2454 = vunpack.c.l.b16 %v451
    %v2455 = vunpack.c.h.b16 %v451
    %v2456 = vunpack.c.l.b16 %v452
    %v2457 = vunpack.c.h.b16 %v452
    %v2458 = vunpack.c.l.b16 %v453
    %v2459 = vunpack.c.l.b16 %v454
    %v2460 = vunpack.c.h.b16 %v454
    %v2461 = vunpack.c.l.b16 %v455
    %v2462 = vunpack.c.h.b16 %v455
    %v2463 = vunpack.c.l.b16 %v456
    %v2464 = vunpack.c.h.b16 %v456
    %v2465 = vunpack.c.l.b16 %v457
    %v2466 = vunpack.c.l.b16 %v458
    %v2467 = vunpack.c.h.b16 %v458
    %v2468 = vunpack.c.l.b16 %v459
    %v2469 = vunpack.c.h.b16 %v459
    %v2470 = vunpack.c.l.b16 %v460
    %v2471 = vunpack.c.h.b16 %v460
    %v2472 = vunpack.c.l.b16 %v461
    %v2473 = vunpack.c.l.b16 %v462
    %v2474 = vunpack.c.h.b16 %v462
    %v2475 = vunpack.c.l.b16 %v463
    %v2476 = vunpack.c.h.b16 %v463
    %v2477 = vunpack.c.l.b16 %v464
    %v2478 = vunpack.c.h.b16 %v464
    %v2479 = vunpack.c.l.b16 %v465
    %v2480 = vunpack.c.l.b16 %v466
    %v2481 = vunpack.c.h.b16 %v466
    %v2482 = vunpack.c.l.b16 %v467
    %v2483 = vunpack.c.h.b16 %v467
    %v2484 = vunpack.c.l.b16 %v468
    %v2485 = vunpack.c.h.b16 %v468
    %v2486 = vunpack.c.l.b16 %v469
    %v2487 = vunpack.c.l.b16 %v470
    %v2488 = vunpack.c.h.b16 %v470
    %v2489 = vunpack.c.l.b16 %v471
    %v2490 = vunpack.c.h.b16 %v471
    %v2491 = vunpack.c.l.b16 %v472
    %v2492 = vunpack.c.h.b16 %v472
    %v2493 = vunpack.c.l.b16 %v473
    %v2494 = vunpack.c.l.b16 %v474
    %v2495 = vunpack.c.h.b16 %v474
    %v2496 = vunpack.c.l.b16 %v475
    %v2497 = vunpack.c.h.b16 %v475
    %v2498 = vunpack.c.l.b16 %v476
    %v2499 = vunpack.c.h.b16 %v476
    %v2500 = vunpack.c.l.b16 %v477
    %v2501 = vunpack.c.l.b16 %v478
    %v2502 = vunpack.c.h.b16 %v478
    %v2503 = vunpack.c.l.b16 %v479
    %v2504 = vunpack.c.h.b16 %v479
    %v2505 = vunpack.c.l.b16 %v480
    %v2506 = vunpack.c.h.b16 %v480
    %v2507 = vunpack.c.l.b16 %v481
    %v2508 = vunpack.c.l.b16 %v482
    %v2509 = vunpack.c.h.b16 %v482
    %v2510 = vunpack.c.l.b16 %v483
    %v2511 = vunpack.c.h.b16 %v483
    %v2512 = vunpack.c.l.b16 %v484
    %v2513 = vunpack.c.h.b16 %v484
    %v2514 = vunpack.c.l.b16 %v485
    %v2515 = vunpack.c.l.b16 %v486
    %v2516 = vunpack.c.h.b16 %v486
    %v2517 = vunpack.c.l.b16 %v487
    %v2518 = vunpack.c.h.b16 %v487
    %v2519 = vunpack.c.l.b16 %v488
    %v2520 = vunpack.c.h.b16 %v488
    %v2521 = vunpack.c.l.b16 %v489
    %v2522 = vunpack.c.l.b16 %v490
    %v2523 = vunpack.c.h.b16 %v490
    %v2524 = vunpack.c.l.b16 %v491
    %v2525 = vunpack.c.h.b16 %v491
    %v2526 = vunpack.c.l.b16 %v492
    %v2527 = vunpack.c.h.b16 %v492
    %v2528 = vunpack.c.l.b16 %v493
    %v2529 = vunpack.c.l.b16 %v494
    %v2530 = vunpack.c.h.b16 %v494
    %v2531 = vunpack.c.l.b16 %v495
    %v2532 = vunpack.c.h.b16 %v495
    %v2533 = vunpack.c.l.b16 %v496
    %v2534 = vunpack.c.h.b16 %v496
    %v2535 = vunpack.c.l.b16 %v497
    %v2536 = vunpack.c.l.b16 %v498
    %v2537 = vunpack.c.h.b16 %v498
    %v2538 = vunpack.c.l.b16 %v499
    %v2539 = vunpack.c.h.b16 %v499
    %v2540 = vunpack.c.l.b16 %v500
    %v2541 = vunpack.c.h.b16 %v500
    %v2542 = vunpack.c.l.b16 %v501
    %v2543 = vunpack.c.l.b16 %v502
    %v2544 = vunpack.c.h.b16 %v502
    %v2545 = vunpack.c.l.b16 %v503
    %v2546 = vunpack.c.h.b16 %v503
    %v2547 = vunpack.c.l.b16 %v504
    %v2548 = vunpack.c.h.b16 %v504
    %v2549 = vunpack.c.l.b16 %v505
    %v2550 = vunpack.c.l.b16 %v506
    %v2551 = vunpack.c.h.b16 %v506
    %v2552 = vunpack.c.l.b16 %v507
    %v2553 = vunpack.c.h.b16 %v507
    %v2554 = vunpack.c.l.b16 %v508
    %v2555 = vunpack.c.h.b16 %v508
    %v2556 = vunpack.c.l.b16 %v509
    %v2557 = vunpack.c.l.b16 %v510
    %v2558 = vunpack.c.h.b16 %v510
    %v2559 = vunpack.c.l.b16 %v511
    %v2560 = vunpack.c.h.b16 %v511
    %v2561 = vunpack.c.l.b16 %v512
    %v2562 = vunpack.c.h.b16 %v512
    %v2563 = vunpack.c.l.b16 %v513
    %v2564 = vunpack.c.l.b16 %v514
    %v2565 = vunpack.c.h.b16 %v514
    %v2566 = vunpack.c.l.b16 %v515
    %v2567 = vunpack.c.h.b16 %v515
    %v2568 = vunpack.c.l.b16 %v516
    %v2569 = vunpack.c.h.b16 %v516
    %v2570 = vunpack.c.l.b16 %v517
    %v2571 = vunpack.c.l.b16 %v518
    %v2572 = vunpack.c.h.b16 %v518
    %v2573 = vunpack.c.l.b16 %v519
    %v2574 = vunpack.c.h.b16 %v519
    %v2575 = vunpack.c.l.b16 %v520
    %v2576 = vunpack.c.h.b16 %v520
    %v2577 = vunpack.c.l.b16 %v521
    %v2578 = vunpack.c.l.b16 %v522
    %v2579 = vunpack.c.h.b16 %v522
    %v2580 = vunpack.c.l.b16 %v523
    %v2581 = vunpack.c.h.b16 %v523
    %v2582 = vunpack.c.l.b16 %v524
    %v2583 = vunpack.c.h.b16 %v524
    %v2584 = vunpack.c.l.b16 %v525
    %v2585 = vunpack.c.l.b16 %v526
    %v2586 = vunpack.c.h.b16 %v526
    %v2587 = vunpack.c.l.b16 %v527
    %v2588 = vunpack.c.h.b16 %v527
    %v2589 = vunpack.c.l.b16 %v528
    %v2590 = vunpack.c.h.b16 %v528
    %v2591 = vunpack.c.l.b16 %v529
    %v2592 = vunpack.c.l.b16 %v530
    %v2593 = vunpack.c.h.b16 %v530
    %v2594 = vunpack.c.l.b16 %v531
    %v2595 = vunpack.c.h.b16 %v531
    %v2596 = vunpack.c.l.b16 %v532
    %v2597 = vunpack.c.h.b16 %v532
    %v2598 = vunpack.c.l.b16 %v533
    %v2599 = vunpack.c.l.b16 %v534
    %v2600 = vunpack.c.h.b16 %v534
    %v2601 = vunpack.c.l.b16 %v535
    %v2602 = vunpack.c.h.b16 %v535
    %v2603 = vunpack.c.l.b16 %v536
    %v2604 = vunpack.c.h.b16 %v536
    %v2605 = vunpack.c.l.b16 %v537
    %v2606 = vunpack.c.l.b16 %v538
    %v2607 = vunpack.c.h.b16 %v538
    %v2608 = vunpack.c.l.b16 %v539
    %v2609 = vunpack.c.h.b16 %v539
    %v2610 = vunpack.c.l.b16 %v540
    %v2611 = vunpack.c.h.b16 %v540
    %v2612 = vunpack.c.l.b16 %v541
    %v2613 = vunpack.c.l.b16 %v542
    %v2614 = vunpack.c.h.b16 %v542
    %v2615 = vunpack.c.l.b16 %v543
    %v2616 = vunpack.c.h.b16 %v543
    %v2617 = vunpack.c.l.b16 %v544
    %v2618 = vunpack.c.h.b16 %v544
    %v2619 = vunpack.c.l.b16 %v545
    %v2620 = vunpack.c.l.b16 %v546
    %v2621 = vunpack.c.h.b16 %v546
    %v2622 = vunpack.c.l.b16 %v547
    %v2623 = vunpack.c.h.b16 %v547
    %v2624 = vunpack.c.l.b16 %v548
    %v2625 = vunpack.c.h.b16 %v548
    %v2626 = vunpack.c.l.b16 %v549
    %v2627 = vunpack.c.l.b16 %v550
    %v2628 = vunpack.c.h.b16 %v550
    %v2629 = vunpack.c.l.b16 %v551
    %v2630 = vunpack.c.h.b16 %v551
    %v2631 = vunpack.c.l.b16 %v552
    %v2632 = vunpack.c.h.b16 %v552
    %v2633 = vunpack.c.l.b16 %v553
    %v2634 = vunpack.c.l.b16 %v554
    %v2635 = vunpack.c.h.b16 %v554
    %v2636 = vunpack.c.l.b16 %v555
    %v2637 = vunpack.c.h.b16 %v555
    %v2638 = vunpack.c.l.b16 %v556
    %v2639 = vunpack.c.h.b16 %v556
    %v2640 = vunpack.c.l.b16 %v557
    %v2641 = vunpack.c.l.b16 %v558
    %v2642 = vunpack.c.h.b16 %v558
    %v2643 = vunpack.c.l.b16 %v559
    %v2644 = vunpack.c.h.b16 %v559
    %v2645 = vunpack.c.l.b16 %v560
    %v2646 = vunpack.c.h.b16 %v560
    %v2647 = vunpack.c.l.b16 %v561
    %v2648 = vunpack.c.l.b16 %v562
    %v2649 = vunpack.c.h.b16 %v562
    %v2650 = vunpack.c.l.b16 %v563
    %v2651 = vunpack.c.h.b16 %v563
    %v2652 = vunpack.c.l.b16 %v564
    %v2653 = vunpack.c.h.b16 %v564
    %v2654 = vunpack.c.l.b16 %v565
    %v2655 = vunpack.c.l.b16 %v566
    %v2656 = vunpack.c.h.b16 %v566
    %v2657 = vunpack.c.l.b16 %v567
    %v2658 = vunpack.c.h.b16 %v567
    %v2659 = vunpack.c.l.b16 %v568
    %v2660 = vunpack.c.h.b16 %v568
    %v2661 = vunpack.c.l.b16 %v569
    %v2662 = vunpack.c.l.b16 %v570
    %v2663 = vunpack.c.h.b16 %v570
    %v2664 = vunpack.c.l.b16 %v571
    %v2665 = vunpack.c.h.b16 %v571
    %v2666 = vunpack.c.l.b16 %v572
    %v2667 = vunpack.c.h.b16 %v572
    %v2668 = vunpack.c.l.b16 %v573
    %v2669 = vunpack.c.l.b16 %v574
    %v2670 = vunpack.c.h.b16 %v574
    %v2671 = vunpack.c.l.b16 %v575
    %v2672 = vunpack.c.h.b16 %v575
    %v2673 = vunpack.c.l.b16 %v576
    %v2674 = vunpack.c.h.b16 %v576
    %v2675 = vunpack.c.l.b16 %v577
    %v2676 = vunpack.c.l.b16 %v578
    %v2677 = vunpack.c.h.b16 %v578
    %v2678 = vunpack.c.l.b16 %v579
    %v2679 = vunpack.c.h.b16 %v579
    %v2680 = vunpack.c.l.b16 %v580
    %v2681 = vunpack.c.h.b16 %v580
    %v2682 = vunpack.c.l.b16 %v581
    %v2683 = vunpack.c.l.b16 %v582
    %v2684 = vunpack.c.h.b16 %v582
    %v2685 = vunpack.c.l.b16 %v583
    %v2686 = vunpack.c.h.b16 %v583
    %v2687 = vunpack.c.l.b16 %v584
    %v2688 = vunpack.c.h.b16 %v584
    %v2689 = vunpack.c.l.b16 %v585
    %v2690 = vunpack.c.l.b16 %v586
    %v2691 = vunpack.c.h.b16 %v586
    %v2692 = vunpack.c.l.b16 %v587
    %v2693 = vunpack.c.h.b16 %v587
    %v2694 = vunpack.c.l.b16 %v588
    %v2695 = vunpack.c.h.b16 %v588
    %v2696 = vunpack.c.l.b16 %v589
    %v2697 = vunpack.c.l.b16 %v590
    %v2698 = vunpack.c.h.b16 %v590
    %v2699 = vunpack.c.l.b16 %v591
    %v2700 = vunpack.c.h.b16 %v591
    %v2701 = vunpack.c.l.b16 %v592
    %v2702 = vunpack.c.h.b16 %v592
    %v2703 = vunpack.c.l.b16 %v593
    %v2704 = vunpack.c.l.b16 %v594
    %v2705 = vunpack.c.h.b16 %v594
    %v2706 = vunpack.c.l.b16 %v595
    %v2707 = vunpack.c.h.b16 %v595
    %v2708 = vunpack.c.l.b16 %v596
    %v2709 = vunpack.c.h.b16 %v596
    %v2710 = vunpack.c.l.b16 %v597
    %v2711 = vunpack.c.l.b16 %v598
    %v2712 = vunpack.c.h.b16 %v598
    %v2713 = vunpack.c.l.b16 %v599
    %v2714 = vunpack.c.h.b16 %v599
    %v2715 = vunpack.c.l.b16 %v600
    %v2716 = vunpack.c.h.b16 %v600
    %v2717 = vunpack.c.l.b16 %v601
    %v2718 = vunpack.c.l.b16 %v602
    %v2719 = vunpack.c.h.b16 %v602
    %v2720 = vunpack.c.l.b16 %v603
    %v2721 = vunpack.c.h.b16 %v603
    %v2722 = vunpack.c.l.b16 %v604
    %v2723 = vunpack.c.h.b16 %v604
    %v2724 = vunpack.c.l.b16 %v605
    %v2725 = vunpack.c.l.b16 %v606
    %v2726 = vunpack.c.h.b16 %v606
    %v2727 = vunpack.c.l.b16 %v607
    %v2728 = vunpack.c.h.b16 %v607
    %v2729 = vunpack.c.l.b16 %v608
    %v2730 = vunpack.c.h.b16 %v608
    %v2731 = vunpack.c.l.b16 %v609
    %v2732 = vunpack.c.l.b16 %v610
    %v2733 = vunpack.c.h.b16 %v610
    %v2734 = vunpack.c.l.b16 %v611
    %v2735 = vunpack.c.h.b16 %v611
    %v2736 = vunpack.c.l.b16 %v612
    %v2737 = vunpack.c.h.b16 %v612
    %v2738 = vunpack.c.l.b16 %v613
    %v2739 = vunpack.c.l.b16 %v614
    %v2740 = vunpack.c.h.b16 %v614
    %v2741 = vunpack.c.l.b16 %v615
    %v2742 = vunpack.c.h.b16 %v615
    %v2743 = vunpack.c.l.b16 %v616
    %v2744 = vunpack.c.h.b16 %v616
    %v2745 = vunpack.c.l.b16 %v617
    %v2746 = vunpack.c.l.b16 %v618
    %v2747 = vunpack.c.h.b16 %v618
    %v2748 = vunpack.c.l.b16 %v619
    %v2749 = vunpack.c.h.b16 %v619
    %v2750 = vunpack.c.l.b16 %v620
    %v2751 = vunpack.c.h.b16 %v620
    %v2752 = vunpack.c.l.b16 %v621
    %v2753 = vunpack.c.l.b16 %v622
    %v2754 = vunpack.c.h.b16 %v622
    %v2755 = vunpack.c.l.b16 %v623
    %v2756 = vunpack.c.h.b16 %v623
    %v2757 = vunpack.c.l.b16 %v624
    %v2758 = vunpack.c.h.b16 %v624
    %v2759 = vunpack.c.l.b16 %v625
    %v2760 = vunpack.c.l.b16 %v626
    %v2761 = vunpack.c.h.b16 %v626
    %v2762 = vunpack.c.l.b16 %v627
    %v2763 = vunpack.c.h.b16 %v627
    %v2764 = vunpack.c.l.b16 %v628
    %v2765 = vunpack.c.h.b16 %v628
    %v2766 = vunpack.c.l.b16 %v629
    %v2767 = vunpack.c.l.b16 %v630
    %v2768 = vunpack.c.h.b16 %v630
    %v2769 = vunpack.c.l.b16 %v631
    %v2770 = vunpack.c.h.b16 %v631
    %v2771 = vunpack.c.l.b16 %v632
    %v2772 = vunpack.c.h.b16 %v632
    %v2773 = vunpack.c.l.b16 %v633
    %v2774 = vunpack.c.l.b16 %v634
    %v2775 = vunpack.c.h.b16 %v634
    %v2776 = vunpack.c.l.b16 %v635
    %v2777 = vunpack.c.h.b16 %v635
    %v2778 = vunpack.c.l.b16 %v636
    %v2779 = vunpack.c.h.b16 %v636
    %v2780 = vunpack.c.l.b16 %v637
    %v2781 = vunpack.c.l.b16 %v638
    %v2782 = vunpack.c.h.b16 %v638
    %v2783 = vunpack.c.l.b16 %v639
    %v2784 = vunpack.c.h.b16 %v639
    %v2785 = vunpack.c.l.b16 %v640
    %v2786 = vunpack.c.h.b16 %v640
    %v2787 = vunpack.c.l.b16 %v641
    %v2788 = vunpack.c.l.b16 %v642
    %v2789 = vunpack.c.h.b16 %v642
    %v2790 = vunpack.c.l.b16 %v643
    %v2791 = vunpack.c.h.b16 %v643
    %v2792 = vunpack.c.l.b16 %v644
    %v2793 = vunpack.c.h.b16 %v644
    %v2794 = vunpack.c.l.b16 %v645
    %v2795 = vunpack.c.l.b16 %v646
    %v2796 = vunpack.c.h.b16 %v646
    %v2797 = vunpack.c.l.b16 %v647
    %v2798 = vunpack.c.h.b16 %v647
    %v2799 = vunpack.c.l.b16 %v648
    %v2800 = vunpack.c.h.b16 %v648
    %v2801 = vunpack.c.l.b16 %v649
    %v2802 = vunpack.c.l.b16 %v650
    %v2803 = vunpack.c.h.b16 %v650
    %v2804 = vunpack.c.l.b16 %v651
    %v2805 = vunpack.c.h.b16 %v651
    %v2806 = vunpack.c.l.b16 %v652
    %v2807 = vunpack.c.h.b16 %v652
    %v2808 = vunpack.c.l.b16 %v653
    %v2809 = vunpack.c.l.b16 %v654
    %v2810 = vunpack.c.h.b16 %v654
    %v2811 = vunpack.c.l.b16 %v655
    %v2812 = vunpack.c.h.b16 %v655
    %v2813 = vunpack.c.l.b16 %v656
    %v2814 = vunpack.c.h.b16 %v656
    %v2815 = vunpack.c.l.b16 %v657
    %v2816 = vunpack.c.l.b16 %v658
    %v2817 = vunpack.c.h.b16 %v658
    %v2818 = vunpack.c.l.b16 %v659
    %v2819 = vunpack.c.h.b16 %v659
    %v2820 = vunpack.c.l.b16 %v660
    %v2821 = vunpack.c.h.b16 %v660
    %v2822 = vunpack.c.l.b16 %v661
    %v2823 = vunpack.c.l.b16 %v662
    %v2824 = vunpack.c.h.b16 %v662
    %v2825 = vunpack.c.l.b16 %v663
    %v2826 = vunpack.c.h.b16 %v663
    %v2827 = vunpack.c.l.b16 %v664
    %v2828 = vunpack.c.h.b16 %v664
    %v2829 = vunpack.c.l.b16 %v665
    %v2830 = vunpack.c.l.b16 %v666
    %v2831 = vunpack.c.h.b16 %v666
    %v2832 = vunpack.c.l.b16 %v667
    %v2833 = vunpack.c.h.b16 %v667
    %v2834 = vunpack.c.l.b16 %v668
    %v2835 = vunpack.c.h.b16 %v668
    %v2836 = vunpack.c.l.b16 %v669
    %v2837 = vunpack.c.l.b16 %v670
    %v2838 = vunpack.c.h.b16 %v670
    %v2839 = vunpack.c.l.b16 %v671
    %v2840 = vunpack.c.h.b16 %v671
    %v2841 = vunpack.c.l.b16 %v672
    %v2842 = vunpack.c.h.b16 %v672
    %v2843 = vunpack.c.l.b16 %v673
    %v2844 = vunpack.c.l.b16 %v674
    %v2845 = vunpack.c.h.b16 %v674
    %v2846 = vunpack.c.l.b16 %v675
    %v2847 = vunpack.c.h.b16 %v675
    %v2848 = vunpack.c.l.b16 %v676
    %v2849 = vunpack.c.h.b16 %v676
    %v2850 = vunpack.c.l.b16 %v677
    %v2851 = vunpack.c.l.b16 %v678
    %v2852 = vunpack.c.h.b16 %v678
    %v2853 = vunpack.c.l.b16 %v679
    %v2854 = vunpack.c.h.b16 %v679
    %v2855 = vunpack.c.l.b16 %v680
    %v2856 = vunpack.c.h.b16 %v680
    %v2857 = vunpack.c.l.b16 %v681
    %v2858 = vunpack.c.l.b16 %v682
    %v2859 = vunpack.c.h.b16 %v682
    %v2860 = vunpack.c.l.b16 %v683
    %v2861 = vunpack.c.h.b16 %v683
    %v2862 = vunpack.c.l.b16 %v684
    %v2863 = vunpack.c.h.b16 %v684
    %v2864 = vunpack.c.l.b16 %v685
    %v2865 = vunpack.c.l.b16 %v686
    %v2866 = vunpack.c.h.b16 %v686
    %v2867 = vunpack.c.l.b16 %v687
    %v2868 = vunpack.c.h.b16 %v687
    %v2869 = vunpack.c.l.b16 %v688
    %v2870 = vunpack.c.h.b16 %v688
    %v2871 = vunpack.c.l.b16 %v689
    %v2872 = vunpack.c.l.b16 %v690
    %v2873 = vunpack.c.h.b16 %v690
    %v2874 = vunpack.c.l.b16 %v691
    %v2875 = vunpack.c.h.b16 %v691
    %v2876 = vunpack.c.l.b16 %v692
    %v2877 = vunpack.c.h.b16 %v692
    %v2878 = vunpack.c.l.b16 %v693
    %v2879 = vunpack.c.l.b16 %v694
    %v2880 = vunpack.c.h.b16 %v694
    %v2881 = vunpack.c.l.b16 %v695
    %v2882 = vunpack.c.h.b16 %v695
    %v2883 = vunpack.c.l.b16 %v696
    %v2884 = vunpack.c.h.b16 %v696
    %v2885 = vunpack.c.l.b16 %v697
    %v2886 = vunpack.c.l.b16 %v698
    %v2887 = vunpack.c.h.b16 %v698
    %v2888 = vunpack.c.l.b16 %v699
    %v2889 = vunpack.c.h.b16 %v699
    %v2890 = vunpack.c.l.b16 %v700
    %v2891 = vunpack.c.h.b16 %v700
    %v2892 = vunpack.c.l.b16 %v701
    %v2893 = vunpack.c.l.b16 %v702
    %v2894 = vunpack.c.h.b16 %v702
    %v2895 = vunpack.c.l.b16 %v703
    %v2896 = vunpack.c.h.b16 %v703
    %v2897 = vunpack.c.l.b16 %v704
    %v2898 = vunpack.c.h.b16 %v704
    %v2899 = vunpack.c.l.b16 %v705
    %v2900 = vunpack.c.l.b16 %v706
    %v2901 = vunpack.c.h.b16 %v706
    %v2902 = vunpack.c.l.b16 %v707
    %v2903 = vunpack.c.h.b16 %v707
    %v2904 = vunpack.c.l.b16 %v708
    %v2905 = vunpack.c.h.b16 %v708
    %v2906 = vunpack.c.l.b16 %v709
    %v2907 = vunpack.c.l.b16 %v710
    %v2908 = vunpack.c.h.b16 %v710
    %v2909 = vunpack.c.l.b16 %v711
    %v2910 = vunpack.c.h.b16 %v711
    %v2911 = vunpack.c.l.b16 %v712
    %v2912 = vunpack.c.h.b16 %v712
    %v2913 = vunpack.c.l.b16 %v713
    %v2914 = vunpack.c.l.b16 %v714
    %v2915 = vunpack.c.h.b16 %v714
    %v2916 = vunpack.c.l.b16 %v715
    %v2917 = vunpack.c.h.b16 %v715
    %v2918 = vunpack.c.l.b16 %v716
    %v2919 = vunpack.c.h.b16 %v716
    %v2920 = vunpack.c.l.b16 %v717
    %v2921 = vunpack.c.l.b16 %v718
    %v2922 = vunpack.c.h.b16 %v718
    %v2923 = vunpack.c.l.b16 %v719
    %v2924 = vunpack.c.h.b16 %v719
    %v2925 = vunpack.c.l.b16 %v720
    %v2926 = vunpack.c.h.b16 %v720
    %v2927 = vunpack.c.l.b16 %v721
    %v2928 = vunpack.c.l.b16 %v722
    %v2929 = vunpack.c.h.b16 %v722
    %v2930 = vunpack.c.l.b16 %v723
    %v2931 = vunpack.c.h.b16 %v723
    %v2932 = vunpack.c.l.b16 %v724
    %v2933 = vunpack.c.h.b16 %v724
    %v2934 = vunpack.c.l.b16 %v725
    %v2935 = vunpack.c.l.b16 %v726
    %v2936 = vunpack.c.h.b16 %v726
    %v2937 = vunpack.c.l.b16 %v727
    %v2938 = vunpack.c.h.b16 %v727
    %v2939 = vunpack.c.l.b16 %v728
    %v2940 = vunpack.c.h.b16 %v728
    %v2941 = vunpack.c.l.b16 %v729
    %v2942 = vunpack.c.l.b16 %v730
    %v2943 = vunpack.c.h.b16 %v730
    %v2944 = vunpack.c.l.b16 %v731
    %v2945 = vunpack.c.h.b16 %v731
    %v2946 = vunpack.c.l.b16 %v732
    %v2947 = vunpack.c.h.b16 %v732
    %v2948 = vunpack.c.l.b16 %v733
    %v2949 = vunpack.c.l.b16 %v734
    %v2950 = vunpack.c.h.b16 %v734
    %v2951 = vunpack.c.l.b16 %v735
    %v2952 = vunpack.c.h.b16 %v735
    %v2953 = vunpack.c.l.b16 %v736
    %v2954 = vunpack.c.h.b16 %v736
    %v2955 = vunpack.c.l.b16 %v737
    %v2956 = vunpack.c.l.b16 %v738
    %v2957 = vunpack.c.h.b16 %v738
    %v2958 = vunpack.c.l.b16 %v739
    %v2959 = vunpack.c.h.b16 %v739
    %v2960 = vunpack.c.l.b16 %v740
    %v2961 = vunpack.c.h.b16 %v740
    %v2962 = vunpack.c.l.b16 %v741
    %v2963 = vunpack.c.l.b16 %v742
    %v2964 = vunpack.c.h.b16 %v742
    %v2965 = vunpack.c.l.b16 %v743
    %v2966 = vunpack.c.h.b16 %v743
    %v2967 = vunpack.c.l.b16 %v744
    %v2968 = vunpack.c.h.b16 %v744
    %v2969 = vunpack.c.l.b16 %v745
    %v2970 = vunpack.c.l.b16 %v746
    %v2971 = vunpack.c.h.b16 %v746
    %v2972 = vunpack.c.l.b16 %v747
    %v2973 = vunpack.c.h.b16 %v747
    %v2974 = vunpack.c.l.b16 %v748
    %v2975 = vunpack.c.h.b16 %v748
    %v2976 = vunpack.c.l.b16 %v749
    %v2977 = vunpack.c.l.b16 %v750
    %v2978 = vunpack.c.h.b16 %v750
    %v2979 = vunpack.c.l.b16 %v751
    %v2980 = vunpack.c.h.b16 %v751
    %v2981 = vunpack.c.l.b16 %v752
    %v2982 = vunpack.c.h.b16 %v752
    %v2983 = vunpack.c.l.b16 %v753
    %v2984 = vunpack.c.l.b16 %v754
    %v2985 = vunpack.c.h.b16 %v754
    %v2986 = vunpack.c.l.b16 %v755
    %v2987 = vunpack.c.h.b16 %v755
    %v2988 = vunpack.c.l.b16 %v756
    %v2989 = vunpack.c.h.b16 %v756
    %v2990 = vunpack.c.l.b16 %v757
    %v2991 = vunpack.c.l.b16 %v758
    %v2992 = vunpack.c.h.b16 %v758
    %v2993 = vunpack.c.l.b16 %v759
    %v2994 = vunpack.c.h.b16 %v759
    %v2995 = vunpack.c.l.b16 %v760
    %v2996 = vunpack.c.h.b16 %v760
    %v2997 = vunpack.c.l.b16 %v761
    %v2998 = vunpack.c.l.b16 %v762
    %v2999 = vunpack.c.h.b16 %v762
    %v3000 = vunpack.c.l.b16 %v763
    %v3001 = vunpack.c.h.b16 %v763
    %v3002 = vunpack.c.l.b16 %v764
    %v3003 = vunpack.c.h.b16 %v764
    %v3004 = vunpack.c.l.b16 %v765
    %v3005 = vunpack.c.l.b16 %v766
    %v3006 = vunpack.c.h.b16 %v766
    %v3007 = vunpack.c.l.b16 %v767
    %v3008 = vunpack.c.h.b16 %v767
    %v3009 = vunpack.c.l.b16 %v768
    %v3010 = vunpack.c.h.b16 %v768
    %v3011 = vunpack.c.l.b16 %v769
    %v3012 = vunpack.c.l.b16 %v770
    %v3013 = vunpack.c.h.b16 %v770
    %v3014 = vunpack.c.l.b16 %v771
    %v3015 = vunpack.c.h.b16 %v771
    %v3016 = vunpack.c.l.b16 %v772
    %v3017 = vunpack.c.h.b16 %v772
    %v3018 = vunpack.c.l.b16 %v773
    %v3019 = vunpack.c.l.b16 %v774
    %v3020 = vunpack.c.h.b16 %v774
    %v3021 = vunpack.c.l.b16 %v775
    %v3022 = vunpack.c.h.b16 %v775
    %v3023 = vunpack.c.l.b16 %v776
    %v3024 = vunpack.c.h.b16 %v776
    %v3025 = vunpack.c.l.b16 %v777
    %v3026 = vunpack.c.l.b16 %v778
    %v3027 = vunpack.c.h.b16 %v778
    %v3028 = vunpack.c.l.b16 %v779
    %v3029 = vunpack.c.h.b16 %v779
    %v3030 = vunpack.c.l.b16 %v780
    %v3031 = vunpack.c.h.b16 %v780
    %v3032 = vunpack.c.l.b16 %v781
    %v3033 = vunpack.c.l.b16 %v782
    %v3034 = vunpack.c.h.b16 %v782
    %v3035 = vunpack.c.l.b16 %v783
    %v3036 = vunpack.c.h.b16 %v783
    %v3037 = vunpack.c.l.b16 %v784
    %v3038 = vunpack.c.h.b16 %v784
    %v3039 = vunpack.c.l.b16 %v785
    %v3040 = vunpack.c.l.b16 %v786
    %v3041 = vunpack.c.h.b16 %v786
    %v3042 = vunpack.c.l.b16 %v787
    %v3043 = vunpack.c.h.b16 %v787
    %v3044 = vunpack.c.l.b16 %v788
    %v3045 = vunpack.c.h.b16 %v788
    %v3046 = vunpack.c.l.b16 %v789
    %v3047 = vunpack.c.l.b16 %v790
    %v3048 = vunpack.c.h.b16 %v790
    %v3049 = vunpack.c.l.b16 %v791
    %v3050 = vunpack.c.h.b16 %v791
    %v3051 = vunpack.c.l.b16 %v792
    %v3052 = vunpack.c.h.b16 %v792
    %v3053 = vunpack.c.l.b16 %v793
    %v3054 = vunpack.c.l.b16 %v794
    %v3055 = vunpack.c.h.b16 %v794
    %v3056 = vunpack.c.l.b16 %v795
    %v3057 = vunpack.c.h.b16 %v795
    %v3058 = vunpack.c.l.b16 %v796
    %v3059 = vunpack.c.h.b16 %v796
    %v3060 = vunpack.c.l.b16 %v797
    %v3061 = vunpack.c.l.b16 %v798
    %v3062 = vunpack.c.h.b16 %v798
    %v3063 = vunpack.c.l.b16 %v799
    %v3064 = vunpack.c.h.b16 %v799
    %v3065 = vunpack.c.l.b16 %v800
    %v3066 = vunpack.c.h.b16 %v800
    %v3067 = vunpack.c.l.b16 %v801
    %v3068 = vunpack.c.l.b16 %v802
    %v3069 = vunpack.c.h.b16 %v802
    %v3070 = vunpack.c.l.b16 %v803
    %v3071 = vunpack.c.h.b16 %v803
    %v3072 = vunpack.c.l.b16 %v804
    %v3073 = vunpack.c.h.b16 %v804
    %v3074 = vunpack.c.l.b16 %v805
    %v3075 = vunpack.c.l.b16 %v806
    %v3076 = vunpack.c.h.b16 %v806
    %v3077 = vunpack.c.l.b16 %v807
    %v3078 = vunpack.c.h.b16 %v807
    %v3079 = vunpack.c.l.b16 %v808
    %v3080 = vunpack.c.h.b16 %v808
    %v3081 = vunpack.c.l.b16 %v809
    %v3082 = vunpack.c.l.b16 %v810
    %v3083 = vunpack.c.h.b16 %v810
    %v3084 = vunpack.c.l.b16 %v811
    %v3085 = vunpack.c.h.b16 %v811
    %v3086 = vunpack.c.l.b16 %v812
    %v3087 = vunpack.c.h.b16 %v812
    %v3088 = vunpack.c.l.b16 %v813
    %v3089 = vunpack.c.l.b16 %v814
    %v3090 = vunpack.c.h.b16 %v814
    %v3091 = vunpack.c.l.b16 %v815
    %v3092 = vunpack.c.h.b16 %v815
    %v3093 = vunpack.c.l.b16 %v816
    %v3094 = vunpack.c.h.b16 %v816
    %v3095 = vunpack.c.l.b16 %v817
    %v3096 = vunpack.c.l.b16 %v818
    %v3097 = vunpack.c.h.b16 %v818
    %v3098 = vunpack.c.l.b16 %v819
    %v3099 = vunpack.c.h.b16 %v819
    %v3100 = vunpack.c.l.b16 %v820
    %v3101 = vunpack.c.h.b16 %v820
    %v3102 = vunpack.c.l.b16 %v821
    %v3103 = vunpack.c.l.b16 %v822
    %v3104 = vunpack.c.h.b16 %v822
    %v3105 = vunpack.c.l.b16 %v823
    %v3106 = vunpack.c.h.b16 %v823
    %v3107 = vunpack.c.l.b16 %v824
    %v3108 = vunpack.c.h.b16 %v824
    %v3109 = vunpack.c.l.b16 %v825
    %v3110 = vunpack.c.l.b16 %v826
    %v3111 = vunpack.c.h.b16 %v826
    %v3112 = vunpack.c.l.b16 %v827
    %v3113 = vunpack.c.h.b16 %v827
    %v3114 = vunpack.c.l.b16 %v828
    %v3115 = vunpack.c.h.b16 %v828
    %v3116 = vunpack.c.l.b16 %v829
    %v3117 = vunpack.c.l.b16 %v830
    %v3118 = vunpack.c.h.b16 %v830
    %v3119 = vunpack.c.l.b16 %v831
    %v3120 = vunpack.c.h.b16 %v831
    %v3121 = vunpack.c.l.b16 %v832
    %v3122 = vunpack.c.h.b16 %v832
    %v3123 = vunpack.c.l.b16 %v833
    %v3124 = vunpack.c.l.b16 %v834
    %v3125 = vunpack.c.h.b16 %v834
    %v3126 = vunpack.c.l.b16 %v835
    %v3127 = vunpack.c.h.b16 %v835
    %v3128 = vunpack.c.l.b16 %v836
    %v3129 = vunpack.c.h.b16 %v836
    %v3130 = vunpack.c.l.b16 %v837
    %v3131 = vunpack.c.l.b16 %v838
    %v3132 = vunpack.c.h.b16 %v838
    %v3133 = vunpack.c.l.b16 %v839
    %v3134 = vunpack.c.h.b16 %v839
    %v3135 = vunpack.c.l.b16 %v840
    %v3136 = vunpack.c.h.b16 %v840
    %v3137 = vunpack.c.l.b16 %v841
    %v3138 = vunpack.c.l.b16 %v842
    %v3139 = vunpack.c.h.b16 %v842
    %v3140 = vunpack.c.l.b16 %v843
    %v3141 = vunpack.c.h.b16 %v843
    %v3142 = vunpack.c.l.b16 %v844
    %v3143 = vunpack.c.h.b16 %v844
    %v3144 = vunpack.c.l.b16 %v845
    %v3145 = vunpack.c.l.b16 %v846
    %v3146 = vunpack.c.h.b16 %v846
    %v3147 = vunpack.c.l.b16 %v847
    %v3148 = vunpack.c.h.b16 %v847
    %v3149 = vunpack.c.l.b16 %v848
    %v3150 = vunpack.c.h.b16 %v848
    %v3151 = vunpack.c.l.b16 %v849
    %v3152 = vpack.c.b16 %v1759, %v1752
    %v3153 = vpack.c.b16 %v1760, %v1753
    %v3154 = vpack.c.b16 %v1761, %v1754
    %v3155 = vpack.c.b16 %v1762, %v1755
    %v3156 = vpack.c.b16 %v1763, %v1756
    %v3157 = vpack.c.b16 %v1764, %v1757
    %v3158 = vpack.c.b16 %v1765, %v1758
    %v3159 = vpack.c.b16 %v1773, %v1766
    %v3160 = vpack.c.b16 %v1774, %v1767
    %v3161 = vpack.c.b16 %v1775, %v1768
    %v3162 = vpack.c.b16 %v1776, %v1769
    %v3163 = vpack.c.b16 %v1777, %v1770
    %v3164 = vpack.c.b16 %v1778, %v1771
    %v3165 = vpack.c.b16 %v1779, %v1772
    %v3166 = vpack.c.b16 %v1787, %v1780
    %v3167 = vpack.c.b16 %v1788, %v1781
    %v3168 = vpack.c.b16 %v1789, %v1782
    %v3169 = vpack.c.b16 %v1790, %v1783
    %v3170 = vpack.c.b16 %v1791, %v1784
    %v3171 = vpack.c.b16 %v1792, %v1785
    %v3172 = vpack.c.b16 %v1793, %v1786
    %v3173 = vpack.c.b16 %v1801, %v1794
    %v3174 = vpack.c.b16 %v1802, %v1795
    %v3175 = vpack.c.b16 %v1803, %v1796
    %v3176 = vpack.c.b16 %v1804, %v1797
    %v3177 = vpack.c.b16 %v1805, %v1798
    %v3178 = vpack.c.b16 %v1806, %v1799
    %v3179 = vpack.c.b16 %v1807, %v1800
    %v3180 = vpack.c.b16 %v1815, %v1808
    %v3181 = vpack.c.b16 %v1816, %v1809
    %v3182 = vpack.c.b16 %v1817, %v1810
    %v3183 = vpack.c.b16 %v1818, %v1811
    %v3184 = vpack.c.b16 %v1819, %v1812
    %v3185 = vpack.c.b16 %v1820, %v1813
    %v3186 = vpack.c.b16 %v1821, %v1814
    %v3187 = vpack.c.b16 %v1829, %v1822
    %v3188 = vpack.c.b16 %v1830, %v1823
    %v3189 = vpack.c.b16 %v1831, %v1824
    %v3190 = vpack.c.b16 %v1832, %v1825
    %v3191 = vpack.c.b16 %v1833, %v1826
    %v3192 = vpack.c.b16 %v1834, %v1827
    %v3193 = vpack.c.b16 %v1835, %v1828
    %v3194 = vpack.c.b16 %v1843, %v1836
    %v3195 = vpack.c.b16 %v1844, %v1837
    %v3196 = vpack.c.b16 %v1845, %v1838
    %v3197 = vpack.c.b16 %v1846, %v1839
    %v3198 = vpack.c.b16 %v1847, %v1840
    %v3199 = vpack.c.b16 %v1848, %v1841
    %v3200 = vpack.c.b16 %v1849, %v1842
    %v3201 = vpack.c.b16 %v1857, %v1850
    %v3202 = vpack.c.b16 %v1858, %v1851
    %v3203 = vpack.c.b16 %v1859, %v1852
    %v3204 = vpack.c.b16 %v1860, %v1853
    %v3205 = vpack.c.b16 %v1861, %v1854
    %v3206 = vpack.c.b16 %v1862, %v1855
    %v3207 = vpack.c.b16 %v1863, %v1856
    %v3208 = vpack.c.b16 %v1871, %v1864
    %v3209 = vpack.c.b16 %v1872, %v1865
    %v3210 = vpack.c.b16 %v1873, %v1866
    %v3211 = vpack.c.b16 %v1874, %v1867
    %v3212 = vpack.c.b16 %v1875, %v1868
    %v3213 = vpack.c.b16 %v1876, %v1869
    %v3214 = vpack.c.b16 %v1877, %v1870
    %v3215 = vpack.c.b16 %v1885, %v1878
    %v3216 = vpack.c.b16 %v1886, %v1879
    %v3217 = vpack.c.b16 %v1887, %v1880
    %v3218 = vpack.c.b16 %v1888, %v1881
    %v3219 = vpack.c.b16 %v1889, %v1882
    %v3220 = vpack.c.b16 %v1890, %v1883
    %v3221 = vpack.c.b16 %v1891, %v1884
    %v3222 = vpack.c.b16 %v1899, %v1892
    %v3223 = vpack.c.b16 %v1900, %v1893
    %v3224 = vpack.c.b16 %v1901, %v1894
    %v3225 = vpack.c.b16 %v1902, %v1895
    %v3226 = vpack.c.b16 %v1903, %v1896
    %v3227 = vpack.c.b16 %v1904, %v1897
    %v3228 = vpack.c.b16 %v1905, %v1898
    %v3229 = vpack.c.b16 %v1913, %v1906
    %v3230 = vpack.c.b16 %v1914, %v1907
    %v3231 = vpack.c.b16 %v1915, %v1908
    %v3232 = vpack.c.b16 %v1916, %v1909
    %v3233 = vpack.c.b16 %v1917, %v1910
    %v3234 = vpack.c.b16 %v1918, %v1911
    %v3235 = vpack.c.b16 %v1919, %v1912
    %v3236 = vpack.c.b16 %v1927, %v1920
    %v3237 = vpack.c.b16 %v1928, %v1921
    %v3238 = vpack.c.b16 %v1929, %v1922
    %v3239 = vpack.c.b16 %v1930, %v1923
    %v3240 = vpack.c.b16 %v1931, %v1924
    %v3241 = vpack.c.b16 %v1932, %v1925
    %v3242 = vpack.c.b16 %v1933, %v1926
    %v3243 = vpack.c.b16 %v1941, %v1934
    %v3244 = vpack.c.b16 %v1942, %v1935
    %v3245 = vpack.c.b16 %v1943, %v1936
    %v3246 = vpack.c.b16 %v1944, %v1937
    %v3247 = vpack.c.b16 %v1945, %v1938
    %v3248 = vpack.c.b16 %v1946, %v1939
    %v3249 = vpack.c.b16 %v1947, %v1940
    %v3250 = vpack.c.b16 %v1955, %v1948
    %v3251 = vpack.c.b16 %v1956, %v1949
    %v3252 = vpack.c.b16 %v1957, %v1950
    %v3253 = vpack.c.b16 %v1958, %v1951
    %v3254 = vpack.c.b16 %v1959, %v1952
    %v3255 = vpack.c.b16 %v1960, %v1953
    %v3256 = vpack.c.b16 %v1961, %v1954
    %v3257 = vpack.c.b16 %v1969, %v1962
    %v3258 = vpack.c.b16 %v1970, %v1963
    %v3259 = vpack.c.b16 %v1971, %v1964
    %v3260 = vpack.c.b16 %v1972, %v1965
    %v3261 = vpack.c.b16 %v1973, %v1966
    %v3262 = vpack.c.b16 %v1974, %v1967
    %v3263 = vpack.c.b16 %v1975, %v1968
    %v3264 = vpack.c.b16 %v1983, %v1976
    %v3265 = vpack.c.b16 %v1984, %v1977
    %v3266 = vpack.c.b16 %v1985, %v1978
    %v3267 = vpack.c.b16 %v1986, %v1979
    %v3268 = vpack.c.b16 %v1987, %v1980
    %v3269 = vpack.c.b16 %v1988, %v1981
    %v3270 = vpack.c.b16 %v1989, %v1982
    %v3271 = vpack.c.b16 %v1997, %v1990
    %v3272 = vpack.c.b16 %v1998, %v1991
    %v3273 = vpack.c.b16 %v1999, %v1992
    %v3274 = vpack.c.b16 %v2000, %v1993
    %v3275 = vpack.c.b16 %v2001, %v1994
    %v3276 = vpack.c.b16 %v2002, %v1995
    %v3277 = vpack.c.b16 %v2003, %v1996
    %v3278 = vpack.c.b16 %v2011, %v2004
    %v3279 = vpack.c.b16 %v2012, %v2005
    %v3280 = vpack.c.b16 %v2013, %v2006
    %v3281 = vpack.c.b16 %v2014, %v2007
    %v3282 = vpack.c.b16 %v2015, %v2008
    %v3283 = vpack.c.b16 %v2016, %v2009
    %v3284 = vpack.c.b16 %v2017, %v2010
    %v3285 = vpack.c.b16 %v2025, %v2018
    %v3286 = vpack.c.b16 %v2026, %v2019
    %v3287 = vpack.c.b16 %v2027, %v2020
    %v3288 = vpack.c.b16 %v2028, %v2021
    %v3289 = vpack.c.b16 %v2029, %v2022
    %v3290 = vpack.c.b16 %v2030, %v2023
    %v3291 = vpack.c.b16 %v2031, %v2024
    %v3292 = vpack.c.b16 %v2039, %v2032
    %v3293 = vpack.c.b16 %v2040, %v2033
    %v3294 = vpack.c.b16 %v2041, %v2034
    %v3295 = vpack.c.b16 %v2042, %v2035
    %v3296 = vpack.c.b16 %v2043, %v2036
    %v3297 = vpack.c.b16 %v2044, %v2037
    %v3298 = vpack.c.b16 %v2045, %v2038
    %v3299 = vpack.c.b16 %v2053, %v2046
    %v3300 = vpack.c.b16 %v2054, %v2047
    %v3301 = vpack.c.b16 %v2055, %v2048
    %v3302 = vpack.c.b16 %v2056, %v2049
    %v3303 = vpack.c.b16 %v2057, %v2050
    %v3304 = vpack.c.b16 %v2058, %v2051
    %v3305 = vpack.c.b16 %v2059, %v2052
    %v3306 = vpack.c.b16 %v2067, %v2060
    %v3307 = vpack.c.b16 %v2068, %v2061
    %v3308 = vpack.c.b16 %v2069, %v2062
    %v3309 = vpack.c.b16 %v2070, %v2063
    %v3310 = vpack.c.b16 %v2071, %v2064
    %v3311 = vpack.c.b16 %v2072, %v2065
    %v3312 = vpack.c.b16 %v2073, %v2066
    %v3313 = vpack.c.b16 %v2081, %v2074
    %v3314 = vpack.c.b16 %v2082, %v2075
    %v3315 = vpack.c.b16 %v2083, %v2076
    %v3316 = vpack.c.b16 %v2084, %v2077
    %v3317 = vpack.c.b16 %v2085, %v2078
    %v3318 = vpack.c.b16 %v2086, %v2079
    %v3319 = vpack.c.b16 %v2087, %v2080
    %v3320 = vpack.c.b16 %v2095, %v2088
    %v3321 = vpack.c.b16 %v2096, %v2089
    %v3322 = vpack.c.b16 %v2097, %v2090
    %v3323 = vpack.c.b16 %v2098, %v2091
    %v3324 = vpack.c.b16 %v2099, %v2092
    %v3325 = vpack.c.b16 %v2100, %v2093
    %v3326 = vpack.c.b16 %v2101, %v2094
    %v3327 = vpack.c.b16 %v2109, %v2102
    %v3328 = vpack.c.b16 %v2110, %v2103
    %v3329 = vpack.c.b16 %v2111, %v2104
    %v3330 = vpack.c.b16 %v2112, %v2105
    %v3331 = vpack.c.b16 %v2113, %v2106
    %v3332 = vpack.c.b16 %v2114, %v2107
    %v3333 = vpack.c.b16 %v2115, %v2108
    %v3334 = vpack.c.b16 %v2123, %v2116
    %v3335 = vpack.c.b16 %v2124, %v2117
    %v3336 = vpack.c.b16 %v2125, %v2118
    %v3337 = vpack.c.b16 %v2126, %v2119
    %v3338 = vpack.c.b16 %v2127, %v2120
    %v3339 = vpack.c.b16 %v2128, %v2121
    %v3340 = vpack.c.b16 %v2129, %v2122
    %v3341 = vpack.c.b16 %v2137, %v2130
    %v3342 = vpack.c.b16 %v2138, %v2131
    %v3343 = vpack.c.b16 %v2139, %v2132
    %v3344 = vpack.c.b16 %v2140, %v2133
    %v3345 = vpack.c.b16 %v2141, %v2134
    %v3346 = vpack.c.b16 %v2142, %v2135
    %v3347 = vpack.c.b16 %v2143, %v2136
    %v3348 = vpack.c.b16 %v2151, %v2144
    %v3349 = vpack.c.b16 %v2152, %v2145
    %v3350 = vpack.c.b16 %v2153, %v2146
    %v3351 = vpack.c.b16 %v2154, %v2147
    %v3352 = vpack.c.b16 %v2155, %v2148
    %v3353 = vpack.c.b16 %v2156, %v2149
    %v3354 = vpack.c.b16 %v2157, %v2150
    %v3355 = vpack.c.b16 %v2165, %v2158
    %v3356 = vpack.c.b16 %v2166, %v2159
    %v3357 = vpack.c.b16 %v2167, %v2160
    %v3358 = vpack.c.b16 %v2168, %v2161
    %v3359 = vpack.c.b16 %v2169, %v2162
    %v3360 = vpack.c.b16 %v2170, %v2163
    %v3361 = vpack.c.b16 %v2171, %v2164
    %v3362 = vpack.c.b16 %v2179, %v2172
    %v3363 = vpack.c.b16 %v2180, %v2173
    %v3364 = vpack.c.b16 %v2181, %v2174
    %v3365 = vpack.c.b16 %v2182, %v2175
    %v3366 = vpack.c.b16 %v2183, %v2176
    %v3367 = vpack.c.b16 %v2184, %v2177
    %v3368 = vpack.c.b16 %v2185, %v2178
    %v3369 = vpack.c.b16 %v2193, %v2186
    %v3370 = vpack.c.b16 %v2194, %v2187
    %v3371 = vpack.c.b16 %v2195, %v2188
    %v3372 = vpack.c.b16 %v2196, %v2189
    %v3373 = vpack.c.b16 %v2197, %v2190
    %v3374 = vpack.c.b16 %v2198, %v2191
    %v3375 = vpack.c.b16 %v2199, %v2192
    %v3376 = vpack.c.b16 %v2207, %v2200
    %v3377 = vpack.c.b16 %v2208, %v2201
    %v3378 = vpack.c.b16 %v2209, %v2202
    %v3379 = vpack.c.b16 %v2210, %v2203
    %v3380 = vpack.c.b16 %v2211, %v2204
    %v3381 = vpack.c.b16 %v2212, %v2205
    %v3382 = vpack.c.b16 %v2213, %v2206
    %v3383 = vpack.c.b16 %v2221, %v2214
    %v3384 = vpack.c.b16 %v2222, %v2215
    %v3385 = vpack.c.b16 %v2223, %v2216
    %v3386 = vpack.c.b16 %v2224, %v2217
    %v3387 = vpack.c.b16 %v2225, %v2218
    %v3388 = vpack.c.b16 %v2226, %v2219
    %v3389 = vpack.c.b16 %v2227, %v2220
    %v3390 = vpack.c.b16 %v2235, %v2228
    %v3391 = vpack.c.b16 %v2236, %v2229
    %v3392 = vpack.c.b16 %v2237, %v2230
    %v3393 = vpack.c.b16 %v2238, %v2231
    %v3394 = vpack.c.b16 %v2239, %v2232
    %v3395 = vpack.c.b16 %v2240, %v2233
    %v3396 = vpack.c.b16 %v2241, %v2234
    %v3397 = vpack.c.b16 %v2249, %v2242
    %v3398 = vpack.c.b16 %v2250, %v2243
    %v3399 = vpack.c.b16 %v2251, %v2244
    %v3400 = vpack.c.b16 %v2252, %v2245
    %v3401 = vpack.c.b16 %v2253, %v2246
    %v3402 = vpack.c.b16 %v2254, %v2247
    %v3403 = vpack.c.b16 %v2255, %v2248
    %v3404 = vpack.c.b16 %v2263, %v2256
    %v3405 = vpack.c.b16 %v2264, %v2257
    %v3406 = vpack.c.b16 %v2265, %v2258
    %v3407 = vpack.c.b16 %v2266, %v2259
    %v3408 = vpack.c.b16 %v2267, %v2260
    %v3409 = vpack.c.b16 %v2268, %v2261
    %v3410 = vpack.c.b16 %v2269, %v2262
    %v3411 = vpack.c.b16 %v2277, %v2270
    %v3412 = vpack.c.b16 %v2278, %v2271
    %v3413 = vpack.c.b16 %v2279, %v2272
    %v3414 = vpack.c.b16 %v2280, %v2273
    %v3415 = vpack.c.b16 %v2281, %v2274
    %v3416 = vpack.c.b16 %v2282, %v2275
    %v3417 = vpack.c.b16 %v2283, %v2276
    %v3418 = vpack.c.b16 %v2291, %v2284
    %v3419 = vpack.c.b16 %v2292, %v2285
    %v3420 = vpack.c.b16 %v2293, %v2286
    %v3421 = vpack.c.b16 %v2294, %v2287
    %v3422 = vpack.c.b16 %v2295, %v2288
    %v3423 = vpack.c.b16 %v2296, %v2289
    %v3424 = vpack.c.b16 %v2297, %v2290
    %v3425 = vpack.c.b16 %v2305, %v2298
    %v3426 = vpack.c.b16 %v2306, %v2299
    %v3427 = vpack.c.b16 %v2307, %v2300
    %v3428 = vpack.c.b16 %v2308, %v2301
    %v3429 = vpack.c.b16 %v2309, %v2302
    %v3430 = vpack.c.b16 %v2310, %v2303
    %v3431 = vpack.c.b16 %v2311, %v2304
    %v3432 = vpack.c.b16 %v2319, %v2312
    %v3433 = vpack.c.b16 %v2320, %v2313
    %v3434 = vpack.c.b16 %v2321, %v2314
    %v3435 = vpack.c.b16 %v2322, %v2315
    %v3436 = vpack.c.b16 %v2323, %v2316
    %v3437 = vpack.c.b16 %v2324, %v2317
    %v3438 = vpack.c.b16 %v2325, %v2318
    %v3439 = vpack.c.b16 %v2333, %v2326
    %v3440 = vpack.c.b16 %v2334, %v2327
    %v3441 = vpack.c.b16 %v2335, %v2328
    %v3442 = vpack.c.b16 %v2336, %v2329
    %v3443 = vpack.c.b16 %v2337, %v2330
    %v3444 = vpack.c.b16 %v2338, %v2331
    %v3445 = vpack.c.b16 %v2339, %v2332
    %v3446 = vpack.c.b16 %v2347, %v2340
    %v3447 = vpack.c.b16 %v2348, %v2341
    %v3448 = vpack.c.b16 %v2349, %v2342
    %v3449 = vpack.c.b16 %v2350, %v2343
    %v3450 = vpack.c.b16 %v2351, %v2344
    %v3451 = vpack.c.b16 %v2352, %v2345
    %v3452 = vpack.c.b16 %v2353, %v2346
    %v3453 = vpack.c.b16 %v2361, %v2354
    %v3454 = vpack.c.b16 %v2362, %v2355
    %v3455 = vpack.c.b16 %v2363, %v2356
    %v3456 = vpack.c.b16 %v2364, %v2357
    %v3457 = vpack.c.b16 %v2365, %v2358
    %v3458 = vpack.c.b16 %v2366, %v2359
    %v3459 = vpack.c.b16 %v2367, %v2360
    %v3460 = vpack.c.b16 %v2375, %v2368
    %v3461 = vpack.c.b16 %v2376, %v2369
    %v3462 = vpack.c.b16 %v2377, %v2370
    %v3463 = vpack.c.b16 %v2378, %v2371
    %v3464 = vpack.c.b16 %v2379, %v2372
    %v3465 = vpack.c.b16 %v2380, %v2373
    %v3466 = vpack.c.b16 %v2381, %v2374
    %v3467 = vpack.c.b16 %v2389, %v2382
    %v3468 = vpack.c.b16 %v2390, %v2383
    %v3469 = vpack.c.b16 %v2391, %v2384
    %v3470 = vpack.c.b16 %v2392, %v2385
    %v3471 = vpack.c.b16 %v2393, %v2386
    %v3472 = vpack.c.b16 %v2394, %v2387
    %v3473 = vpack.c.b16 %v2395, %v2388
    %v3474 = vpack.c.b16 %v2403, %v2396
    %v3475 = vpack.c.b16 %v2404, %v2397
    %v3476 = vpack.c.b16 %v2405, %v2398
    %v3477 = vpack.c.b16 %v2406, %v2399
    %v3478 = vpack.c.b16 %v2407, %v2400
    %v3479 = vpack.c.b16 %v2408, %v2401
    %v3480 = vpack.c.b16 %v2409, %v2402
    %v3481 = vpack.c.b16 %v2417, %v2410
    %v3482 = vpack.c.b16 %v2418, %v2411
    %v3483 = vpack.c.b16 %v2419, %v2412
    %v3484 = vpack.c.b16 %v2420, %v2413
    %v3485 = vpack.c.b16 %v2421, %v2414
    %v3486 = vpack.c.b16 %v2422, %v2415
    %v3487 = vpack.c.b16 %v2423, %v2416
    %v3488 = vpack.c.b16 %v2431, %v2424
    %v3489 = vpack.c.b16 %v2432, %v2425
    %v3490 = vpack.c.b16 %v2433, %v2426
    %v3491 = vpack.c.b16 %v2434, %v2427
    %v3492 = vpack.c.b16 %v2435, %v2428
    %v3493 = vpack.c.b16 %v2436, %v2429
    %v3494 = vpack.c.b16 %v2437, %v2430
    %v3495 = vpack.c.b16 %v2445, %v2438
    %v3496 = vpack.c.b16 %v2446, %v2439
    %v3497 = vpack.c.b16 %v2447, %v2440
    %v3498 = vpack.c.b16 %v2448, %v2441
    %v3499 = vpack.c.b16 %v2449, %v2442
    %v3500 = vpack.c.b16 %v2450, %v2443
    %v3501 = vpack.c.b16 %v2451, %v2444
    %v3502 = vpack.c.b16 %v2459, %v2452
    %v3503 = vpack.c.b16 %v2460, %v2453
    %v3504 = vpack.c.b16 %v2461, %v2454
    %v3505 = vpack.c.b16 %v2462, %v2455
    %v3506 = vpack.c.b16 %v2463, %v2456
    %v3507 = vpack.c.b16 %v2464, %v2457
    %v3508 = vpack.c.b16 %v2465, %v2458
    %v3509 = vpack.c.b16 %v2473, %v2466
    %v3510 = vpack.c.b16 %v2474, %v2467
    %v3511 = vpack.c.b16 %v2475, %v2468
    %v3512 = vpack.c.b16 %v2476, %v2469
    %v3513 = vpack.c.b16 %v2477, %v2470
    %v3514 = vpack.c.b16 %v2478, %v2471
    %v3515 = vpack.c.b16 %v2479, %v2472
    %v3516 = vpack.c.b16 %v2487, %v2480
    %v3517 = vpack.c.b16 %v2488, %v2481
    %v3518 = vpack.c.b16 %v2489, %v2482
    %v3519 = vpack.c.b16 %v2490, %v2483
    %v3520 = vpack.c.b16 %v2491, %v2484
    %v3521 = vpack.c.b16 %v2492, %v2485
    %v3522 = vpack.c.b16 %v2493, %v2486
    %v3523 = vpack.c.b16 %v2501, %v2494
    %v3524 = vpack.c.b16 %v2502, %v2495
    %v3525 = vpack.c.b16 %v2503, %v2496
    %v3526 = vpack.c.b16 %v2504, %v2497
    %v3527 = vpack.c.b16 %v2505, %v2498
    %v3528 = vpack.c.b16 %v2506, %v2499
    %v3529 = vpack.c.b16 %v2507, %v2500
    %v3530 = vpack.c.b16 %v2515, %v2508
    %v3531 = vpack.c.b16 %v2516, %v2509
    %v3532 = vpack.c.b16 %v2517, %v2510
    %v3533 = vpack.c.b16 %v2518, %v2511
    %v3534 = vpack.c.b16 %v2519, %v2512
    %v3535 = vpack.c.b16 %v2520, %v2513
    %v3536 = vpack.c.b16 %v2521, %v2514
    %v3537 = vpack.c.b16 %v2529, %v2522
    %v3538 = vpack.c.b16 %v2530, %v2523
    %v3539 = vpack.c.b16 %v2531, %v2524
    %v3540 = vpack.c.b16 %v2532, %v2525
    %v3541 = vpack.c.b16 %v2533, %v2526
    %v3542 = vpack.c.b16 %v2534, %v2527
    %v3543 = vpack.c.b16 %v2535, %v2528
    %v3544 = vpack.c.b16 %v2543, %v2536
    %v3545 = vpack.c.b16 %v2544, %v2537
    %v3546 = vpack.c.b16 %v2545, %v2538
    %v3547 = vpack.c.b16 %v2546, %v2539
    %v3548 = vpack.c.b16 %v2547, %v2540
    %v3549 = vpack.c.b16 %v2548, %v2541
    %v3550 = vpack.c.b16 %v2549, %v2542
    %v3551 = vpack.c.b16 %v2557, %v2550
    %v3552 = vpack.c.b16 %v2558, %v2551
    %v3553 = vpack.c.b16 %v2559, %v2552
    %v3554 = vpack.c.b16 %v2560, %v2553
    %v3555 = vpack.c.b16 %v2561, %v2554
    %v3556 = vpack.c.b16 %v2562, %v2555
    %v3557 = vpack.c.b16 %v2563, %v2556
    %v3558 = vpack.c.b16 %v2571, %v2564
    %v3559 = vpack.c.b16 %v2572, %v2565
    %v3560 = vpack.c.b16 %v2573, %v2566
    %v3561 = vpack.c.b16 %v2574, %v2567
    %v3562 = vpack.c.b16 %v2575, %v2568
    %v3563 = vpack.c.b16 %v2576, %v2569
    %v3564 = vpack.c.b16 %v2577, %v2570
    %v3565 = vpack.c.b16 %v2585, %v2578
    %v3566 = vpack.c.b16 %v2586, %v2579
    %v3567 = vpack.c.b16 %v2587, %v2580
    %v3568 = vpack.c.b16 %v2588, %v2581
    %v3569 = vpack.c.b16 %v2589, %v2582
    %v3570 = vpack.c.b16 %v2590, %v2583
    %v3571 = vpack.c.b16 %v2591, %v2584
    %v3572 = vpack.c.b16 %v2599, %v2592
    %v3573 = vpack.c.b16 %v2600, %v2593
    %v3574 = vpack.c.b16 %v2601, %v2594
    %v3575 = vpack.c.b16 %v2602, %v2595
    %v3576 = vpack.c.b16 %v2603, %v2596
    %v3577 = vpack.c.b16 %v2604, %v2597
    %v3578 = vpack.c.b16 %v2605, %v2598
    %v3579 = vpack.c.b16 %v2613, %v2606
    %v3580 = vpack.c.b16 %v2614, %v2607
    %v3581 = vpack.c.b16 %v2615, %v2608
    %v3582 = vpack.c.b16 %v2616, %v2609
    %v3583 = vpack.c.b16 %v2617, %v2610
    %v3584 = vpack.c.b16 %v2618, %v2611
    %v3585 = vpack.c.b16 %v2619, %v2612
    %v3586 = vpack.c.b16 %v2627, %v2620
    %v3587 = vpack.c.b16 %v2628, %v2621
    %v3588 = vpack.c.b16 %v2629, %v2622
    %v3589 = vpack.c.b16 %v2630, %v2623
    %v3590 = vpack.c.b16 %v2631, %v2624
    %v3591 = vpack.c.b16 %v2632, %v2625
    %v3592 = vpack.c.b16 %v2633, %v2626
    %v3593 = vpack.c.b16 %v2641, %v2634
    %v3594 = vpack.c.b16 %v2642, %v2635
    %v3595 = vpack.c.b16 %v2643, %v2636
    %v3596 = vpack.c.b16 %v2644, %v2637
    %v3597 = vpack.c.b16 %v2645, %v2638
    %v3598 = vpack.c.b16 %v2646, %v2639
    %v3599 = vpack.c.b16 %v2647, %v2640
    %v3600 = vpack.c.b16 %v2655, %v2648
    %v3601 = vpack.c.b16 %v2656, %v2649
    %v3602 = vpack.c.b16 %v2657, %v2650
    %v3603 = vpack.c.b16 %v2658, %v2651
    %v3604 = vpack.c.b16 %v2659, %v2652
    %v3605 = vpack.c.b16 %v2660, %v2653
    %v3606 = vpack.c.b16 %v2661, %v2654
    %v3607 = vpack.c.b16 %v2669, %v2662
    %v3608 = vpack.c.b16 %v2670, %v2663
    %v3609 = vpack.c.b16 %v2671, %v2664
    %v3610 = vpack.c.b16 %v2672, %v2665
    %v3611 = vpack.c.b16 %v2673, %v2666
    %v3612 = vpack.c.b16 %v2674, %v2667
    %v3613 = vpack.c.b16 %v2675, %v2668
    %v3614 = vpack.c.b16 %v2683, %v2676
    %v3615 = vpack.c.b16 %v2684, %v2677
    %v3616 = vpack.c.b16 %v2685, %v2678
    %v3617 = vpack.c.b16 %v2686, %v2679
    %v3618 = vpack.c.b16 %v2687, %v2680
    %v3619 = vpack.c.b16 %v2688, %v2681
    %v3620 = vpack.c.b16 %v2689, %v2682
    %v3621 = vpack.c.b16 %v2697, %v2690
    %v3622 = vpack.c.b16 %v2698, %v2691
    %v3623 = vpack.c.b16 %v2699, %v2692
    %v3624 = vpack.c.b16 %v2700, %v2693
    %v3625 = vpack.c.b16 %v2701, %v2694
    %v3626 = vpack.c.b16 %v2702, %v2695
    %v3627 = vpack.c.b16 %v2703, %v2696
    %v3628 = vpack.c.b16 %v2711, %v2704
    %v3629 = vpack.c.b16 %v2712, %v2705
    %v3630 = vpack.c.b16 %v2713, %v2706
    %v3631 = vpack.c.b16 %v2714, %v2707
    %v3632 = vpack.c.b16 %v2715, %v2708
    %v3633 = vpack.c.b16 %v2716, %v2709
    %v3634 = vpack.c.b16 %v2717, %v2710
    %v3635 = vpack.c.b16 %v2725, %v2718
    %v3636 = vpack.c.b16 %v2726, %v2719
    %v3637 = vpack.c.b16 %v2727, %v2720
    %v3638 = vpack.c.b16 %v2728, %v2721
    %v3639 = vpack.c.b16 %v2729, %v2722
    %v3640 = vpack.c.b16 %v2730, %v2723
    %v3641 = vpack.c.b16 %v2731, %v2724
    %v3642 = vpack.c.b16 %v2739, %v2732
    %v3643 = vpack.c.b16 %v2740, %v2733
    %v3644 = vpack.c.b16 %v2741, %v2734
    %v3645 = vpack.c.b16 %v2742, %v2735
    %v3646 = vpack.c.b16 %v2743, %v2736
    %v3647 = vpack.c.b16 %v2744, %v2737
    %v3648 = vpack.c.b16 %v2745, %v2738
    %v3649 = vpack.c.b16 %v2753, %v2746
    %v3650 = vpack.c.b16 %v2754, %v2747
    %v3651 = vpack.c.b16 %v2755, %v2748
    %v3652 = vpack.c.b16 %v2756, %v2749
    %v3653 = vpack.c.b16 %v2757, %v2750
    %v3654 = vpack.c.b16 %v2758, %v2751
    %v3655 = vpack.c.b16 %v2759, %v2752
    %v3656 = vpack.c.b16 %v2767, %v2760
    %v3657 = vpack.c.b16 %v2768, %v2761
    %v3658 = vpack.c.b16 %v2769, %v2762
    %v3659 = vpack.c.b16 %v2770, %v2763
    %v3660 = vpack.c.b16 %v2771, %v2764
    %v3661 = vpack.c.b16 %v2772, %v2765
    %v3662 = vpack.c.b16 %v2773, %v2766
    %v3663 = vpack.c.b16 %v2781, %v2774
    %v3664 = vpack.c.b16 %v2782, %v2775
    %v3665 = vpack.c.b16 %v2783, %v2776
    %v3666 = vpack.c.b16 %v2784, %v2777
    %v3667 = vpack.c.b16 %v2785, %v2778
    %v3668 = vpack.c.b16 %v2786, %v2779
    %v3669 = vpack.c.b16 %v2787, %v2780
    %v3670 = vpack.c.b16 %v2795, %v2788
    %v3671 = vpack.c.b16 %v2796, %v2789
    %v3672 = vpack.c.b16 %v2797, %v2790
    %v3673 = vpack.c.b16 %v2798, %v2791
    %v3674 = vpack.c.b16 %v2799, %v2792
    %v3675 = vpack.c.b16 %v2800, %v2793
    %v3676 = vpack.c.b16 %v2801, %v2794
    %v3677 = vpack.c.b16 %v2809, %v2802
    %v3678 = vpack.c.b16 %v2810, %v2803
    %v3679 = vpack.c.b16 %v2811, %v2804
    %v3680 = vpack.c.b16 %v2812, %v2805
    %v3681 = vpack.c.b16 %v2813, %v2806
    %v3682 = vpack.c.b16 %v2814, %v2807
    %v3683 = vpack.c.b16 %v2815, %v2808
    %v3684 = vpack.c.b16 %v2823, %v2816
    %v3685 = vpack.c.b16 %v2824, %v2817
    %v3686 = vpack.c.b16 %v2825, %v2818
    %v3687 = vpack.c.b16 %v2826, %v2819
    %v3688 = vpack.c.b16 %v2827, %v2820
    %v3689 = vpack.c.b16 %v2828, %v2821
    %v3690 = vpack.c.b16 %v2829, %v2822
    %v3691 = vpack.c.b16 %v2837, %v2830
    %v3692 = vpack.c.b16 %v2838, %v2831
    %v3693 = vpack.c.b16 %v2839, %v2832
    %v3694 = vpack.c.b16 %v2840, %v2833
    %v3695 = vpack.c.b16 %v2841, %v2834
    %v3696 = vpack.c.b16 %v2842, %v2835
    %v3697 = vpack.c.b16 %v2843, %v2836
    %v3698 = vpack.c.b16 %v2851, %v2844
    %v3699 = vpack.c.b16 %v2852, %v2845
    %v3700 = vpack.c.b16 %v2853, %v2846
    %v3701 = vpack.c.b16 %v2854, %v2847
    %v3702 = vpack.c.b16 %v2855, %v2848
    %v3703 = vpack.c.b16 %v2856, %v2849
    %v3704 = vpack.c.b16 %v2857, %v2850
    %v3705 = vpack.c.b16 %v2865, %v2858
    %v3706 = vpack.c.b16 %v2866, %v2859
    %v3707 = vpack.c.b16 %v2867, %v2860
    %v3708 = vpack.c.b16 %v2868, %v2861
    %v3709 = vpack.c.b16 %v2869, %v2862
    %v3710 = vpack.c.b16 %v2870, %v2863
    %v3711 = vpack.c.b16 %v2871, %v2864
    %v3712 = vpack.c.b16 %v2879, %v2872
    %v3713 = vpack.c.b16 %v2880, %v2873
    %v3714 = vpack.c.b16 %v2881, %v2874
    %v3715 = vpack.c.b16 %v2882, %v2875
    %v3716 = vpack.c.b16 %v2883, %v2876
    %v3717 = vpack.c.b16 %v2884, %v2877
    %v3718 = vpack.c.b16 %v2885, %v2878
    %v3719 = vpack.c.b16 %v2893, %v2886
    %v3720 = vpack.c.b16 %v2894, %v2887
    %v3721 = vpack.c.b16 %v2895, %v2888
    %v3722 = vpack.c.b16 %v2896, %v2889
    %v3723 = vpack.c.b16 %v2897, %v2890
    %v3724 = vpack.c.b16 %v2898, %v2891
    %v3725 = vpack.c.b16 %v2899, %v2892
    %v3726 = vpack.c.b16 %v2907, %v2900
    %v3727 = vpack.c.b16 %v2908, %v2901
    %v3728 = vpack.c.b16 %v2909, %v2902
    %v3729 = vpack.c.b16 %v2910, %v2903
    %v3730 = vpack.c.b16 %v2911, %v2904
    %v3731 = vpack.c.b16 %v2912, %v2905
    %v3732 = vpack.c.b16 %v2913, %v2906
    %v3733 = vpack.c.b16 %v2921, %v2914
    %v3734 = vpack.c.b16 %v2922, %v2915
    %v3735 = vpack.c.b16 %v2923, %v2916
    %v3736 = vpack.c.b16 %v2924, %v2917
    %v3737 = vpack.c.b16 %v2925, %v2918
    %v3738 = vpack.c.b16 %v2926, %v2919
    %v3739 = vpack.c.b16 %v2927, %v2920
    %v3740 = vpack.c.b16 %v2935, %v2928
    %v3741 = vpack.c.b16 %v2936, %v2929
    %v3742 = vpack.c.b16 %v2937, %v2930
    %v3743 = vpack.c.b16 %v2938, %v2931
    %v3744 = vpack.c.b16 %v2939, %v2932
    %v3745 = vpack.c.b16 %v2940, %v2933
    %v3746 = vpack.c.b16 %v2941, %v2934
    %v3747 = vpack.c.b16 %v2949, %v2942
    %v3748 = vpack.c.b16 %v2950, %v2943
    %v3749 = vpack.c.b16 %v2951, %v2944
    %v3750 = vpack.c.b16 %v2952, %v2945
    %v3751 = vpack.c.b16 %v2953, %v2946
    %v3752 = vpack.c.b16 %v2954, %v2947
    %v3753 = vpack.c.b16 %v2955, %v2948
    %v3754 = vpack.c.b16 %v2963, %v2956
    %v3755 = vpack.c.b16 %v2964, %v2957
    %v3756 = vpack.c.b16 %v2965, %v2958
    %v3757 = vpack.c.b16 %v2966, %v2959
    %v3758 = vpack.c.b16 %v2967, %v2960
    %v3759 = vpack.c.b16 %v2968, %v2961
    %v3760 = vpack.c.b16 %v2969, %v2962
    %v3761 = vpack.c.b16 %v2977, %v2970
    %v3762 = vpack.c.b16 %v2978, %v2971
    %v3763 = vpack.c.b16 %v2979, %v2972
    %v3764 = vpack.c.b16 %v2980, %v2973
    %v3765 = vpack.c.b16 %v2981, %v2974
    %v3766 = vpack.c.b16 %v2982, %v2975
    %v3767 = vpack.c.b16 %v2983, %v2976
    %v3768 = vpack.c.b16 %v2991, %v2984
    %v3769 = vpack.c.b16 %v2992, %v2985
    %v3770 = vpack.c.b16 %v2993, %v2986
    %v3771 = vpack.c.b16 %v2994, %v2987
    %v3772 = vpack.c.b16 %v2995, %v2988
    %v3773 = vpack.c.b16 %v2996, %v2989
    %v3774 = vpack.c.b16 %v2997, %v2990
    %v3775 = vpack.c.b16 %v3005, %v2998
    %v3776 = vpack.c.b16 %v3006, %v2999
    %v3777 = vpack.c.b16 %v3007, %v3000
    %v3778 = vpack.c.b16 %v3008, %v3001
    %v3779 = vpack.c.b16 %v3009, %v3002
    %v3780 = vpack.c.b16 %v3010, %v3003
    %v3781 = vpack.c.b16 %v3011, %v3004
    %v3782 = vpack.c.b16 %v3019, %v3012
    %v3783 = vpack.c.b16 %v3020, %v3013
    %v3784 = vpack.c.b16 %v3021, %v3014
    %v3785 = vpack.c.b16 %v3022, %v3015
    %v3786 = vpack.c.b16 %v3023, %v3016
    %v3787 = vpack.c.b16 %v3024, %v3017
    %v3788 = vpack.c.b16 %v3025, %v3018
    %v3789 = vpack.c.b16 %v3033, %v3026
    %v3790 = vpack.c.b16 %v3034, %v3027
    %v3791 = vpack.c.b16 %v3035, %v3028
    %v3792 = vpack.c.b16 %v3036, %v3029
    %v3793 = vpack.c.b16 %v3037, %v3030
    %v3794 = vpack.c.b16 %v3038, %v3031
    %v3795 = vpack.c.b16 %v3039, %v3032
    %v3796 = vpack.c.b16 %v3047, %v3040
    %v3797 = vpack.c.b16 %v3048, %v3041
    %v3798 = vpack.c.b16 %v3049, %v3042
    %v3799 = vpack.c.b16 %v3050, %v3043
    %v3800 = vpack.c.b16 %v3051, %v3044
    %v3801 = vpack.c.b16 %v3052, %v3045
    %v3802 = vpack.c.b16 %v3053, %v3046
    %v3803 = vpack.c.b16 %v3061, %v3054
    %v3804 = vpack.c.b16 %v3062, %v3055
    %v3805 = vpack.c.b16 %v3063, %v3056
    %v3806 = vpack.c.b16 %v3064, %v3057
    %v3807 = vpack.c.b16 %v3065, %v3058
    %v3808 = vpack.c.b16 %v3066, %v3059
    %v3809 = vpack.c.b16 %v3067, %v3060
    %v3810 = vpack.c.b16 %v3075, %v3068
    %v3811 = vpack.c.b16 %v3076, %v3069
    %v3812 = vpack.c.b16 %v3077, %v3070
    %v3813 = vpack.c.b16 %v3078, %v3071
    %v3814 = vpack.c.b16 %v3079, %v3072
    %v3815 = vpack.c.b16 %v3080, %v3073
    %v3816 = vpack.c.b16 %v3081, %v3074
    %v3817 = vpack.c.b16 %v3089, %v3082
    %v3818 = vpack.c.b16 %v3090, %v3083
    %v3819 = vpack.c.b16 %v3091, %v3084
    %v3820 = vpack.c.b16 %v3092, %v3085
    %v3821 = vpack.c.b16 %v3093, %v3086
    %v3822 = vpack.c.b16 %v3094, %v3087
    %v3823 = vpack.c.b16 %v3095, %v3088
    %v3824 = vpack.c.b16 %v3103, %v3096
    %v3825 = vpack.c.b16 %v3104, %v3097
    %v3826 = vpack.c.b16 %v3105, %v3098
    %v3827 = vpack.c.b16 %v3106, %v3099
    %v3828 = vpack.c.b16 %v3107, %v3100
    %v3829 = vpack.c.b16 %v3108, %v3101
    %v3830 = vpack.c.b16 %v3109, %v3102
    %v3831 = vpack.c.b16 %v3117, %v3110
    %v3832 = vpack.c.b16 %v3118, %v3111
    %v3833 = vpack.c.b16 %v3119, %v3112
    %v3834 = vpack.c.b16 %v3120, %v3113
    %v3835 = vpack.c.b16 %v3121, %v3114
    %v3836 = vpack.c.b16 %v3122, %v3115
    %v3837 = vpack.c.b16 %v3123, %v3116
    %v3838 = vpack.c.b16 %v3131, %v3124
    %v3839 = vpack.c.b16 %v3132, %v3125
    %v3840 = vpack.c.b16 %v3133, %v3126
    %v3841 = vpack.c.b16 %v3134, %v3127
    %v3842 = vpack.c.b16 %v3135, %v3128
    %v3843 = vpack.c.b16 %v3136, %v3129
    %v3844 = vpack.c.b16 %v3137, %v3130
    %v3845 = vpack.c.b16 %v3145, %v3138
    %v3846 = vpack.c.b16 %v3146, %v3139
    %v3847 = vpack.c.b16 %v3147, %v3140
    %v3848 = vpack.c.b16 %v3148, %v3141
    %v3849 = vpack.c.b16 %v3149, %v3142
    %v3850 = vpack.c.b16 %v3150, %v3143
    %v3851 = vpack.c.b16 %v3151, %v3144
    %vm4552 = vcmask 523264
    %v4554 = vsel %vm4552, %v939, 0
    %4556 = vmatprep.subr.bf16.mxu0 %v3153
    %4557 = vmatpush1.bf16.msra.mxu0 %v3152
    %4558 = vmatprep.subr.bf16.mxu0 %v3160
    %4559 = vmatpush1.bf16.msra.mxu0 %v3159
    %4560 = vmatprep.subr.bf16.mxu0 %v3167
    %4561 = vmatpush1.bf16.msra.mxu0 %v3166
    %4562 = vmatprep.subr.bf16.mxu0 %v3174
    %4563 = vmatpush1.bf16.msra.mxu0 %v3173
    %4564 = vmatprep.subr.bf16.mxu0 %v3181
    %4565 = vmatpush1.bf16.msra.mxu0 %v3180
    %4566 = vmatprep.subr.bf16.mxu0 %v3188
    %4567 = vmatpush1.bf16.msra.mxu0 %v3187
    %4568 = vmatprep.subr.bf16.mxu0 %v3195
    %4569 = vmatpush1.bf16.msra.mxu0 %v3194
    %4570 = vmatprep.subr.bf16.mxu0 %v3202
    %4571 = vmatpush1.bf16.msra.mxu0 %v3201
    %4572 = vmatprep.subr.bf16.mxu0 %v3209
    %4573 = vmatpush1.bf16.msra.mxu0 %v3208
    %4574 = vmatprep.subr.bf16.mxu0 %v3216
    %4575 = vmatpush1.bf16.msra.mxu0 %v3215
    %4576 = vmatprep.subr.bf16.mxu0 %v3223
    %4577 = vmatpush1.bf16.msra.mxu0 %v3222
    %4578 = vmatprep.subr.bf16.mxu0 %v3230
    %4579 = vmatpush1.bf16.msra.mxu0 %v3229
    %4580 = vmatprep.subr.bf16.mxu0 %v3237
    %4581 = vmatpush1.bf16.msra.mxu0 %v3236
    %4582 = vmatprep.subr.bf16.mxu0 %v3244
    %4583 = vmatpush1.bf16.msra.mxu0 %v3243
    %4584 = vmatprep.subr.bf16.mxu0 %v3251
    %4585 = vmatpush1.bf16.msra.mxu0 %v3250
    %4586 = vmatprep.subr.bf16.mxu0 %v3258
    %4587 = vmatpush1.bf16.msra.mxu0 %v3257
    %4588 = vmatprep.mubr.bf16.mxu0 %v928
    %4589 = vmatmul.mubr.bf16.gmra.mrb[0].mxu0 %v927
    %v4590 = vpop.f32.mrb[0].mxu0
    %v4591 = vadd.f32 %v855, %v4590
    %v4592 = vpop.f32.mrb[0].mxu0
    %v4593 = vadd.f32 %v859, %v4592
    %v4594 = vpop.f32.mrb[0].mxu0
    %v4595 = vadd.f32 %v855, %v4594
    %v4596 = vpop.f32.mrb[0].mxu0
    %v4597 = vadd.f32 %v859, %v4596
    %4598 = vdwg.mxu0
    %4599 = vmatprep.subr.bf16.mxu0 %v3265
    %4600 = vmatpush1.bf16.msra.mxu0 %v3264
    %4601 = vmatprep.subr.bf16.mxu0 %v3272
    %4602 = vmatpush1.bf16.msra.mxu0 %v3271
    %4603 = vmatprep.subr.bf16.mxu0 %v3279
    %4604 = vmatpush1.bf16.msra.mxu0 %v3278
    %4605 = vmatprep.subr.bf16.mxu0 %v3286
    %4606 = vmatpush1.bf16.msra.mxu0 %v3285
    %4607 = vmatprep.subr.bf16.mxu0 %v3293
    %4608 = vmatpush1.bf16.msra.mxu0 %v3292
    %4609 = vmatprep.subr.bf16.mxu0 %v3300
    %4610 = vmatpush1.bf16.msra.mxu0 %v3299
    %4611 = vmatprep.subr.bf16.mxu0 %v3307
    %4612 = vmatpush1.bf16.msra.mxu0 %v3306
    %4613 = vmatprep.subr.bf16.mxu0 %v3314
    %4614 = vmatpush1.bf16.msra.mxu0 %v3313
    %4615 = vmatprep.subr.bf16.mxu0 %v3321
    %4616 = vmatpush1.bf16.msra.mxu0 %v3320
    %4617 = vmatprep.subr.bf16.mxu0 %v3328
    %4618 = vmatpush1.bf16.msra.mxu0 %v3327
    %4619 = vmatprep.subr.bf16.mxu0 %v3335
    %4620 = vmatpush1.bf16.msra.mxu0 %v3334
    %4621 = vmatprep.subr.bf16.mxu0 %v3342
    %4622 = vmatpush1.bf16.msra.mxu0 %v3341
    %4623 = vmatprep.subr.bf16.mxu0 %v3349
    %4624 = vmatpush1.bf16.msra.mxu0 %v3348
    %4625 = vmatprep.subr.bf16.mxu0 %v3356
    %4626 = vmatpush1.bf16.msra.mxu0 %v3355
    %4627 = vmatprep.subr.bf16.mxu0 %v3363
    %4628 = vmatpush1.bf16.msra.mxu0 %v3362
    %4629 = vmatprep.subr.bf16.mxu0 %v3370
    %4630 = vmatpush1.bf16.msra.mxu0 %v3369
    %4631 = vmatprep.mubr.bf16.mxu0 %v930
    %4632 = vmatmul.mubr.bf16.gmra.mrb[0].mxu0 %v929
    %v4633 = vpop.f32.mrb[0].mxu0
    %v4634 = vadd.f32 %v4591, %v4633
    %v4635 = vpop.f32.mrb[0].mxu0
    %v4636 = vadd.f32 %v4593, %v4635
    %v4637 = vpop.f32.mrb[0].mxu0
    %v4638 = vadd.f32 %v4595, %v4637
    %v4639 = vpop.f32.mrb[0].mxu0
    %v4640 = vadd.f32 %v4597, %v4639
    %4641 = vdwg.mxu0
    %4642 = vmatprep.subr.bf16.mxu0 %v3377
    %4643 = vmatpush1.bf16.msra.mxu0 %v3376
    %4644 = vmatprep.subr.bf16.mxu0 %v3384
    %4645 = vmatpush1.bf16.msra.mxu0 %v3383
    %4646 = vmatprep.subr.bf16.mxu0 %v3391
    %4647 = vmatpush1.bf16.msra.mxu0 %v3390
    %4648 = vmatprep.subr.bf16.mxu0 %v3398
    %4649 = vmatpush1.bf16.msra.mxu0 %v3397
    %4650 = vmatprep.subr.bf16.mxu0 %v3405
    %4651 = vmatpush1.bf16.msra.mxu0 %v3404
    %4652 = vmatprep.subr.bf16.mxu0 %v3412
    %4653 = vmatpush1.bf16.msra.mxu0 %v3411
    %4654 = vmatprep.subr.bf16.mxu0 %v3419
    %4655 = vmatpush1.bf16.msra.mxu0 %v3418
    %4656 = vmatprep.subr.bf16.mxu0 %v3426
    %4657 = vmatpush1.bf16.msra.mxu0 %v3425
    %4658 = vmatprep.subr.bf16.mxu0 %v3433
    %4659 = vmatpush1.bf16.msra.mxu0 %v3432
    %4660 = vmatprep.subr.bf16.mxu0 %v3440
    %4661 = vmatpush1.bf16.msra.mxu0 %v3439
    %4662 = vmatprep.subr.bf16.mxu0 %v3447
    %4663 = vmatpush1.bf16.msra.mxu0 %v3446
    %4664 = vmatprep.subr.bf16.mxu0 %v3454
    %4665 = vmatpush1.bf16.msra.mxu0 %v3453
    %4666 = vmatprep.subr.bf16.mxu0 %v3461
    %4667 = vmatpush1.bf16.msra.mxu0 %v3460
    %4668 = vmatprep.subr.bf16.mxu0 %v3468
    %4669 = vmatpush1.bf16.msra.mxu0 %v3467
    %4670 = vmatprep.subr.bf16.mxu0 %v3475
    %4671 = vmatpush1.bf16.msra.mxu0 %v3474
    %4672 = vmatprep.subr.bf16.mxu0 %v3482
    %4673 = vmatpush1.bf16.msra.mxu0 %v3481
    %4674 = vmatprep.mubr.bf16.mxu0 %v932
    %4675 = vmatmul.mubr.bf16.gmra.mrb[0].mxu0 %v931
    %v4676 = vpop.f32.mrb[0].mxu0
    %v4677 = vadd.f32 %v4634, %v4676
    %v4678 = vpop.f32.mrb[0].mxu0
    %v4679 = vadd.f32 %v4636, %v4678
    %v4680 = vpop.f32.mrb[0].mxu0
    %v4681 = vadd.f32 %v4638, %v4680
    %v4682 = vpop.f32.mrb[0].mxu0
    %v4683 = vadd.f32 %v4640, %v4682
    %4684 = vdwg.mxu0
    %4685 = vmatprep.subr.bf16.mxu0 %v3489
    %4686 = vmatpush1.bf16.msra.mxu0 %v3488
    %4687 = vmatprep.subr.bf16.mxu0 %v3496
    %4688 = vmatpush1.bf16.msra.mxu0 %v3495
    %4689 = vmatprep.subr.bf16.mxu0 %v3503
    %4690 = vmatpush1.bf16.msra.mxu0 %v3502
    %4691 = vmatprep.subr.bf16.mxu0 %v3510
    %4692 = vmatpush1.bf16.msra.mxu0 %v3509
    %4693 = vmatprep.subr.bf16.mxu0 %v3517
    %4694 = vmatpush1.bf16.msra.mxu0 %v3516
    %4695 = vmatprep.subr.bf16.mxu0 %v3524
    %4696 = vmatpush1.bf16.msra.mxu0 %v3523
    %4697 = vmatprep.subr.bf16.mxu0 %v3531
    %4698 = vmatpush1.bf16.msra.mxu0 %v3530
    %4699 = vmatprep.subr.bf16.mxu0 %v3538
    %4700 = vmatpush1.bf16.msra.mxu0 %v3537
    %4701 = vmatprep.subr.bf16.mxu0 %v3545
    %4702 = vmatpush1.bf16.msra.mxu0 %v3544
    %4703 = vmatprep.subr.bf16.mxu0 %v3552
    %4704 = vmatpush1.bf16.msra.mxu0 %v3551
    %4705 = vmatprep.subr.bf16.mxu0 %v3559
    %4706 = vmatpush1.bf16.msra.mxu0 %v3558
    %4707 = vmatprep.subr.bf16.mxu0 %v3566
    %4708 = vmatpush1.bf16.msra.mxu0 %v3565
    %4709 = vmatprep.subr.bf16.mxu0 %v3573
    %4710 = vmatpush1.bf16.msra.mxu0 %v3572
    %4711 = vmatprep.subr.bf16.mxu0 %v3580
    %4712 = vmatpush1.bf16.msra.mxu0 %v3579
    %4713 = vmatprep.subr.bf16.mxu0 %v3587
    %4714 = vmatpush1.bf16.msra.mxu0 %v3586
    %4715 = vmatprep.subr.bf16.mxu0 %v3594
    %4716 = vmatpush1.bf16.msra.mxu0 %v3593
    %4717 = vmatprep.mubr.bf16.mxu0 %v934
    %4718 = vmatmul.mubr.bf16.gmra.mrb[0].mxu0 %v933
    %v4719 = vpop.f32.mrb[0].mxu0
    %v4720 = vadd.f32 %v4677, %v4719
    %v4721 = vpop.f32.mrb[0].mxu0
    %v4722 = vadd.f32 %v4679, %v4721
    %v4723 = vpop.f32.mrb[0].mxu0
    %v4724 = vadd.f32 %v4681, %v4723
    %v4725 = vpop.f32.mrb[0].mxu0
    %v4726 = vadd.f32 %v4683, %v4725
    %4727 = vdwg.mxu0
    %4728 = vmatprep.subr.bf16.mxu0 %v3601
    %4729 = vmatpush1.bf16.msra.mxu0 %v3600
    %4730 = vmatprep.subr.bf16.mxu0 %v3608
    %4731 = vmatpush1.bf16.msra.mxu0 %v3607
    %4732 = vmatprep.subr.bf16.mxu0 %v3615
    %4733 = vmatpush1.bf16.msra.mxu0 %v3614
    %4734 = vmatprep.subr.bf16.mxu0 %v3622
    %4735 = vmatpush1.bf16.msra.mxu0 %v3621
    %4736 = vmatprep.subr.bf16.mxu0 %v3629
    %4737 = vmatpush1.bf16.msra.mxu0 %v3628
    %4738 = vmatprep.subr.bf16.mxu0 %v3636
    %4739 = vmatpush1.bf16.msra.mxu0 %v3635
    %4740 = vmatprep.subr.bf16.mxu0 %v3643
    %4741 = vmatpush1.bf16.msra.mxu0 %v3642
    %4742 = vmatprep.subr.bf16.mxu0 %v3650
    %4743 = vmatpush1.bf16.msra.mxu0 %v3649
    %4744 = vmatprep.subr.bf16.mxu0 %v3657
    %4745 = vmatpush1.bf16.msra.mxu0 %v3656
    %4746 = vmatprep.subr.bf16.mxu0 %v3664
    %4747 = vmatpush1.bf16.msra.mxu0 %v3663
    %4748 = vmatprep.subr.bf16.mxu0 %v3671
    %4749 = vmatpush1.bf16.msra.mxu0 %v3670
    %4750 = vmatprep.subr.bf16.mxu0 %v3678
    %4751 = vmatpush1.bf16.msra.mxu0 %v3677
    %4752 = vmatprep.subr.bf16.mxu0 %v3685
    %4753 = vmatpush1.bf16.msra.mxu0 %v3684
    %4754 = vmatprep.subr.bf16.mxu0 %v3692
    %4755 = vmatpush1.bf16.msra.mxu0 %v3691
    %4756 = vmatprep.subr.bf16.mxu0 %v3699
    %4757 = vmatpush1.bf16.msra.mxu0 %v3698
    %4758 = vmatprep.subr.bf16.mxu0 %v3706
    %4759 = vmatpush1.bf16.msra.mxu0 %v3705
    %4760 = vmatprep.mubr.bf16.mxu0 %v936
    %4761 = vmatmul.mubr.bf16.gmra.mrb[0].mxu0 %v935
    %v4762 = vpop.f32.mrb[0].mxu0
    %v4763 = vadd.f32 %v4720, %v4762
    %v4764 = vpop.f32.mrb[0].mxu0
    %v4765 = vadd.f32 %v4722, %v4764
    %v4766 = vpop.f32.mrb[0].mxu0
    %v4767 = vadd.f32 %v4724, %v4766
    %v4768 = vpop.f32.mrb[0].mxu0
    %v4769 = vadd.f32 %v4726, %v4768
    %4770 = vdwg.mxu0
    %4771 = vmatprep.subr.bf16.mxu0 %v3713
    %4772 = vmatpush1.bf16.msra.mxu0 %v3712
    %4773 = vmatprep.subr.bf16.mxu0 %v3720
    %4774 = vmatpush1.bf16.msra.mxu0 %v3719
    %4775 = vmatprep.subr.bf16.mxu0 %v3727
    %4776 = vmatpush1.bf16.msra.mxu0 %v3726
    %4777 = vmatprep.subr.bf16.mxu0 %v3734
    %4778 = vmatpush1.bf16.msra.mxu0 %v3733
    %4779 = vmatprep.subr.bf16.mxu0 %v3741
    %4780 = vmatpush1.bf16.msra.mxu0 %v3740
    %4781 = vmatprep.subr.bf16.mxu0 %v3748
    %4782 = vmatpush1.bf16.msra.mxu0 %v3747
    %4783 = vmatprep.subr.bf16.mxu0 %v3755
    %4784 = vmatpush1.bf16.msra.mxu0 %v3754
    %4785 = vmatprep.subr.bf16.mxu0 %v3762
    %4786 = vmatpush1.bf16.msra.mxu0 %v3761
    %4787 = vmatprep.subr.bf16.mxu0 %v3769
    %4788 = vmatpush1.bf16.msra.mxu0 %v3768
    %4789 = vmatprep.subr.bf16.mxu0 %v3776
    %4790 = vmatpush1.bf16.msra.mxu0 %v3775
    %4791 = vmatprep.subr.bf16.mxu0 %v3783
    %4792 = vmatpush1.bf16.msra.mxu0 %v3782
    %4793 = vmatprep.subr.bf16.mxu0 %v3790
    %4794 = vmatpush1.bf16.msra.mxu0 %v3789
    %4795 = vmatprep.subr.bf16.mxu0 %v3797
    %4796 = vmatpush1.bf16.msra.mxu0 %v3796
    %4797 = vmatprep.subr.bf16.mxu0 %v3804
    %4798 = vmatpush1.bf16.msra.mxu0 %v3803
    %4799 = vmatprep.subr.bf16.mxu0 %v3811
    %4800 = vmatpush1.bf16.msra.mxu0 %v3810
    %4801 = vmatprep.subr.bf16.mxu0 %v3818
    %4802 = vmatpush1.bf16.msra.mxu0 %v3817
    %4803 = vmatprep.mubr.bf16.mxu0 %v938
    %4804 = vmatmul.mubr.bf16.gmra.mrb[0].mxu0 %v937
    %v4805 = vpop.f32.mrb[0].mxu0
    %v4806 = vadd.f32 %v4763, %v4805
    %v4807 = vpop.f32.mrb[0].mxu0
    %v4808 = vadd.f32 %v4765, %v4807
    %v4809 = vpop.f32.mrb[0].mxu0
    %v4810 = vadd.f32 %v4767, %v4809
    %v4811 = vpop.f32.mrb[0].mxu0
    %v4812 = vadd.f32 %v4769, %v4811
    %4813 = vdwg.mxu0
    %4814 = vmatprep.subr.bf16.mxu0 %v3825
    %4815 = vmatpush1.bf16.msra.mxu0 %v3824
    %4816 = vmatprep.subr.bf16.mxu0 %v3832
    %4817 = vmatpush1.bf16.msra.mxu0 %v3831
    %4818 = vmatprep.subr.bf16.mxu0 %v3839
    %4819 = vmatpush1.bf16.msra.mxu0 %v3838
    %4820 = vmatprep.subr.bf16.mxu0 %v3846
    %4821 = vmatpush1.bf16.msra.mxu0 %v3845
    %4822 = vmatprep.subr.bf16.mxu0 0
    %4823 = vmatpush1.bf16.msra.mxu0 0
    %4824 = vmatprep.subr.bf16.mxu0 0
    %4825 = vmatpush1.bf16.msra.mxu0 0
    %4826 = vmatprep.subr.bf16.mxu0 0
    %4827 = vmatpush1.bf16.msra.mxu0 0
    %4828 = vmatprep.subr.bf16.mxu0 0
    %4829 = vmatpush1.bf16.msra.mxu0 0
    %4830 = vmatprep.subr.bf16.mxu0 0
    %4831 = vmatpush1.bf16.msra.mxu0 0
    %4832 = vmatprep.subr.bf16.mxu0 0
    %4833 = vmatpush1.bf16.msra.mxu0 0
    %4834 = vmatprep.subr.bf16.mxu0 0
    %4835 = vmatpush1.bf16.msra.mxu0 0
    %4836 = vmatprep.subr.bf16.mxu0 0
    %4837 = vmatpush1.bf16.msra.mxu0 0
    %4838 = vmatprep.subr.bf16.mxu0 0
    %4839 = vmatpush1.bf16.msra.mxu0 0
    %4840 = vmatprep.subr.bf16.mxu0 0
    %4841 = vmatpush1.bf16.msra.mxu0 0
    %4842 = vmatprep.subr.bf16.mxu0 0
    %4843 = vmatpush1.bf16.msra.mxu0 0
    %4844 = vmatprep.subr.bf16.mxu0 0
    %4845 = vmatpush1.bf16.msra.mxu0 0
    %4846 = vmatprep.mubr.bf16.mxu0 0
    %4847 = vmatmul.mubr.bf16.gmra.mrb[0].mxu0 %v4554
    %v4848 = vpop.f32.mrb[0].mxu0
    %v4849 = vadd.f32 %v4806, %v4848
    %v4850 = vpop.f32.mrb[0].mxu0
    %v4851 = vadd.f32 %v4808, %v4850
    %v4852 = vpop.f32.mrb[0].mxu0
    %v4853 = vadd.f32 %v4810, %v4852
    %v4854 = vpop.f32.mrb[0].mxu0
    %v4855 = vadd.f32 %v4812, %v4854
    %4856 = vdwg.mxu0
    %4857 = vmatprep.subr.bf16.mxu0 %v3155
    %4858 = vmatpush1.bf16.msra.mxu0 %v3154
    %4859 = vmatprep.subr.bf16.mxu0 %v3162
    %4860 = vmatpush1.bf16.msra.mxu0 %v3161
    %4861 = vmatprep.subr.bf16.mxu0 %v3169
    %4862 = vmatpush1.bf16.msra.mxu0 %v3168
    %4863 = vmatprep.subr.bf16.mxu0 %v3176
    %4864 = vmatpush1.bf16.msra.mxu0 %v3175
    %4865 = vmatprep.subr.bf16.mxu0 %v3183
    %4866 = vmatpush1.bf16.msra.mxu0 %v3182
    %4867 = vmatprep.subr.bf16.mxu0 %v3190
    %4868 = vmatpush1.bf16.msra.mxu0 %v3189
    %4869 = vmatprep.subr.bf16.mxu0 %v3197
    %4870 = vmatpush1.bf16.msra.mxu0 %v3196
    %4871 = vmatprep.subr.bf16.mxu0 %v3204
    %4872 = vmatpush1.bf16.msra.mxu0 %v3203
    %4873 = vmatprep.subr.bf16.mxu0 %v3211
    %4874 = vmatpush1.bf16.msra.mxu0 %v3210
    %4875 = vmatprep.subr.bf16.mxu0 %v3218
    %4876 = vmatpush1.bf16.msra.mxu0 %v3217
    %4877 = vmatprep.subr.bf16.mxu0 %v3225
    %4878 = vmatpush1.bf16.msra.mxu0 %v3224
    %4879 = vmatprep.subr.bf16.mxu0 %v3232
    %4880 = vmatpush1.bf16.msra.mxu0 %v3231
    %4881 = vmatprep.subr.bf16.mxu0 %v3239
    %4882 = vmatpush1.bf16.msra.mxu0 %v3238
    %4883 = vmatprep.subr.bf16.mxu0 %v3246
    %4884 = vmatpush1.bf16.msra.mxu0 %v3245
    %4885 = vmatprep.subr.bf16.mxu0 %v3253
    %4886 = vmatpush1.bf16.msra.mxu0 %v3252
    %4887 = vmatprep.subr.bf16.mxu0 %v3260
    %4888 = vmatpush1.bf16.msra.mxu0 %v3259
    %4889 = vmatprep.mubr.bf16.mxu0 %v928
    %4890 = vmatmul.mubr.bf16.gmra.mrb[0].mxu0 %v927
    %v4891 = vpop.f32.mrb[0].mxu0
    %v4892 = vadd.f32 %v863, %v4891
    %v4893 = vpop.f32.mrb[0].mxu0
    %v4894 = vadd.f32 %v867, %v4893
    %v4895 = vpop.f32.mrb[0].mxu0
    %v4896 = vadd.f32 %v863, %v4895
    %v4897 = vpop.f32.mrb[0].mxu0
    %v4898 = vadd.f32 %v867, %v4897
    %4899 = vdwg.mxu0
    %4900 = vmatprep.subr.bf16.mxu0 %v3267
    %4901 = vmatpush1.bf16.msra.mxu0 %v3266
    %4902 = vmatprep.subr.bf16.mxu0 %v3274
    %4903 = vmatpush1.bf16.msra.mxu0 %v3273
    %4904 = vmatprep.subr.bf16.mxu0 %v3281
    %4905 = vmatpush1.bf16.msra.mxu0 %v3280
    %4906 = vmatprep.subr.bf16.mxu0 %v3288
    %4907 = vmatpush1.bf16.msra.mxu0 %v3287
    %4908 = vmatprep.subr.bf16.mxu0 %v3295
    %4909 = vmatpush1.bf16.msra.mxu0 %v3294
    %4910 = vmatprep.subr.bf16.mxu0 %v3302
    %4911 = vmatpush1.bf16.msra.mxu0 %v3301
    %4912 = vmatprep.subr.bf16.mxu0 %v3309
    %4913 = vmatpush1.bf16.msra.mxu0 %v3308
    %4914 = vmatprep.subr.bf16.mxu0 %v3316
    %4915 = vmatpush1.bf16.msra.mxu0 %v3315
    %4916 = vmatprep.subr.bf16.mxu0 %v3323
    %4917 = vmatpush1.bf16.msra.mxu0 %v3322
    %4918 = vmatprep.subr.bf16.mxu0 %v3330
    %4919 = vmatpush1.bf16.msra.mxu0 %v3329
    %4920 = vmatprep.subr.bf16.mxu0 %v3337
    %4921 = vmatpush1.bf16.msra.mxu0 %v3336
    %4922 = vmatprep.subr.bf16.mxu0 %v3344
    %4923 = vmatpush1.bf16.msra.mxu0 %v3343
    %4924 = vmatprep.subr.bf16.mxu0 %v3351
    %4925 = vmatpush1.bf16.msra.mxu0 %v3350
    %4926 = vmatprep.subr.bf16.mxu0 %v3358
    %4927 = vmatpush1.bf16.msra.mxu0 %v3357
    %4928 = vmatprep.subr.bf16.mxu0 %v3365
    %4929 = vmatpush1.bf16.msra.mxu0 %v3364
    %4930 = vmatprep.subr.bf16.mxu0 %v3372
    %4931 = vmatpush1.bf16.msra.mxu0 %v3371
    %4932 = vmatprep.mubr.bf16.mxu0 %v930
    %4933 = vmatmul.mubr.bf16.gmra.mrb[0].mxu0 %v929
    %v4934 = vpop.f32.mrb[0].mxu0
    %v4935 = vadd.f32 %v4892, %v4934
    %v4936 = vpop.f32.mrb[0].mxu0
    %v4937 = vadd.f32 %v4894, %v4936
    %v4938 = vpop.f32.mrb[0].mxu0
    %v4939 = vadd.f32 %v4896, %v4938
    %v4940 = vpop.f32.mrb[0].mxu0
    %v4941 = vadd.f32 %v4898, %v4940
    %4942 = vdwg.mxu0
    %4943 = vmatprep.subr.bf16.mxu0 %v3379
    %4944 = vmatpush1.bf16.msra.mxu0 %v3378
    %4945 = vmatprep.subr.bf16.mxu0 %v3386
    %4946 = vmatpush1.bf16.msra.mxu0 %v3385
    %4947 = vmatprep.subr.bf16.mxu0 %v3393
    %4948 = vmatpush1.bf16.msra.mxu0 %v3392
    %4949 = vmatprep.subr.bf16.mxu0 %v3400
    %4950 = vmatpush1.bf16.msra.mxu0 %v3399
    %4951 = vmatprep.subr.bf16.mxu0 %v3407
    %4952 = vmatpush1.bf16.msra.mxu0 %v3406
    %4953 = vmatprep.subr.bf16.mxu0 %v3414
    %4954 = vmatpush1.bf16.msra.mxu0 %v3413
    %4955 = vmatprep.subr.bf16.mxu0 %v3421
    %4956 = vmatpush1.bf16.msra.mxu0 %v3420
    %4957 = vmatprep.subr.bf16.mxu0 %v3428
    %4958 = vmatpush1.bf16.msra.mxu0 %v3427
    %4959 = vmatprep.subr.bf16.mxu0 %v3435
    %4960 = vmatpush1.bf16.msra.mxu0 %v3434
    %4961 = vmatprep.subr.bf16.mxu0 %v3442
    %4962 = vmatpush1.bf16.msra.mxu0 %v3441
    %4963 = vmatprep.subr.bf16.mxu0 %v3449
    %4964 = vmatpush1.bf16.msra.mxu0 %v3448
    %4965 = vmatprep.subr.bf16.mxu0 %v3456
    %4966 = vmatpush1.bf16.msra.mxu0 %v3455
    %4967 = vmatprep.subr.bf16.mxu0 %v3463
    %4968 = vmatpush1.bf16.msra.mxu0 %v3462
    %4969 = vmatprep.subr.bf16.mxu0 %v3470
    %4970 = vmatpush1.bf16.msra.mxu0 %v3469
    %4971 = vmatprep.subr.bf16.mxu0 %v3477
    %4972 = vmatpush1.bf16.msra.mxu0 %v3476
    %4973 = vmatprep.subr.bf16.mxu0 %v3484
    %4974 = vmatpush1.bf16.msra.mxu0 %v3483
    %4975 = vmatprep.mubr.bf16.mxu0 %v932
    %4976 = vmatmul.mubr.bf16.gmra.mrb[0].mxu0 %v931
    %v4977 = vpop.f32.mrb[0].mxu0
    %v4978 = vadd.f32 %v4935, %v4977
    %v4979 = vpop.f32.mrb[0].mxu0
    %v4980 = vadd.f32 %v4937, %v4979
    %v4981 = vpop.f32.mrb[0].mxu0
    %v4982 = vadd.f32 %v4939, %v4981
    %v4983 = vpop.f32.mrb[0].mxu0
    %v4984 = vadd.f32 %v4941, %v4983
    %4985 = vdwg.mxu0
    %4986 = vmatprep.subr.bf16.mxu0 %v3491
    %4987 = vmatpush1.bf16.msra.mxu0 %v3490
    %4988 = vmatprep.subr.bf16.mxu0 %v3498
    %4989 = vmatpush1.bf16.msra.mxu0 %v3497
    %4990 = vmatprep.subr.bf16.mxu0 %v3505
    %4991 = vmatpush1.bf16.msra.mxu0 %v3504
    %4992 = vmatprep.subr.bf16.mxu0 %v3512
    %4993 = vmatpush1.bf16.msra.mxu0 %v3511
    %4994 = vmatprep.subr.bf16.mxu0 %v3519
    %4995 = vmatpush1.bf16.msra.mxu0 %v3518
    %4996 = vmatprep.subr.bf16.mxu0 %v3526
    %4997 = vmatpush1.bf16.msra.mxu0 %v3525
    %4998 = vmatprep.subr.bf16.mxu0 %v3533
    %4999 = vmatpush1.bf16.msra.mxu0 %v3532
    %5000 = vmatprep.subr.bf16.mxu0 %v3540
    %5001 = vmatpush1.bf16.msra.mxu0 %v3539
    %5002 = vmatprep.subr.bf16.mxu0 %v3547
    %5003 = vmatpush1.bf16.msra.mxu0 %v3546
    %5004 = vmatprep.subr.bf16.mxu0 %v3554
    %5005 = vmatpush1.bf16.msra.mxu0 %v3553
    %5006 = vmatprep.subr.bf16.mxu0 %v3561
    %5007 = vmatpush1.bf16.msra.mxu0 %v3560
    %5008 = vmatprep.subr.bf16.mxu0 %v3568
    %5009 = vmatpush1.bf16.msra.mxu0 %v3567
    %5010 = vmatprep.subr.bf16.mxu0 %v3575
    %5011 = vmatpush1.bf16.msra.mxu0 %v3574
    %5012 = vmatprep.subr.bf16.mxu0 %v3582
    %5013 = vmatpush1.bf16.msra.mxu0 %v3581
    %5014 = vmatprep.subr.bf16.mxu0 %v3589
    %5015 = vmatpush1.bf16.msra.mxu0 %v3588
    %5016 = vmatprep.subr.bf16.mxu0 %v3596
    %5017 = vmatpush1.bf16.msra.mxu0 %v3595
    %5018 = vmatprep.mubr.bf16.mxu0 %v934
    %5019 = vmatmul.mubr.bf16.gmra.mrb[0].mxu0 %v933
    %v5020 = vpop.f32.mrb[0].mxu0
    %v5021 = vadd.f32 %v4978, %v5020
    %v5022 = vpop.f32.mrb[0].mxu0
    %v5023 = vadd.f32 %v4980, %v5022
    %v5024 = vpop.f32.mrb[0].mxu0
    %v5025 = vadd.f32 %v4982, %v5024
    %v5026 = vpop.f32.mrb[0].mxu0
    %v5027 = vadd.f32 %v4984, %v5026
    %5028 = vdwg.mxu0
    %5029 = vmatprep.subr.bf16.mxu0 %v3603
    %5030 = vmatpush1.bf16.msra.mxu0 %v3602
    %5031 = vmatprep.subr.bf16.mxu0 %v3610
    %5032 = vmatpush1.bf16.msra.mxu0 %v3609
    %5033 = vmatprep.subr.bf16.mxu0 %v3617
    %5034 = vmatpush1.bf16.msra.mxu0 %v3616
    %5035 = vmatprep.subr.bf16.mxu0 %v3624
    %5036 = vmatpush1.bf16.msra.mxu0 %v3623
    %5037 = vmatprep.subr.bf16.mxu0 %v3631
    %5038 = vmatpush1.bf16.msra.mxu0 %v3630
    %5039 = vmatprep.subr.bf16.mxu0 %v3638
    %5040 = vmatpush1.bf16.msra.mxu0 %v3637
    %5041 = vmatprep.subr.bf16.mxu0 %v3645
    %5042 = vmatpush1.bf16.msra.mxu0 %v3644
    %5043 = vmatprep.subr.bf16.mxu0 %v3652
    %5044 = vmatpush1.bf16.msra.mxu0 %v3651
    %5045 = vmatprep.subr.bf16.mxu0 %v3659
    %5046 = vmatpush1.bf16.msra.mxu0 %v3658
    %5047 = vmatprep.subr.bf16.mxu0 %v3666
    %5048 = vmatpush1.bf16.msra.mxu0 %v3665
    %5049 = vmatprep.subr.bf16.mxu0 %v3673
    %5050 = vmatpush1.bf16.msra.mxu0 %v3672
    %5051 = vmatprep.subr.bf16.mxu0 %v3680
    %5052 = vmatpush1.bf16.msra.mxu0 %v3679
    %5053 = vmatprep.subr.bf16.mxu0 %v3687
    %5054 = vmatpush1.bf16.msra.mxu0 %v3686
    %5055 = vmatprep.subr.bf16.mxu0 %v3694
    %5056 = vmatpush1.bf16.msra.mxu0 %v3693
    %5057 = vmatprep.subr.bf16.mxu0 %v3701
    %5058 = vmatpush1.bf16.msra.mxu0 %v3700
    %5059 = vmatprep.subr.bf16.mxu0 %v3708
    %5060 = vmatpush1.bf16.msra.mxu0 %v3707
    %5061 = vmatprep.mubr.bf16.mxu0 %v936
    %5062 = vmatmul.mubr.bf16.gmra.mrb[0].mxu0 %v935
    %v5063 = vpop.f32.mrb[0].mxu0
    %v5064 = vadd.f32 %v5021, %v5063
    %v5065 = vpop.f32.mrb[0].mxu0
    %v5066 = vadd.f32 %v5023, %v5065
    %v5067 = vpop.f32.mrb[0].mxu0
    %v5068 = vadd.f32 %v5025, %v5067
    %v5069 = vpop.f32.mrb[0].mxu0
    %v5070 = vadd.f32 %v5027, %v5069
    %5071 = vdwg.mxu0
    %5072 = vmatprep.subr.bf16.mxu0 %v3715
    %5073 = vmatpush1.bf16.msra.mxu0 %v3714
    %5074 = vmatprep.subr.bf16.mxu0 %v3722
    %5075 = vmatpush1.bf16.msra.mxu0 %v3721
    %5076 = vmatprep.subr.bf16.mxu0 %v3729
    %5077 = vmatpush1.bf16.msra.mxu0 %v3728
    %5078 = vmatprep.subr.bf16.mxu0 %v3736
    %5079 = vmatpush1.bf16.msra.mxu0 %v3735
    %5080 = vmatprep.subr.bf16.mxu0 %v3743
    %5081 = vmatpush1.bf16.msra.mxu0 %v3742
    %5082 = vmatprep.subr.bf16.mxu0 %v3750
    %5083 = vmatpush1.bf16.msra.mxu0 %v3749
    %5084 = vmatprep.subr.bf16.mxu0 %v3757
    %5085 = vmatpush1.bf16.msra.mxu0 %v3756
    %5086 = vmatprep.subr.bf16.mxu0 %v3764
    %5087 = vmatpush1.bf16.msra.mxu0 %v3763
    %5088 = vmatprep.subr.bf16.mxu0 %v3771
    %5089 = vmatpush1.bf16.msra.mxu0 %v3770
    %5090 = vmatprep.subr.bf16.mxu0 %v3778
    %5091 = vmatpush1.bf16.msra.mxu0 %v3777
    %5092 = vmatprep.subr.bf16.mxu0 %v3785
    %5093 = vmatpush1.bf16.msra.mxu0 %v3784
    %5094 = vmatprep.subr.bf16.mxu0 %v3792
    %5095 = vmatpush1.bf16.msra.mxu0 %v3791
    %5096 = vmatprep.subr.bf16.mxu0 %v3799
    %5097 = vmatpush1.bf16.msra.mxu0 %v3798
    %5098 = vmatprep.subr.bf16.mxu0 %v3806
    %5099 = vmatpush1.bf16.msra.mxu0 %v3805
    %5100 = vmatprep.subr.bf16.mxu0 %v3813
    %5101 = vmatpush1.bf16.msra.mxu0 %v3812
    %5102 = vmatprep.subr.bf16.mxu0 %v3820
    %5103 = vmatpush1.bf16.msra.mxu0 %v3819
    %5104 = vmatprep.mubr.bf16.mxu0 %v938
    %5105 = vmatmul.mubr.bf16.gmra.mrb[0].mxu0 %v937
    %v5106 = vpop.f32.mrb[0].mxu0
    %v5107 = vadd.f32 %v5064, %v5106
    %v5108 = vpop.f32.mrb[0].mxu0
    %v5109 = vadd.f32 %v5066, %v5108
    %v5110 = vpop.f32.mrb[0].mxu0
    %v5111 = vadd.f32 %v5068, %v5110
    %v5112 = vpop.f32.mrb[0].mxu0
    %v5113 = vadd.f32 %v5070, %v5112
    %5114 = vdwg.mxu0
    %5115 = vmatprep.subr.bf16.mxu0 %v3827
    %5116 = vmatpush1.bf16.msra.mxu0 %v3826
    %5117 = vmatprep.subr.bf16.mxu0 %v3834
    %5118 = vmatpush1.bf16.msra.mxu0 %v3833
    %5119 = vmatprep.subr.bf16.mxu0 %v3841
    %5120 = vmatpush1.bf16.msra.mxu0 %v3840
    %5121 = vmatprep.subr.bf16.mxu0 %v3848
    %5122 = vmatpush1.bf16.msra.mxu0 %v3847
    %5123 = vmatprep.subr.bf16.mxu0 0
    %5124 = vmatpush1.bf16.msra.mxu0 0
    %5125 = vmatprep.subr.bf16.mxu0 0
    %5126 = vmatpush1.bf16.msra.mxu0 0
    %5127 = vmatprep.subr.bf16.mxu0 0
    %5128 = vmatpush1.bf16.msra.mxu0 0
    %5129 = vmatprep.subr.bf16.mxu0 0
    %5130 = vmatpush1.bf16.msra.mxu0 0
    %5131 = vmatprep.subr.bf16.mxu0 0
    %5132 = vmatpush1.bf16.msra.mxu0 0
    %5133 = vmatprep.subr.bf16.mxu0 0
    %5134 = vmatpush1.bf16.msra.mxu0 0
    %5135 = vmatprep.subr.bf16.mxu0 0
    %5136 = vmatpush1.bf16.msra.mxu0 0
    %5137 = vmatprep.subr.bf16.mxu0 0
    %5138 = vmatpush1.bf16.msra.mxu0 0
    %5139 = vmatprep.subr.bf16.mxu0 0
    %5140 = vmatpush1.bf16.msra.mxu0 0
    %5141 = vmatprep.subr.bf16.mxu0 0
    %5142 = vmatpush1.bf16.msra.mxu0 0
    %5143 = vmatprep.subr.bf16.mxu0 0
    %5144 = vmatpush1.bf16.msra.mxu0 0
    %5145 = vmatprep.subr.bf16.mxu0 0
    %5146 = vmatpush1.bf16.msra.mxu0 0
    %5147 = vmatprep.mubr.bf16.mxu0 0
    %5148 = vmatmul.mubr.bf16.gmra.mrb[0].mxu0 %v4554
    %v5149 = vpop.f32.mrb[0].mxu0
    %v5150 = vadd.f32 %v5107, %v5149
    %v5151 = vpop.f32.mrb[0].mxu0
    %v5152 = vadd.f32 %v5109, %v5151
    %v5153 = vpop.f32.mrb[0].mxu0
    %v5154 = vadd.f32 %v5111, %v5153
    %v5155 = vpop.f32.mrb[0].mxu0
    %v5156 = vadd.f32 %v5113, %v5155
    %5157 = vdwg.mxu0
    %5158 = vmatprep.subr.bf16.mxu0 %v3157
    %5159 = vmatpush1.bf16.msra.mxu0 %v3156
    %5160 = vmatprep.subr.bf16.mxu0 %v3164
    %5161 = vmatpush1.bf16.msra.mxu0 %v3163
    %5162 = vmatprep.subr.bf16.mxu0 %v3171
    %5163 = vmatpush1.bf16.msra.mxu0 %v3170
    %5164 = vmatprep.subr.bf16.mxu0 %v3178
    %5165 = vmatpush1.bf16.msra.mxu0 %v3177
    %5166 = vmatprep.subr.bf16.mxu0 %v3185
    %5167 = vmatpush1.bf16.msra.mxu0 %v3184
    %5168 = vmatprep.subr.bf16.mxu0 %v3192
    %5169 = vmatpush1.bf16.msra.mxu0 %v3191
    %5170 = vmatprep.subr.bf16.mxu0 %v3199
    %5171 = vmatpush1.bf16.msra.mxu0 %v3198
    %5172 = vmatprep.subr.bf16.mxu0 %v3206
    %5173 = vmatpush1.bf16.msra.mxu0 %v3205
    %5174 = vmatprep.subr.bf16.mxu0 %v3213
    %5175 = vmatpush1.bf16.msra.mxu0 %v3212
    %5176 = vmatprep.subr.bf16.mxu0 %v3220
    %5177 = vmatpush1.bf16.msra.mxu0 %v3219
    %5178 = vmatprep.subr.bf16.mxu0 %v3227
    %5179 = vmatpush1.bf16.msra.mxu0 %v3226
    %5180 = vmatprep.subr.bf16.mxu0 %v3234
    %5181 = vmatpush1.bf16.msra.mxu0 %v3233
    %5182 = vmatprep.subr.bf16.mxu0 %v3241
    %5183 = vmatpush1.bf16.msra.mxu0 %v3240
    %5184 = vmatprep.subr.bf16.mxu0 %v3248
    %5185 = vmatpush1.bf16.msra.mxu0 %v3247
    %5186 = vmatprep.subr.bf16.mxu0 %v3255
    %5187 = vmatpush1.bf16.msra.mxu0 %v3254
    %5188 = vmatprep.subr.bf16.mxu0 %v3262
    %5189 = vmatpush1.bf16.msra.mxu0 %v3261
    %5190 = vmatprep.mubr.bf16.mxu0 %v928
    %5191 = vmatmul.mubr.bf16.gmra.mrb[0].mxu0 %v927
    %v5192 = vpop.f32.mrb[0].mxu0
    %v5193 = vadd.f32 %v871, %v5192
    %v5194 = vpop.f32.mrb[0].mxu0
    %v5195 = vadd.f32 %v875, %v5194
    %v5196 = vpop.f32.mrb[0].mxu0
    %v5197 = vadd.f32 %v871, %v5196
    %v5198 = vpop.f32.mrb[0].mxu0
    %v5199 = vadd.f32 %v875, %v5198
    %5200 = vdwg.mxu0
    %5201 = vmatprep.subr.bf16.mxu0 %v3269
    %5202 = vmatpush1.bf16.msra.mxu0 %v3268
    %5203 = vmatprep.subr.bf16.mxu0 %v3276
    %5204 = vmatpush1.bf16.msra.mxu0 %v3275
    %5205 = vmatprep.subr.bf16.mxu0 %v3283
    %5206 = vmatpush1.bf16.msra.mxu0 %v3282
    %5207 = vmatprep.subr.bf16.mxu0 %v3290
    %5208 = vmatpush1.bf16.msra.mxu0 %v3289
    %5209 = vmatprep.subr.bf16.mxu0 %v3297
    %5210 = vmatpush1.bf16.msra.mxu0 %v3296
    %5211 = vmatprep.subr.bf16.mxu0 %v3304
    %5212 = vmatpush1.bf16.msra.mxu0 %v3303
    %5213 = vmatprep.subr.bf16.mxu0 %v3311
    %5214 = vmatpush1.bf16.msra.mxu0 %v3310
    %5215 = vmatprep.subr.bf16.mxu0 %v3318
    %5216 = vmatpush1.bf16.msra.mxu0 %v3317
    %5217 = vmatprep.subr.bf16.mxu0 %v3325
    %5218 = vmatpush1.bf16.msra.mxu0 %v3324
    %5219 = vmatprep.subr.bf16.mxu0 %v3332
    %5220 = vmatpush1.bf16.msra.mxu0 %v3331
    %5221 = vmatprep.subr.bf16.mxu0 %v3339
    %5222 = vmatpush1.bf16.msra.mxu0 %v3338
    %5223 = vmatprep.subr.bf16.mxu0 %v3346
    %5224 = vmatpush1.bf16.msra.mxu0 %v3345
    %5225 = vmatprep.subr.bf16.mxu0 %v3353
    %5226 = vmatpush1.bf16.msra.mxu0 %v3352
    %5227 = vmatprep.subr.bf16.mxu0 %v3360
    %5228 = vmatpush1.bf16.msra.mxu0 %v3359
    %5229 = vmatprep.subr.bf16.mxu0 %v3367
    %5230 = vmatpush1.bf16.msra.mxu0 %v3366
    %5231 = vmatprep.subr.bf16.mxu0 %v3374
    %5232 = vmatpush1.bf16.msra.mxu0 %v3373
    %5233 = vmatprep.mubr.bf16.mxu0 %v930
    %5234 = vmatmul.mubr.bf16.gmra.mrb[0].mxu0 %v929
    %v5235 = vpop.f32.mrb[0].mxu0
    %v5236 = vadd.f32 %v5193, %v5235
    %v5237 = vpop.f32.mrb[0].mxu0
    %v5238 = vadd.f32 %v5195, %v5237
    %v5239 = vpop.f32.mrb[0].mxu0
    %v5240 = vadd.f32 %v5197, %v5239
    %v5241 = vpop.f32.mrb[0].mxu0
    %v5242 = vadd.f32 %v5199, %v5241
    %5243 = vdwg.mxu0
    %5244 = vmatprep.subr.bf16.mxu0 %v3381
    %5245 = vmatpush1.bf16.msra.mxu0 %v3380
    %5246 = vmatprep.subr.bf16.mxu0 %v3388
    %5247 = vmatpush1.bf16.msra.mxu0 %v3387
    %5248 = vmatprep.subr.bf16.mxu0 %v3395
    %5249 = vmatpush1.bf16.msra.mxu0 %v3394
    %5250 = vmatprep.subr.bf16.mxu0 %v3402
    %5251 = vmatpush1.bf16.msra.mxu0 %v3401
    %5252 = vmatprep.subr.bf16.mxu0 %v3409
    %5253 = vmatpush1.bf16.msra.mxu0 %v3408
    %5254 = vmatprep.subr.bf16.mxu0 %v3416
    %5255 = vmatpush1.bf16.msra.mxu0 %v3415
    %5256 = vmatprep.subr.bf16.mxu0 %v3423
    %5257 = vmatpush1.bf16.msra.mxu0 %v3422
    %5258 = vmatprep.subr.bf16.mxu0 %v3430
    %5259 = vmatpush1.bf16.msra.mxu0 %v3429
    %5260 = vmatprep.subr.bf16.mxu0 %v3437
    %5261 = vmatpush1.bf16.msra.mxu0 %v3436
    %5262 = vmatprep.subr.bf16.mxu0 %v3444
    %5263 = vmatpush1.bf16.msra.mxu0 %v3443
    %5264 = vmatprep.subr.bf16.mxu0 %v3451
    %5265 = vmatpush1.bf16.msra.mxu0 %v3450
    %5266 = vmatprep.subr.bf16.mxu0 %v3458
    %5267 = vmatpush1.bf16.msra.mxu0 %v3457
    %5268 = vmatprep.subr.bf16.mxu0 %v3465
    %5269 = vmatpush1.bf16.msra.mxu0 %v3464
    %5270 = vmatprep.subr.bf16.mxu0 %v3472
    %5271 = vmatpush1.bf16.msra.mxu0 %v3471
    %5272 = vmatprep.subr.bf16.mxu0 %v3479
    %5273 = vmatpush1.bf16.msra.mxu0 %v3478
    %5274 = vmatprep.subr.bf16.mxu0 %v3486
    %5275 = vmatpush1.bf16.msra.mxu0 %v3485
    %5276 = vmatprep.mubr.bf16.mxu0 %v932
    %5277 = vmatmul.mubr.bf16.gmra.mrb[0].mxu0 %v931
    %v5278 = vpop.f32.mrb[0].mxu0
    %v5279 = vadd.f32 %v5236, %v5278
    %v5280 = vpop.f32.mrb[0].mxu0
    %v5281 = vadd.f32 %v5238, %v5280
    %v5282 = vpop.f32.mrb[0].mxu0
    %v5283 = vadd.f32 %v5240, %v5282
    %v5284 = vpop.f32.mrb[0].mxu0
    %v5285 = vadd.f32 %v5242, %v5284
    %5286 = vdwg.mxu0
    %5287 = vmatprep.subr.bf16.mxu0 %v3493
    %5288 = vmatpush1.bf16.msra.mxu0 %v3492
    %5289 = vmatprep.subr.bf16.mxu0 %v3500
    %5290 = vmatpush1.bf16.msra.mxu0 %v3499
    %5291 = vmatprep.subr.bf16.mxu0 %v3507
    %5292 = vmatpush1.bf16.msra.mxu0 %v3506
    %5293 = vmatprep.subr.bf16.mxu0 %v3514
    %5294 = vmatpush1.bf16.msra.mxu0 %v3513
    %5295 = vmatprep.subr.bf16.mxu0 %v3521
    %5296 = vmatpush1.bf16.msra.mxu0 %v3520
    %5297 = vmatprep.subr.bf16.mxu0 %v3528
    %5298 = vmatpush1.bf16.msra.mxu0 %v3527
    %5299 = vmatprep.subr.bf16.mxu0 %v3535
    %5300 = vmatpush1.bf16.msra.mxu0 %v3534
    %5301 = vmatprep.subr.bf16.mxu0 %v3542
    %5302 = vmatpush1.bf16.msra.mxu0 %v3541
    %5303 = vmatprep.subr.bf16.mxu0 %v3549
    %5304 = vmatpush1.bf16.msra.mxu0 %v3548
    %5305 = vmatprep.subr.bf16.mxu0 %v3556
    %5306 = vmatpush1.bf16.msra.mxu0 %v3555
    %5307 = vmatprep.subr.bf16.mxu0 %v3563
    %5308 = vmatpush1.bf16.msra.mxu0 %v3562
    %5309 = vmatprep.subr.bf16.mxu0 %v3570
    %5310 = vmatpush1.bf16.msra.mxu0 %v3569
    %5311 = vmatprep.subr.bf16.mxu0 %v3577
    %5312 = vmatpush1.bf16.msra.mxu0 %v3576
    %5313 = vmatprep.subr.bf16.mxu0 %v3584
    %5314 = vmatpush1.bf16.msra.mxu0 %v3583
    %5315 = vmatprep.subr.bf16.mxu0 %v3591
    %5316 = vmatpush1.bf16.msra.mxu0 %v3590
    %5317 = vmatprep.subr.bf16.mxu0 %v3598
    %5318 = vmatpush1.bf16.msra.mxu0 %v3597
    %5319 = vmatprep.mubr.bf16.mxu0 %v934
    %5320 = vmatmul.mubr.bf16.gmra.mrb[0].mxu0 %v933
    %v5321 = vpop.f32.mrb[0].mxu0
    %v5322 = vadd.f32 %v5279, %v5321
    %v5323 = vpop.f32.mrb[0].mxu0
    %v5324 = vadd.f32 %v5281, %v5323
    %v5325 = vpop.f32.mrb[0].mxu0
    %v5326 = vadd.f32 %v5283, %v5325
    %v5327 = vpop.f32.mrb[0].mxu0
    %v5328 = vadd.f32 %v5285, %v5327
    %5329 = vdwg.mxu0
    %5330 = vmatprep.subr.bf16.mxu0 %v3605
    %5331 = vmatpush1.bf16.msra.mxu0 %v3604
    %5332 = vmatprep.subr.bf16.mxu0 %v3612
    %5333 = vmatpush1.bf16.msra.mxu0 %v3611
    %5334 = vmatprep.subr.bf16.mxu0 %v3619
    %5335 = vmatpush1.bf16.msra.mxu0 %v3618
    %5336 = vmatprep.subr.bf16.mxu0 %v3626
    %5337 = vmatpush1.bf16.msra.mxu0 %v3625
    %5338 = vmatprep.subr.bf16.mxu0 %v3633
    %5339 = vmatpush1.bf16.msra.mxu0 %v3632
    %5340 = vmatprep.subr.bf16.mxu0 %v3640
    %5341 = vmatpush1.bf16.msra.mxu0 %v3639
    %5342 = vmatprep.subr.bf16.mxu0 %v3647
    %5343 = vmatpush1.bf16.msra.mxu0 %v3646
    %5344 = vmatprep.subr.bf16.mxu0 %v3654
    %5345 = vmatpush1.bf16.msra.mxu0 %v3653
    %5346 = vmatprep.subr.bf16.mxu0 %v3661
    %5347 = vmatpush1.bf16.msra.mxu0 %v3660
    %5348 = vmatprep.subr.bf16.mxu0 %v3668
    %5349 = vmatpush1.bf16.msra.mxu0 %v3667
    %5350 = vmatprep.subr.bf16.mxu0 %v3675
    %5351 = vmatpush1.bf16.msra.mxu0 %v3674
    %5352 = vmatprep.subr.bf16.mxu0 %v3682
    %5353 = vmatpush1.bf16.msra.mxu0 %v3681
    %5354 = vmatprep.subr.bf16.mxu0 %v3689
    %5355 = vmatpush1.bf16.msra.mxu0 %v3688
    %5356 = vmatprep.subr.bf16.mxu0 %v3696
    %5357 = vmatpush1.bf16.msra.mxu0 %v3695
    %5358 = vmatprep.subr.bf16.mxu0 %v3703
    %5359 = vmatpush1.bf16.msra.mxu0 %v3702
    %5360 = vmatprep.subr.bf16.mxu0 %v3710
    %5361 = vmatpush1.bf16.msra.mxu0 %v3709
    %5362 = vmatprep.mubr.bf16.mxu0 %v936
    %5363 = vmatmul.mubr.bf16.gmra.mrb[0].mxu0 %v935
    %v5364 = vpop.f32.mrb[0].mxu0
    %v5365 = vadd.f32 %v5322, %v5364
    %v5366 = vpop.f32.mrb[0].mxu0
    %v5367 = vadd.f32 %v5324, %v5366
    %v5368 = vpop.f32.mrb[0].mxu0
    %v5369 = vadd.f32 %v5326, %v5368
    %v5370 = vpop.f32.mrb[0].mxu0
    %v5371 = vadd.f32 %v5328, %v5370
    %5372 = vdwg.mxu0
    %5373 = vmatprep.subr.bf16.mxu0 %v3717
    %5374 = vmatpush1.bf16.msra.mxu0 %v3716
    %5375 = vmatprep.subr.bf16.mxu0 %v3724
    %5376 = vmatpush1.bf16.msra.mxu0 %v3723
    %5377 = vmatprep.subr.bf16.mxu0 %v3731
    %5378 = vmatpush1.bf16.msra.mxu0 %v3730
    %5379 = vmatprep.subr.bf16.mxu0 %v3738
    %5380 = vmatpush1.bf16.msra.mxu0 %v3737
    %5381 = vmatprep.subr.bf16.mxu0 %v3745
    %5382 = vmatpush1.bf16.msra.mxu0 %v3744
    %5383 = vmatprep.subr.bf16.mxu0 %v3752
    %5384 = vmatpush1.bf16.msra.mxu0 %v3751
    %5385 = vmatprep.subr.bf16.mxu0 %v3759
    %5386 = vmatpush1.bf16.msra.mxu0 %v3758
    %5387 = vmatprep.subr.bf16.mxu0 %v3766
    %5388 = vmatpush1.bf16.msra.mxu0 %v3765
    %5389 = vmatprep.subr.bf16.mxu0 %v3773
    %5390 = vmatpush1.bf16.msra.mxu0 %v3772
    %5391 = vmatprep.subr.bf16.mxu0 %v3780
    %5392 = vmatpush1.bf16.msra.mxu0 %v3779
    %5393 = vmatprep.subr.bf16.mxu0 %v3787
    %5394 = vmatpush1.bf16.msra.mxu0 %v3786
    %5395 = vmatprep.subr.bf16.mxu0 %v3794
    %5396 = vmatpush1.bf16.msra.mxu0 %v3793
    %5397 = vmatprep.subr.bf16.mxu0 %v3801
    %5398 = vmatpush1.bf16.msra.mxu0 %v3800
    %5399 = vmatprep.subr.bf16.mxu0 %v3808
    %5400 = vmatpush1.bf16.msra.mxu0 %v3807
    %5401 = vmatprep.subr.bf16.mxu0 %v3815
    %5402 = vmatpush1.bf16.msra.mxu0 %v3814
    %5403 = vmatprep.subr.bf16.mxu0 %v3822
    %5404 = vmatpush1.bf16.msra.mxu0 %v3821
    %5405 = vmatprep.mubr.bf16.mxu0 %v938
    %5406 = vmatmul.mubr.bf16.gmra.mrb[0].mxu0 %v937
    %v5407 = vpop.f32.mrb[0].mxu0
    %v5408 = vadd.f32 %v5365, %v5407
    %v5409 = vpop.f32.mrb[0].mxu0
    %v5410 = vadd.f32 %v5367, %v5409
    %v5411 = vpop.f32.mrb[0].mxu0
    %v5412 = vadd.f32 %v5369, %v5411
    %v5413 = vpop.f32.mrb[0].mxu0
    %v5414 = vadd.f32 %v5371, %v5413
    %5415 = vdwg.mxu0
    %5416 = vmatprep.subr.bf16.mxu0 %v3829
    %5417 = vmatpush1.bf16.msra.mxu0 %v3828
    %5418 = vmatprep.subr.bf16.mxu0 %v3836
    %5419 = vmatpush1.bf16.msra.mxu0 %v3835
    %5420 = vmatprep.subr.bf16.mxu0 %v3843
    %5421 = vmatpush1.bf16.msra.mxu0 %v3842
    %5422 = vmatprep.subr.bf16.mxu0 %v3850
    %5423 = vmatpush1.bf16.msra.mxu0 %v3849
    %5424 = vmatprep.subr.bf16.mxu0 0
    %5425 = vmatpush1.bf16.msra.mxu0 0
    %5426 = vmatprep.subr.bf16.mxu0 0
    %5427 = vmatpush1.bf16.msra.mxu0 0
    %5428 = vmatprep.subr.bf16.mxu0 0
    %5429 = vmatpush1.bf16.msra.mxu0 0
    %5430 = vmatprep.subr.bf16.mxu0 0
    %5431 = vmatpush1.bf16.msra.mxu0 0
    %5432 = vmatprep.subr.bf16.mxu0 0
    %5433 = vmatpush1.bf16.msra.mxu0 0
    %5434 = vmatprep.subr.bf16.mxu0 0
    %5435 = vmatpush1.bf16.msra.mxu0 0
    %5436 = vmatprep.subr.bf16.mxu0 0
    %5437 = vmatpush1.bf16.msra.mxu0 0
    %5438 = vmatprep.subr.bf16.mxu0 0
    %5439 = vmatpush1.bf16.msra.mxu0 0
    %5440 = vmatprep.subr.bf16.mxu0 0
    %5441 = vmatpush1.bf16.msra.mxu0 0
    %5442 = vmatprep.subr.bf16.mxu0 0
    %5443 = vmatpush1.bf16.msra.mxu0 0
    %5444 = vmatprep.subr.bf16.mxu0 0
    %5445 = vmatpush1.bf16.msra.mxu0 0
    %5446 = vmatprep.subr.bf16.mxu0 0
    %5447 = vmatpush1.bf16.msra.mxu0 0
    %5448 = vmatprep.mubr.bf16.mxu0 0
    %5449 = vmatmul.mubr.bf16.gmra.mrb[0].mxu0 %v4554
    %v5450 = vpop.f32.mrb[0].mxu0
    %v5451 = vadd.f32 %v5408, %v5450
    %v5452 = vpop.f32.mrb[0].mxu0
    %v5453 = vadd.f32 %v5410, %v5452
    %v5454 = vpop.f32.mrb[0].mxu0
    %v5455 = vadd.f32 %v5412, %v5454
    %v5456 = vpop.f32.mrb[0].mxu0
    %v5457 = vadd.f32 %v5414, %v5456
    %5458 = vdwg.mxu0
    %5459 = vmatprep.subr.bf16.mxu0 0
    %5460 = vmatpush1.bf16.msra.mxu0 %v3158
    %5461 = vmatprep.subr.bf16.mxu0 0
    %5462 = vmatpush1.bf16.msra.mxu0 %v3165
    %5463 = vmatprep.subr.bf16.mxu0 0
    %5464 = vmatpush1.bf16.msra.mxu0 %v3172
    %5465 = vmatprep.subr.bf16.mxu0 0
    %5466 = vmatpush1.bf16.msra.mxu0 %v3179
    %5467 = vmatprep.subr.bf16.mxu0 0
    %5468 = vmatpush1.bf16.msra.mxu0 %v3186
    %5469 = vmatprep.subr.bf16.mxu0 0
    %5470 = vmatpush1.bf16.msra.mxu0 %v3193
    %5471 = vmatprep.subr.bf16.mxu0 0
    %5472 = vmatpush1.bf16.msra.mxu0 %v3200
    %5473 = vmatprep.subr.bf16.mxu0 0
    %5474 = vmatpush1.bf16.msra.mxu0 %v3207
    %5475 = vmatprep.subr.bf16.mxu0 0
    %5476 = vmatpush1.bf16.msra.mxu0 %v3214
    %5477 = vmatprep.subr.bf16.mxu0 0
    %5478 = vmatpush1.bf16.msra.mxu0 %v3221
    %5479 = vmatprep.subr.bf16.mxu0 0
    %5480 = vmatpush1.bf16.msra.mxu0 %v3228
    %5481 = vmatprep.subr.bf16.mxu0 0
    %5482 = vmatpush1.bf16.msra.mxu0 %v3235
    %5483 = vmatprep.subr.bf16.mxu0 0
    %5484 = vmatpush1.bf16.msra.mxu0 %v3242
    %5485 = vmatprep.subr.bf16.mxu0 0
    %5486 = vmatpush1.bf16.msra.mxu0 %v3249
    %5487 = vmatprep.subr.bf16.mxu0 0
    %5488 = vmatpush1.bf16.msra.mxu0 %v3256
    %5489 = vmatprep.subr.bf16.mxu0 0
    %5490 = vmatpush1.bf16.msra.mxu0 %v3263
    %5491 = vmatprep.mubr.bf16.mxu0 %v928
    %5492 = vmatmul.mubr.bf16.gmra.mrb[0].mxu0 %v927
    %v5493 = vpop.f32.mrb[0].mxu0
    %v5494 = vadd.f32 %v879, %v5493
    %v5495 = vpop.f32.mrb[0].mxu0
    %v5496 = vpop.f32.mrb[0].mxu0
    %v5497 = vadd.f32 %v879, %v5496
    %v5498 = vpop.f32.mrb[0].mxu0
    %5499 = vdwg.mxu0
    %5500 = vmatprep.subr.bf16.mxu0 0
    %5501 = vmatpush1.bf16.msra.mxu0 %v3270
    %5502 = vmatprep.subr.bf16.mxu0 0
    %5503 = vmatpush1.bf16.msra.mxu0 %v3277
    %5504 = vmatprep.subr.bf16.mxu0 0
    %5505 = vmatpush1.bf16.msra.mxu0 %v3284
    %5506 = vmatprep.subr.bf16.mxu0 0
    %5507 = vmatpush1.bf16.msra.mxu0 %v3291
    %5508 = vmatprep.subr.bf16.mxu0 0
    %5509 = vmatpush1.bf16.msra.mxu0 %v3298
    %5510 = vmatprep.subr.bf16.mxu0 0
    %5511 = vmatpush1.bf16.msra.mxu0 %v3305
    %5512 = vmatprep.subr.bf16.mxu0 0
    %5513 = vmatpush1.bf16.msra.mxu0 %v3312
    %5514 = vmatprep.subr.bf16.mxu0 0
    %5515 = vmatpush1.bf16.msra.mxu0 %v3319
    %5516 = vmatprep.subr.bf16.mxu0 0
    %5517 = vmatpush1.bf16.msra.mxu0 %v3326
    %5518 = vmatprep.subr.bf16.mxu0 0
    %5519 = vmatpush1.bf16.msra.mxu0 %v3333
    %5520 = vmatprep.subr.bf16.mxu0 0
    %5521 = vmatpush1.bf16.msra.mxu0 %v3340
    %5522 = vmatprep.subr.bf16.mxu0 0
    %5523 = vmatpush1.bf16.msra.mxu0 %v3347
    %5524 = vmatprep.subr.bf16.mxu0 0
    %5525 = vmatpush1.bf16.msra.mxu0 %v3354
    %5526 = vmatprep.subr.bf16.mxu0 0
    %5527 = vmatpush1.bf16.msra.mxu0 %v3361
    %5528 = vmatprep.subr.bf16.mxu0 0
    %5529 = vmatpush1.bf16.msra.mxu0 %v3368
    %5530 = vmatprep.subr.bf16.mxu0 0
    %5531 = vmatpush1.bf16.msra.mxu0 %v3375
    %5532 = vmatprep.mubr.bf16.mxu0 %v930
    %5533 = vmatmul.mubr.bf16.gmra.mrb[0].mxu0 %v929
    %v5534 = vpop.f32.mrb[0].mxu0
    %v5535 = vadd.f32 %v5494, %v5534
    %v5536 = vpop.f32.mrb[0].mxu0
    %v5537 = vpop.f32.mrb[0].mxu0
    %v5538 = vadd.f32 %v5497, %v5537
    %v5539 = vpop.f32.mrb[0].mxu0
    %5540 = vdwg.mxu0
    %5541 = vmatprep.subr.bf16.mxu0 0
    %5542 = vmatpush1.bf16.msra.mxu0 %v3382
    %5543 = vmatprep.subr.bf16.mxu0 0
    %5544 = vmatpush1.bf16.msra.mxu0 %v3389
    %5545 = vmatprep.subr.bf16.mxu0 0
    %5546 = vmatpush1.bf16.msra.mxu0 %v3396
    %5547 = vmatprep.subr.bf16.mxu0 0
    %5548 = vmatpush1.bf16.msra.mxu0 %v3403
    %5549 = vmatprep.subr.bf16.mxu0 0
    %5550 = vmatpush1.bf16.msra.mxu0 %v3410
    %5551 = vmatprep.subr.bf16.mxu0 0
    %5552 = vmatpush1.bf16.msra.mxu0 %v3417
    %5553 = vmatprep.subr.bf16.mxu0 0
    %5554 = vmatpush1.bf16.msra.mxu0 %v3424
    %5555 = vmatprep.subr.bf16.mxu0 0
    %5556 = vmatpush1.bf16.msra.mxu0 %v3431
    %5557 = vmatprep.subr.bf16.mxu0 0
    %5558 = vmatpush1.bf16.msra.mxu0 %v3438
    %5559 = vmatprep.subr.bf16.mxu0 0
    %5560 = vmatpush1.bf16.msra.mxu0 %v3445
    %5561 = vmatprep.subr.bf16.mxu0 0
    %5562 = vmatpush1.bf16.msra.mxu0 %v3452
    %5563 = vmatprep.subr.bf16.mxu0 0
    %5564 = vmatpush1.bf16.msra.mxu0 %v3459
    %5565 = vmatprep.subr.bf16.mxu0 0
    %5566 = vmatpush1.bf16.msra.mxu0 %v3466
    %5567 = vmatprep.subr.bf16.mxu0 0
    %5568 = vmatpush1.bf16.msra.mxu0 %v3473
    %5569 = vmatprep.subr.bf16.mxu0 0
    %5570 = vmatpush1.bf16.msra.mxu0 %v3480
    %5571 = vmatprep.subr.bf16.mxu0 0
    %5572 = vmatpush1.bf16.msra.mxu0 %v3487
    %5573 = vmatprep.mubr.bf16.mxu0 %v932
    %5574 = vmatmul.mubr.bf16.gmra.mrb[0].mxu0 %v931
    %v5575 = vpop.f32.mrb[0].mxu0
    %v5576 = vadd.f32 %v5535, %v5575
    %v5577 = vpop.f32.mrb[0].mxu0
    %v5578 = vpop.f32.mrb[0].mxu0
    %v5579 = vadd.f32 %v5538, %v5578
    %v5580 = vpop.f32.mrb[0].mxu0
    %5581 = vdwg.mxu0
    %5582 = vmatprep.subr.bf16.mxu0 0
    %5583 = vmatpush1.bf16.msra.mxu0 %v3494
    %5584 = vmatprep.subr.bf16.mxu0 0
    %5585 = vmatpush1.bf16.msra.mxu0 %v3501
    %5586 = vmatprep.subr.bf16.mxu0 0
    %5587 = vmatpush1.bf16.msra.mxu0 %v3508
    %5588 = vmatprep.subr.bf16.mxu0 0
    %5589 = vmatpush1.bf16.msra.mxu0 %v3515
    %5590 = vmatprep.subr.bf16.mxu0 0
    %5591 = vmatpush1.bf16.msra.mxu0 %v3522
    %5592 = vmatprep.subr.bf16.mxu0 0
    %5593 = vmatpush1.bf16.msra.mxu0 %v3529
    %5594 = vmatprep.subr.bf16.mxu0 0
    %5595 = vmatpush1.bf16.msra.mxu0 %v3536
    %5596 = vmatprep.subr.bf16.mxu0 0
    %5597 = vmatpush1.bf16.msra.mxu0 %v3543
    %5598 = vmatprep.subr.bf16.mxu0 0
    %5599 = vmatpush1.bf16.msra.mxu0 %v3550
    %5600 = vmatprep.subr.bf16.mxu0 0
    %5601 = vmatpush1.bf16.msra.mxu0 %v3557
    %5602 = vmatprep.subr.bf16.mxu0 0
    %5603 = vmatpush1.bf16.msra.mxu0 %v3564
    %5604 = vmatprep.subr.bf16.mxu0 0
    %5605 = vmatpush1.bf16.msra.mxu0 %v3571
    %5606 = vmatprep.subr.bf16.mxu0 0
    %5607 = vmatpush1.bf16.msra.mxu0 %v3578
    %5608 = vmatprep.subr.bf16.mxu0 0
    %5609 = vmatpush1.bf16.msra.mxu0 %v3585
    %5610 = vmatprep.subr.bf16.mxu0 0
    %5611 = vmatpush1.bf16.msra.mxu0 %v3592
    %5612 = vmatprep.subr.bf16.mxu0 0
    %5613 = vmatpush1.bf16.msra.mxu0 %v3599
    %5614 = vmatprep.mubr.bf16.mxu0 %v934
    %5615 = vmatmul.mubr.bf16.gmra.mrb[0].mxu0 %v933
    %v5616 = vpop.f32.mrb[0].mxu0
    %v5617 = vadd.f32 %v5576, %v5616
    %v5618 = vpop.f32.mrb[0].mxu0
    %v5619 = vpop.f32.mrb[0].mxu0
    %v5620 = vadd.f32 %v5579, %v5619
    %v5621 = vpop.f32.mrb[0].mxu0
    %5622 = vdwg.mxu0
    %5623 = vmatprep.subr.bf16.mxu0 0
    %5624 = vmatpush1.bf16.msra.mxu0 %v3606
    %5625 = vmatprep.subr.bf16.mxu0 0
    %5626 = vmatpush1.bf16.msra.mxu0 %v3613
    %5627 = vmatprep.subr.bf16.mxu0 0
    %5628 = vmatpush1.bf16.msra.mxu0 %v3620
    %5629 = vmatprep.subr.bf16.mxu0 0
    %5630 = vmatpush1.bf16.msra.mxu0 %v3627
    %5631 = vmatprep.subr.bf16.mxu0 0
    %5632 = vmatpush1.bf16.msra.mxu0 %v3634
    %5633 = vmatprep.subr.bf16.mxu0 0
    %5634 = vmatpush1.bf16.msra.mxu0 %v3641
    %5635 = vmatprep.subr.bf16.mxu0 0
    %5636 = vmatpush1.bf16.msra.mxu0 %v3648
    %5637 = vmatprep.subr.bf16.mxu0 0
    %5638 = vmatpush1.bf16.msra.mxu0 %v3655
    %5639 = vmatprep.subr.bf16.mxu0 0
    %5640 = vmatpush1.bf16.msra.mxu0 %v3662
    %5641 = vmatprep.subr.bf16.mxu0 0
    %5642 = vmatpush1.bf16.msra.mxu0 %v3669
    %5643 = vmatprep.subr.bf16.mxu0 0
    %5644 = vmatpush1.bf16.msra.mxu0 %v3676
    %5645 = vmatprep.subr.bf16.mxu0 0
    %5646 = vmatpush1.bf16.msra.mxu0 %v3683
    %5647 = vmatprep.subr.bf16.mxu0 0
    %5648 = vmatpush1.bf16.msra.mxu0 %v3690
    %5649 = vmatprep.subr.bf16.mxu0 0
    %5650 = vmatpush1.bf16.msra.mxu0 %v3697
    %5651 = vmatprep.subr.bf16.mxu0 0
    %5652 = vmatpush1.bf16.msra.mxu0 %v3704
    %5653 = vmatprep.subr.bf16.mxu0 0
    %5654 = vmatpush1.bf16.msra.mxu0 %v3711
    %5655 = vmatprep.mubr.bf16.mxu0 %v936
    %5656 = vmatmul.mubr.bf16.gmra.mrb[0].mxu0 %v935
    %v5657 = vpop.f32.mrb[0].mxu0
    %v5658 = vadd.f32 %v5617, %v5657
    %v5659 = vpop.f32.mrb[0].mxu0
    %v5660 = vpop.f32.mrb[0].mxu0
    %v5661 = vadd.f32 %v5620, %v5660
    %v5662 = vpop.f32.mrb[0].mxu0
    %5663 = vdwg.mxu0
    %5664 = vmatprep.subr.bf16.mxu0 0
    %5665 = vmatpush1.bf16.msra.mxu0 %v3718
    %5666 = vmatprep.subr.bf16.mxu0 0
    %5667 = vmatpush1.bf16.msra.mxu0 %v3725
    %5668 = vmatprep.subr.bf16.mxu0 0
    %5669 = vmatpush1.bf16.msra.mxu0 %v3732
    %5670 = vmatprep.subr.bf16.mxu0 0
    %5671 = vmatpush1.bf16.msra.mxu0 %v3739
    %5672 = vmatprep.subr.bf16.mxu0 0
    %5673 = vmatpush1.bf16.msra.mxu0 %v3746
    %5674 = vmatprep.subr.bf16.mxu0 0
    %5675 = vmatpush1.bf16.msra.mxu0 %v3753
    %5676 = vmatprep.subr.bf16.mxu0 0
    %5677 = vmatpush1.bf16.msra.mxu0 %v3760
    %5678 = vmatprep.subr.bf16.mxu0 0
    %5679 = vmatpush1.bf16.msra.mxu0 %v3767
    %5680 = vmatprep.subr.bf16.mxu0 0
    %5681 = vmatpush1.bf16.msra.mxu0 %v3774
    %5682 = vmatprep.subr.bf16.mxu0 0
    %5683 = vmatpush1.bf16.msra.mxu0 %v3781
    %5684 = vmatprep.subr.bf16.mxu0 0
    %5685 = vmatpush1.bf16.msra.mxu0 %v3788
    %5686 = vmatprep.subr.bf16.mxu0 0
    %5687 = vmatpush1.bf16.msra.mxu0 %v3795
    %5688 = vmatprep.subr.bf16.mxu0 0
    %5689 = vmatpush1.bf16.msra.mxu0 %v3802
    %5690 = vmatprep.subr.bf16.mxu0 0
    %5691 = vmatpush1.bf16.msra.mxu0 %v3809
    %5692 = vmatprep.subr.bf16.mxu0 0
    %5693 = vmatpush1.bf16.msra.mxu0 %v3816
    %5694 = vmatprep.subr.bf16.mxu0 0
    %5695 = vmatpush1.bf16.msra.mxu0 %v3823
    %5696 = vmatprep.mubr.bf16.mxu0 %v938
    %5697 = vmatmul.mubr.bf16.gmra.mrb[0].mxu0 %v937
    %v5698 = vpop.f32.mrb[0].mxu0
    %v5699 = vadd.f32 %v5658, %v5698
    %v5700 = vpop.f32.mrb[0].mxu0
    %v5701 = vpop.f32.mrb[0].mxu0
    %v5702 = vadd.f32 %v5661, %v5701
    %v5703 = vpop.f32.mrb[0].mxu0
    %5704 = vdwg.mxu0
    %5705 = vmatprep.subr.bf16.mxu0 0
    %5706 = vmatpush1.bf16.msra.mxu0 %v3830
    %5707 = vmatprep.subr.bf16.mxu0 0
    %5708 = vmatpush1.bf16.msra.mxu0 %v3837
    %5709 = vmatprep.subr.bf16.mxu0 0
    %5710 = vmatpush1.bf16.msra.mxu0 %v3844
    %5711 = vmatprep.subr.bf16.mxu0 0
    %5712 = vmatpush1.bf16.msra.mxu0 %v3851
    %5713 = vmatprep.subr.bf16.mxu0 0
    %5714 = vmatpush1.bf16.msra.mxu0 0
    %5715 = vmatprep.subr.bf16.mxu0 0
    %5716 = vmatpush1.bf16.msra.mxu0 0
    %5717 = vmatprep.subr.bf16.mxu0 0
    %5718 = vmatpush1.bf16.msra.mxu0 0
    %5719 = vmatprep.subr.bf16.mxu0 0
    %5720 = vmatpush1.bf16.msra.mxu0 0
    %5721 = vmatprep.subr.bf16.mxu0 0
    %5722 = vmatpush1.bf16.msra.mxu0 0
    %5723 = vmatprep.subr.bf16.mxu0 0
    %5724 = vmatpush1.bf16.msra.mxu0 0
    %5725 = vmatprep.subr.bf16.mxu0 0
    %5726 = vmatpush1.bf16.msra.mxu0 0
    %5727 = vmatprep.subr.bf16.mxu0 0
    %5728 = vmatpush1.bf16.msra.mxu0 0
    %5729 = vmatprep.subr.bf16.mxu0 0
    %5730 = vmatpush1.bf16.msra.mxu0 0
    %5731 = vmatprep.subr.bf16.mxu0 0
    %5732 = vmatpush1.bf16.msra.mxu0 0
    %5733 = vmatprep.subr.bf16.mxu0 0
    %5734 = vmatpush1.bf16.msra.mxu0 0
    %5735 = vmatprep.subr.bf16.mxu0 0
    %5736 = vmatpush1.bf16.msra.mxu0 0
    %5737 = vmatprep.mubr.bf16.mxu0 0
    %5738 = vmatmul.mubr.bf16.gmra.mrb[0].mxu0 %v4554
    %v5739 = vpop.f32.mrb[0].mxu0
    %v5740 = vadd.f32 %v5699, %v5739
    %v5741 = vpop.f32.mrb[0].mxu0
    %v5742 = vpop.f32.mrb[0].mxu0
    %v5743 = vadd.f32 %v5702, %v5742
    %v5744 = vpop.f32.mrb[0].mxu0
    %5745 = vdwg.mxu0
    %v5746 = vmax.f32 %v4849, 0.0
    %v5747 = vmax.f32 %v4851, 0.0
    %v5748 = vmax.f32 %v5150, 0.0
    %v5749 = vmax.f32 %v5152, 0.0
    %v5750 = vmax.f32 %v5451, 0.0
    %v5751 = vmax.f32 %v5453, 0.0
    %v5752 = vmax.f32 %v5740, 0.0
    %v5753 = vmax.f32 %v4853, 0.0
    %v5754 = vmax.f32 %v4855, 0.0
    %v5755 = vmax.f32 %v5154, 0.0
    %v5756 = vmax.f32 %v5156, 0.0
    %v5757 = vmax.f32 %v5455, 0.0
    %v5758 = vmax.f32 %v5457, 0.0
    %v5759 = vmax.f32 %v5743, 0.0
    %v5760 = vpack.c.bf16 %v5753, %v5746
    %v5761 = vpack.c.bf16 %v5754, %v5747
    %v5762 = vpack.c.bf16 %v5755, %v5748
    %v5763 = vpack.c.bf16 %v5756, %v5749
    %v5764 = vpack.c.bf16 %v5757, %v5750
    %v5765 = vpack.c.bf16 %v5758, %v5751
    %v5766 = vpack.c.bf16 %v5759, %v5752
    %v5767 = vld [vmem:[%s3] sm:$0xff]
    %v5768 = vld [vmem:[%s3 + $0x8] sm:$0xff]
    %v5769 = vld [vmem:[%s3 + $0x10] sm:$0xff]
    %v5770 = vld [vmem:[%s3 + $0x18] sm:$0xff]
    %v5771 = vld [vmem:[%s3 + $0x20] sm:$0xff]
    %v5772 = vld [vmem:[%s3 + $0x28] sm:$0xff]
    %v5773 = vld [vmem:[%s3 + $0x30] sm:$0xff]
    %v5774 = vld [vmem:[%s3 + $0x38] sm:$0xff]
    %v5775 = vld [vmem:[%s3 + $0x40] sm:$0xff]
    %v5776 = vld [vmem:[%s3 + $0x48] sm:$0xff]
    %v5777 = vld [vmem:[%s3 + $0x50] sm:$0xff]
    %v5778 = vld [vmem:[%s3 + $0x58] sm:$0xff]
    %v5779 = vld [vmem:[%s3 + $0x60] sm:$0xff]
    %v5780 = vld [vmem:[%s3 + $0x68] sm:$0xff]
    %v5781 = vld [vmem:[%s3 + $0x70] sm:$0xff]
    %v5782 = vld [vmem:[%s3 + $0x78] sm:$0xff]
    %v5783 = vld [vmem:[%s3 + $0x80] sm:$0xff]
    %v5784 = vld [vmem:[%s3 + $0x88] sm:$0xff]
    %v5785 = vld [vmem:[%s3 + $0x90] sm:$0xff]
    %v5786 = vld [vmem:[%s3 + $0x98] sm:$0xff]
    %v5787 = vld [vmem:[%s3 + $0xa0] sm:$0xff]
    %v5788 = vld [vmem:[%s3 + $0xa8] sm:$0xff]
    %v5789 = vld [vmem:[%s3 + $0xb0] sm:$0xff]
    %v5790 = vld [vmem:[%s3 + $0xb8] sm:$0xff]
    %v5791 = vld [vmem:[%s3 + $0xc0] sm:$0xff]
    %v5792 = vld [vmem:[%s3 + $0xc8] sm:$0xff]
    %v5793 = vld [vmem:[%s3 + $0xd0] sm:$0xff]
    %v5794 = vld [vmem:[%s3 + $0xd8] sm:$0xff]
    %v5795 = vld [vmem:[%s3 + $0xe0] sm:$0xff]
    %v5796 = vld [vmem:[%s3 + $0xe8] sm:$0xff]
    %v5797 = vld [vmem:[%s3 + $0xf0] sm:$0xff]
    %v5798 = vld [vmem:[%s3 + $0xf8] sm:$0xff]
    %v5799 = vld [vmem:[%s3 + $0x100] sm:$0xff]
    %v5800 = vld [vmem:[%s3 + $0x108] sm:$0xff]
    %v5801 = vld [vmem:[%s3 + $0x110] sm:$0xff]
    %v5802 = vld [vmem:[%s3 + $0x118] sm:$0xff]
    %v5803 = vld [vmem:[%s3 + $0x120] sm:$0xff]
    %v5804 = vld [vmem:[%s3 + $0x128] sm:$0xff]
    %v5805 = vld [vmem:[%s3 + $0x130] sm:$0xff]
    %v5806 = vld [vmem:[%s3 + $0x138] sm:$0xff]
    %v5807 = vld [vmem:[%s3 + $0x140] sm:$0xff]
    %v5808 = vld [vmem:[%s3 + $0x148] sm:$0xff]
    %v5809 = vld [vmem:[%s3 + $0x150] sm:$0xff]
    %v5810 = vld [vmem:[%s3 + $0x158] sm:$0xff]
    %v5811 = vld [vmem:[%s3 + $0x160] sm:$0xff]
    %v5812 = vld [vmem:[%s3 + $0x168] sm:$0xff]
    %v5813 = vld [vmem:[%s3 + $0x170] sm:$0xff]
    %v5814 = vld [vmem:[%s3 + $0x178] sm:$0xff]
    %v5815 = vld [vmem:[%s3 + $0x180] sm:$0xff]
    %v5816 = vld [vmem:[%s3 + $0x188] sm:$0xff]
    %v5817 = vld [vmem:[%s3 + $0x190] sm:$0xff]
    %v5818 = vld [vmem:[%s3 + $0x198] sm:$0xff]
    %v5819 = vld [vmem:[%s3 + $0x1a0] sm:$0xff]
    %v5820 = vld [vmem:[%s3 + $0x1a8] sm:$0xff]
    %v5821 = vld [vmem:[%s3 + $0x1b0] sm:$0xff]
    %v5822 = vld [vmem:[%s3 + $0x1b8] sm:$0xff]
    %v5823 = vld [vmem:[%s3 + $0x1c0] sm:$0xff]
    %v5824 = vld [vmem:[%s3 + $0x1c8] sm:$0xff]
    %v5825 = vld [vmem:[%s3 + $0x1d0] sm:$0xff]
    %v5826 = vld [vmem:[%s3 + $0x1d8] sm:$0xff]
    %v5827 = vld [vmem:[%s3 + $0x1e0] sm:$0xff]
    %v5828 = vld [vmem:[%s3 + $0x1e8] sm:$0xff]
    %v5829 = vld [vmem:[%s3 + $0x1f0] sm:$0xff]
    %v5830 = vld [vmem:[%s3 + $0x1f8] sm:$0xff]
    %v5831 = vld [vmem:[%s3 + $0x200] sm:$0xff]
    %v5832 = vld [vmem:[%s3 + $0x208] sm:$0xff]
    %v5833 = vld [vmem:[%s3 + $0x210] sm:$0xff]
    %v5834 = vld [vmem:[%s3 + $0x218] sm:$0xff]
    %v5835 = vld [vmem:[%s3 + $0x220] sm:$0xff]
    %v5836 = vld [vmem:[%s3 + $0x228] sm:$0xff]
    %v5837 = vld [vmem:[%s3 + $0x230] sm:$0xff]
    %v5838 = vld [vmem:[%s3 + $0x238] sm:$0xff]
    %v5839 = vld [vmem:[%s3 + $0x240] sm:$0xff]
    %v5840 = vld [vmem:[%s3 + $0x248] sm:$0xff]
    %v5841 = vld [vmem:[%s3 + $0x250] sm:$0xff]
    %v5842 = vld [vmem:[%s3 + $0x258] sm:$0xff]
    %v5843 = vld [vmem:[%s3 + $0x260] sm:$0xff]
    %v5844 = vld [vmem:[%s3 + $0x268] sm:$0xff]
    %v5845 = vld [vmem:[%s3 + $0x270] sm:$0xff]
    %v5846 = vld [vmem:[%s3 + $0x278] sm:$0xff]
    %v5847 = vld [vmem:[%s3 + $0x280] sm:$0xff]
    %v5848 = vld [vmem:[%s3 + $0x288] sm:$0xff]
    %v5849 = vld [vmem:[%s3 + $0x290] sm:$0xff]
    %v5850 = vld [vmem:[%s3 + $0x298] sm:$0xff]
    %v5851 = vld [vmem:[%s3 + $0x2a0] sm:$0xff]
    %v5852 = vld [vmem:[%s3 + $0x2a8] sm:$0xff]
    %v5853 = vld [vmem:[%s3 + $0x2b0] sm:$0xff]
    %v5854 = vld [vmem:[%s3 + $0x2b8] sm:$0xff]
    %v5855 = vld [vmem:[%s3 + $0x2c0] sm:$0xff]
    %v5856 = vld [vmem:[%s3 + $0x2c8] sm:$0xff]
    %v5857 = vld [vmem:[%s3 + $0x2d0] sm:$0xff]
    %v5858 = vld [vmem:[%s3 + $0x2d8] sm:$0xff]
    %v5859 = vld [vmem:[%s3 + $0x2e0] sm:$0xff]
    %v5860 = vld [vmem:[%s3 + $0x2e8] sm:$0xff]
    %v5861 = vld [vmem:[%s3 + $0x2f0] sm:$0xff]
    %v5862 = vld [vmem:[%s3 + $0x2f8] sm:$0xff]
    %v5863 = vld [vmem:[%s3 + $0x300] sm:$0xff]
    %v5864 = vld [vmem:[%s3 + $0x308] sm:$0xff]
    %v5865 = vld [vmem:[%s3 + $0x310] sm:$0xff]
    %v5866 = vld [vmem:[%s3 + $0x318] sm:$0xff]
    %v5867 = vld [vmem:[%s4] sm:$0x3]
    %v5869 = vlaneseq
    %v5870 = vshrl.u32 %v5869, 7
    %v5871 = vsub.s32 0, %v5870
    %v5872 = vrot.slane %v5867, %v5871
    %v5873 = vlaneseq
    %v5874 = vshrl.u32 %v5873, 7
    %v5875 = vsub.s32 1, %v5874
    %v5876 = vrot.slane %v5867, %v5875
    %v5979 = vunpack.c.l.b16 %v5767
    %v5980 = vunpack.c.h.b16 %v5767
    %v5981 = vunpack.c.l.b16 %v5768
    %v5982 = vunpack.c.h.b16 %v5768
    %v5983 = vunpack.c.l.b16 %v5769
    %v5984 = vunpack.c.h.b16 %v5769
    %v5985 = vunpack.c.l.b16 %v5770
    %v5986 = vunpack.c.h.b16 %v5770
    %v5987 = vunpack.c.l.b16 %v5771
    %v5988 = vunpack.c.h.b16 %v5771
    %v5989 = vunpack.c.l.b16 %v5772
    %v5990 = vunpack.c.h.b16 %v5772
    %v5991 = vunpack.c.l.b16 %v5773
    %v5992 = vunpack.c.h.b16 %v5773
    %v5993 = vunpack.c.l.b16 %v5774
    %v5994 = vunpack.c.h.b16 %v5774
    %v5995 = vunpack.c.l.b16 %v5775
    %v5996 = vunpack.c.h.b16 %v5775
    %v5997 = vunpack.c.l.b16 %v5776
    %v5998 = vunpack.c.h.b16 %v5776
    %v5999 = vunpack.c.l.b16 %v5777
    %v6000 = vunpack.c.h.b16 %v5777
    %v6001 = vunpack.c.l.b16 %v5778
    %v6002 = vunpack.c.h.b16 %v5778
    %v6003 = vunpack.c.l.b16 %v5779
    %v6004 = vunpack.c.h.b16 %v5779
    %v6005 = vunpack.c.l.b16 %v5780
    %v6006 = vunpack.c.h.b16 %v5780
    %v6007 = vunpack.c.l.b16 %v5781
    %v6008 = vunpack.c.h.b16 %v5781
    %v6009 = vunpack.c.l.b16 %v5782
    %v6010 = vunpack.c.h.b16 %v5782
    %v6011 = vunpack.c.l.b16 %v5783
    %v6012 = vunpack.c.h.b16 %v5783
    %v6013 = vunpack.c.l.b16 %v5784
    %v6014 = vunpack.c.h.b16 %v5784
    %v6015 = vunpack.c.l.b16 %v5785
    %v6016 = vunpack.c.h.b16 %v5785
    %v6017 = vunpack.c.l.b16 %v5786
    %v6018 = vunpack.c.h.b16 %v5786
    %v6019 = vunpack.c.l.b16 %v5787
    %v6020 = vunpack.c.h.b16 %v5787
    %v6021 = vunpack.c.l.b16 %v5788
    %v6022 = vunpack.c.h.b16 %v5788
    %v6023 = vunpack.c.l.b16 %v5789
    %v6024 = vunpack.c.h.b16 %v5789
    %v6025 = vunpack.c.l.b16 %v5790
    %v6026 = vunpack.c.h.b16 %v5790
    %v6027 = vunpack.c.l.b16 %v5791
    %v6028 = vunpack.c.h.b16 %v5791
    %v6029 = vunpack.c.l.b16 %v5792
    %v6030 = vunpack.c.h.b16 %v5792
    %v6031 = vunpack.c.l.b16 %v5793
    %v6032 = vunpack.c.h.b16 %v5793
    %v6033 = vunpack.c.l.b16 %v5794
    %v6034 = vunpack.c.h.b16 %v5794
    %v6035 = vunpack.c.l.b16 %v5795
    %v6036 = vunpack.c.h.b16 %v5795
    %v6037 = vunpack.c.l.b16 %v5796
    %v6038 = vunpack.c.h.b16 %v5796
    %v6039 = vunpack.c.l.b16 %v5797
    %v6040 = vunpack.c.h.b16 %v5797
    %v6041 = vunpack.c.l.b16 %v5798
    %v6042 = vunpack.c.h.b16 %v5798
    %v6043 = vunpack.c.l.b16 %v5799
    %v6044 = vunpack.c.h.b16 %v5799
    %v6045 = vunpack.c.l.b16 %v5800
    %v6046 = vunpack.c.h.b16 %v5800
    %v6047 = vunpack.c.l.b16 %v5801
    %v6048 = vunpack.c.h.b16 %v5801
    %v6049 = vunpack.c.l.b16 %v5802
    %v6050 = vunpack.c.h.b16 %v5802
    %v6051 = vunpack.c.l.b16 %v5803
    %v6052 = vunpack.c.h.b16 %v5803
    %v6053 = vunpack.c.l.b16 %v5804
    %v6054 = vunpack.c.h.b16 %v5804
    %v6055 = vunpack.c.l.b16 %v5805
    %v6056 = vunpack.c.h.b16 %v5805
    %v6057 = vunpack.c.l.b16 %v5806
    %v6058 = vunpack.c.h.b16 %v5806
    %v6059 = vunpack.c.l.b16 %v5807
    %v6060 = vunpack.c.h.b16 %v5807
    %v6061 = vunpack.c.l.b16 %v5808
    %v6062 = vunpack.c.h.b16 %v5808
    %v6063 = vunpack.c.l.b16 %v5809
    %v6064 = vunpack.c.h.b16 %v5809
    %v6065 = vunpack.c.l.b16 %v5810
    %v6066 = vunpack.c.h.b16 %v5810
    %v6067 = vunpack.c.l.b16 %v5811
    %v6068 = vunpack.c.h.b16 %v5811
    %v6069 = vunpack.c.l.b16 %v5812
    %v6070 = vunpack.c.h.b16 %v5812
    %v6071 = vunpack.c.l.b16 %v5813
    %v6072 = vunpack.c.h.b16 %v5813
    %v6073 = vunpack.c.l.b16 %v5814
    %v6074 = vunpack.c.h.b16 %v5814
    %v6075 = vunpack.c.l.b16 %v5815
    %v6076 = vunpack.c.h.b16 %v5815
    %v6077 = vunpack.c.l.b16 %v5816
    %v6078 = vunpack.c.h.b16 %v5816
    %v6079 = vunpack.c.l.b16 %v5817
    %v6080 = vunpack.c.h.b16 %v5817
    %v6081 = vunpack.c.l.b16 %v5818
    %v6082 = vunpack.c.h.b16 %v5818
    %v6083 = vunpack.c.l.b16 %v5819
    %v6084 = vunpack.c.h.b16 %v5819
    %v6085 = vunpack.c.l.b16 %v5820
    %v6086 = vunpack.c.h.b16 %v5820
    %v6087 = vunpack.c.l.b16 %v5821
    %v6088 = vunpack.c.h.b16 %v5821
    %v6089 = vunpack.c.l.b16 %v5822
    %v6090 = vunpack.c.h.b16 %v5822
    %v6091 = vunpack.c.l.b16 %v5823
    %v6092 = vunpack.c.h.b16 %v5823
    %v6093 = vunpack.c.l.b16 %v5824
    %v6094 = vunpack.c.h.b16 %v5824
    %v6095 = vunpack.c.l.b16 %v5825
    %v6096 = vunpack.c.h.b16 %v5825
    %v6097 = vunpack.c.l.b16 %v5826
    %v6098 = vunpack.c.h.b16 %v5826
    %v6099 = vunpack.c.l.b16 %v5827
    %v6100 = vunpack.c.h.b16 %v5827
    %v6101 = vunpack.c.l.b16 %v5828
    %v6102 = vunpack.c.h.b16 %v5828
    %v6103 = vunpack.c.l.b16 %v5829
    %v6104 = vunpack.c.h.b16 %v5829
    %v6105 = vunpack.c.l.b16 %v5830
    %v6106 = vunpack.c.h.b16 %v5830
    %v6107 = vunpack.c.l.b16 %v5831
    %v6108 = vunpack.c.h.b16 %v5831
    %v6109 = vunpack.c.l.b16 %v5832
    %v6110 = vunpack.c.h.b16 %v5832
    %v6111 = vunpack.c.l.b16 %v5833
    %v6112 = vunpack.c.h.b16 %v5833
    %v6113 = vunpack.c.l.b16 %v5834
    %v6114 = vunpack.c.h.b16 %v5834
    %v6115 = vunpack.c.l.b16 %v5835
    %v6116 = vunpack.c.h.b16 %v5835
    %v6117 = vunpack.c.l.b16 %v5836
    %v6118 = vunpack.c.h.b16 %v5836
    %v6119 = vunpack.c.l.b16 %v5837
    %v6120 = vunpack.c.h.b16 %v5837
    %v6121 = vunpack.c.l.b16 %v5838
    %v6122 = vunpack.c.h.b16 %v5838
    %v6123 = vunpack.c.l.b16 %v5839
    %v6124 = vunpack.c.h.b16 %v5839
    %v6125 = vunpack.c.l.b16 %v5840
    %v6126 = vunpack.c.h.b16 %v5840
    %v6127 = vunpack.c.l.b16 %v5841
    %v6128 = vunpack.c.h.b16 %v5841
    %v6129 = vunpack.c.l.b16 %v5842
    %v6130 = vunpack.c.h.b16 %v5842
    %v6131 = vunpack.c.l.b16 %v5843
    %v6132 = vunpack.c.h.b16 %v5843
    %v6133 = vunpack.c.l.b16 %v5844
    %v6134 = vunpack.c.h.b16 %v5844
    %v6135 = vunpack.c.l.b16 %v5845
    %v6136 = vunpack.c.h.b16 %v5845
    %v6137 = vunpack.c.l.b16 %v5846
    %v6138 = vunpack.c.h.b16 %v5846
    %v6139 = vunpack.c.l.b16 %v5847
    %v6140 = vunpack.c.h.b16 %v5847
    %v6141 = vunpack.c.l.b16 %v5848
    %v6142 = vunpack.c.h.b16 %v5848
    %v6143 = vunpack.c.l.b16 %v5849
    %v6144 = vunpack.c.h.b16 %v5849
    %v6145 = vunpack.c.l.b16 %v5850
    %v6146 = vunpack.c.h.b16 %v5850
    %v6147 = vunpack.c.l.b16 %v5851
    %v6148 = vunpack.c.h.b16 %v5851
    %v6149 = vunpack.c.l.b16 %v5852
    %v6150 = vunpack.c.h.b16 %v5852
    %v6151 = vunpack.c.l.b16 %v5853
    %v6152 = vunpack.c.h.b16 %v5853
    %v6153 = vunpack.c.l.b16 %v5854
    %v6154 = vunpack.c.h.b16 %v5854
    %v6155 = vunpack.c.l.b16 %v5855
    %v6156 = vunpack.c.h.b16 %v5855
    %v6157 = vunpack.c.l.b16 %v5856
    %v6158 = vunpack.c.h.b16 %v5856
    %v6159 = vunpack.c.l.b16 %v5857
    %v6160 = vunpack.c.h.b16 %v5857
    %v6161 = vunpack.c.l.b16 %v5858
    %v6162 = vunpack.c.h.b16 %v5858
    %v6163 = vunpack.c.l.b16 %v5859
    %v6164 = vunpack.c.h.b16 %v5859
    %v6165 = vunpack.c.l.b16 %v5860
    %v6166 = vunpack.c.h.b16 %v5860
    %v6167 = vunpack.c.l.b16 %v5861
    %v6168 = vunpack.c.h.b16 %v5861
    %v6169 = vunpack.c.l.b16 %v5862
    %v6170 = vunpack.c.h.b16 %v5862
    %v6171 = vunpack.c.l.b16 %v5863
    %v6172 = vunpack.c.h.b16 %v5863
    %v6173 = vunpack.c.l.b16 %v5864
    %v6174 = vunpack.c.h.b16 %v5864
    %v6175 = vunpack.c.l.b16 %v5865
    %v6176 = vunpack.c.h.b16 %v5865
    %v6177 = vunpack.c.l.b16 %v5866
    %v6178 = vunpack.c.h.b16 %v5866
    %v6179 = vpack.c.b16 %v5981, %v5979
    %v6180 = vpack.c.b16 %v5982, %v5980
    %v6181 = vpack.c.b16 %v5985, %v5983
    %v6182 = vpack.c.b16 %v5986, %v5984
    %v6183 = vpack.c.b16 %v5989, %v5987
    %v6184 = vpack.c.b16 %v5990, %v5988
    %v6185 = vpack.c.b16 %v5993, %v5991
    %v6186 = vpack.c.b16 %v5994, %v5992
    %v6187 = vpack.c.b16 %v5997, %v5995
    %v6188 = vpack.c.b16 %v5998, %v5996
    %v6189 = vpack.c.b16 %v6001, %v5999
    %v6190 = vpack.c.b16 %v6002, %v6000
    %v6191 = vpack.c.b16 %v6005, %v6003
    %v6192 = vpack.c.b16 %v6006, %v6004
    %v6193 = vpack.c.b16 %v6009, %v6007
    %v6194 = vpack.c.b16 %v6010, %v6008
    %v6195 = vpack.c.b16 %v6013, %v6011
    %v6196 = vpack.c.b16 %v6014, %v6012
    %v6197 = vpack.c.b16 %v6017, %v6015
    %v6198 = vpack.c.b16 %v6018, %v6016
    %v6199 = vpack.c.b16 %v6021, %v6019
    %v6200 = vpack.c.b16 %v6022, %v6020
    %v6201 = vpack.c.b16 %v6025, %v6023
    %v6202 = vpack.c.b16 %v6026, %v6024
    %v6203 = vpack.c.b16 %v6029, %v6027
    %v6204 = vpack.c.b16 %v6030, %v6028
    %v6205 = vpack.c.b16 %v6033, %v6031
    %v6206 = vpack.c.b16 %v6034, %v6032
    %v6207 = vpack.c.b16 %v6037, %v6035
    %v6208 = vpack.c.b16 %v6038, %v6036
    %v6209 = vpack.c.b16 %v6041, %v6039
    %v6210 = vpack.c.b16 %v6042, %v6040
    %v6211 = vpack.c.b16 %v6045, %v6043
    %v6212 = vpack.c.b16 %v6046, %v6044
    %v6213 = vpack.c.b16 %v6049, %v6047
    %v6214 = vpack.c.b16 %v6050, %v6048
    %v6215 = vpack.c.b16 %v6053, %v6051
    %v6216 = vpack.c.b16 %v6054, %v6052
    %v6217 = vpack.c.b16 %v6057, %v6055
    %v6218 = vpack.c.b16 %v6058, %v6056
    %v6219 = vpack.c.b16 %v6061, %v6059
    %v6220 = vpack.c.b16 %v6062, %v6060
    %v6221 = vpack.c.b16 %v6065, %v6063
    %v6222 = vpack.c.b16 %v6066, %v6064
    %v6223 = vpack.c.b16 %v6069, %v6067
    %v6224 = vpack.c.b16 %v6070, %v6068
    %v6225 = vpack.c.b16 %v6073, %v6071
    %v6226 = vpack.c.b16 %v6074, %v6072
    %v6227 = vpack.c.b16 %v6077, %v6075
    %v6228 = vpack.c.b16 %v6078, %v6076
    %v6229 = vpack.c.b16 %v6081, %v6079
    %v6230 = vpack.c.b16 %v6082, %v6080
    %v6231 = vpack.c.b16 %v6085, %v6083
    %v6232 = vpack.c.b16 %v6086, %v6084
    %v6233 = vpack.c.b16 %v6089, %v6087
    %v6234 = vpack.c.b16 %v6090, %v6088
    %v6235 = vpack.c.b16 %v6093, %v6091
    %v6236 = vpack.c.b16 %v6094, %v6092
    %v6237 = vpack.c.b16 %v6097, %v6095
    %v6238 = vpack.c.b16 %v6098, %v6096
    %v6239 = vpack.c.b16 %v6101, %v6099
    %v6240 = vpack.c.b16 %v6102, %v6100
    %v6241 = vpack.c.b16 %v6105, %v6103
    %v6242 = vpack.c.b16 %v6106, %v6104
    %v6243 = vpack.c.b16 %v6109, %v6107
    %v6244 = vpack.c.b16 %v6110, %v6108
    %v6245 = vpack.c.b16 %v6113, %v6111
    %v6246 = vpack.c.b16 %v6114, %v6112
    %v6247 = vpack.c.b16 %v6117, %v6115
    %v6248 = vpack.c.b16 %v6118, %v6116
    %v6249 = vpack.c.b16 %v6121, %v6119
    %v6250 = vpack.c.b16 %v6122, %v6120
    %v6251 = vpack.c.b16 %v6125, %v6123
    %v6252 = vpack.c.b16 %v6126, %v6124
    %v6253 = vpack.c.b16 %v6129, %v6127
    %v6254 = vpack.c.b16 %v6130, %v6128
    %v6255 = vpack.c.b16 %v6133, %v6131
    %v6256 = vpack.c.b16 %v6134, %v6132
    %v6257 = vpack.c.b16 %v6137, %v6135
    %v6258 = vpack.c.b16 %v6138, %v6136
    %v6259 = vpack.c.b16 %v6141, %v6139
    %v6260 = vpack.c.b16 %v6142, %v6140
    %v6261 = vpack.c.b16 %v6145, %v6143
    %v6262 = vpack.c.b16 %v6146, %v6144
    %v6263 = vpack.c.b16 %v6149, %v6147
    %v6264 = vpack.c.b16 %v6150, %v6148
    %v6265 = vpack.c.b16 %v6153, %v6151
    %v6266 = vpack.c.b16 %v6154, %v6152
    %v6267 = vpack.c.b16 %v6157, %v6155
    %v6268 = vpack.c.b16 %v6158, %v6156
    %v6269 = vpack.c.b16 %v6161, %v6159
    %v6270 = vpack.c.b16 %v6162, %v6160
    %v6271 = vpack.c.b16 %v6165, %v6163
    %v6272 = vpack.c.b16 %v6166, %v6164
    %v6273 = vpack.c.b16 %v6169, %v6167
    %v6274 = vpack.c.b16 %v6170, %v6168
    %v6275 = vpack.c.b16 %v6173, %v6171
    %v6276 = vpack.c.b16 %v6174, %v6172
    %v6277 = vpack.c.b16 %v6177, %v6175
    %v6278 = vpack.c.b16 %v6178, %v6176
    %vm6379 = vcmask 261120
    %v6381 = vsel %vm6379, %v5766, 0
    %6383 = vmatprep.subr.bf16.mxu0 %v6180
    %6384 = vmatpush1.bf16.msra.mxu0 %v6179
    %6385 = vmatprep.subr.bf16.mxu0 %v6182
    %6386 = vmatpush1.bf16.msra.mxu0 %v6181
    %6387 = vmatprep.subr.bf16.mxu0 %v6184
    %6388 = vmatpush1.bf16.msra.mxu0 %v6183
    %6389 = vmatprep.subr.bf16.mxu0 %v6186
    %6390 = vmatpush1.bf16.msra.mxu0 %v6185
    %6391 = vmatprep.subr.bf16.mxu0 %v6188
    %6392 = vmatpush1.bf16.msra.mxu0 %v6187
    %6393 = vmatprep.subr.bf16.mxu0 %v6190
    %6394 = vmatpush1.bf16.msra.mxu0 %v6189
    %6395 = vmatprep.subr.bf16.mxu0 %v6192
    %6396 = vmatpush1.bf16.msra.mxu0 %v6191
    %6397 = vmatprep.subr.bf16.mxu0 %v6194
    %6398 = vmatpush1.bf16.msra.mxu0 %v6193
    %6399 = vmatprep.subr.bf16.mxu0 %v6196
    %6400 = vmatpush1.bf16.msra.mxu0 %v6195
    %6401 = vmatprep.subr.bf16.mxu0 %v6198
    %6402 = vmatpush1.bf16.msra.mxu0 %v6197
    %6403 = vmatprep.subr.bf16.mxu0 %v6200
    %6404 = vmatpush1.bf16.msra.mxu0 %v6199
    %6405 = vmatprep.subr.bf16.mxu0 %v6202
    %6406 = vmatpush1.bf16.msra.mxu0 %v6201
    %6407 = vmatprep.subr.bf16.mxu0 %v6204
    %6408 = vmatpush1.bf16.msra.mxu0 %v6203
    %6409 = vmatprep.subr.bf16.mxu0 %v6206
    %6410 = vmatpush1.bf16.msra.mxu0 %v6205
    %6411 = vmatprep.subr.bf16.mxu0 %v6208
    %6412 = vmatpush1.bf16.msra.mxu0 %v6207
    %6413 = vmatprep.subr.bf16.mxu0 %v6210
    %6414 = vmatpush1.bf16.msra.mxu0 %v6209
    %6415 = vmatprep.mubr.bf16.mxu0 %v5761
    %6416 = vmatmul.mubr.bf16.gmra.mrb[0].mxu0 %v5760
    %v6417 = vpop.f32.mrb[0].mxu0
    %v6418 = vadd.f32 %v5872, %v6417
    %v6419 = vpop.f32.mrb[0].mxu0
    %v6420 = vadd.f32 %v5876, %v6419
    %v6421 = vpop.f32.mrb[0].mxu0
    %v6422 = vadd.f32 %v5872, %v6421
    %v6423 = vpop.f32.mrb[0].mxu0
    %v6424 = vadd.f32 %v5876, %v6423
    %6425 = vdwg.mxu0
    %6426 = vmatprep.subr.bf16.mxu0 %v6212
    %6427 = vmatpush1.bf16.msra.mxu0 %v6211
    %6428 = vmatprep.subr.bf16.mxu0 %v6214
    %6429 = vmatpush1.bf16.msra.mxu0 %v6213
    %6430 = vmatprep.subr.bf16.mxu0 %v6216
    %6431 = vmatpush1.bf16.msra.mxu0 %v6215
    %6432 = vmatprep.subr.bf16.mxu0 %v6218
    %6433 = vmatpush1.bf16.msra.mxu0 %v6217
    %6434 = vmatprep.subr.bf16.mxu0 %v6220
    %6435 = vmatpush1.bf16.msra.mxu0 %v6219
    %6436 = vmatprep.subr.bf16.mxu0 %v6222
    %6437 = vmatpush1.bf16.msra.mxu0 %v6221
    %6438 = vmatprep.subr.bf16.mxu0 %v6224
    %6439 = vmatpush1.bf16.msra.mxu0 %v6223
    %6440 = vmatprep.subr.bf16.mxu0 %v6226
    %6441 = vmatpush1.bf16.msra.mxu0 %v6225
    %6442 = vmatprep.subr.bf16.mxu0 %v6228
    %6443 = vmatpush1.bf16.msra.mxu0 %v6227
    %6444 = vmatprep.subr.bf16.mxu0 %v6230
    %6445 = vmatpush1.bf16.msra.mxu0 %v6229
    %6446 = vmatprep.subr.bf16.mxu0 %v6232
    %6447 = vmatpush1.bf16.msra.mxu0 %v6231
    %6448 = vmatprep.subr.bf16.mxu0 %v6234
    %6449 = vmatpush1.bf16.msra.mxu0 %v6233
    %6450 = vmatprep.subr.bf16.mxu0 %v6236
    %6451 = vmatpush1.bf16.msra.mxu0 %v6235
    %6452 = vmatprep.subr.bf16.mxu0 %v6238
    %6453 = vmatpush1.bf16.msra.mxu0 %v6237
    %6454 = vmatprep.subr.bf16.mxu0 %v6240
    %6455 = vmatpush1.bf16.msra.mxu0 %v6239
    %6456 = vmatprep.subr.bf16.mxu0 %v6242
    %6457 = vmatpush1.bf16.msra.mxu0 %v6241
    %6458 = vmatprep.mubr.bf16.mxu0 %v5763
    %6459 = vmatmul.mubr.bf16.gmra.mrb[0].mxu0 %v5762
    %v6460 = vpop.f32.mrb[0].mxu0
    %v6461 = vadd.f32 %v6418, %v6460
    %v6462 = vpop.f32.mrb[0].mxu0
    %v6463 = vadd.f32 %v6420, %v6462
    %v6464 = vpop.f32.mrb[0].mxu0
    %v6465 = vadd.f32 %v6422, %v6464
    %v6466 = vpop.f32.mrb[0].mxu0
    %v6467 = vadd.f32 %v6424, %v6466
    %6468 = vdwg.mxu0
    %6469 = vmatprep.subr.bf16.mxu0 %v6244
    %6470 = vmatpush1.bf16.msra.mxu0 %v6243
    %6471 = vmatprep.subr.bf16.mxu0 %v6246
    %6472 = vmatpush1.bf16.msra.mxu0 %v6245
    %6473 = vmatprep.subr.bf16.mxu0 %v6248
    %6474 = vmatpush1.bf16.msra.mxu0 %v6247
    %6475 = vmatprep.subr.bf16.mxu0 %v6250
    %6476 = vmatpush1.bf16.msra.mxu0 %v6249
    %6477 = vmatprep.subr.bf16.mxu0 %v6252
    %6478 = vmatpush1.bf16.msra.mxu0 %v6251
    %6479 = vmatprep.subr.bf16.mxu0 %v6254
    %6480 = vmatpush1.bf16.msra.mxu0 %v6253
    %6481 = vmatprep.subr.bf16.mxu0 %v6256
    %6482 = vmatpush1.bf16.msra.mxu0 %v6255
    %6483 = vmatprep.subr.bf16.mxu0 %v6258
    %6484 = vmatpush1.bf16.msra.mxu0 %v6257
    %6485 = vmatprep.subr.bf16.mxu0 %v6260
    %6486 = vmatpush1.bf16.msra.mxu0 %v6259
    %6487 = vmatprep.subr.bf16.mxu0 %v6262
    %6488 = vmatpush1.bf16.msra.mxu0 %v6261
    %6489 = vmatprep.subr.bf16.mxu0 %v6264
    %6490 = vmatpush1.bf16.msra.mxu0 %v6263
    %6491 = vmatprep.subr.bf16.mxu0 %v6266
    %6492 = vmatpush1.bf16.msra.mxu0 %v6265
    %6493 = vmatprep.subr.bf16.mxu0 %v6268
    %6494 = vmatpush1.bf16.msra.mxu0 %v6267
    %6495 = vmatprep.subr.bf16.mxu0 %v6270
    %6496 = vmatpush1.bf16.msra.mxu0 %v6269
    %6497 = vmatprep.subr.bf16.mxu0 %v6272
    %6498 = vmatpush1.bf16.msra.mxu0 %v6271
    %6499 = vmatprep.subr.bf16.mxu0 %v6274
    %6500 = vmatpush1.bf16.msra.mxu0 %v6273
    %6501 = vmatprep.mubr.bf16.mxu0 %v5765
    %6502 = vmatmul.mubr.bf16.gmra.mrb[0].mxu0 %v5764
    %v6503 = vpop.f32.mrb[0].mxu0
    %v6504 = vadd.f32 %v6461, %v6503
    %v6505 = vpop.f32.mrb[0].mxu0
    %v6506 = vadd.f32 %v6463, %v6505
    %v6507 = vpop.f32.mrb[0].mxu0
    %v6508 = vadd.f32 %v6465, %v6507
    %v6509 = vpop.f32.mrb[0].mxu0
    %v6510 = vadd.f32 %v6467, %v6509
    %6511 = vdwg.mxu0
    %6512 = vmatprep.subr.bf16.mxu0 %v6276
    %6513 = vmatpush1.bf16.msra.mxu0 %v6275
    %6514 = vmatprep.subr.bf16.mxu0 %v6278
    %6515 = vmatpush1.bf16.msra.mxu0 %v6277
    %6516 = vmatprep.subr.bf16.mxu0 0
    %6517 = vmatpush1.bf16.msra.mxu0 0
    %6518 = vmatprep.subr.bf16.mxu0 0
    %6519 = vmatpush1.bf16.msra.mxu0 0
    %6520 = vmatprep.subr.bf16.mxu0 0
    %6521 = vmatpush1.bf16.msra.mxu0 0
    %6522 = vmatprep.subr.bf16.mxu0 0
    %6523 = vmatpush1.bf16.msra.mxu0 0
    %6524 = vmatprep.subr.bf16.mxu0 0
    %6525 = vmatpush1.bf16.msra.mxu0 0
    %6526 = vmatprep.subr.bf16.mxu0 0
    %6527 = vmatpush1.bf16.msra.mxu0 0
    %6528 = vmatprep.subr.bf16.mxu0 0
    %6529 = vmatpush1.bf16.msra.mxu0 0
    %6530 = vmatprep.subr.bf16.mxu0 0
    %6531 = vmatpush1.bf16.msra.mxu0 0
    %6532 = vmatprep.subr.bf16.mxu0 0
    %6533 = vmatpush1.bf16.msra.mxu0 0
    %6534 = vmatprep.subr.bf16.mxu0 0
    %6535 = vmatpush1.bf16.msra.mxu0 0
    %6536 = vmatprep.subr.bf16.mxu0 0
    %6537 = vmatpush1.bf16.msra.mxu0 0
    %6538 = vmatprep.subr.bf16.mxu0 0
    %6539 = vmatpush1.bf16.msra.mxu0 0
    %6540 = vmatprep.subr.bf16.mxu0 0
    %6541 = vmatpush1.bf16.msra.mxu0 0
    %6542 = vmatprep.subr.bf16.mxu0 0
    %6543 = vmatpush1.bf16.msra.mxu0 0
    %6544 = vmatprep.mubr.bf16.mxu0 0
    %6545 = vmatmul.mubr.bf16.gmra.mrb[0].mxu0 %v6381
    %v6546 = vpop.f32.mrb[0].mxu0
    %v6547 = vadd.f32 %v6504, %v6546
    %v6548 = vpop.f32.mrb[0].mxu0
    %v6549 = vadd.f32 %v6506, %v6548
    %v6550 = vpop.f32.mrb[0].mxu0
    %v6551 = vadd.f32 %v6508, %v6550
    %v6552 = vpop.f32.mrb[0].mxu0
    %v6553 = vadd.f32 %v6510, %v6552
    %6554 = vdwg.mxu0
    %v6555 = vmax.f32 %v6547, 0.0
    %v6556 = vmax.f32 %v6549, 0.0
    %v6557 = vmax.f32 %v6551, 0.0
    %v6558 = vmax.f32 %v6553, 0.0
    %v6559 = vpack.c.bf16 %v6557, %v6555
    %v6560 = vpack.c.bf16 %v6558, %v6556
    %v6561 = vld [vmem:[%s5] sm:$0xf]
    %v6562 = vld [vmem:[%s5 + $0x4] sm:$0xf]
    %v6563 = vld [vmem:[%s5 + $0x8] sm:$0xf]
    %v6564 = vld [vmem:[%s5 + $0xc] sm:$0xf]
    %v6565 = vld [vmem:[%s5 + $0x10] sm:$0xf]
    %v6566 = vld [vmem:[%s5 + $0x14] sm:$0xf]
    %v6567 = vld [vmem:[%s5 + $0x18] sm:$0xf]
    %v6568 = vld [vmem:[%s5 + $0x1c] sm:$0xf]
    %v6569 = vld [vmem:[%s5 + $0x20] sm:$0xf]
    %v6570 = vld [vmem:[%s5 + $0x24] sm:$0xf]
    %v6571 = vld [vmem:[%s5 + $0x28] sm:$0xf]
    %v6572 = vld [vmem:[%s5 + $0x2c] sm:$0xf]
    %v6573 = vld [vmem:[%s5 + $0x30] sm:$0xf]
    %v6574 = vld [vmem:[%s5 + $0x34] sm:$0xf]
    %v6575 = vld [vmem:[%s5 + $0x38] sm:$0xf]
    %v6576 = vld [vmem:[%s5 + $0x3c] sm:$0xf]
    %v6577 = vld [vmem:[%s5 + $0x40] sm:$0xf]
    %v6578 = vld [vmem:[%s5 + $0x44] sm:$0xf]
    %v6579 = vld [vmem:[%s5 + $0x48] sm:$0xf]
    %v6580 = vld [vmem:[%s5 + $0x4c] sm:$0xf]
    %v6581 = vld [vmem:[%s5 + $0x50] sm:$0xf]
    %v6582 = vld [vmem:[%s5 + $0x54] sm:$0xf]
    %v6583 = vld [vmem:[%s5 + $0x58] sm:$0xf]
    %v6584 = vld [vmem:[%s5 + $0x5c] sm:$0xf]
    %v6585 = vld [vmem:[%s5 + $0x60] sm:$0xf]
    %v6586 = vld [vmem:[%s6] sm:$0x1]
    %v6588 = vlaneseq
    %v6589 = vshrl.u32 %v6588, 7
    %v6590 = vsub.s32 0, %v6589
    %v6591 = vrot.slane %v6586, %v6590
    %v6618 = vunpack.c.l.b16 %v6561
    %v6619 = vunpack.c.l.b16 %v6562
    %v6620 = vunpack.c.l.b16 %v6563
    %v6621 = vunpack.c.l.b16 %v6564
    %v6622 = vunpack.c.l.b16 %v6565
    %v6623 = vunpack.c.l.b16 %v6566
    %v6624 = vunpack.c.l.b16 %v6567
    %v6625 = vunpack.c.l.b16 %v6568
    %v6626 = vunpack.c.l.b16 %v6569
    %v6627 = vunpack.c.l.b16 %v6570
    %v6628 = vunpack.c.l.b16 %v6571
    %v6629 = vunpack.c.l.b16 %v6572
    %v6630 = vunpack.c.l.b16 %v6573
    %v6631 = vunpack.c.l.b16 %v6574
    %v6632 = vunpack.c.l.b16 %v6575
    %v6633 = vunpack.c.l.b16 %v6576
    %v6634 = vunpack.c.l.b16 %v6577
    %v6635 = vunpack.c.l.b16 %v6578
    %v6636 = vunpack.c.l.b16 %v6579
    %v6637 = vunpack.c.l.b16 %v6580
    %v6638 = vunpack.c.l.b16 %v6581
    %v6639 = vunpack.c.l.b16 %v6582
    %v6640 = vunpack.c.l.b16 %v6583
    %v6641 = vunpack.c.l.b16 %v6584
    %v6642 = vunpack.c.l.b16 %v6585
    %v6643 = vpack.c.b16 %v6619, %v6618
    %v6644 = vpack.c.b16 %v6621, %v6620
    %v6645 = vpack.c.b16 %v6623, %v6622
    %v6646 = vpack.c.b16 %v6625, %v6624
    %v6647 = vpack.c.b16 %v6627, %v6626
    %v6648 = vpack.c.b16 %v6629, %v6628
    %v6649 = vpack.c.b16 %v6631, %v6630
    %v6650 = vpack.c.b16 %v6633, %v6632
    %v6651 = vpack.c.b16 %v6635, %v6634
    %v6652 = vpack.c.b16 %v6637, %v6636
    %v6653 = vpack.c.b16 %v6639, %v6638
    %v6654 = vpack.c.b16 %v6641, %v6640
    %v6655 = vpack.c.b16 %v6642, %v6642
    %vm6668 = vcmask 588800
    %v6670 = vsel %vm6668, %v6560, 0
    %vm6672 = vcmask 1043456
    %v6674 = vsel %vm6672, %v6655, 0
    %6676 = vmatprep.subr.bf16.mxu0 0
    %6677 = vmatpush1.bf16.msra.mxu0 %v6643
    %6678 = vmatprep.subr.bf16.mxu0 0
    %6679 = vmatpush1.bf16.msra.mxu0 %v6644
    %6680 = vmatprep.subr.bf16.mxu0 0
    %6681 = vmatpush1.bf16.msra.mxu0 %v6645
    %6682 = vmatprep.subr.bf16.mxu0 0
    %6683 = vmatpush1.bf16.msra.mxu0 %v6646
    %6684 = vmatprep.subr.bf16.mxu0 0
    %6685 = vmatpush1.bf16.msra.mxu0 %v6647
    %6686 = vmatprep.subr.bf16.mxu0 0
    %6687 = vmatpush1.bf16.msra.mxu0 %v6648
    %6688 = vmatprep.subr.bf16.mxu0 0
    %6689 = vmatpush1.bf16.msra.mxu0 %v6649
    %6690 = vmatprep.subr.bf16.mxu0 0
    %6691 = vmatpush1.bf16.msra.mxu0 %v6650
    %6692 = vmatprep.subr.bf16.mxu0 0
    %6693 = vmatpush1.bf16.msra.mxu0 %v6651
    %6694 = vmatprep.subr.bf16.mxu0 0
    %6695 = vmatpush1.bf16.msra.mxu0 %v6652
    %6696 = vmatprep.subr.bf16.mxu0 0
    %6697 = vmatpush1.bf16.msra.mxu0 %v6653
    %6698 = vmatprep.subr.bf16.mxu0 0
    %6699 = vmatpush1.bf16.msra.mxu0 %v6654
    %6700 = vmatprep.subr.bf16.mxu0 0
    %6701 = vmatpush1.bf16.msra.mxu0 %v6674
    %6702 = vmatprep.subr.bf16.mxu0 0
    %6703 = vmatpush1.bf16.msra.mxu0 0
    %6704 = vmatprep.subr.bf16.mxu0 0
    %6705 = vmatpush1.bf16.msra.mxu0 0
    %6706 = vmatprep.subr.bf16.mxu0 0
    %6707 = vmatpush1.bf16.msra.mxu0 0
    %6708 = vmatprep.mubr.bf16.mxu0 %v6670
    %6709 = vmatmul.mubr.bf16.gmra.mrb[0].mxu0 %v6559
    %v6710 = vpop.f32.mrb[0].mxu0
    %v6711 = vadd.f32 %v6591, %v6710
    %v6712 = vpop.f32.mrb[0].mxu0
    %v6713 = vpop.f32.mrb[0].mxu0
    %v6714 = vadd.f32 %v6591, %v6713
    %v6715 = vpop.f32.mrb[0].mxu0
    %6716 = vdwg.mxu0
    %v6717 = vmax.f32 %v6711, 0.0
    %v6718 = vmax.f32 %v6714, 0.0
    %v6719 = vld [vmem:[%s7] sm:$0x1]
    %v6720 = vpack.c.bf16 %v6719, %v6719
    %v6721 = vpack.c.bf16 %v6718, %v6717
    %v6722 = vld [vmem:[#allocation2] sm:$0x1]
    %6724 = vset.pattern.permute.xlu0 0
    %6725 = vperm.xlu0 %6724, %v6722
    %v6726 = vpop.permute.xlu0 %6725
    %v6728 = vlaneseq
    %v6729 = vshrl.u32 %v6728, 7
    %v6730 = vsub.s32 0, %v6729
    %v6731 = vrot.slane %v6726, %v6730
    %vm6732 = vcmask 162816
    %v6734 = vsel %vm6732, %v6720, 0
    %v6737 = vsel %vm6732, %v6721, 0
    %6739 = vmatprep.subr.bf16.mxu0 0
    %6740 = vmatpush1.bf16.xpose.msra.mxu0 %v6737
    %6741 = vmatprep.subr.bf16.mxu0 0
    %6742 = vmatpush1.bf16.xpose.msra.mxu0 0
    %6743 = vmatprep.subr.bf16.mxu0 0
    %6744 = vmatpush1.bf16.xpose.msra.mxu0 0
    %6745 = vmatprep.subr.bf16.mxu0 0
    %6746 = vmatpush1.bf16.xpose.msra.mxu0 0
    %6747 = vmatprep.subr.bf16.mxu0 0
    %6748 = vmatpush1.bf16.xpose.msra.mxu0 0
    %6749 = vmatprep.subr.bf16.mxu0 0
    %6750 = vmatpush1.bf16.xpose.msra.mxu0 0
    %6751 = vmatprep.subr.bf16.mxu0 0
    %6752 = vmatpush1.bf16.xpose.msra.mxu0 0
    %6753 = vmatprep.subr.bf16.mxu0 0
    %6754 = vmatpush1.bf16.xpose.msra.mxu0 0
    %6755 = vmatprep.subr.bf16.mxu0 0
    %6756 = vmatpush1.bf16.xpose.msra.mxu0 0
    %6757 = vmatprep.subr.bf16.mxu0 0
    %6758 = vmatpush1.bf16.xpose.msra.mxu0 0
    %6759 = vmatprep.subr.bf16.mxu0 0
    %6760 = vmatpush1.bf16.xpose.msra.mxu0 0
    %6761 = vmatprep.subr.bf16.mxu0 0
    %6762 = vmatpush1.bf16.xpose.msra.mxu0 0
    %6763 = vmatprep.subr.bf16.mxu0 0
    %6764 = vmatpush1.bf16.xpose.msra.mxu0 0
    %6765 = vmatprep.subr.bf16.mxu0 0
    %6766 = vmatpush1.bf16.xpose.msra.mxu0 0
    %6767 = vmatprep.subr.bf16.mxu0 0
    %6768 = vmatpush1.bf16.xpose.msra.mxu0 0
    %6769 = vmatprep.subr.bf16.mxu0 0
    %6770 = vmatpush1.bf16.xpose.msra.mxu0 0
    %6771 = vmatprep.mubr.bf16.mxu0 0
    %6772 = vmatmul.mubr.bf16.gmra.mrb[0].mxu0 %v6734
    %v6773 = vpop.f32.mrb[0].mxu0
    %v6774 = vadd.f32 %v6731, %v6773
    %v6775 = vpop.f32.mrb[0].mxu0
    %v6776 = vpop.f32.mrb[0].mxu0
    %v6777 = vpop.f32.mrb[0].mxu0
    %6778 = vdwg.mxu0
    %v6779 = vmax.f32 %v6774, 0.0
    %v6780 = vsub.f32 0.0, %v6779
    %v6781 = vmul.f32 %v6780, 1.442695
    %v6782 = vpow.pop %v6781
    %v6783 = vadd.f32 %v6782, 1.0
    %v6784 = vrcp.pop %v6783
    %vm6785 = vcmask 122880
    %6786 = vst.msk [vmem:[#allocation3] sm:$0x1] %vm6785, %v6784
    // Predicated region
    $region38: #{tpu_custom_call.1} parent=1 // pred_check
      _
    $region39: #{tpu_custom_call.1} parent=1 // pred_check_branch
      %6788 = sbr.rel (0) target = $region41
    $region40: #{tpu_custom_call.1} parent=1 // pred_region
      %s6790 = ssub.s32 16, 16
      %6791 = vsyncadd [#allocation4], %s6790
      %s6793 = sshll.u32 [#allocation3], 4
      %s6794 = int_to_ptr.vmem [resolvable:$true] %s6793
      %6796 = dma.vmem_to_hbm [thread:$0]  %s6794, 16, %s9, [#allocation4]
    $region41: #{tpu_custom_call.1} parent=1 // pred_fallthru
      _
    // Predicated region
    $region42: #{tpu_custom_call.1} parent=1 // pred_check
      _
    $region43: #{tpu_custom_call.1} parent=1 // pred_check_branch
      %6798 = sbr.rel (0) target = $region45
    $region44: #{tpu_custom_call.1} parent=1 // pred_region
      %6799 = dma.done [#allocation4], 16
    $region45: #{tpu_custom_call.1} parent=1 // pred_fallthru
      _
    %6800 = vsyncpa [#allocation4], 1

// kernel: tpu_custom_call.1
$region0: #{tpu_custom_call.1}
  #allocation0 [shape = 'u32[]', space=smem, size = 0x4, offset = 0x4, fixed_abs, tag = 'smem constant byte address 0x4 - core index']
  #allocation1 [shape = 'u32[144,128]{1,0:T(1,128)}', space=vmem, size = 0x12000, scoped, tag = 'internal scratch']
  #allocation2 [shape = 'f32[1,1]{1,0:T(1,128)S(1)}', space=vmem, size = 0x200, scoped, tag = 'scoped memory for tpu_custom_call.1']
  %s0 = inlined_call_operand.vmem [shape: bf16[16,1600], index: 0, kind: input, shape index: {}]
  %s1 = inlined_call_operand.vmem [shape: bf16[1600,800], index: 1, kind: input, shape index: {}]
  %s2 = inlined_call_operand.vmem [shape: f32[1,800], index: 2, kind: input, shape index: {}]
  %s3 = inlined_call_operand.vmem [shape: bf16[800,200], index: 3, kind: input, shape index: {}]
  %s4 = inlined_call_operand.vmem [shape: f32[1,200], index: 4, kind: input, shape index: {}]
  %s5 = inlined_call_operand.vmem [shape: bf16[200,20], index: 5, kind: input, shape index: {}]
  %s6 = inlined_call_operand.vmem [shape: f32[1,20], index: 6, kind: input, shape index: {}]
  %s7 = inlined_call_operand.vmem [shape: f32[1,20], index: 7, kind: input, shape index: {}]
  %s8 = inlined_call_operand.<no memory space> [shape: f32[1,1], index: 8, kind: input, shape index: {}]
  %s9 = inlined_call_operand.hbm [shape: f32[1,16], index: 9, kind: output, shape index: {}]
  %s10 = sld [smem:[#allocation0]]
  $region46: #{tpu_custom_call.1} parent=0
    _
  %s12 = ssub.s32 1, %s10
  %s13 = scalar_select 0, %s12, %s10
  %v14 = vstv %s8
  %15 = vst [vmem:[#allocation2] sm:$0x1] %v14
  $region1: #{tpu_custom_call.1} parent=0
    #allocation3 [shape = 'u8[512]{0}', space=vmem, size = 0x400, scoped, tag = 'output window, operand 0, single buffered']
    #allocation4 [shape = 's32[1]{0}', space=sflag, size = 0x4, scoped, tag = 'scoped memory for tpu_custom_call.1']
    %16 = vsyncpa [#allocation4], 0
    // Predicated region
    $region2: #{tpu_custom_call.1} parent=1 // pred_check
      _
    $region3: #{tpu_custom_call.1} parent=1 // pred_check_branch
      %18 = sbr.rel (0) target = $region5
    $region4: #{tpu_custom_call.1} parent=1 // pred_region
      _
    $region5: #{tpu_custom_call.1} parent=1 // pred_fallthru
      _
    // Predicated region
    $region6: #{tpu_custom_call.1} parent=1 // pred_check
      _
    $region7: #{tpu_custom_call.1} parent=1 // pred_check_branch
      %20 = sbr.rel (0) target = $region9
    $region8: #{tpu_custom_call.1} parent=1 // pred_region
      _
    $region9: #{tpu_custom_call.1} parent=1 // pred_fallthru
      _
    // Predicated region
    $region10: #{tpu_custom_call.1} parent=1 // pred_check
      _
    $region11: #{tpu_custom_call.1} parent=1 // pred_check_branch
      %22 = sbr.rel (0) target = $region13
    $region12: #{tpu_custom_call.1} parent=1 // pred_region
      _
    $region13: #{tpu_custom_call.1} parent=1 // pred_fallthru
      _
    // Predicated region
    $region14: #{tpu_custom_call.1} parent=1 // pred_check
      _
    $region15: #{tpu_custom_call.1} parent=1 // pred_check_branch
      %24 = sbr.rel (0) target = $region17
    $region16: #{tpu_custom_call.1} parent=1 // pred_region
      _
    $region17: #{tpu_custom_call.1} parent=1 // pred_fallthru
      _
    // Predicated region
    $region18: #{tpu_custom_call.1} parent=1 // pred_check
      _
    $region19: #{tpu_custom_call.1} parent=1 // pred_check_branch
      %26 = sbr.rel (0) target = $region21
    $region20: #{tpu_custom_call.1} parent=1 // pred_region
      _
    $region21: #{tpu_custom_call.1} parent=1 // pred_fallthru
      _
    // Predicated region
    $region22: #{tpu_custom_call.1} parent=1 // pred_check
      _
    $region23: #{tpu_custom_call.1} parent=1 // pred_check_branch
      %28 = sbr.rel (0) target = $region25
    $region24: #{tpu_custom_call.1} parent=1 // pred_region
      _
    $region25: #{tpu_custom_call.1} parent=1 // pred_fallthru
      _
    // Predicated region
    $region26: #{tpu_custom_call.1} parent=1 // pred_check
      _
    $region27: #{tpu_custom_call.1} parent=1 // pred_check_branch
      %30 = sbr.rel (0) target = $region29
    $region28: #{tpu_custom_call.1} parent=1 // pred_region
      _
    $region29: #{tpu_custom_call.1} parent=1 // pred_fallthru
      _
    // Predicated region
    $region30: #{tpu_custom_call.1} parent=1 // pred_check
      _
    $region31: #{tpu_custom_call.1} parent=1 // pred_check_branch
      %32 = sbr.rel (0) target = $region33
    $region32: #{tpu_custom_call.1} parent=1 // pred_region
      _
    $region33: #{tpu_custom_call.1} parent=1 // pred_fallthru
      _
    // Predicated region
    $region34: #{tpu_custom_call.1} parent=1 // pred_check
      _
    $region35: #{tpu_custom_call.1} parent=1 // pred_check_branch
      %34 = sbr.rel (0) target = $region37
    $region36: #{tpu_custom_call.1} parent=1 // pred_region
      _
    $region37: #{tpu_custom_call.1} parent=1 // pred_fallthru
      _
    %v36 = vld [vmem:[%s0] sm:$0xff]
    %v37 = vld [vmem:[%s0 + $0x8] sm:$0xff]
    %v38 = vld [vmem:[%s0 + $0x10] sm:$0xff]
    %v39 = vld [vmem:[%s0 + $0x18] sm:$0xff]
    %v40 = vld [vmem:[%s0 + $0x20] sm:$0xff]
    %v41 = vld [vmem:[%s0 + $0x28] sm:$0xff]
    %v42 = vld [vmem:[%s0 + $0x30] sm:$0xf]
    %v43 = vld [vmem:[%s0 + $0x34] sm:$0xff]
    %v44 = vld [vmem:[%s0 + $0x3c] sm:$0xff]
    %v45 = vld [vmem:[%s0 + $0x44] sm:$0xff]
    %v46 = vld [vmem:[%s0 + $0x4c] sm:$0xff]
    %v47 = vld [vmem:[%s0 + $0x54] sm:$0xff]
    %v48 = vld [vmem:[%s0 + $0x5c] sm:$0xff]
    %v49 = vld [vmem:[%s0 + $0x64] sm:$0xf]
    %v50 = vld [vmem:[%s1] sm:$0xff]
    %v51 = vld [vmem:[%s1 + $0x8] sm:$0xff]
    %v52 = vld [vmem:[%s1 + $0x10] sm:$0xff]
    %v53 = vld [vmem:[%s1 + $0x18] sm:$0xf]
    %v54 = vld [vmem:[%s1 + $0x1c] sm:$0xff]
    %v55 = vld [vmem:[%s1 + $0x24] sm:$0xff]
    %v56 = vld [vmem:[%s1 + $0x2c] sm:$0xff]
    %v57 = vld [vmem:[%s1 + $0x34] sm:$0xf]
    %v58 = vld [vmem:[%s1 + $0x38] sm:$0xff]
    %v59 = vld [vmem:[%s1 + $0x40] sm:$0xff]
    %v60 = vld [vmem:[%s1 + $0x48] sm:$0xff]
    %v61 = vld [vmem:[%s1 + $0x50] sm:$0xf]
    %v62 = vld [vmem:[%s1 + $0x54] sm:$0xff]
    %v63 = vld [vmem:[%s1 + $0x5c] sm:$0xff]
    %v64 = vld [vmem:[%s1 + $0x64] sm:$0xff]
    %v65 = vld [vmem:[%s1 + $0x6c] sm:$0xf]
    %v66 = vld [vmem:[%s1 + $0x70] sm:$0xff]
    %v67 = vld [vmem:[%s1 + $0x78] sm:$0xff]
    %v68 = vld [vmem:[%s1 + $0x80] sm:$0xff]
    %v69 = vld [vmem:[%s1 + $0x88] sm:$0xf]
    %v70 = vld [vmem:[%s1 + $0x8c] sm:$0xff]
    %v71 = vld [vmem:[%s1 + $0x94] sm:$0xff]
    %v72 = vld [vmem:[%s1 + $0x9c] sm:$0xff]
    %v73 = vld [vmem:[%s1 + $0xa4] sm:$0xf]
    %v74 = vld [vmem:[%s1 + $0xa8] sm:$0xff]
    %v75 = vld [vmem:[%s1 + $0xb0] sm:$0xff]
    %v76 = vld [vmem:[%s1 + $0xb8] sm:$0xff]
    %v77 = vld [vmem:[%s1 + $0xc0] sm:$0xf]
    %v78 = vld [vmem:[%s1 + $0xc4] sm:$0xff]
    %v79 = vld [vmem:[%s1 + $0xcc] sm:$0xff]
    %v80 = vld [vmem:[%s1 + $0xd4] sm:$0xff]
    %v81 = vld [vmem:[%s1 + $0xdc] sm:$0xf]
    %v82 = vld [vmem:[%s1 + $0xe0] sm:$0xff]
    %v83 = vld [vmem:[%s1 + $0xe8] sm:$0xff]
    %v84 = vld [vmem:[%s1 + $0xf0] sm:$0xff]
    %v85 = vld [vmem:[%s1 + $0xf8] sm:$0xf]
    %v86 = vld [vmem:[%s1 + $0xfc] sm:$0xff]
    %v87 = vld [vmem:[%s1 + $0x104] sm:$0xff]
    %v88 = vld [vmem:[%s1 + $0x10c] sm:$0xff]
    %v89 = vld [vmem:[%s1 + $0x114] sm:$0xf]
    %v90 = vld [vmem:[%s1 + $0x118] sm:$0xff]
    %v91 = vld [vmem:[%s1 + $0x120] sm:$0xff]
    %v92 = vld [vmem:[%s1 + $0x128] sm:$0xff]
    %v93 = vld [vmem:[%s1 + $0x130] sm:$0xf]
    %v94 = vld [vmem:[%s1 + $0x134] sm:$0xff]
    %v95 = vld [vmem:[%s1 + $0x13c] sm:$0xff]
    %v96 = vld [vmem:[%s1 + $0x144] sm:$0xff]
    %v97 = vld [vmem:[%s1 + $0x14c] sm:$0xf]
    %v98 = vld [vmem:[%s1 + $0x150] sm:$0xff]
    %v99 = vld [vmem:[%s1 + $0x158] sm:$0xff]
    %v100 = vld [vmem:[%s1 + $0x160] sm:$0xff]
    %v101 = vld [vmem:[%s1 + $0x168] sm:$0xf]
    %v102 = vld [vmem:[%s1 + $0x16c] sm:$0xff]
    %v103 = vld [vmem:[%s1 + $0x174] sm:$0xff]
    %v104 = vld [vmem:[%s1 + $0x17c] sm:$0xff]
    %v105 = vld [vmem:[%s1 + $0x184] sm:$0xf]
    %v106 = vld [vmem:[%s1 + $0x188] sm:$0xff]
    %v107 = vld [vmem:[%s1 + $0x190] sm:$0xff]
    %v108 = vld [vmem:[%s1 + $0x198] sm:$0xff]
    %v109 = vld [vmem:[%s1 + $0x1a0] sm:$0xf]
    %v110 = vld [vmem:[%s1 + $0x1a4] sm:$0xff]
    %v111 = vld [vmem:[%s1 + $0x1ac] sm:$0xff]
    %v112 = vld [vmem:[%s1 + $0x1b4] sm:$0xff]
    %v113 = vld [vmem:[%s1 + $0x1bc] sm:$0xf]
    %v114 = vld [vmem:[%s1 + $0x1c0] sm:$0xff]
    %v115 = vld [vmem:[%s1 + $0x1c8] sm:$0xff]
    %v116 = vld [vmem:[%s1 + $0x1d0] sm:$0xff]
    %v117 = vld [vmem:[%s1 + $0x1d8] sm:$0xf]
    %v118 = vld [vmem:[%s1 + $0x1dc] sm:$0xff]
    %v119 = vld [vmem:[%s1 + $0x1e4] sm:$0xff]
    %v120 = vld [vmem:[%s1 + $0x1ec] sm:$0xff]
    %v121 = vld [vmem:[%s1 + $0x1f4] sm:$0xf]
    %v122 = vld [vmem:[%s1 + $0x1f8] sm:$0xff]
    %v123 = vld [vmem:[%s1 + $0x200] sm:$0xff]
    %v124 = vld [vmem:[%s1 + $0x208] sm:$0xff]
    %v125 = vld [vmem:[%s1 + $0x210] sm:$0xf]
    %v126 = vld [vmem:[%s1 + $0x214] sm:$0xff]
    %v127 = vld [vmem:[%s1 + $0x21c] sm:$0xff]
    %v128 = vld [vmem:[%s1 + $0x224] sm:$0xff]
    %v129 = vld [vmem:[%s1 + $0x22c] sm:$0xf]
    %v130 = vld [vmem:[%s1 + $0x230] sm:$0xff]
    %v131 = vld [vmem:[%s1 + $0x238] sm:$0xff]
    %v132 = vld [vmem:[%s1 + $0x240] sm:$0xff]
    %v133 = vld [vmem:[%s1 + $0x248] sm:$0xf]
    %v134 = vld [vmem:[%s1 + $0x24c] sm:$0xff]
    %v135 = vld [vmem:[%s1 + $0x254] sm:$0xff]
    %v136 = vld [vmem:[%s1 + $0x25c] sm:$0xff]
    %v137 = vld [vmem:[%s1 + $0x264] sm:$0xf]
    %v138 = vld [vmem:[%s1 + $0x268] sm:$0xff]
    %v139 = vld [vmem:[%s1 + $0x270] sm:$0xff]
    %v140 = vld [vmem:[%s1 + $0x278] sm:$0xff]
    %v141 = vld [vmem:[%s1 + $0x280] sm:$0xf]
    %v142 = vld [vmem:[%s1 + $0x284] sm:$0xff]
    %v143 = vld [vmem:[%s1 + $0x28c] sm:$0xff]
    %v144 = vld [vmem:[%s1 + $0x294] sm:$0xff]
    %v145 = vld [vmem:[%s1 + $0x29c] sm:$0xf]
    %v146 = vld [vmem:[%s1 + $0x2a0] sm:$0xff]
    %v147 = vld [vmem:[%s1 + $0x2a8] sm:$0xff]
    %v148 = vld [vmem:[%s1 + $0x2b0] sm:$0xff]
    %v149 = vld [vmem:[%s1 + $0x2b8] sm:$0xf]
    %v150 = vld [vmem:[%s1 + $0x2bc] sm:$0xff]
    %v151 = vld [vmem:[%s1 + $0x2c4] sm:$0xff]
    %v152 = vld [vmem:[%s1 + $0x2cc] sm:$0xff]
    %v153 = vld [vmem:[%s1 + $0x2d4] sm:$0xf]
    %v154 = vld [vmem:[%s1 + $0x2d8] sm:$0xff]
    %v155 = vld [vmem:[%s1 + $0x2e0] sm:$0xff]
    %v156 = vld [vmem:[%s1 + $0x2e8] sm:$0xff]
    %v157 = vld [vmem:[%s1 + $0x2f0] sm:$0xf]
    %v158 = vld [vmem:[%s1 + $0x2f4] sm:$0xff]
    %v159 = vld [vmem:[%s1 + $0x2fc] sm:$0xff]
    %v160 = vld [vmem:[%s1 + $0x304] sm:$0xff]
    %v161 = vld [vmem:[%s1 + $0x30c] sm:$0xf]
    %v162 = vld [vmem:[%s1 + $0x310] sm:$0xff]
    %v163 = vld [vmem:[%s1 + $0x318] sm:$0xff]
    %v164 = vld [vmem:[%s1 + $0x320] sm:$0xff]
    %v165 = vld [vmem:[%s1 + $0x328] sm:$0xf]
    %v166 = vld [vmem:[%s1 + $0x32c] sm:$0xff]
    %v167 = vld [vmem:[%s1 + $0x334] sm:$0xff]
    %v168 = vld [vmem:[%s1 + $0x33c] sm:$0xff]
    %v169 = vld [vmem:[%s1 + $0x344] sm:$0xf]
    %v170 = vld [vmem:[%s1 + $0x348] sm:$0xff]
    %v171 = vld [vmem:[%s1 + $0x350] sm:$0xff]
    %v172 = vld [vmem:[%s1 + $0x358] sm:$0xff]
    %v173 = vld [vmem:[%s1 + $0x360] sm:$0xf]
    %v174 = vld [vmem:[%s1 + $0x364] sm:$0xff]
    %v175 = vld [vmem:[%s1 + $0x36c] sm:$0xff]
    %v176 = vld [vmem:[%s1 + $0x374] sm:$0xff]
    %v177 = vld [vmem:[%s1 + $0x37c] sm:$0xf]
    %v178 = vld [vmem:[%s1 + $0x380] sm:$0xff]
    %v179 = vld [vmem:[%s1 + $0x388] sm:$0xff]
    %v180 = vld [vmem:[%s1 + $0x390] sm:$0xff]
    %v181 = vld [vmem:[%s1 + $0x398] sm:$0xf]
    %v182 = vld [vmem:[%s1 + $0x39c] sm:$0xff]
    %v183 = vld [vmem:[%s1 + $0x3a4] sm:$0xff]
    %v184 = vld [vmem:[%s1 + $0x3ac] sm:$0xff]
    %v185 = vld [vmem:[%s1 + $0x3b4] sm:$0xf]
    %v186 = vld [vmem:[%s1 + $0x3b8] sm:$0xff]
    %v187 = vld [vmem:[%s1 + $0x3c0] sm:$0xff]
    %v188 = vld [vmem:[%s1 + $0x3c8] sm:$0xff]
    %v189 = vld [vmem:[%s1 + $0x3d0] sm:$0xf]
    %v190 = vld [vmem:[%s1 + $0x3d4] sm:$0xff]
    %v191 = vld [vmem:[%s1 + $0x3dc] sm:$0xff]
    %v192 = vld [vmem:[%s1 + $0x3e4] sm:$0xff]
    %v193 = vld [vmem:[%s1 + $0x3ec] sm:$0xf]
    %v194 = vld [vmem:[%s1 + $0x3f0] sm:$0xff]
    %v195 = vld [vmem:[%s1 + $0x3f8] sm:$0xff]
    %v196 = vld [vmem:[%s1 + $0x400] sm:$0xff]
    %v197 = vld [vmem:[%s1 + $0x408] sm:$0xf]
    %v198 = vld [vmem:[%s1 + $0x40c] sm:$0xff]
    %v199 = vld [vmem:[%s1 + $0x414] sm:$0xff]
    %v200 = vld [vmem:[%s1 + $0x41c] sm:$0xff]
    %v201 = vld [vmem:[%s1 + $0x424] sm:$0xf]
    %v202 = vld [vmem:[%s1 + $0x428] sm:$0xff]
    %v203 = vld [vmem:[%s1 + $0x430] sm:$0xff]
    %v204 = vld [vmem:[%s1 + $0x438] sm:$0xff]
    %v205 = vld [vmem:[%s1 + $0x440] sm:$0xf]
    %v206 = vld [vmem:[%s1 + $0x444] sm:$0xff]
    %v207 = vld [vmem:[%s1 + $0x44c] sm:$0xff]
    %v208 = vld [vmem:[%s1 + $0x454] sm:$0xff]
    %v209 = vld [vmem:[%s1 + $0x45c] sm:$0xf]
    %v210 = vld [vmem:[%s1 + $0x460] sm:$0xff]
    %v211 = vld [vmem:[%s1 + $0x468] sm:$0xff]
    %v212 = vld [vmem:[%s1 + $0x470] sm:$0xff]
    %v213 = vld [vmem:[%s1 + $0x478] sm:$0xf]
    %v214 = vld [vmem:[%s1 + $0x47c] sm:$0xff]
    %v215 = vld [vmem:[%s1 + $0x484] sm:$0xff]
    %v216 = vld [vmem:[%s1 + $0x48c] sm:$0xff]
    %v217 = vld [vmem:[%s1 + $0x494] sm:$0xf]
    %v218 = vld [vmem:[%s1 + $0x498] sm:$0xff]
    %v219 = vld [vmem:[%s1 + $0x4a0] sm:$0xff]
    %v220 = vld [vmem:[%s1 + $0x4a8] sm:$0xff]
    %v221 = vld [vmem:[%s1 + $0x4b0] sm:$0xf]
    %v222 = vld [vmem:[%s1 + $0x4b4] sm:$0xff]
    %v223 = vld [vmem:[%s1 + $0x4bc] sm:$0xff]
    %v224 = vld [vmem:[%s1 + $0x4c4] sm:$0xff]
    %v225 = vld [vmem:[%s1 + $0x4cc] sm:$0xf]
    %v226 = vld [vmem:[%s1 + $0x4d0] sm:$0xff]
    %v227 = vld [vmem:[%s1 + $0x4d8] sm:$0xff]
    %v228 = vld [vmem:[%s1 + $0x4e0] sm:$0xff]
    %v229 = vld [vmem:[%s1 + $0x4e8] sm:$0xf]
    %v230 = vld [vmem:[%s1 + $0x4ec] sm:$0xff]
    %v231 = vld [vmem:[%s1 + $0x4f4] sm:$0xff]
    %v232 = vld [vmem:[%s1 + $0x4fc] sm:$0xff]
    %v233 = vld [vmem:[%s1 + $0x504] sm:$0xf]
    %v234 = vld [vmem:[%s1 + $0x508] sm:$0xff]
    %v235 = vld [vmem:[%s1 + $0x510] sm:$0xff]
    %v236 = vld [vmem:[%s1 + $0x518] sm:$0xff]
    %v237 = vld [vmem:[%s1 + $0x520] sm:$0xf]
    %v238 = vld [vmem:[%s1 + $0x524] sm:$0xff]
    %v239 = vld [vmem:[%s1 + $0x52c] sm:$0xff]
    %v240 = vld [vmem:[%s1 + $0x534] sm:$0xff]
    %v241 = vld [vmem:[%s1 + $0x53c] sm:$0xf]
    %v242 = vld [vmem:[%s1 + $0x540] sm:$0xff]
    %v243 = vld [vmem:[%s1 + $0x548] sm:$0xff]
    %v244 = vld [vmem:[%s1 + $0x550] sm:$0xff]
    %v245 = vld [vmem:[%s1 + $0x558] sm:$0xf]
    %v246 = vld [vmem:[%s1 + $0x55c] sm:$0xff]
    %v247 = vld [vmem:[%s1 + $0x564] sm:$0xff]
    %v248 = vld [vmem:[%s1 + $0x56c] sm:$0xff]
    %v249 = vld [vmem:[%s1 + $0x574] sm:$0xf]
    %v250 = vld [vmem:[%s1 + $0x578] sm:$0xff]
    %v251 = vld [vmem:[%s1 + $0x580] sm:$0xff]
    %v252 = vld [vmem:[%s1 + $0x588] sm:$0xff]
    %v253 = vld [vmem:[%s1 + $0x590] sm:$0xf]
    %v254 = vld [vmem:[%s1 + $0x594] sm:$0xff]
    %v255 = vld [vmem:[%s1 + $0x59c] sm:$0xff]
    %v256 = vld [vmem:[%s1 + $0x5a4] sm:$0xff]
    %v257 = vld [vmem:[%s1 + $0x5ac] sm:$0xf]
    %v258 = vld [vmem:[%s1 + $0x5b0] sm:$0xff]
    %v259 = vld [vmem:[%s1 + $0x5b8] sm:$0xff]
    %v260 = vld [vmem:[%s1 + $0x5c0] sm:$0xff]
    %v261 = vld [vmem:[%s1 + $0x5c8] sm:$0xf]
    %v262 = vld [vmem:[%s1 + $0x5cc] sm:$0xff]
    %v263 = vld [vmem:[%s1 + $0x5d4] sm:$0xff]
    %v264 = vld [vmem:[%s1 + $0x5dc] sm:$0xff]
    %v265 = vld [vmem:[%s1 + $0x5e4] sm:$0xf]
    %v266 = vld [vmem:[%s1 + $0x5e8] sm:$0xff]
    %v267 = vld [vmem:[%s1 + $0x5f0] sm:$0xff]
    %v268 = vld [vmem:[%s1 + $0x5f8] sm:$0xff]
    %v269 = vld [vmem:[%s1 + $0x600] sm:$0xf]
    %v270 = vld [vmem:[%s1 + $0x604] sm:$0xff]
    %v271 = vld [vmem:[%s1 + $0x60c] sm:$0xff]
    %v272 = vld [vmem:[%s1 + $0x614] sm:$0xff]
    %v273 = vld [vmem:[%s1 + $0x61c] sm:$0xf]
    %v274 = vld [vmem:[%s1 + $0x620] sm:$0xff]
    %v275 = vld [vmem:[%s1 + $0x628] sm:$0xff]
    %v276 = vld [vmem:[%s1 + $0x630] sm:$0xff]
    %v277 = vld [vmem:[%s1 + $0x638] sm:$0xf]
    %v278 = vld [vmem:[%s1 + $0x63c] sm:$0xff]
    %v279 = vld [vmem:[%s1 + $0x644] sm:$0xff]
    %v280 = vld [vmem:[%s1 + $0x64c] sm:$0xff]
    %v281 = vld [vmem:[%s1 + $0x654] sm:$0xf]
    %v282 = vld [vmem:[%s1 + $0x658] sm:$0xff]
    %v283 = vld [vmem:[%s1 + $0x660] sm:$0xff]
    %v284 = vld [vmem:[%s1 + $0x668] sm:$0xff]
    %v285 = vld [vmem:[%s1 + $0x670] sm:$0xf]
    %v286 = vld [vmem:[%s1 + $0x674] sm:$0xff]
    %v287 = vld [vmem:[%s1 + $0x67c] sm:$0xff]
    %v288 = vld [vmem:[%s1 + $0x684] sm:$0xff]
    %v289 = vld [vmem:[%s1 + $0x68c] sm:$0xf]
    %v290 = vld [vmem:[%s1 + $0x690] sm:$0xff]
    %v291 = vld [vmem:[%s1 + $0x698] sm:$0xff]
    %v292 = vld [vmem:[%s1 + $0x6a0] sm:$0xff]
    %v293 = vld [vmem:[%s1 + $0x6a8] sm:$0xf]
    %v294 = vld [vmem:[%s1 + $0x6ac] sm:$0xff]
    %v295 = vld [vmem:[%s1 + $0x6b4] sm:$0xff]
    %v296 = vld [vmem:[%s1 + $0x6bc] sm:$0xff]
    %v297 = vld [vmem:[%s1 + $0x6c4] sm:$0xf]
    %v298 = vld [vmem:[%s1 + $0x6c8] sm:$0xff]
    %v299 = vld [vmem:[%s1 + $0x6d0] sm:$0xff]
    %v300 = vld [vmem:[%s1 + $0x6d8] sm:$0xff]
    %v301 = vld [vmem:[%s1 + $0x6e0] sm:$0xf]
    %v302 = vld [vmem:[%s1 + $0x6e4] sm:$0xff]
    %v303 = vld [vmem:[%s1 + $0x6ec] sm:$0xff]
    %v304 = vld [vmem:[%s1 + $0x6f4] sm:$0xff]
    %v305 = vld [vmem:[%s1 + $0x6fc] sm:$0xf]
    %v306 = vld [vmem:[%s1 + $0x700] sm:$0xff]
    %v307 = vld [vmem:[%s1 + $0x708] sm:$0xff]
    %v308 = vld [vmem:[%s1 + $0x710] sm:$0xff]
    %v309 = vld [vmem:[%s1 + $0x718] sm:$0xf]
    %v310 = vld [vmem:[%s1 + $0x71c] sm:$0xff]
    %v311 = vld [vmem:[%s1 + $0x724] sm:$0xff]
    %v312 = vld [vmem:[%s1 + $0x72c] sm:$0xff]
    %v313 = vld [vmem:[%s1 + $0x734] sm:$0xf]
    %v314 = vld [vmem:[%s1 + $0x738] sm:$0xff]
    %v315 = vld [vmem:[%s1 + $0x740] sm:$0xff]
    %v316 = vld [vmem:[%s1 + $0x748] sm:$0xff]
    %v317 = vld [vmem:[%s1 + $0x750] sm:$0xf]
    %v318 = vld [vmem:[%s1 + $0x754] sm:$0xff]
    %v319 = vld [vmem:[%s1 + $0x75c] sm:$0xff]
    %v320 = vld [vmem:[%s1 + $0x764] sm:$0xff]
    %v321 = vld [vmem:[%s1 + $0x76c] sm:$0xf]
    %v322 = vld [vmem:[%s1 + $0x770] sm:$0xff]
    %v323 = vld [vmem:[%s1 + $0x778] sm:$0xff]
    %v324 = vld [vmem:[%s1 + $0x780] sm:$0xff]
    %v325 = vld [vmem:[%s1 + $0x788] sm:$0xf]
    %v326 = vld [vmem:[%s1 + $0x78c] sm:$0xff]
    %v327 = vld [vmem:[%s1 + $0x794] sm:$0xff]
    %v328 = vld [vmem:[%s1 + $0x79c] sm:$0xff]
    %v329 = vld [vmem:[%s1 + $0x7a4] sm:$0xf]
    %v330 = vld [vmem:[%s1 + $0x7a8] sm:$0xff]
    %v331 = vld [vmem:[%s1 + $0x7b0] sm:$0xff]
    %v332 = vld [vmem:[%s1 + $0x7b8] sm:$0xff]
    %v333 = vld [vmem:[%s1 + $0x7c0] sm:$0xf]
    %v334 = vld [vmem:[%s1 + $0x7c4] sm:$0xff]
    %v335 = vld [vmem:[%s1 + $0x7cc] sm:$0xff]
    %v336 = vld [vmem:[%s1 + $0x7d4] sm:$0xff]
    %v337 = vld [vmem:[%s1 + $0x7dc] sm:$0xf]
    %v338 = vld [vmem:[%s1 + $0x7e0] sm:$0xff]
    %v339 = vld [vmem:[%s1 + $0x7e8] sm:$0xff]
    %v340 = vld [vmem:[%s1 + $0x7f0] sm:$0xff]
    %v341 = vld [vmem:[%s1 + $0x7f8] sm:$0xf]
    %v342 = vld [vmem:[%s1 + $0x7fc] sm:$0xff]
    %v343 = vld [vmem:[%s1 + $0x804] sm:$0xff]
    %v344 = vld [vmem:[%s1 + $0x80c] sm:$0xff]
    %v345 = vld [vmem:[%s1 + $0x814] sm:$0xf]
    %v346 = vld [vmem:[%s1 + $0x818] sm:$0xff]
    %v347 = vld [vmem:[%s1 + $0x820] sm:$0xff]
    %v348 = vld [vmem:[%s1 + $0x828] sm:$0xff]
    %v349 = vld [vmem:[%s1 + $0x830] sm:$0xf]
    %v350 = vld [vmem:[%s1 + $0x834] sm:$0xff]
    %v351 = vld [vmem:[%s1 + $0x83c] sm:$0xff]
    %v352 = vld [vmem:[%s1 + $0x844] sm:$0xff]
    %v353 = vld [vmem:[%s1 + $0x84c] sm:$0xf]
    %v354 = vld [vmem:[%s1 + $0x850] sm:$0xff]
    %v355 = vld [vmem:[%s1 + $0x858] sm:$0xff]
    %v356 = vld [vmem:[%s1 + $0x860] sm:$0xff]
    %v357 = vld [vmem:[%s1 + $0x868] sm:$0xf]
    %v358 = vld [vmem:[%s1 + $0x86c] sm:$0xff]
    %v359 = vld [vmem:[%s1 + $0x874] sm:$0xff]
    %v360 = vld [vmem:[%s1 + $0x87c] sm:$0xff]
    %v361 = vld [vmem:[%s1 + $0x884] sm:$0xf]
    %v362 = vld [vmem:[%s1 + $0x888] sm:$0xff]
    %v363 = vld [vmem:[%s1 + $0x890] sm:$0xff]
    %v364 = vld [vmem:[%s1 + $0x898] sm:$0xff]
    %v365 = vld [vmem:[%s1 + $0x8a0] sm:$0xf]
    %v366 = vld [vmem:[%s1 + $0x8a4] sm:$0xff]
    %v367 = vld [vmem:[%s1 + $0x8ac] sm:$0xff]
    %v368 = vld [vmem:[%s1 + $0x8b4] sm:$0xff]
    %v369 = vld [vmem:[%s1 + $0x8bc] sm:$0xf]
    %v370 = vld [vmem:[%s1 + $0x8c0] sm:$0xff]
    %v371 = vld [vmem:[%s1 + $0x8c8] sm:$0xff]
    %v372 = vld [vmem:[%s1 + $0x8d0] sm:$0xff]
    %v373 = vld [vmem:[%s1 + $0x8d8] sm:$0xf]
    %v374 = vld [vmem:[%s1 + $0x8dc] sm:$0xff]
    %v375 = vld [vmem:[%s1 + $0x8e4] sm:$0xff]
    %v376 = vld [vmem:[%s1 + $0x8ec] sm:$0xff]
    %v377 = vld [vmem:[%s1 + $0x8f4] sm:$0xf]
    %v378 = vld [vmem:[%s1 + $0x8f8] sm:$0xff]
    %v379 = vld [vmem:[%s1 + $0x900] sm:$0xff]
    %v380 = vld [vmem:[%s1 + $0x908] sm:$0xff]
    %v381 = vld [vmem:[%s1 + $0x910] sm:$0xf]
    %v382 = vld [vmem:[%s1 + $0x914] sm:$0xff]
    %v383 = vld [vmem:[%s1 + $0x91c] sm:$0xff]
    %v384 = vld [vmem:[%s1 + $0x924] sm:$0xff]
    %v385 = vld [vmem:[%s1 + $0x92c] sm:$0xf]
    %v386 = vld [vmem:[%s1 + $0x930] sm:$0xff]
    %v387 = vld [vmem:[%s1 + $0x938] sm:$0xff]
    %v388 = vld [vmem:[%s1 + $0x940] sm:$0xff]
    %v389 = vld [vmem:[%s1 + $0x948] sm:$0xf]
    %v390 = vld [vmem:[%s1 + $0x94c] sm:$0xff]
    %v391 = vld [vmem:[%s1 + $0x954] sm:$0xff]
    %v392 = vld [vmem:[%s1 + $0x95c] sm:$0xff]
    %v393 = vld [vmem:[%s1 + $0x964] sm:$0xf]
    %v394 = vld [vmem:[%s1 + $0x968] sm:$0xff]
    %v395 = vld [vmem:[%s1 + $0x970] sm:$0xff]
    %v396 = vld [vmem:[%s1 + $0x978] sm:$0xff]
    %v397 = vld [vmem:[%s1 + $0x980] sm:$0xf]
    %v398 = vld [vmem:[%s1 + $0x984] sm:$0xff]
    %v399 = vld [vmem:[%s1 + $0x98c] sm:$0xff]
    %v400 = vld [vmem:[%s1 + $0x994] sm:$0xff]
    %v401 = vld [vmem:[%s1 + $0x99c] sm:$0xf]
    %v402 = vld [vmem:[%s1 + $0x9a0] sm:$0xff]
    %v403 = vld [vmem:[%s1 + $0x9a8] sm:$0xff]
    %v404 = vld [vmem:[%s1 + $0x9b0] sm:$0xff]
    %v405 = vld [vmem:[%s1 + $0x9b8] sm:$0xf]
    %v406 = vld [vmem:[%s1 + $0x9bc] sm:$0xff]
    %v407 = vld [vmem:[%s1 + $0x9c4] sm:$0xff]
    %v408 = vld [vmem:[%s1 + $0x9cc] sm:$0xff]
    %v409 = vld [vmem:[%s1 + $0x9d4] sm:$0xf]
    %v410 = vld [vmem:[%s1 + $0x9d8] sm:$0xff]
    %v411 = vld [vmem:[%s1 + $0x9e0] sm:$0xff]
    %v412 = vld [vmem:[%s1 + $0x9e8] sm:$0xff]
    %v413 = vld [vmem:[%s1 + $0x9f0] sm:$0xf]
    %v414 = vld [vmem:[%s1 + $0x9f4] sm:$0xff]
    %v415 = vld [vmem:[%s1 + $0x9fc] sm:$0xff]
    %v416 = vld [vmem:[%s1 + $0xa04] sm:$0xff]
    %v417 = vld [vmem:[%s1 + $0xa0c] sm:$0xf]
    %v418 = vld [vmem:[%s1 + $0xa10] sm:$0xff]
    %v419 = vld [vmem:[%s1 + $0xa18] sm:$0xff]
    %v420 = vld [vmem:[%s1 + $0xa20] sm:$0xff]
    %v421 = vld [vmem:[%s1 + $0xa28] sm:$0xf]
    %v422 = vld [vmem:[%s1 + $0xa2c] sm:$0xff]
    %v423 = vld [vmem:[%s1 + $0xa34] sm:$0xff]
    %v424 = vld [vmem:[%s1 + $0xa3c] sm:$0xff]
    %v425 = vld [vmem:[%s1 + $0xa44] sm:$0xf]
    %v426 = vld [vmem:[%s1 + $0xa48] sm:$0xff]
    %v427 = vld [vmem:[%s1 + $0xa50] sm:$0xff]
    %v428 = vld [vmem:[%s1 + $0xa58] sm:$0xff]
    %v429 = vld [vmem:[%s1 + $0xa60] sm:$0xf]
    %v430 = vld [vmem:[%s1 + $0xa64] sm:$0xff]
    %v431 = vld [vmem:[%s1 + $0xa6c] sm:$0xff]
    %v432 = vld [vmem:[%s1 + $0xa74] sm:$0xff]
    %v433 = vld [vmem:[%s1 + $0xa7c] sm:$0xf]
    %v434 = vld [vmem:[%s1 + $0xa80] sm:$0xff]
    %v435 = vld [vmem:[%s1 + $0xa88] sm:$0xff]
    %v436 = vld [vmem:[%s1 + $0xa90] sm:$0xff]
    %v437 = vld [vmem:[%s1 + $0xa98] sm:$0xf]
    %v438 = vld [vmem:[%s1 + $0xa9c] sm:$0xff]
    %v439 = vld [vmem:[%s1 + $0xaa4] sm:$0xff]
    %v440 = vld [vmem:[%s1 + $0xaac] sm:$0xff]
    %v441 = vld [vmem:[%s1 + $0xab4] sm:$0xf]
    %v442 = vld [vmem:[%s1 + $0xab8] sm:$0xff]
    %v443 = vld [vmem:[%s1 + $0xac0] sm:$0xff]
    %v444 = vld [vmem:[%s1 + $0xac8] sm:$0xff]
    %v445 = vld [vmem:[%s1 + $0xad0] sm:$0xf]
    %v446 = vld [vmem:[%s1 + $0xad4] sm:$0xff]
    %v447 = vld [vmem:[%s1 + $0xadc] sm:$0xff]
    %v448 = vld [vmem:[%s1 + $0xae4] sm:$0xff]
    %v449 = vld [vmem:[%s1 + $0xaec] sm:$0xf]
    %v450 = vld [vmem:[%s1 + $0xaf0] sm:$0xff]
    %v451 = vld [vmem:[%s1 + $0xaf8] sm:$0xff]
    %v452 = vld [vmem:[%s1 + $0xb00] sm:$0xff]
    %v453 = vld [vmem:[%s1 + $0xb08] sm:$0xf]
    %v454 = vld [vmem:[%s1 + $0xb0c] sm:$0xff]
    %v455 = vld [vmem:[%s1 + $0xb14] sm:$0xff]
    %v456 = vld [vmem:[%s1 + $0xb1c] sm:$0xff]
    %v457 = vld [vmem:[%s1 + $0xb24] sm:$0xf]
    %v458 = vld [vmem:[%s1 + $0xb28] sm:$0xff]
    %v459 = vld [vmem:[%s1 + $0xb30] sm:$0xff]
    %v460 = vld [vmem:[%s1 + $0xb38] sm:$0xff]
    %v461 = vld [vmem:[%s1 + $0xb40] sm:$0xf]
    %v462 = vld [vmem:[%s1 + $0xb44] sm:$0xff]
    %v463 = vld [vmem:[%s1 + $0xb4c] sm:$0xff]
    %v464 = vld [vmem:[%s1 + $0xb54] sm:$0xff]
    %v465 = vld [vmem:[%s1 + $0xb5c] sm:$0xf]
    %v466 = vld [vmem:[%s1 + $0xb60] sm:$0xff]
    %v467 = vld [vmem:[%s1 + $0xb68] sm:$0xff]
    %v468 = vld [vmem:[%s1 + $0xb70] sm:$0xff]
    %v469 = vld [vmem:[%s1 + $0xb78] sm:$0xf]
    %v470 = vld [vmem:[%s1 + $0xb7c] sm:$0xff]
    %v471 = vld [vmem:[%s1 + $0xb84] sm:$0xff]
    %v472 = vld [vmem:[%s1 + $0xb8c] sm:$0xff]
    %v473 = vld [vmem:[%s1 + $0xb94] sm:$0xf]
    %v474 = vld [vmem:[%s1 + $0xb98] sm:$0xff]
    %v475 = vld [vmem:[%s1 + $0xba0] sm:$0xff]
    %v476 = vld [vmem:[%s1 + $0xba8] sm:$0xff]
    %v477 = vld [vmem:[%s1 + $0xbb0] sm:$0xf]
    %v478 = vld [vmem:[%s1 + $0xbb4] sm:$0xff]
    %v479 = vld [vmem:[%s1 + $0xbbc] sm:$0xff]
    %v480 = vld [vmem:[%s1 + $0xbc4] sm:$0xff]
    %v481 = vld [vmem:[%s1 + $0xbcc] sm:$0xf]
    %v482 = vld [vmem:[%s1 + $0xbd0] sm:$0xff]
    %v483 = vld [vmem:[%s1 + $0xbd8] sm:$0xff]
    %v484 = vld [vmem:[%s1 + $0xbe0] sm:$0xff]
    %v485 = vld [vmem:[%s1 + $0xbe8] sm:$0xf]
    %v486 = vld [vmem:[%s1 + $0xbec] sm:$0xff]
    %v487 = vld [vmem:[%s1 + $0xbf4] sm:$0xff]
    %v488 = vld [vmem:[%s1 + $0xbfc] sm:$0xff]
    %v489 = vld [vmem:[%s1 + $0xc04] sm:$0xf]
    %v490 = vld [vmem:[%s1 + $0xc08] sm:$0xff]
    %v491 = vld [vmem:[%s1 + $0xc10] sm:$0xff]
    %v492 = vld [vmem:[%s1 + $0xc18] sm:$0xff]
    %v493 = vld [vmem:[%s1 + $0xc20] sm:$0xf]
    %v494 = vld [vmem:[%s1 + $0xc24] sm:$0xff]
    %v495 = vld [vmem:[%s1 + $0xc2c] sm:$0xff]
    %v496 = vld [vmem:[%s1 + $0xc34] sm:$0xff]
    %v497 = vld [vmem:[%s1 + $0xc3c] sm:$0xf]
    %v498 = vld [vmem:[%s1 + $0xc40] sm:$0xff]
    %v499 = vld [vmem:[%s1 + $0xc48] sm:$0xff]
    %v500 = vld [vmem:[%s1 + $0xc50] sm:$0xff]
    %v501 = vld [vmem:[%s1 + $0xc58] sm:$0xf]
    %v502 = vld [vmem:[%s1 + $0xc5c] sm:$0xff]
    %v503 = vld [vmem:[%s1 + $0xc64] sm:$0xff]
    %v504 = vld [vmem:[%s1 + $0xc6c] sm:$0xff]
    %v505 = vld [vmem:[%s1 + $0xc74] sm:$0xf]
    %v506 = vld [vmem:[%s1 + $0xc78] sm:$0xff]
    %v507 = vld [vmem:[%s1 + $0xc80] sm:$0xff]
    %v508 = vld [vmem:[%s1 + $0xc88] sm:$0xff]
    %v509 = vld [vmem:[%s1 + $0xc90] sm:$0xf]
    %v510 = vld [vmem:[%s1 + $0xc94] sm:$0xff]
    %v511 = vld [vmem:[%s1 + $0xc9c] sm:$0xff]
    %v512 = vld [vmem:[%s1 + $0xca4] sm:$0xff]
    %v513 = vld [vmem:[%s1 + $0xcac] sm:$0xf]
    %v514 = vld [vmem:[%s1 + $0xcb0] sm:$0xff]
    %v515 = vld [vmem:[%s1 + $0xcb8] sm:$0xff]
    %v516 = vld [vmem:[%s1 + $0xcc0] sm:$0xff]
    %v517 = vld [vmem:[%s1 + $0xcc8] sm:$0xf]
    %v518 = vld [vmem:[%s1 + $0xccc] sm:$0xff]
    %v519 = vld [vmem:[%s1 + $0xcd4] sm:$0xff]
    %v520 = vld [vmem:[%s1 + $0xcdc] sm:$0xff]
    %v521 = vld [vmem:[%s1 + $0xce4] sm:$0xf]
    %v522 = vld [vmem:[%s1 + $0xce8] sm:$0xff]
    %v523 = vld [vmem:[%s1 + $0xcf0] sm:$0xff]
    %v524 = vld [vmem:[%s1 + $0xcf8] sm:$0xff]
    %v525 = vld [vmem:[%s1 + $0xd00] sm:$0xf]
    %v526 = vld [vmem:[%s1 + $0xd04] sm:$0xff]
    %v527 = vld [vmem:[%s1 + $0xd0c] sm:$0xff]
    %v528 = vld [vmem:[%s1 + $0xd14] sm:$0xff]
    %v529 = vld [vmem:[%s1 + $0xd1c] sm:$0xf]
    %v530 = vld [vmem:[%s1 + $0xd20] sm:$0xff]
    %v531 = vld [vmem:[%s1 + $0xd28] sm:$0xff]
    %v532 = vld [vmem:[%s1 + $0xd30] sm:$0xff]
    %v533 = vld [vmem:[%s1 + $0xd38] sm:$0xf]
    %v534 = vld [vmem:[%s1 + $0xd3c] sm:$0xff]
    %v535 = vld [vmem:[%s1 + $0xd44] sm:$0xff]
    %v536 = vld [vmem:[%s1 + $0xd4c] sm:$0xff]
    %v537 = vld [vmem:[%s1 + $0xd54] sm:$0xf]
    %v538 = vld [vmem:[%s1 + $0xd58] sm:$0xff]
    %v539 = vld [vmem:[%s1 + $0xd60] sm:$0xff]
    %v540 = vld [vmem:[%s1 + $0xd68] sm:$0xff]
    %v541 = vld [vmem:[%s1 + $0xd70] sm:$0xf]
    %v542 = vld [vmem:[%s1 + $0xd74] sm:$0xff]
    %v543 = vld [vmem:[%s1 + $0xd7c] sm:$0xff]
    %v544 = vld [vmem:[%s1 + $0xd84] sm:$0xff]
    %v545 = vld [vmem:[%s1 + $0xd8c] sm:$0xf]
    %v546 = vld [vmem:[%s1 + $0xd90] sm:$0xff]
    %v547 = vld [vmem:[%s1 + $0xd98] sm:$0xff]
    %v548 = vld [vmem:[%s1 + $0xda0] sm:$0xff]
    %v549 = vld [vmem:[%s1 + $0xda8] sm:$0xf]
    %v550 = vld [vmem:[%s1 + $0xdac] sm:$0xff]
    %v551 = vld [vmem:[%s1 + $0xdb4] sm:$0xff]
    %v552 = vld [vmem:[%s1 + $0xdbc] sm:$0xff]
    %v553 = vld [vmem:[%s1 + $0xdc4] sm:$0xf]
    %v554 = vld [vmem:[%s1 + $0xdc8] sm:$0xff]
    %v555 = vld [vmem:[%s1 + $0xdd0] sm:$0xff]
    %v556 = vld [vmem:[%s1 + $0xdd8] sm:$0xff]
    %v557 = vld [vmem:[%s1 + $0xde0] sm:$0xf]
    %v558 = vld [vmem:[%s1 + $0xde4] sm:$0xff]
    %v559 = vld [vmem:[%s1 + $0xdec] sm:$0xff]
    %v560 = vld [vmem:[%s1 + $0xdf4] sm:$0xff]
    %v561 = vld [vmem:[%s1 + $0xdfc] sm:$0xf]
    %v562 = vld [vmem:[%s1 + $0xe00] sm:$0xff]
    %v563 = vld [vmem:[%s1 + $0xe08] sm:$0xff]
    %v564 = vld [vmem:[%s1 + $0xe10] sm:$0xff]
    %v565 = vld [vmem:[%s1 + $0xe18] sm:$0xf]
    %v566 = vld [vmem:[%s1 + $0xe1c] sm:$0xff]
    %v567 = vld [vmem:[%s1 + $0xe24] sm:$0xff]
    %v568 = vld [vmem:[%s1 + $0xe2c] sm:$0xff]
    %v569 = vld [vmem:[%s1 + $0xe34] sm:$0xf]
    %v570 = vld [vmem:[%s1 + $0xe38] sm:$0xff]
    %v571 = vld [vmem:[%s1 + $0xe40] sm:$0xff]
    %v572 = vld [vmem:[%s1 + $0xe48] sm:$0xff]
    %v573 = vld [vmem:[%s1 + $0xe50] sm:$0xf]
    %v574 = vld [vmem:[%s1 + $0xe54] sm:$0xff]
    %v575 = vld [vmem:[%s1 + $0xe5c] sm:$0xff]
    %v576 = vld [vmem:[%s1 + $0xe64] sm:$0xff]
    %v577 = vld [vmem:[%s1 + $0xe6c] sm:$0xf]
    %v578 = vld [vmem:[%s1 + $0xe70] sm:$0xff]
    %v579 = vld [vmem:[%s1 + $0xe78] sm:$0xff]
    %v580 = vld [vmem:[%s1 + $0xe80] sm:$0xff]
    %v581 = vld [vmem:[%s1 + $0xe88] sm:$0xf]
    %v582 = vld [vmem:[%s1 + $0xe8c] sm:$0xff]
    %v583 = vld [vmem:[%s1 + $0xe94] sm:$0xff]
    %v584 = vld [vmem:[%s1 + $0xe9c] sm:$0xff]
    %v585 = vld [vmem:[%s1 + $0xea4] sm:$0xf]
    %v586 = vld [vmem:[%s1 + $0xea8] sm:$0xff]
    %v587 = vld [vmem:[%s1 + $0xeb0] sm:$0xff]
    %v588 = vld [vmem:[%s1 + $0xeb8] sm:$0xff]
    %v589 = vld [vmem:[%s1 + $0xec0] sm:$0xf]
    %v590 = vld [vmem:[%s1 + $0xec4] sm:$0xff]
    %v591 = vld [vmem:[%s1 + $0xecc] sm:$0xff]
    %v592 = vld [vmem:[%s1 + $0xed4] sm:$0xff]
    %v593 = vld [vmem:[%s1 + $0xedc] sm:$0xf]
    %v594 = vld [vmem:[%s1 + $0xee0] sm:$0xff]
    %v595 = vld [vmem:[%s1 + $0xee8] sm:$0xff]
    %v596 = vld [vmem:[%s1 + $0xef0] sm:$0xff]
    %v597 = vld [vmem:[%s1 + $0xef8] sm:$0xf]
    %v598 = vld [vmem:[%s1 + $0xefc] sm:$0xff]
    %v599 = vld [vmem:[%s1 + $0xf04] sm:$0xff]
    %v600 = vld [vmem:[%s1 + $0xf0c] sm:$0xff]
    %v601 = vld [vmem:[%s1 + $0xf14] sm:$0xf]
    %v602 = vld [vmem:[%s1 + $0xf18] sm:$0xff]
    %v603 = vld [vmem:[%s1 + $0xf20] sm:$0xff]
    %v604 = vld [vmem:[%s1 + $0xf28] sm:$0xff]
    %v605 = vld [vmem:[%s1 + $0xf30] sm:$0xf]
    %v606 = vld [vmem:[%s1 + $0xf34] sm:$0xff]
    %v607 = vld [vmem:[%s1 + $0xf3c] sm:$0xff]
    %v608 = vld [vmem:[%s1 + $0xf44] sm:$0xff]
    %v609 = vld [vmem:[%s1 + $0xf4c] sm:$0xf]
    %v610 = vld [vmem:[%s1 + $0xf50] sm:$0xff]
    %v611 = vld [vmem:[%s1 + $0xf58] sm:$0xff]
    %v612 = vld [vmem:[%s1 + $0xf60] sm:$0xff]
    %v613 = vld [vmem:[%s1 + $0xf68] sm:$0xf]
    %v614 = vld [vmem:[%s1 + $0xf6c] sm:$0xff]
    %v615 = vld [vmem:[%s1 + $0xf74] sm:$0xff]
    %v616 = vld [vmem:[%s1 + $0xf7c] sm:$0xff]
    %v617 = vld [vmem:[%s1 + $0xf84] sm:$0xf]
    %v618 = vld [vmem:[%s1 + $0xf88] sm:$0xff]
    %v619 = vld [vmem:[%s1 + $0xf90] sm:$0xff]
    %v620 = vld [vmem:[%s1 + $0xf98] sm:$0xff]
    %v621 = vld [vmem:[%s1 + $0xfa0] sm:$0xf]
    %v622 = vld [vmem:[%s1 + $0xfa4] sm:$0xff]
    %v623 = vld [vmem:[%s1 + $0xfac] sm:$0xff]
    %v624 = vld [vmem:[%s1 + $0xfb4] sm:$0xff]
    %v625 = vld [vmem:[%s1 + $0xfbc] sm:$0xf]
    %v626 = vld [vmem:[%s1 + $0xfc0] sm:$0xff]
    %v627 = vld [vmem:[%s1 + $0xfc8] sm:$0xff]
    %v628 = vld [vmem:[%s1 + $0xfd0] sm:$0xff]
    %v629 = vld [vmem:[%s1 + $0xfd8] sm:$0xf]
    %v630 = vld [vmem:[%s1 + $0xfdc] sm:$0xff]
    %v631 = vld [vmem:[%s1 + $0xfe4] sm:$0xff]
    %v632 = vld [vmem:[%s1 + $0xfec] sm:$0xff]
    %v633 = vld [vmem:[%s1 + $0xff4] sm:$0xf]
    %v634 = vld [vmem:[%s1 + $0xff8] sm:$0xff]
    %v635 = vld [vmem:[%s1 + $0x1000] sm:$0xff]
    %v636 = vld [vmem:[%s1 + $0x1008] sm:$0xff]
    %v637 = vld [vmem:[%s1 + $0x1010] sm:$0xf]
    %v638 = vld [vmem:[%s1 + $0x1014] sm:$0xff]
    %v639 = vld [vmem:[%s1 + $0x101c] sm:$0xff]
    %v640 = vld [vmem:[%s1 + $0x1024] sm:$0xff]
    %v641 = vld [vmem:[%s1 + $0x102c] sm:$0xf]
    %v642 = vld [vmem:[%s1 + $0x1030] sm:$0xff]
    %v643 = vld [vmem:[%s1 + $0x1038] sm:$0xff]
    %v644 = vld [vmem:[%s1 + $0x1040] sm:$0xff]
    %v645 = vld [vmem:[%s1 + $0x1048] sm:$0xf]
    %v646 = vld [vmem:[%s1 + $0x104c] sm:$0xff]
    %v647 = vld [vmem:[%s1 + $0x1054] sm:$0xff]
    %v648 = vld [vmem:[%s1 + $0x105c] sm:$0xff]
    %v649 = vld [vmem:[%s1 + $0x1064] sm:$0xf]
    %v650 = vld [vmem:[%s1 + $0x1068] sm:$0xff]
    %v651 = vld [vmem:[%s1 + $0x1070] sm:$0xff]
    %v652 = vld [vmem:[%s1 + $0x1078] sm:$0xff]
    %v653 = vld [vmem:[%s1 + $0x1080] sm:$0xf]
    %v654 = vld [vmem:[%s1 + $0x1084] sm:$0xff]
    %v655 = vld [vmem:[%s1 + $0x108c] sm:$0xff]
    %v656 = vld [vmem:[%s1 + $0x1094] sm:$0xff]
    %v657 = vld [vmem:[%s1 + $0x109c] sm:$0xf]
    %v658 = vld [vmem:[%s1 + $0x10a0] sm:$0xff]
    %v659 = vld [vmem:[%s1 + $0x10a8] sm:$0xff]
    %v660 = vld [vmem:[%s1 + $0x10b0] sm:$0xff]
    %v661 = vld [vmem:[%s1 + $0x10b8] sm:$0xf]
    %v662 = vld [vmem:[%s1 + $0x10bc] sm:$0xff]
    %v663 = vld [vmem:[%s1 + $0x10c4] sm:$0xff]
    %v664 = vld [vmem:[%s1 + $0x10cc] sm:$0xff]
    %v665 = vld [vmem:[%s1 + $0x10d4] sm:$0xf]
    %v666 = vld [vmem:[%s1 + $0x10d8] sm:$0xff]
    %v667 = vld [vmem:[%s1 + $0x10e0] sm:$0xff]
    %v668 = vld [vmem:[%s1 + $0x10e8] sm:$0xff]
    %v669 = vld [vmem:[%s1 + $0x10f0] sm:$0xf]
    %v670 = vld [vmem:[%s1 + $0x10f4] sm:$0xff]
    %v671 = vld [vmem:[%s1 + $0x10fc] sm:$0xff]
    %v672 = vld [vmem:[%s1 + $0x1104] sm:$0xff]
    %v673 = vld [vmem:[%s1 + $0x110c] sm:$0xf]
    %v674 = vld [vmem:[%s1 + $0x1110] sm:$0xff]
    %v675 = vld [vmem:[%s1 + $0x1118] sm:$0xff]
    %v676 = vld [vmem:[%s1 + $0x1120] sm:$0xff]
    %v677 = vld [vmem:[%s1 + $0x1128] sm:$0xf]
    %v678 = vld [vmem:[%s1 + $0x112c] sm:$0xff]
    %v679 = vld [vmem:[%s1 + $0x1134] sm:$0xff]
    %v680 = vld [vmem:[%s1 + $0x113c] sm:$0xff]
    %v681 = vld [vmem:[%s1 + $0x1144] sm:$0xf]
    %v682 = vld [vmem:[%s1 + $0x1148] sm:$0xff]
    %v683 = vld [vmem:[%s1 + $0x1150] sm:$0xff]
    %v684 = vld [vmem:[%s1 + $0x1158] sm:$0xff]
    %v685 = vld [vmem:[%s1 + $0x1160] sm:$0xf]
    %v686 = vld [vmem:[%s1 + $0x1164] sm:$0xff]
    %v687 = vld [vmem:[%s1 + $0x116c] sm:$0xff]
    %v688 = vld [vmem:[%s1 + $0x1174] sm:$0xff]
    %v689 = vld [vmem:[%s1 + $0x117c] sm:$0xf]
    %v690 = vld [vmem:[%s1 + $0x1180] sm:$0xff]
    %v691 = vld [vmem:[%s1 + $0x1188] sm:$0xff]
    %v692 = vld [vmem:[%s1 + $0x1190] sm:$0xff]
    %v693 = vld [vmem:[%s1 + $0x1198] sm:$0xf]
    %v694 = vld [vmem:[%s1 + $0x119c] sm:$0xff]
    %v695 = vld [vmem:[%s1 + $0x11a4] sm:$0xff]
    %v696 = vld [vmem:[%s1 + $0x11ac] sm:$0xff]
    %v697 = vld [vmem:[%s1 + $0x11b4] sm:$0xf]
    %v698 = vld [vmem:[%s1 + $0x11b8] sm:$0xff]
    %v699 = vld [vmem:[%s1 + $0x11c0] sm:$0xff]
    %v700 = vld [vmem:[%s1 + $0x11c8] sm:$0xff]
    %v701 = vld [vmem:[%s1 + $0x11d0] sm:$0xf]
    %v702 = vld [vmem:[%s1 + $0x11d4] sm:$0xff]
    %v703 = vld [vmem:[%s1 + $0x11dc] sm:$0xff]
    %v704 = vld [vmem:[%s1 + $0x11e4] sm:$0xff]
    %v705 = vld [vmem:[%s1 + $0x11ec] sm:$0xf]
    %v706 = vld [vmem:[%s1 + $0x11f0] sm:$0xff]
    %v707 = vld [vmem:[%s1 + $0x11f8] sm:$0xff]
    %v708 = vld [vmem:[%s1 + $0x1200] sm:$0xff]
    %v709 = vld [vmem:[%s1 + $0x1208] sm:$0xf]
    %v710 = vld [vmem:[%s1 + $0x120c] sm:$0xff]
    %v711 = vld [vmem:[%s1 + $0x1214] sm:$0xff]
    %v712 = vld [vmem:[%s1 + $0x121c] sm:$0xff]
    %v713 = vld [vmem:[%s1 + $0x1224] sm:$0xf]
    %v714 = vld [vmem:[%s1 + $0x1228] sm:$0xff]
    %v715 = vld [vmem:[%s1 + $0x1230] sm:$0xff]
    %v716 = vld [vmem:[%s1 + $0x1238] sm:$0xff]
    %v717 = vld [vmem:[%s1 + $0x1240] sm:$0xf]
    %v718 = vld [vmem:[%s1 + $0x1244] sm:$0xff]
    %v719 = vld [vmem:[%s1 + $0x124c] sm:$0xff]
    %v720 = vld [vmem:[%s1 + $0x1254] sm:$0xff]
    %v721 = vld [vmem:[%s1 + $0x125c] sm:$0xf]
    %v722 = vld [vmem:[%s1 + $0x1260] sm:$0xff]
    %v723 = vld [vmem:[%s1 + $0x1268] sm:$0xff]
    %v724 = vld [vmem:[%s1 + $0x1270] sm:$0xff]
    %v725 = vld [vmem:[%s1 + $0x1278] sm:$0xf]
    %v726 = vld [vmem:[%s1 + $0x127c] sm:$0xff]
    %v727 = vld [vmem:[%s1 + $0x1284] sm:$0xff]
    %v728 = vld [vmem:[%s1 + $0x128c] sm:$0xff]
    %v729 = vld [vmem:[%s1 + $0x1294] sm:$0xf]
    %v730 = vld [vmem:[%s1 + $0x1298] sm:$0xff]
    %v731 = vld [vmem:[%s1 + $0x12a0] sm:$0xff]
    %v732 = vld [vmem:[%s1 + $0x12a8] sm:$0xff]
    %v733 = vld [vmem:[%s1 + $0x12b0] sm:$0xf]
    %v734 = vld [vmem:[%s1 + $0x12b4] sm:$0xff]
    %v735 = vld [vmem:[%s1 + $0x12bc] sm:$0xff]
    %v736 = vld [vmem:[%s1 + $0x12c4] sm:$0xff]
    %v737 = vld [vmem:[%s1 + $0x12cc] sm:$0xf]
    %v738 = vld [vmem:[%s1 + $0x12d0] sm:$0xff]
    %v739 = vld [vmem:[%s1 + $0x12d8] sm:$0xff]
    %v740 = vld [vmem:[%s1 + $0x12e0] sm:$0xff]
    %v741 = vld [vmem:[%s1 + $0x12e8] sm:$0xf]
    %v742 = vld [vmem:[%s1 + $0x12ec] sm:$0xff]
    %v743 = vld [vmem:[%s1 + $0x12f4] sm:$0xff]
    %v744 = vld [vmem:[%s1 + $0x12fc] sm:$0xff]
    %v745 = vld [vmem:[%s1 + $0x1304] sm:$0xf]
    %v746 = vld [vmem:[%s1 + $0x1308] sm:$0xff]
    %v747 = vld [vmem:[%s1 + $0x1310] sm:$0xff]
    %v748 = vld [vmem:[%s1 + $0x1318] sm:$0xff]
    %v749 = vld [vmem:[%s1 + $0x1320] sm:$0xf]
    %v750 = vld [vmem:[%s1 + $0x1324] sm:$0xff]
    %v751 = vld [vmem:[%s1 + $0x132c] sm:$0xff]
    %v752 = vld [vmem:[%s1 + $0x1334] sm:$0xff]
    %v753 = vld [vmem:[%s1 + $0x133c] sm:$0xf]
    %v754 = vld [vmem:[%s1 + $0x1340] sm:$0xff]
    %v755 = vld [vmem:[%s1 + $0x1348] sm:$0xff]
    %v756 = vld [vmem:[%s1 + $0x1350] sm:$0xff]
    %v757 = vld [vmem:[%s1 + $0x1358] sm:$0xf]
    %v758 = vld [vmem:[%s1 + $0x135c] sm:$0xff]
    %v759 = vld [vmem:[%s1 + $0x1364] sm:$0xff]
    %v760 = vld [vmem:[%s1 + $0x136c] sm:$0xff]
    %v761 = vld [vmem:[%s1 + $0x1374] sm:$0xf]
    %v762 = vld [vmem:[%s1 + $0x1378] sm:$0xff]
    %v763 = vld [vmem:[%s1 + $0x1380] sm:$0xff]
    %v764 = vld [vmem:[%s1 + $0x1388] sm:$0xff]
    %v765 = vld [vmem:[%s1 + $0x1390] sm:$0xf]
    %v766 = vld [vmem:[%s1 + $0x1394] sm:$0xff]
    %v767 = vld [vmem:[%s1 + $0x139c] sm:$0xff]
    %v768 = vld [vmem:[%s1 + $0x13a4] sm:$0xff]
    %v769 = vld [vmem:[%s1 + $0x13ac] sm:$0xf]
    %v770 = vld [vmem:[%s1 + $0x13b0] sm:$0xff]
    %v771 = vld [vmem:[%s1 + $0x13b8] sm:$0xff]
    %v772 = vld [vmem:[%s1 + $0x13c0] sm:$0xff]
    %v773 = vld [vmem:[%s1 + $0x13c8] sm:$0xf]
    %v774 = vld [vmem:[%s1 + $0x13cc] sm:$0xff]
    %v775 = vld [vmem:[%s1 + $0x13d4] sm:$0xff]
    %v776 = vld [vmem:[%s1 + $0x13dc] sm:$0xff]
    %v777 = vld [vmem:[%s1 + $0x13e4] sm:$0xf]
    %v778 = vld [vmem:[%s1 + $0x13e8] sm:$0xff]
    %v779 = vld [vmem:[%s1 + $0x13f0] sm:$0xff]
    %v780 = vld [vmem:[%s1 + $0x13f8] sm:$0xff]
    %v781 = vld [vmem:[%s1 + $0x1400] sm:$0xf]
    %v782 = vld [vmem:[%s1 + $0x1404] sm:$0xff]
    %v783 = vld [vmem:[%s1 + $0x140c] sm:$0xff]
    %v784 = vld [vmem:[%s1 + $0x1414] sm:$0xff]
    %v785 = vld [vmem:[%s1 + $0x141c] sm:$0xf]
    %v786 = vld [vmem:[%s1 + $0x1420] sm:$0xff]
    %v787 = vld [vmem:[%s1 + $0x1428] sm:$0xff]
    %v788 = vld [vmem:[%s1 + $0x1430] sm:$0xff]
    %v789 = vld [vmem:[%s1 + $0x1438] sm:$0xf]
    %v790 = vld [vmem:[%s1 + $0x143c] sm:$0xff]
    %v791 = vld [vmem:[%s1 + $0x1444] sm:$0xff]
    %v792 = vld [vmem:[%s1 + $0x144c] sm:$0xff]
    %v793 = vld [vmem:[%s1 + $0x1454] sm:$0xf]
    %v794 = vld [vmem:[%s1 + $0x1458] sm:$0xff]
    %v795 = vld [vmem:[%s1 + $0x1460] sm:$0xff]
    %v796 = vld [vmem:[%s1 + $0x1468] sm:$0xff]
    %v797 = vld [vmem:[%s1 + $0x1470] sm:$0xf]
    %v798 = vld [vmem:[%s1 + $0x1474] sm:$0xff]
    %v799 = vld [vmem:[%s1 + $0x147c] sm:$0xff]
    %v800 = vld [vmem:[%s1 + $0x1484] sm:$0xff]
    %v801 = vld [vmem:[%s1 + $0x148c] sm:$0xf]
    %v802 = vld [vmem:[%s1 + $0x1490] sm:$0xff]
    %v803 = vld [vmem:[%s1 + $0x1498] sm:$0xff]
    %v804 = vld [vmem:[%s1 + $0x14a0] sm:$0xff]
    %v805 = vld [vmem:[%s1 + $0x14a8] sm:$0xf]
    %v806 = vld [vmem:[%s1 + $0x14ac] sm:$0xff]
    %v807 = vld [vmem:[%s1 + $0x14b4] sm:$0xff]
    %v808 = vld [vmem:[%s1 + $0x14bc] sm:$0xff]
    %v809 = vld [vmem:[%s1 + $0x14c4] sm:$0xf]
    %v810 = vld [vmem:[%s1 + $0x14c8] sm:$0xff]
    %v811 = vld [vmem:[%s1 + $0x14d0] sm:$0xff]
    %v812 = vld [vmem:[%s1 + $0x14d8] sm:$0xff]
    %v813 = vld [vmem:[%s1 + $0x14e0] sm:$0xf]
    %v814 = vld [vmem:[%s1 + $0x14e4] sm:$0xff]
    %v815 = vld [vmem:[%s1 + $0x14ec] sm:$0xff]
    %v816 = vld [vmem:[%s1 + $0x14f4] sm:$0xff]
    %v817 = vld [vmem:[%s1 + $0x14fc] sm:$0xf]
    %v818 = vld [vmem:[%s1 + $0x1500] sm:$0xff]
    %v819 = vld [vmem:[%s1 + $0x1508] sm:$0xff]
    %v820 = vld [vmem:[%s1 + $0x1510] sm:$0xff]
    %v821 = vld [vmem:[%s1 + $0x1518] sm:$0xf]
    %v822 = vld [vmem:[%s1 + $0x151c] sm:$0xff]
    %v823 = vld [vmem:[%s1 + $0x1524] sm:$0xff]
    %v824 = vld [vmem:[%s1 + $0x152c] sm:$0xff]
    %v825 = vld [vmem:[%s1 + $0x1534] sm:$0xf]
    %v826 = vld [vmem:[%s1 + $0x1538] sm:$0xff]
    %v827 = vld [vmem:[%s1 + $0x1540] sm:$0xff]
    %v828 = vld [vmem:[%s1 + $0x1548] sm:$0xff]
    %v829 = vld [vmem:[%s1 + $0x1550] sm:$0xf]
    %v830 = vld [vmem:[%s1 + $0x1554] sm:$0xff]
    %v831 = vld [vmem:[%s1 + $0x155c] sm:$0xff]
    %v832 = vld [vmem:[%s1 + $0x1564] sm:$0xff]
    %v833 = vld [vmem:[%s1 + $0x156c] sm:$0xf]
    %v834 = vld [vmem:[%s1 + $0x1570] sm:$0xff]
    %v835 = vld [vmem:[%s1 + $0x1578] sm:$0xff]
    %v836 = vld [vmem:[%s1 + $0x1580] sm:$0xff]
    %v837 = vld [vmem:[%s1 + $0x1588] sm:$0xf]
    %v838 = vld [vmem:[%s1 + $0x158c] sm:$0xff]
    %v839 = vld [vmem:[%s1 + $0x1594] sm:$0xff]
    %v840 = vld [vmem:[%s1 + $0x159c] sm:$0xff]
    %v841 = vld [vmem:[%s1 + $0x15a4] sm:$0xf]
    %v842 = vld [vmem:[%s1 + $0x15a8] sm:$0xff]
    %v843 = vld [vmem:[%s1 + $0x15b0] sm:$0xff]
    %v844 = vld [vmem:[%s1 + $0x15b8] sm:$0xff]
    %v845 = vld [vmem:[%s1 + $0x15c0] sm:$0xf]
    %v846 = vld [vmem:[%s1 + $0x15c4] sm:$0xff]
    %v847 = vld [vmem:[%s1 + $0x15cc] sm:$0xff]
    %v848 = vld [vmem:[%s1 + $0x15d4] sm:$0xff]
    %v849 = vld [vmem:[%s1 + $0x15dc] sm:$0xf]
    %v850 = vld [vmem:[%s2] sm:$0x7f]
    %v852 = vlaneseq
    %v853 = vshrl.u32 %v852, 7
    %v854 = vsub.s32 0, %v853
    %v855 = vrot.slane %v850, %v854
    %v856 = vlaneseq
    %v857 = vshrl.u32 %v856, 7
    %v858 = vsub.s32 1, %v857
    %v859 = vrot.slane %v850, %v858
    %v860 = vlaneseq
    %v861 = vshrl.u32 %v860, 7
    %v862 = vsub.s32 2, %v861
    %v863 = vrot.slane %v850, %v862
    %v864 = vlaneseq
    %v865 = vshrl.u32 %v864, 7
    %v866 = vsub.s32 3, %v865
    %v867 = vrot.slane %v850, %v866
    %v868 = vlaneseq
    %v869 = vshrl.u32 %v868, 7
    %v870 = vsub.s32 4, %v869
    %v871 = vrot.slane %v850, %v870
    %v872 = vlaneseq
    %v873 = vshrl.u32 %v872, 7
    %v874 = vsub.s32 5, %v873
    %v875 = vrot.slane %v850, %v874
    %v876 = vlaneseq
    %v877 = vshrl.u32 %v876, 7
    %v878 = vsub.s32 6, %v877
    %v879 = vrot.slane %v850, %v878
    %v901 = vunpack.c.l.b16 %v36
    %v902 = vunpack.c.h.b16 %v36
    %v903 = vunpack.c.l.b16 %v37
    %v904 = vunpack.c.h.b16 %v37
    %v905 = vunpack.c.l.b16 %v38
    %v906 = vunpack.c.h.b16 %v38
    %v907 = vunpack.c.l.b16 %v39
    %v908 = vunpack.c.h.b16 %v39
    %v909 = vunpack.c.l.b16 %v40
    %v910 = vunpack.c.h.b16 %v40
    %v911 = vunpack.c.l.b16 %v41
    %v912 = vunpack.c.h.b16 %v41
    %v913 = vunpack.c.l.b16 %v42
    %v914 = vunpack.c.l.b16 %v43
    %v915 = vunpack.c.h.b16 %v43
    %v916 = vunpack.c.l.b16 %v44
    %v917 = vunpack.c.h.b16 %v44
    %v918 = vunpack.c.l.b16 %v45
    %v919 = vunpack.c.h.b16 %v45
    %v920 = vunpack.c.l.b16 %v46
    %v921 = vunpack.c.h.b16 %v46
    %v922 = vunpack.c.l.b16 %v47
    %v923 = vunpack.c.h.b16 %v47
    %v924 = vunpack.c.l.b16 %v48
    %v925 = vunpack.c.h.b16 %v48
    %v926 = vunpack.c.l.b16 %v49
    %v927 = vpack.c.b16 %v914, %v901
    %v928 = vpack.c.b16 %v915, %v902
    %v929 = vpack.c.b16 %v916, %v903
    %v930 = vpack.c.b16 %v917, %v904
    %v931 = vpack.c.b16 %v918, %v905
    %v932 = vpack.c.b16 %v919, %v906
    %v933 = vpack.c.b16 %v920, %v907
    %v934 = vpack.c.b16 %v921, %v908
    %v935 = vpack.c.b16 %v922, %v909
    %v936 = vpack.c.b16 %v923, %v910
    %v937 = vpack.c.b16 %v924, %v911
    %v938 = vpack.c.b16 %v925, %v912
    %v939 = vpack.c.b16 %v926, %v913
    %v1752 = vunpack.c.l.b16 %v50
    %v1753 = vunpack.c.h.b16 %v50
    %v1754 = vunpack.c.l.b16 %v51
    %v1755 = vunpack.c.h.b16 %v51
    %v1756 = vunpack.c.l.b16 %v52
    %v1757 = vunpack.c.h.b16 %v52
    %v1758 = vunpack.c.l.b16 %v53
    %v1759 = vunpack.c.l.b16 %v54
    %v1760 = vunpack.c.h.b16 %v54
    %v1761 = vunpack.c.l.b16 %v55
    %v1762 = vunpack.c.h.b16 %v55
    %v1763 = vunpack.c.l.b16 %v56
    %v1764 = vunpack.c.h.b16 %v56
    %v1765 = vunpack.c.l.b16 %v57
    %v1766 = vunpack.c.l.b16 %v58
    %v1767 = vunpack.c.h.b16 %v58
    %v1768 = vunpack.c.l.b16 %v59
    %v1769 = vunpack.c.h.b16 %v59
    %v1770 = vunpack.c.l.b16 %v60
    %v1771 = vunpack.c.h.b16 %v60
    %v1772 = vunpack.c.l.b16 %v61
    %v1773 = vunpack.c.l.b16 %v62
    %v1774 = vunpack.c.h.b16 %v62
    %v1775 = vunpack.c.l.b16 %v63
    %v1776 = vunpack.c.h.b16 %v63
    %v1777 = vunpack.c.l.b16 %v64
    %v1778 = vunpack.c.h.b16 %v64
    %v1779 = vunpack.c.l.b16 %v65
    %v1780 = vunpack.c.l.b16 %v66
    %v1781 = vunpack.c.h.b16 %v66
    %v1782 = vunpack.c.l.b16 %v67
    %v1783 = vunpack.c.h.b16 %v67
    %v1784 = vunpack.c.l.b16 %v68
    %v1785 = vunpack.c.h.b16 %v68
    %v1786 = vunpack.c.l.b16 %v69
    %v1787 = vunpack.c.l.b16 %v70
    %v1788 = vunpack.c.h.b16 %v70
    %v1789 = vunpack.c.l.b16 %v71
    %v1790 = vunpack.c.h.b16 %v71
    %v1791 = vunpack.c.l.b16 %v72
    %v1792 = vunpack.c.h.b16 %v72
    %v1793 = vunpack.c.l.b16 %v73
    %v1794 = vunpack.c.l.b16 %v74
    %v1795 = vunpack.c.h.b16 %v74
    %v1796 = vunpack.c.l.b16 %v75
    %v1797 = vunpack.c.h.b16 %v75
    %v1798 = vunpack.c.l.b16 %v76
    %v1799 = vunpack.c.h.b16 %v76
    %v1800 = vunpack.c.l.b16 %v77
    %v1801 = vunpack.c.l.b16 %v78
    %v1802 = vunpack.c.h.b16 %v78
    %v1803 = vunpack.c.l.b16 %v79
    %v1804 = vunpack.c.h.b16 %v79
    %v1805 = vunpack.c.l.b16 %v80
    %v1806 = vunpack.c.h.b16 %v80
    %v1807 = vunpack.c.l.b16 %v81
    %v1808 = vunpack.c.l.b16 %v82
    %v1809 = vunpack.c.h.b16 %v82
    %v1810 = vunpack.c.l.b16 %v83
    %v1811 = vunpack.c.h.b16 %v83
    %v1812 = vunpack.c.l.b16 %v84
    %v1813 = vunpack.c.h.b16 %v84
    %v1814 = vunpack.c.l.b16 %v85
    %v1815 = vunpack.c.l.b16 %v86
    %v1816 = vunpack.c.h.b16 %v86
    %v1817 = vunpack.c.l.b16 %v87
    %v1818 = vunpack.c.h.b16 %v87
    %v1819 = vunpack.c.l.b16 %v88
    %v1820 = vunpack.c.h.b16 %v88
    %v1821 = vunpack.c.l.b16 %v89
    %v1822 = vunpack.c.l.b16 %v90
    %v1823 = vunpack.c.h.b16 %v90
    %v1824 = vunpack.c.l.b16 %v91
    %v1825 = vunpack.c.h.b16 %v91
    %v1826 = vunpack.c.l.b16 %v92
    %v1827 = vunpack.c.h.b16 %v92
    %v1828 = vunpack.c.l.b16 %v93
    %v1829 = vunpack.c.l.b16 %v94
    %v1830 = vunpack.c.h.b16 %v94
    %v1831 = vunpack.c.l.b16 %v95
    %v1832 = vunpack.c.h.b16 %v95
    %v1833 = vunpack.c.l.b16 %v96
    %v1834 = vunpack.c.h.b16 %v96
    %v1835 = vunpack.c.l.b16 %v97
    %v1836 = vunpack.c.l.b16 %v98
    %v1837 = vunpack.c.h.b16 %v98
    %v1838 = vunpack.c.l.b16 %v99
    %v1839 = vunpack.c.h.b16 %v99
    %v1840 = vunpack.c.l.b16 %v100
    %v1841 = vunpack.c.h.b16 %v100
    %v1842 = vunpack.c.l.b16 %v101
    %v1843 = vunpack.c.l.b16 %v102
    %v1844 = vunpack.c.h.b16 %v102
    %v1845 = vunpack.c.l.b16 %v103
    %v1846 = vunpack.c.h.b16 %v103
    %v1847 = vunpack.c.l.b16 %v104
    %v1848 = vunpack.c.h.b16 %v104
    %v1849 = vunpack.c.l.b16 %v105
    %v1850 = vunpack.c.l.b16 %v106
    %v1851 = vunpack.c.h.b16 %v106
    %v1852 = vunpack.c.l.b16 %v107
    %v1853 = vunpack.c.h.b16 %v107
    %v1854 = vunpack.c.l.b16 %v108
    %v1855 = vunpack.c.h.b16 %v108
    %v1856 = vunpack.c.l.b16 %v109
    %v1857 = vunpack.c.l.b16 %v110
    %v1858 = vunpack.c.h.b16 %v110
    %v1859 = vunpack.c.l.b16 %v111
    %v1860 = vunpack.c.h.b16 %v111
    %v1861 = vunpack.c.l.b16 %v112
    %v1862 = vunpack.c.h.b16 %v112
    %v1863 = vunpack.c.l.b16 %v113
    %v1864 = vunpack.c.l.b16 %v114
    %v1865 = vunpack.c.h.b16 %v114
    %v1866 = vunpack.c.l.b16 %v115
    %v1867 = vunpack.c.h.b16 %v115
    %v1868 = vunpack.c.l.b16 %v116
    %v1869 = vunpack.c.h.b16 %v116
    %v1870 = vunpack.c.l.b16 %v117
    %v1871 = vunpack.c.l.b16 %v118
    %v1872 = vunpack.c.h.b16 %v118
    %v1873 = vunpack.c.l.b16 %v119
    %v1874 = vunpack.c.h.b16 %v119
    %v1875 = vunpack.c.l.b16 %v120
    %v1876 = vunpack.c.h.b16 %v120
    %v1877 = vunpack.c.l.b16 %v121
    %v1878 = vunpack.c.l.b16 %v122
    %v1879 = vunpack.c.h.b16 %v122
    %v1880 = vunpack.c.l.b16 %v123
    %v1881 = vunpack.c.h.b16 %v123
    %v1882 = vunpack.c.l.b16 %v124
    %v1883 = vunpack.c.h.b16 %v124
    %v1884 = vunpack.c.l.b16 %v125
    %v1885 = vunpack.c.l.b16 %v126
    %v1886 = vunpack.c.h.b16 %v126
    %v1887 = vunpack.c.l.b16 %v127
    %v1888 = vunpack.c.h.b16 %v127
    %v1889 = vunpack.c.l.b16 %v128
    %v1890 = vunpack.c.h.b16 %v128
    %v1891 = vunpack.c.l.b16 %v129
    %v1892 = vunpack.c.l.b16 %v130
    %v1893 = vunpack.c.h.b16 %v130
    %v1894 = vunpack.c.l.b16 %v131
    %v1895 = vunpack.c.h.b16 %v131
    %v1896 = vunpack.c.l.b16 %v132
    %v1897 = vunpack.c.h.b16 %v132
    %v1898 = vunpack.c.l.b16 %v133
    %v1899 = vunpack.c.l.b16 %v134
    %v1900 = vunpack.c.h.b16 %v134
    %v1901 = vunpack.c.l.b16 %v135
    %v1902 = vunpack.c.h.b16 %v135
    %v1903 = vunpack.c.l.b16 %v136
    %v1904 = vunpack.c.h.b16 %v136
    %v1905 = vunpack.c.l.b16 %v137
    %v1906 = vunpack.c.l.b16 %v138
    %v1907 = vunpack.c.h.b16 %v138
    %v1908 = vunpack.c.l.b16 %v139
    %v1909 = vunpack.c.h.b16 %v139
    %v1910 = vunpack.c.l.b16 %v140
    %v1911 = vunpack.c.h.b16 %v140
    %v1912 = vunpack.c.l.b16 %v141
    %v1913 = vunpack.c.l.b16 %v142
    %v1914 = vunpack.c.h.b16 %v142
    %v1915 = vunpack.c.l.b16 %v143
    %v1916 = vunpack.c.h.b16 %v143
    %v1917 = vunpack.c.l.b16 %v144
    %v1918 = vunpack.c.h.b16 %v144
    %v1919 = vunpack.c.l.b16 %v145
    %v1920 = vunpack.c.l.b16 %v146
    %v1921 = vunpack.c.h.b16 %v146
    %v1922 = vunpack.c.l.b16 %v147
    %v1923 = vunpack.c.h.b16 %v147
    %v1924 = vunpack.c.l.b16 %v148
    %v1925 = vunpack.c.h.b16 %v148
    %v1926 = vunpack.c.l.b16 %v149
    %v1927 = vunpack.c.l.b16 %v150
    %v1928 = vunpack.c.h.b16 %v150
    %v1929 = vunpack.c.l.b16 %v151
    %v1930 = vunpack.c.h.b16 %v151
    %v1931 = vunpack.c.l.b16 %v152
    %v1932 = vunpack.c.h.b16 %v152
    %v1933 = vunpack.c.l.b16 %v153
    %v1934 = vunpack.c.l.b16 %v154
    %v1935 = vunpack.c.h.b16 %v154
    %v1936 = vunpack.c.l.b16 %v155
    %v1937 = vunpack.c.h.b16 %v155
    %v1938 = vunpack.c.l.b16 %v156
    %v1939 = vunpack.c.h.b16 %v156
    %v1940 = vunpack.c.l.b16 %v157
    %v1941 = vunpack.c.l.b16 %v158
    %v1942 = vunpack.c.h.b16 %v158
    %v1943 = vunpack.c.l.b16 %v159
    %v1944 = vunpack.c.h.b16 %v159
    %v1945 = vunpack.c.l.b16 %v160
    %v1946 = vunpack.c.h.b16 %v160
    %v1947 = vunpack.c.l.b16 %v161
    %v1948 = vunpack.c.l.b16 %v162
    %v1949 = vunpack.c.h.b16 %v162
    %v1950 = vunpack.c.l.b16 %v163
    %v1951 = vunpack.c.h.b16 %v163
    %v1952 = vunpack.c.l.b16 %v164
    %v1953 = vunpack.c.h.b16 %v164
    %v1954 = vunpack.c.l.b16 %v165
    %v1955 = vunpack.c.l.b16 %v166
    %v1956 = vunpack.c.h.b16 %v166
    %v1957 = vunpack.c.l.b16 %v167
    %v1958 = vunpack.c.h.b16 %v167
    %v1959 = vunpack.c.l.b16 %v168
    %v1960 = vunpack.c.h.b16 %v168
    %v1961 = vunpack.c.l.b16 %v169
    %v1962 = vunpack.c.l.b16 %v170
    %v1963 = vunpack.c.h.b16 %v170
    %v1964 = vunpack.c.l.b16 %v171
    %v1965 = vunpack.c.h.b16 %v171
    %v1966 = vunpack.c.l.b16 %v172
    %v1967 = vunpack.c.h.b16 %v172
    %v1968 = vunpack.c.l.b16 %v173
    %v1969 = vunpack.c.l.b16 %v174
    %v1970 = vunpack.c.h.b16 %v174
    %v1971 = vunpack.c.l.b16 %v175
    %v1972 = vunpack.c.h.b16 %v175
    %v1973 = vunpack.c.l.b16 %v176
    %v1974 = vunpack.c.h.b16 %v176
    %v1975 = vunpack.c.l.b16 %v177
    %v1976 = vunpack.c.l.b16 %v178
    %v1977 = vunpack.c.h.b16 %v178
    %v1978 = vunpack.c.l.b16 %v179
    %v1979 = vunpack.c.h.b16 %v179
    %v1980 = vunpack.c.l.b16 %v180
    %v1981 = vunpack.c.h.b16 %v180
    %v1982 = vunpack.c.l.b16 %v181
    %v1983 = vunpack.c.l.b16 %v182
    %v1984 = vunpack.c.h.b16 %v182
    %v1985 = vunpack.c.l.b16 %v183
    %v1986 = vunpack.c.h.b16 %v183
    %v1987 = vunpack.c.l.b16 %v184
    %v1988 = vunpack.c.h.b16 %v184
    %v1989 = vunpack.c.l.b16 %v185
    %v1990 = vunpack.c.l.b16 %v186
    %v1991 = vunpack.c.h.b16 %v186
    %v1992 = vunpack.c.l.b16 %v187
    %v1993 = vunpack.c.h.b16 %v187
    %v1994 = vunpack.c.l.b16 %v188
    %v1995 = vunpack.c.h.b16 %v188
    %v1996 = vunpack.c.l.b16 %v189
    %v1997 = vunpack.c.l.b16 %v190
    %v1998 = vunpack.c.h.b16 %v190
    %v1999 = vunpack.c.l.b16 %v191
    %v2000 = vunpack.c.h.b16 %v191
    %v2001 = vunpack.c.l.b16 %v192
    %v2002 = vunpack.c.h.b16 %v192
    %v2003 = vunpack.c.l.b16 %v193
    %v2004 = vunpack.c.l.b16 %v194
    %v2005 = vunpack.c.h.b16 %v194
    %v2006 = vunpack.c.l.b16 %v195
    %v2007 = vunpack.c.h.b16 %v195
    %v2008 = vunpack.c.l.b16 %v196
    %v2009 = vunpack.c.h.b16 %v196
    %v2010 = vunpack.c.l.b16 %v197
    %v2011 = vunpack.c.l.b16 %v198
    %v2012 = vunpack.c.h.b16 %v198
    %v2013 = vunpack.c.l.b16 %v199
    %v2014 = vunpack.c.h.b16 %v199
    %v2015 = vunpack.c.l.b16 %v200
    %v2016 = vunpack.c.h.b16 %v200
    %v2017 = vunpack.c.l.b16 %v201
    %v2018 = vunpack.c.l.b16 %v202
    %v2019 = vunpack.c.h.b16 %v202
    %v2020 = vunpack.c.l.b16 %v203
    %v2021 = vunpack.c.h.b16 %v203
    %v2022 = vunpack.c.l.b16 %v204
    %v2023 = vunpack.c.h.b16 %v204
    %v2024 = vunpack.c.l.b16 %v205
    %v2025 = vunpack.c.l.b16 %v206
    %v2026 = vunpack.c.h.b16 %v206
    %v2027 = vunpack.c.l.b16 %v207
    %v2028 = vunpack.c.h.b16 %v207
    %v2029 = vunpack.c.l.b16 %v208
    %v2030 = vunpack.c.h.b16 %v208
    %v2031 = vunpack.c.l.b16 %v209
    %v2032 = vunpack.c.l.b16 %v210
    %v2033 = vunpack.c.h.b16 %v210
    %v2034 = vunpack.c.l.b16 %v211
    %v2035 = vunpack.c.h.b16 %v211
    %v2036 = vunpack.c.l.b16 %v212
    %v2037 = vunpack.c.h.b16 %v212
    %v2038 = vunpack.c.l.b16 %v213
    %v2039 = vunpack.c.l.b16 %v214
    %v2040 = vunpack.c.h.b16 %v214
    %v2041 = vunpack.c.l.b16 %v215
    %v2042 = vunpack.c.h.b16 %v215
    %v2043 = vunpack.c.l.b16 %v216
    %v2044 = vunpack.c.h.b16 %v216
    %v2045 = vunpack.c.l.b16 %v217
    %v2046 = vunpack.c.l.b16 %v218
    %v2047 = vunpack.c.h.b16 %v218
    %v2048 = vunpack.c.l.b16 %v219
    %v2049 = vunpack.c.h.b16 %v219
    %v2050 = vunpack.c.l.b16 %v220
    %v2051 = vunpack.c.h.b16 %v220
    %v2052 = vunpack.c.l.b16 %v221
    %v2053 = vunpack.c.l.b16 %v222
    %v2054 = vunpack.c.h.b16 %v222
    %v2055 = vunpack.c.l.b16 %v223
    %v2056 = vunpack.c.h.b16 %v223
    %v2057 = vunpack.c.l.b16 %v224
    %v2058 = vunpack.c.h.b16 %v224
    %v2059 = vunpack.c.l.b16 %v225
    %v2060 = vunpack.c.l.b16 %v226
    %v2061 = vunpack.c.h.b16 %v226
    %v2062 = vunpack.c.l.b16 %v227
    %v2063 = vunpack.c.h.b16 %v227
    %v2064 = vunpack.c.l.b16 %v228
    %v2065 = vunpack.c.h.b16 %v228
    %v2066 = vunpack.c.l.b16 %v229
    %v2067 = vunpack.c.l.b16 %v230
    %v2068 = vunpack.c.h.b16 %v230
    %v2069 = vunpack.c.l.b16 %v231
    %v2070 = vunpack.c.h.b16 %v231
    %v2071 = vunpack.c.l.b16 %v232
    %v2072 = vunpack.c.h.b16 %v232
    %v2073 = vunpack.c.l.b16 %v233
    %v2074 = vunpack.c.l.b16 %v234
    %v2075 = vunpack.c.h.b16 %v234
    %v2076 = vunpack.c.l.b16 %v235
    %v2077 = vunpack.c.h.b16 %v235
    %v2078 = vunpack.c.l.b16 %v236
    %v2079 = vunpack.c.h.b16 %v236
    %v2080 = vunpack.c.l.b16 %v237
    %v2081 = vunpack.c.l.b16 %v238
    %v2082 = vunpack.c.h.b16 %v238
    %v2083 = vunpack.c.l.b16 %v239
    %v2084 = vunpack.c.h.b16 %v239
    %v2085 = vunpack.c.l.b16 %v240
    %v2086 = vunpack.c.h.b16 %v240
    %v2087 = vunpack.c.l.b16 %v241
    %v2088 = vunpack.c.l.b16 %v242
    %v2089 = vunpack.c.h.b16 %v242
    %v2090 = vunpack.c.l.b16 %v243
    %v2091 = vunpack.c.h.b16 %v243
    %v2092 = vunpack.c.l.b16 %v244
    %v2093 = vunpack.c.h.b16 %v244
    %v2094 = vunpack.c.l.b16 %v245
    %v2095 = vunpack.c.l.b16 %v246
    %v2096 = vunpack.c.h.b16 %v246
    %v2097 = vunpack.c.l.b16 %v247
    %v2098 = vunpack.c.h.b16 %v247
    %v2099 = vunpack.c.l.b16 %v248
    %v2100 = vunpack.c.h.b16 %v248
    %v2101 = vunpack.c.l.b16 %v249
    %v2102 = vunpack.c.l.b16 %v250
    %v2103 = vunpack.c.h.b16 %v250
    %v2104 = vunpack.c.l.b16 %v251
    %v2105 = vunpack.c.h.b16 %v251
    %v2106 = vunpack.c.l.b16 %v252
    %v2107 = vunpack.c.h.b16 %v252
    %v2108 = vunpack.c.l.b16 %v253
    %v2109 = vunpack.c.l.b16 %v254
    %v2110 = vunpack.c.h.b16 %v254
    %v2111 = vunpack.c.l.b16 %v255
    %v2112 = vunpack.c.h.b16 %v255
    %v2113 = vunpack.c.l.b16 %v256
    %v2114 = vunpack.c.h.b16 %v256
    %v2115 = vunpack.c.l.b16 %v257
    %v2116 = vunpack.c.l.b16 %v258
    %v2117 = vunpack.c.h.b16 %v258
    %v2118 = vunpack.c.l.b16 %v259
    %v2119 = vunpack.c.h.b16 %v259
    %v2120 = vunpack.c.l.b16 %v260
    %v2121 = vunpack.c.h.b16 %v260
    %v2122 = vunpack.c.l.b16 %v261
    %v2123 = vunpack.c.l.b16 %v262
    %v2124 = vunpack.c.h.b16 %v262
    %v2125 = vunpack.c.l.b16 %v263
    %v2126 = vunpack.c.h.b16 %v263
    %v2127 = vunpack.c.l.b16 %v264
    %v2128 = vunpack.c.h.b16 %v264
    %v2129 = vunpack.c.l.b16 %v265
    %v2130 = vunpack.c.l.b16 %v266
    %v2131 = vunpack.c.h.b16 %v266
    %v2132 = vunpack.c.l.b16 %v267
    %v2133 = vunpack.c.h.b16 %v267
    %v2134 = vunpack.c.l.b16 %v268
    %v2135 = vunpack.c.h.b16 %v268
    %v2136 = vunpack.c.l.b16 %v269
    %v2137 = vunpack.c.l.b16 %v270
    %v2138 = vunpack.c.h.b16 %v270
    %v2139 = vunpack.c.l.b16 %v271
    %v2140 = vunpack.c.h.b16 %v271
    %v2141 = vunpack.c.l.b16 %v272
    %v2142 = vunpack.c.h.b16 %v272
    %v2143 = vunpack.c.l.b16 %v273
    %v2144 = vunpack.c.l.b16 %v274
    %v2145 = vunpack.c.h.b16 %v274
    %v2146 = vunpack.c.l.b16 %v275
    %v2147 = vunpack.c.h.b16 %v275
    %v2148 = vunpack.c.l.b16 %v276
    %v2149 = vunpack.c.h.b16 %v276
    %v2150 = vunpack.c.l.b16 %v277
    %v2151 = vunpack.c.l.b16 %v278
    %v2152 = vunpack.c.h.b16 %v278
    %v2153 = vunpack.c.l.b16 %v279
    %v2154 = vunpack.c.h.b16 %v279
    %v2155 = vunpack.c.l.b16 %v280
    %v2156 = vunpack.c.h.b16 %v280
    %v2157 = vunpack.c.l.b16 %v281
    %v2158 = vunpack.c.l.b16 %v282
    %v2159 = vunpack.c.h.b16 %v282
    %v2160 = vunpack.c.l.b16 %v283
    %v2161 = vunpack.c.h.b16 %v283
    %v2162 = vunpack.c.l.b16 %v284
    %v2163 = vunpack.c.h.b16 %v284
    %v2164 = vunpack.c.l.b16 %v285
    %v2165 = vunpack.c.l.b16 %v286
    %v2166 = vunpack.c.h.b16 %v286
    %v2167 = vunpack.c.l.b16 %v287
    %v2168 = vunpack.c.h.b16 %v287
    %v2169 = vunpack.c.l.b16 %v288
    %v2170 = vunpack.c.h.b16 %v288
    %v2171 = vunpack.c.l.b16 %v289
    %v2172 = vunpack.c.l.b16 %v290
    %v2173 = vunpack.c.h.b16 %v290
    %v2174 = vunpack.c.l.b16 %v291
    %v2175 = vunpack.c.h.b16 %v291
    %v2176 = vunpack.c.l.b16 %v292
    %v2177 = vunpack.c.h.b16 %v292
    %v2178 = vunpack.c.l.b16 %v293
    %v2179 = vunpack.c.l.b16 %v294
    %v2180 = vunpack.c.h.b16 %v294
    %v2181 = vunpack.c.l.b16 %v295
    %v2182 = vunpack.c.h.b16 %v295
    %v2183 = vunpack.c.l.b16 %v296
    %v2184 = vunpack.c.h.b16 %v296
    %v2185 = vunpack.c.l.b16 %v297
    %v2186 = vunpack.c.l.b16 %v298
    %v2187 = vunpack.c.h.b16 %v298
    %v2188 = vunpack.c.l.b16 %v299
    %v2189 = vunpack.c.h.b16 %v299
    %v2190 = vunpack.c.l.b16 %v300
    %v2191 = vunpack.c.h.b16 %v300
    %v2192 = vunpack.c.l.b16 %v301
    %v2193 = vunpack.c.l.b16 %v302
    %v2194 = vunpack.c.h.b16 %v302
    %v2195 = vunpack.c.l.b16 %v303
    %v2196 = vunpack.c.h.b16 %v303
    %v2197 = vunpack.c.l.b16 %v304
    %v2198 = vunpack.c.h.b16 %v304
    %v2199 = vunpack.c.l.b16 %v305
    %v2200 = vunpack.c.l.b16 %v306
    %v2201 = vunpack.c.h.b16 %v306
    %v2202 = vunpack.c.l.b16 %v307
    %v2203 = vunpack.c.h.b16 %v307
    %v2204 = vunpack.c.l.b16 %v308
    %v2205 = vunpack.c.h.b16 %v308
    %v2206 = vunpack.c.l.b16 %v309
    %v2207 = vunpack.c.l.b16 %v310
    %v2208 = vunpack.c.h.b16 %v310
    %v2209 = vunpack.c.l.b16 %v311
    %v2210 = vunpack.c.h.b16 %v311
    %v2211 = vunpack.c.l.b16 %v312
    %v2212 = vunpack.c.h.b16 %v312
    %v2213 = vunpack.c.l.b16 %v313
    %v2214 = vunpack.c.l.b16 %v314
    %v2215 = vunpack.c.h.b16 %v314
    %v2216 = vunpack.c.l.b16 %v315
    %v2217 = vunpack.c.h.b16 %v315
    %v2218 = vunpack.c.l.b16 %v316
    %v2219 = vunpack.c.h.b16 %v316
    %v2220 = vunpack.c.l.b16 %v317
    %v2221 = vunpack.c.l.b16 %v318
    %v2222 = vunpack.c.h.b16 %v318
    %v2223 = vunpack.c.l.b16 %v319
    %v2224 = vunpack.c.h.b16 %v319
    %v2225 = vunpack.c.l.b16 %v320
    %v2226 = vunpack.c.h.b16 %v320
    %v2227 = vunpack.c.l.b16 %v321
    %v2228 = vunpack.c.l.b16 %v322
    %v2229 = vunpack.c.h.b16 %v322
    %v2230 = vunpack.c.l.b16 %v323
    %v2231 = vunpack.c.h.b16 %v323
    %v2232 = vunpack.c.l.b16 %v324
    %v2233 = vunpack.c.h.b16 %v324
    %v2234 = vunpack.c.l.b16 %v325
    %v2235 = vunpack.c.l.b16 %v326
    %v2236 = vunpack.c.h.b16 %v326
    %v2237 = vunpack.c.l.b16 %v327
    %v2238 = vunpack.c.h.b16 %v327
    %v2239 = vunpack.c.l.b16 %v328
    %v2240 = vunpack.c.h.b16 %v328
    %v2241 = vunpack.c.l.b16 %v329
    %v2242 = vunpack.c.l.b16 %v330
    %v2243 = vunpack.c.h.b16 %v330
    %v2244 = vunpack.c.l.b16 %v331
    %v2245 = vunpack.c.h.b16 %v331
    %v2246 = vunpack.c.l.b16 %v332
    %v2247 = vunpack.c.h.b16 %v332
    %v2248 = vunpack.c.l.b16 %v333
    %v2249 = vunpack.c.l.b16 %v334
    %v2250 = vunpack.c.h.b16 %v334
    %v2251 = vunpack.c.l.b16 %v335
    %v2252 = vunpack.c.h.b16 %v335
    %v2253 = vunpack.c.l.b16 %v336
    %v2254 = vunpack.c.h.b16 %v336
    %v2255 = vunpack.c.l.b16 %v337
    %v2256 = vunpack.c.l.b16 %v338
    %v2257 = vunpack.c.h.b16 %v338
    %v2258 = vunpack.c.l.b16 %v339
    %v2259 = vunpack.c.h.b16 %v339
    %v2260 = vunpack.c.l.b16 %v340
    %v2261 = vunpack.c.h.b16 %v340
    %v2262 = vunpack.c.l.b16 %v341
    %v2263 = vunpack.c.l.b16 %v342
    %v2264 = vunpack.c.h.b16 %v342
    %v2265 = vunpack.c.l.b16 %v343
    %v2266 = vunpack.c.h.b16 %v343
    %v2267 = vunpack.c.l.b16 %v344
    %v2268 = vunpack.c.h.b16 %v344
    %v2269 = vunpack.c.l.b16 %v345
    %v2270 = vunpack.c.l.b16 %v346
    %v2271 = vunpack.c.h.b16 %v346
    %v2272 = vunpack.c.l.b16 %v347
    %v2273 = vunpack.c.h.b16 %v347
    %v2274 = vunpack.c.l.b16 %v348
    %v2275 = vunpack.c.h.b16 %v348
    %v2276 = vunpack.c.l.b16 %v349
    %v2277 = vunpack.c.l.b16 %v350
    %v2278 = vunpack.c.h.b16 %v350
    %v2279 = vunpack.c.l.b16 %v351
    %v2280 = vunpack.c.h.b16 %v351
    %v2281 = vunpack.c.l.b16 %v352
    %v2282 = vunpack.c.h.b16 %v352
    %v2283 = vunpack.c.l.b16 %v353
    %v2284 = vunpack.c.l.b16 %v354
    %v2285 = vunpack.c.h.b16 %v354
    %v2286 = vunpack.c.l.b16 %v355
    %v2287 = vunpack.c.h.b16 %v355
    %v2288 = vunpack.c.l.b16 %v356
    %v2289 = vunpack.c.h.b16 %v356
    %v2290 = vunpack.c.l.b16 %v357
    %v2291 = vunpack.c.l.b16 %v358
    %v2292 = vunpack.c.h.b16 %v358
    %v2293 = vunpack.c.l.b16 %v359
    %v2294 = vunpack.c.h.b16 %v359
    %v2295 = vunpack.c.l.b16 %v360
    %v2296 = vunpack.c.h.b16 %v360
    %v2297 = vunpack.c.l.b16 %v361
    %v2298 = vunpack.c.l.b16 %v362
    %v2299 = vunpack.c.h.b16 %v362
    %v2300 = vunpack.c.l.b16 %v363
    %v2301 = vunpack.c.h.b16 %v363
    %v2302 = vunpack.c.l.b16 %v364
    %v2303 = vunpack.c.h.b16 %v364
    %v2304 = vunpack.c.l.b16 %v365
    %v2305 = vunpack.c.l.b16 %v366
    %v2306 = vunpack.c.h.b16 %v366
    %v2307 = vunpack.c.l.b16 %v367
    %v2308 = vunpack.c.h.b16 %v367
    %v2309 = vunpack.c.l.b16 %v368
    %v2310 = vunpack.c.h.b16 %v368
    %v2311 = vunpack.c.l.b16 %v369
    %v2312 = vunpack.c.l.b16 %v370
    %v2313 = vunpack.c.h.b16 %v370
    %v2314 = vunpack.c.l.b16 %v371
    %v2315 = vunpack.c.h.b16 %v371
    %v2316 = vunpack.c.l.b16 %v372
    %v2317 = vunpack.c.h.b16 %v372
    %v2318 = vunpack.c.l.b16 %v373
    %v2319 = vunpack.c.l.b16 %v374
    %v2320 = vunpack.c.h.b16 %v374
    %v2321 = vunpack.c.l.b16 %v375
    %v2322 = vunpack.c.h.b16 %v375
    %v2323 = vunpack.c.l.b16 %v376
    %v2324 = vunpack.c.h.b16 %v376
    %v2325 = vunpack.c.l.b16 %v377
    %v2326 = vunpack.c.l.b16 %v378
    %v2327 = vunpack.c.h.b16 %v378
    %v2328 = vunpack.c.l.b16 %v379
    %v2329 = vunpack.c.h.b16 %v379
    %v2330 = vunpack.c.l.b16 %v380
    %v2331 = vunpack.c.h.b16 %v380
    %v2332 = vunpack.c.l.b16 %v381
    %v2333 = vunpack.c.l.b16 %v382
    %v2334 = vunpack.c.h.b16 %v382
    %v2335 = vunpack.c.l.b16 %v383
    %v2336 = vunpack.c.h.b16 %v383
    %v2337 = vunpack.c.l.b16 %v384
    %v2338 = vunpack.c.h.b16 %v384
    %v2339 = vunpack.c.l.b16 %v385
    %v2340 = vunpack.c.l.b16 %v386
    %v2341 = vunpack.c.h.b16 %v386
    %v2342 = vunpack.c.l.b16 %v387
    %v2343 = vunpack.c.h.b16 %v387
    %v2344 = vunpack.c.l.b16 %v388
    %v2345 = vunpack.c.h.b16 %v388
    %v2346 = vunpack.c.l.b16 %v389
    %v2347 = vunpack.c.l.b16 %v390
    %v2348 = vunpack.c.h.b16 %v390
    %v2349 = vunpack.c.l.b16 %v391
    %v2350 = vunpack.c.h.b16 %v391
    %v2351 = vunpack.c.l.b16 %v392
    %v2352 = vunpack.c.h.b16 %v392
    %v2353 = vunpack.c.l.b16 %v393
    %v2354 = vunpack.c.l.b16 %v394
    %v2355 = vunpack.c.h.b16 %v394
    %v2356 = vunpack.c.l.b16 %v395
    %v2357 = vunpack.c.h.b16 %v395
    %v2358 = vunpack.c.l.b16 %v396
    %v2359 = vunpack.c.h.b16 %v396
    %v2360 = vunpack.c.l.b16 %v397
    %v2361 = vunpack.c.l.b16 %v398
    %v2362 = vunpack.c.h.b16 %v398
    %v2363 = vunpack.c.l.b16 %v399
    %v2364 = vunpack.c.h.b16 %v399
    %v2365 = vunpack.c.l.b16 %v400
    %v2366 = vunpack.c.h.b16 %v400
    %v2367 = vunpack.c.l.b16 %v401
    %v2368 = vunpack.c.l.b16 %v402
    %v2369 = vunpack.c.h.b16 %v402
    %v2370 = vunpack.c.l.b16 %v403
    %v2371 = vunpack.c.h.b16 %v403
    %v2372 = vunpack.c.l.b16 %v404
    %v2373 = vunpack.c.h.b16 %v404
    %v2374 = vunpack.c.l.b16 %v405
    %v2375 = vunpack.c.l.b16 %v406
    %v2376 = vunpack.c.h.b16 %v406
    %v2377 = vunpack.c.l.b16 %v407
    %v2378 = vunpack.c.h.b16 %v407
    %v2379 = vunpack.c.l.b16 %v408
    %v2380 = vunpack.c.h.b16 %v408
    %v2381 = vunpack.c.l.b16 %v409
    %v2382 = vunpack.c.l.b16 %v410
    %v2383 = vunpack.c.h.b16 %v410
    %v2384 = vunpack.c.l.b16 %v411
    %v2385 = vunpack.c.h.b16 %v411
    %v2386 = vunpack.c.l.b16 %v412
    %v2387 = vunpack.c.h.b16 %v412
    %v2388 = vunpack.c.l.b16 %v413
    %v2389 = vunpack.c.l.b16 %v414
    %v2390 = vunpack.c.h.b16 %v414
    %v2391 = vunpack.c.l.b16 %v415
    %v2392 = vunpack.c.h.b16 %v415
    %v2393 = vunpack.c.l.b16 %v416
    %v2394 = vunpack.c.h.b16 %v416
    %v2395 = vunpack.c.l.b16 %v417
    %v2396 = vunpack.c.l.b16 %v418
    %v2397 = vunpack.c.h.b16 %v418
    %v2398 = vunpack.c.l.b16 %v419
    %v2399 = vunpack.c.h.b16 %v419
    %v2400 = vunpack.c.l.b16 %v420
    %v2401 = vunpack.c.h.b16 %v420
    %v2402 = vunpack.c.l.b16 %v421
    %v2403 = vunpack.c.l.b16 %v422
    %v2404 = vunpack.c.h.b16 %v422
    %v2405 = vunpack.c.l.b16 %v423
    %v2406 = vunpack.c.h.b16 %v423
    %v2407 = vunpack.c.l.b16 %v424
    %v2408 = vunpack.c.h.b16 %v424
    %v2409 = vunpack.c.l.b16 %v425
    %v2410 = vunpack.c.l.b16 %v426
    %v2411 = vunpack.c.h.b16 %v426
    %v2412 = vunpack.c.l.b16 %v427
    %v2413 = vunpack.c.h.b16 %v427
    %v2414 = vunpack.c.l.b16 %v428
    %v2415 = vunpack.c.h.b16 %v428
    %v2416 = vunpack.c.l.b16 %v429
    %v2417 = vunpack.c.l.b16 %v430
    %v2418 = vunpack.c.h.b16 %v430
    %v2419 = vunpack.c.l.b16 %v431
    %v2420 = vunpack.c.h.b16 %v431
    %v2421 = vunpack.c.l.b16 %v432
    %v2422 = vunpack.c.h.b16 %v432
    %v2423 = vunpack.c.l.b16 %v433
    %v2424 = vunpack.c.l.b16 %v434
    %v2425 = vunpack.c.h.b16 %v434
    %v2426 = vunpack.c.l.b16 %v435
    %v2427 = vunpack.c.h.b16 %v435
    %v2428 = vunpack.c.l.b16 %v436
    %v2429 = vunpack.c.h.b16 %v436
    %v2430 = vunpack.c.l.b16 %v437
    %v2431 = vunpack.c.l.b16 %v438
    %v2432 = vunpack.c.h.b16 %v438
    %v2433 = vunpack.c.l.b16 %v439
    %v2434 = vunpack.c.h.b16 %v439
    %v2435 = vunpack.c.l.b16 %v440
    %v2436 = vunpack.c.h.b16 %v440
    %v2437 = vunpack.c.l.b16 %v441
    %v2438 = vunpack.c.l.b16 %v442
    %v2439 = vunpack.c.h.b16 %v442
    %v2440 = vunpack.c.l.b16 %v443
    %v2441 = vunpack.c.h.b16 %v443
    %v2442 = vunpack.c.l.b16 %v444
    %v2443 = vunpack.c.h.b16 %v444
    %v2444 = vunpack.c.l.b16 %v445
    %v2445 = vunpack.c.l.b16 %v446
    %v2446 = vunpack.c.h.b16 %v446
    %v2447 = vunpack.c.l.b16 %v447
    %v2448 = vunpack.c.h.b16 %v447
    %v2449 = vunpack.c.l.b16 %v448
    %v2450 = vunpack.c.h.b16 %v448
    %v2451 = vunpack.c.l.b16 %v449
    %v2452 = vunpack.c.l.b16 %v450
    %v2453 = vunpack.c.h.b16 %v450
    %v2454 = vunpack.c.l.b16 %v451
    %v2455 = vunpack.c.h.b16 %v451
    %v2456 = vunpack.c.l.b16 %v452
    %v2457 = vunpack.c.h.b16 %v452
    %v2458 = vunpack.c.l.b16 %v453
    %v2459 = vunpack.c.l.b16 %v454
    %v2460 = vunpack.c.h.b16 %v454
    %v2461 = vunpack.c.l.b16 %v455
    %v2462 = vunpack.c.h.b16 %v455
    %v2463 = vunpack.c.l.b16 %v456
    %v2464 = vunpack.c.h.b16 %v456
    %v2465 = vunpack.c.l.b16 %v457
    %v2466 = vunpack.c.l.b16 %v458
    %v2467 = vunpack.c.h.b16 %v458
    %v2468 = vunpack.c.l.b16 %v459
    %v2469 = vunpack.c.h.b16 %v459
    %v2470 = vunpack.c.l.b16 %v460
    %v2471 = vunpack.c.h.b16 %v460
    %v2472 = vunpack.c.l.b16 %v461
    %v2473 = vunpack.c.l.b16 %v462
    %v2474 = vunpack.c.h.b16 %v462
    %v2475 = vunpack.c.l.b16 %v463
    %v2476 = vunpack.c.h.b16 %v463
    %v2477 = vunpack.c.l.b16 %v464
    %v2478 = vunpack.c.h.b16 %v464
    %v2479 = vunpack.c.l.b16 %v465
    %v2480 = vunpack.c.l.b16 %v466
    %v2481 = vunpack.c.h.b16 %v466
    %v2482 = vunpack.c.l.b16 %v467
    %v2483 = vunpack.c.h.b16 %v467
    %v2484 = vunpack.c.l.b16 %v468
    %v2485 = vunpack.c.h.b16 %v468
    %v2486 = vunpack.c.l.b16 %v469
    %v2487 = vunpack.c.l.b16 %v470
    %v2488 = vunpack.c.h.b16 %v470
    %v2489 = vunpack.c.l.b16 %v471
    %v2490 = vunpack.c.h.b16 %v471
    %v2491 = vunpack.c.l.b16 %v472
    %v2492 = vunpack.c.h.b16 %v472
    %v2493 = vunpack.c.l.b16 %v473
    %v2494 = vunpack.c.l.b16 %v474
    %v2495 = vunpack.c.h.b16 %v474
    %v2496 = vunpack.c.l.b16 %v475
    %v2497 = vunpack.c.h.b16 %v475
    %v2498 = vunpack.c.l.b16 %v476
    %v2499 = vunpack.c.h.b16 %v476
    %v2500 = vunpack.c.l.b16 %v477
    %v2501 = vunpack.c.l.b16 %v478
    %v2502 = vunpack.c.h.b16 %v478
    %v2503 = vunpack.c.l.b16 %v479
    %v2504 = vunpack.c.h.b16 %v479
    %v2505 = vunpack.c.l.b16 %v480
    %v2506 = vunpack.c.h.b16 %v480
    %v2507 = vunpack.c.l.b16 %v481
    %v2508 = vunpack.c.l.b16 %v482
    %v2509 = vunpack.c.h.b16 %v482
    %v2510 = vunpack.c.l.b16 %v483
    %v2511 = vunpack.c.h.b16 %v483
    %v2512 = vunpack.c.l.b16 %v484
    %v2513 = vunpack.c.h.b16 %v484
    %v2514 = vunpack.c.l.b16 %v485
    %v2515 = vunpack.c.l.b16 %v486
    %v2516 = vunpack.c.h.b16 %v486
    %v2517 = vunpack.c.l.b16 %v487
    %v2518 = vunpack.c.h.b16 %v487
    %v2519 = vunpack.c.l.b16 %v488
    %v2520 = vunpack.c.h.b16 %v488
    %v2521 = vunpack.c.l.b16 %v489
    %v2522 = vunpack.c.l.b16 %v490
    %v2523 = vunpack.c.h.b16 %v490
    %v2524 = vunpack.c.l.b16 %v491
    %v2525 = vunpack.c.h.b16 %v491
    %v2526 = vunpack.c.l.b16 %v492
    %v2527 = vunpack.c.h.b16 %v492
    %v2528 = vunpack.c.l.b16 %v493
    %v2529 = vunpack.c.l.b16 %v494
    %v2530 = vunpack.c.h.b16 %v494
    %v2531 = vunpack.c.l.b16 %v495
    %v2532 = vunpack.c.h.b16 %v495
    %v2533 = vunpack.c.l.b16 %v496
    %v2534 = vunpack.c.h.b16 %v496
    %v2535 = vunpack.c.l.b16 %v497
    %v2536 = vunpack.c.l.b16 %v498
    %v2537 = vunpack.c.h.b16 %v498
    %v2538 = vunpack.c.l.b16 %v499
    %v2539 = vunpack.c.h.b16 %v499
    %v2540 = vunpack.c.l.b16 %v500
    %v2541 = vunpack.c.h.b16 %v500
    %v2542 = vunpack.c.l.b16 %v501
    %v2543 = vunpack.c.l.b16 %v502
    %v2544 = vunpack.c.h.b16 %v502
    %v2545 = vunpack.c.l.b16 %v503
    %v2546 = vunpack.c.h.b16 %v503
    %v2547 = vunpack.c.l.b16 %v504
    %v2548 = vunpack.c.h.b16 %v504
    %v2549 = vunpack.c.l.b16 %v505
    %v2550 = vunpack.c.l.b16 %v506
    %v2551 = vunpack.c.h.b16 %v506
    %v2552 = vunpack.c.l.b16 %v507
    %v2553 = vunpack.c.h.b16 %v507
    %v2554 = vunpack.c.l.b16 %v508
    %v2555 = vunpack.c.h.b16 %v508
    %v2556 = vunpack.c.l.b16 %v509
    %v2557 = vunpack.c.l.b16 %v510
    %v2558 = vunpack.c.h.b16 %v510
    %v2559 = vunpack.c.l.b16 %v511
    %v2560 = vunpack.c.h.b16 %v511
    %v2561 = vunpack.c.l.b16 %v512
    %v2562 = vunpack.c.h.b16 %v512
    %v2563 = vunpack.c.l.b16 %v513
    %v2564 = vunpack.c.l.b16 %v514
    %v2565 = vunpack.c.h.b16 %v514
    %v2566 = vunpack.c.l.b16 %v515
    %v2567 = vunpack.c.h.b16 %v515
    %v2568 = vunpack.c.l.b16 %v516
    %v2569 = vunpack.c.h.b16 %v516
    %v2570 = vunpack.c.l.b16 %v517
    %v2571 = vunpack.c.l.b16 %v518
    %v2572 = vunpack.c.h.b16 %v518
    %v2573 = vunpack.c.l.b16 %v519
    %v2574 = vunpack.c.h.b16 %v519
    %v2575 = vunpack.c.l.b16 %v520
    %v2576 = vunpack.c.h.b16 %v520
    %v2577 = vunpack.c.l.b16 %v521
    %v2578 = vunpack.c.l.b16 %v522
    %v2579 = vunpack.c.h.b16 %v522
    %v2580 = vunpack.c.l.b16 %v523
    %v2581 = vunpack.c.h.b16 %v523
    %v2582 = vunpack.c.l.b16 %v524
    %v2583 = vunpack.c.h.b16 %v524
    %v2584 = vunpack.c.l.b16 %v525
    %v2585 = vunpack.c.l.b16 %v526
    %v2586 = vunpack.c.h.b16 %v526
    %v2587 = vunpack.c.l.b16 %v527
    %v2588 = vunpack.c.h.b16 %v527
    %v2589 = vunpack.c.l.b16 %v528
    %v2590 = vunpack.c.h.b16 %v528
    %v2591 = vunpack.c.l.b16 %v529
    %v2592 = vunpack.c.l.b16 %v530
    %v2593 = vunpack.c.h.b16 %v530
    %v2594 = vunpack.c.l.b16 %v531
    %v2595 = vunpack.c.h.b16 %v531
    %v2596 = vunpack.c.l.b16 %v532
    %v2597 = vunpack.c.h.b16 %v532
    %v2598 = vunpack.c.l.b16 %v533
    %v2599 = vunpack.c.l.b16 %v534
    %v2600 = vunpack.c.h.b16 %v534
    %v2601 = vunpack.c.l.b16 %v535
    %v2602 = vunpack.c.h.b16 %v535
    %v2603 = vunpack.c.l.b16 %v536
    %v2604 = vunpack.c.h.b16 %v536
    %v2605 = vunpack.c.l.b16 %v537
    %v2606 = vunpack.c.l.b16 %v538
    %v2607 = vunpack.c.h.b16 %v538
    %v2608 = vunpack.c.l.b16 %v539
    %v2609 = vunpack.c.h.b16 %v539
    %v2610 = vunpack.c.l.b16 %v540
    %v2611 = vunpack.c.h.b16 %v540
    %v2612 = vunpack.c.l.b16 %v541
    %v2613 = vunpack.c.l.b16 %v542
    %v2614 = vunpack.c.h.b16 %v542
    %v2615 = vunpack.c.l.b16 %v543
    %v2616 = vunpack.c.h.b16 %v543
    %v2617 = vunpack.c.l.b16 %v544
    %v2618 = vunpack.c.h.b16 %v544
    %v2619 = vunpack.c.l.b16 %v545
    %v2620 = vunpack.c.l.b16 %v546
    %v2621 = vunpack.c.h.b16 %v546
    %v2622 = vunpack.c.l.b16 %v547
    %v2623 = vunpack.c.h.b16 %v547
    %v2624 = vunpack.c.l.b16 %v548
    %v2625 = vunpack.c.h.b16 %v548
    %v2626 = vunpack.c.l.b16 %v549
    %v2627 = vunpack.c.l.b16 %v550
    %v2628 = vunpack.c.h.b16 %v550
    %v2629 = vunpack.c.l.b16 %v551
    %v2630 = vunpack.c.h.b16 %v551
    %v2631 = vunpack.c.l.b16 %v552
    %v2632 = vunpack.c.h.b16 %v552
    %v2633 = vunpack.c.l.b16 %v553
    %v2634 = vunpack.c.l.b16 %v554
    %v2635 = vunpack.c.h.b16 %v554
    %v2636 = vunpack.c.l.b16 %v555
    %v2637 = vunpack.c.h.b16 %v555
    %v2638 = vunpack.c.l.b16 %v556
    %v2639 = vunpack.c.h.b16 %v556
    %v2640 = vunpack.c.l.b16 %v557
    %v2641 = vunpack.c.l.b16 %v558
    %v2642 = vunpack.c.h.b16 %v558
    %v2643 = vunpack.c.l.b16 %v559
    %v2644 = vunpack.c.h.b16 %v559
    %v2645 = vunpack.c.l.b16 %v560
    %v2646 = vunpack.c.h.b16 %v560
    %v2647 = vunpack.c.l.b16 %v561
    %v2648 = vunpack.c.l.b16 %v562
    %v2649 = vunpack.c.h.b16 %v562
    %v2650 = vunpack.c.l.b16 %v563
    %v2651 = vunpack.c.h.b16 %v563
    %v2652 = vunpack.c.l.b16 %v564
    %v2653 = vunpack.c.h.b16 %v564
    %v2654 = vunpack.c.l.b16 %v565
    %v2655 = vunpack.c.l.b16 %v566
    %v2656 = vunpack.c.h.b16 %v566
    %v2657 = vunpack.c.l.b16 %v567
    %v2658 = vunpack.c.h.b16 %v567
    %v2659 = vunpack.c.l.b16 %v568
    %v2660 = vunpack.c.h.b16 %v568
    %v2661 = vunpack.c.l.b16 %v569
    %v2662 = vunpack.c.l.b16 %v570
    %v2663 = vunpack.c.h.b16 %v570
    %v2664 = vunpack.c.l.b16 %v571
    %v2665 = vunpack.c.h.b16 %v571
    %v2666 = vunpack.c.l.b16 %v572
    %v2667 = vunpack.c.h.b16 %v572
    %v2668 = vunpack.c.l.b16 %v573
    %v2669 = vunpack.c.l.b16 %v574
    %v2670 = vunpack.c.h.b16 %v574
    %v2671 = vunpack.c.l.b16 %v575
    %v2672 = vunpack.c.h.b16 %v575
    %v2673 = vunpack.c.l.b16 %v576
    %v2674 = vunpack.c.h.b16 %v576
    %v2675 = vunpack.c.l.b16 %v577
    %v2676 = vunpack.c.l.b16 %v578
    %v2677 = vunpack.c.h.b16 %v578
    %v2678 = vunpack.c.l.b16 %v579
    %v2679 = vunpack.c.h.b16 %v579
    %v2680 = vunpack.c.l.b16 %v580
    %v2681 = vunpack.c.h.b16 %v580
    %v2682 = vunpack.c.l.b16 %v581
    %v2683 = vunpack.c.l.b16 %v582
    %v2684 = vunpack.c.h.b16 %v582
    %v2685 = vunpack.c.l.b16 %v583
    %v2686 = vunpack.c.h.b16 %v583
    %v2687 = vunpack.c.l.b16 %v584
    %v2688 = vunpack.c.h.b16 %v584
    %v2689 = vunpack.c.l.b16 %v585
    %v2690 = vunpack.c.l.b16 %v586
    %v2691 = vunpack.c.h.b16 %v586
    %v2692 = vunpack.c.l.b16 %v587
    %v2693 = vunpack.c.h.b16 %v587
    %v2694 = vunpack.c.l.b16 %v588
    %v2695 = vunpack.c.h.b16 %v588
    %v2696 = vunpack.c.l.b16 %v589
    %v2697 = vunpack.c.l.b16 %v590
    %v2698 = vunpack.c.h.b16 %v590
    %v2699 = vunpack.c.l.b16 %v591
    %v2700 = vunpack.c.h.b16 %v591
    %v2701 = vunpack.c.l.b16 %v592
    %v2702 = vunpack.c.h.b16 %v592
    %v2703 = vunpack.c.l.b16 %v593
    %v2704 = vunpack.c.l.b16 %v594
    %v2705 = vunpack.c.h.b16 %v594
    %v2706 = vunpack.c.l.b16 %v595
    %v2707 = vunpack.c.h.b16 %v595
    %v2708 = vunpack.c.l.b16 %v596
    %v2709 = vunpack.c.h.b16 %v596
    %v2710 = vunpack.c.l.b16 %v597
    %v2711 = vunpack.c.l.b16 %v598
    %v2712 = vunpack.c.h.b16 %v598
    %v2713 = vunpack.c.l.b16 %v599
    %v2714 = vunpack.c.h.b16 %v599
    %v2715 = vunpack.c.l.b16 %v600
    %v2716 = vunpack.c.h.b16 %v600
    %v2717 = vunpack.c.l.b16 %v601
    %v2718 = vunpack.c.l.b16 %v602
    %v2719 = vunpack.c.h.b16 %v602
    %v2720 = vunpack.c.l.b16 %v603
    %v2721 = vunpack.c.h.b16 %v603
    %v2722 = vunpack.c.l.b16 %v604
    %v2723 = vunpack.c.h.b16 %v604
    %v2724 = vunpack.c.l.b16 %v605
    %v2725 = vunpack.c.l.b16 %v606
    %v2726 = vunpack.c.h.b16 %v606
    %v2727 = vunpack.c.l.b16 %v607
    %v2728 = vunpack.c.h.b16 %v607
    %v2729 = vunpack.c.l.b16 %v608
    %v2730 = vunpack.c.h.b16 %v608
    %v2731 = vunpack.c.l.b16 %v609
    %v2732 = vunpack.c.l.b16 %v610
    %v2733 = vunpack.c.h.b16 %v610
    %v2734 = vunpack.c.l.b16 %v611
    %v2735 = vunpack.c.h.b16 %v611
    %v2736 = vunpack.c.l.b16 %v612
    %v2737 = vunpack.c.h.b16 %v612
    %v2738 = vunpack.c.l.b16 %v613
    %v2739 = vunpack.c.l.b16 %v614
    %v2740 = vunpack.c.h.b16 %v614
    %v2741 = vunpack.c.l.b16 %v615
    %v2742 = vunpack.c.h.b16 %v615
    %v2743 = vunpack.c.l.b16 %v616
    %v2744 = vunpack.c.h.b16 %v616
    %v2745 = vunpack.c.l.b16 %v617
    %v2746 = vunpack.c.l.b16 %v618
    %v2747 = vunpack.c.h.b16 %v618
    %v2748 = vunpack.c.l.b16 %v619
    %v2749 = vunpack.c.h.b16 %v619
    %v2750 = vunpack.c.l.b16 %v620
    %v2751 = vunpack.c.h.b16 %v620
    %v2752 = vunpack.c.l.b16 %v621
    %v2753 = vunpack.c.l.b16 %v622
    %v2754 = vunpack.c.h.b16 %v622
    %v2755 = vunpack.c.l.b16 %v623
    %v2756 = vunpack.c.h.b16 %v623
    %v2757 = vunpack.c.l.b16 %v624
    %v2758 = vunpack.c.h.b16 %v624
    %v2759 = vunpack.c.l.b16 %v625
    %v2760 = vunpack.c.l.b16 %v626
    %v2761 = vunpack.c.h.b16 %v626
    %v2762 = vunpack.c.l.b16 %v627
    %v2763 = vunpack.c.h.b16 %v627
    %v2764 = vunpack.c.l.b16 %v628
    %v2765 = vunpack.c.h.b16 %v628
    %v2766 = vunpack.c.l.b16 %v629
    %v2767 = vunpack.c.l.b16 %v630
    %v2768 = vunpack.c.h.b16 %v630
    %v2769 = vunpack.c.l.b16 %v631
    %v2770 = vunpack.c.h.b16 %v631
    %v2771 = vunpack.c.l.b16 %v632
    %v2772 = vunpack.c.h.b16 %v632
    %v2773 = vunpack.c.l.b16 %v633
    %v2774 = vunpack.c.l.b16 %v634
    %v2775 = vunpack.c.h.b16 %v634
    %v2776 = vunpack.c.l.b16 %v635
    %v2777 = vunpack.c.h.b16 %v635
    %v2778 = vunpack.c.l.b16 %v636
    %v2779 = vunpack.c.h.b16 %v636
    %v2780 = vunpack.c.l.b16 %v637
    %v2781 = vunpack.c.l.b16 %v638
    %v2782 = vunpack.c.h.b16 %v638
    %v2783 = vunpack.c.l.b16 %v639
    %v2784 = vunpack.c.h.b16 %v639
    %v2785 = vunpack.c.l.b16 %v640
    %v2786 = vunpack.c.h.b16 %v640
    %v2787 = vunpack.c.l.b16 %v641
    %v2788 = vunpack.c.l.b16 %v642
    %v2789 = vunpack.c.h.b16 %v642
    %v2790 = vunpack.c.l.b16 %v643
    %v2791 = vunpack.c.h.b16 %v643
    %v2792 = vunpack.c.l.b16 %v644
    %v2793 = vunpack.c.h.b16 %v644
    %v2794 = vunpack.c.l.b16 %v645
    %v2795 = vunpack.c.l.b16 %v646
    %v2796 = vunpack.c.h.b16 %v646
    %v2797 = vunpack.c.l.b16 %v647
    %v2798 = vunpack.c.h.b16 %v647
    %v2799 = vunpack.c.l.b16 %v648
    %v2800 = vunpack.c.h.b16 %v648
    %v2801 = vunpack.c.l.b16 %v649
    %v2802 = vunpack.c.l.b16 %v650
    %v2803 = vunpack.c.h.b16 %v650
    %v2804 = vunpack.c.l.b16 %v651
    %v2805 = vunpack.c.h.b16 %v651
    %v2806 = vunpack.c.l.b16 %v652
    %v2807 = vunpack.c.h.b16 %v652
    %v2808 = vunpack.c.l.b16 %v653
    %v2809 = vunpack.c.l.b16 %v654
    %v2810 = vunpack.c.h.b16 %v654
    %v2811 = vunpack.c.l.b16 %v655
    %v2812 = vunpack.c.h.b16 %v655
    %v2813 = vunpack.c.l.b16 %v656
    %v2814 = vunpack.c.h.b16 %v656
    %v2815 = vunpack.c.l.b16 %v657
    %v2816 = vunpack.c.l.b16 %v658
    %v2817 = vunpack.c.h.b16 %v658
    %v2818 = vunpack.c.l.b16 %v659
    %v2819 = vunpack.c.h.b16 %v659
    %v2820 = vunpack.c.l.b16 %v660
    %v2821 = vunpack.c.h.b16 %v660
    %v2822 = vunpack.c.l.b16 %v661
    %v2823 = vunpack.c.l.b16 %v662
    %v2824 = vunpack.c.h.b16 %v662
    %v2825 = vunpack.c.l.b16 %v663
    %v2826 = vunpack.c.h.b16 %v663
    %v2827 = vunpack.c.l.b16 %v664
    %v2828 = vunpack.c.h.b16 %v664
    %v2829 = vunpack.c.l.b16 %v665
    %v2830 = vunpack.c.l.b16 %v666
    %v2831 = vunpack.c.h.b16 %v666
    %v2832 = vunpack.c.l.b16 %v667
    %v2833 = vunpack.c.h.b16 %v667
    %v2834 = vunpack.c.l.b16 %v668
    %v2835 = vunpack.c.h.b16 %v668
    %v2836 = vunpack.c.l.b16 %v669
    %v2837 = vunpack.c.l.b16 %v670
    %v2838 = vunpack.c.h.b16 %v670
    %v2839 = vunpack.c.l.b16 %v671
    %v2840 = vunpack.c.h.b16 %v671
    %v2841 = vunpack.c.l.b16 %v672
    %v2842 = vunpack.c.h.b16 %v672
    %v2843 = vunpack.c.l.b16 %v673
    %v2844 = vunpack.c.l.b16 %v674
    %v2845 = vunpack.c.h.b16 %v674
    %v2846 = vunpack.c.l.b16 %v675
    %v2847 = vunpack.c.h.b16 %v675
    %v2848 = vunpack.c.l.b16 %v676
    %v2849 = vunpack.c.h.b16 %v676
    %v2850 = vunpack.c.l.b16 %v677
    %v2851 = vunpack.c.l.b16 %v678
    %v2852 = vunpack.c.h.b16 %v678
    %v2853 = vunpack.c.l.b16 %v679
    %v2854 = vunpack.c.h.b16 %v679
    %v2855 = vunpack.c.l.b16 %v680
    %v2856 = vunpack.c.h.b16 %v680
    %v2857 = vunpack.c.l.b16 %v681
    %v2858 = vunpack.c.l.b16 %v682
    %v2859 = vunpack.c.h.b16 %v682
    %v2860 = vunpack.c.l.b16 %v683
    %v2861 = vunpack.c.h.b16 %v683
    %v2862 = vunpack.c.l.b16 %v684
    %v2863 = vunpack.c.h.b16 %v684
    %v2864 = vunpack.c.l.b16 %v685
    %v2865 = vunpack.c.l.b16 %v686
    %v2866 = vunpack.c.h.b16 %v686
    %v2867 = vunpack.c.l.b16 %v687
    %v2868 = vunpack.c.h.b16 %v687
    %v2869 = vunpack.c.l.b16 %v688
    %v2870 = vunpack.c.h.b16 %v688
    %v2871 = vunpack.c.l.b16 %v689
    %v2872 = vunpack.c.l.b16 %v690
    %v2873 = vunpack.c.h.b16 %v690
    %v2874 = vunpack.c.l.b16 %v691
    %v2875 = vunpack.c.h.b16 %v691
    %v2876 = vunpack.c.l.b16 %v692
    %v2877 = vunpack.c.h.b16 %v692
    %v2878 = vunpack.c.l.b16 %v693
    %v2879 = vunpack.c.l.b16 %v694
    %v2880 = vunpack.c.h.b16 %v694
    %v2881 = vunpack.c.l.b16 %v695
    %v2882 = vunpack.c.h.b16 %v695
    %v2883 = vunpack.c.l.b16 %v696
    %v2884 = vunpack.c.h.b16 %v696
    %v2885 = vunpack.c.l.b16 %v697
    %v2886 = vunpack.c.l.b16 %v698
    %v2887 = vunpack.c.h.b16 %v698
    %v2888 = vunpack.c.l.b16 %v699
    %v2889 = vunpack.c.h.b16 %v699
    %v2890 = vunpack.c.l.b16 %v700
    %v2891 = vunpack.c.h.b16 %v700
    %v2892 = vunpack.c.l.b16 %v701
    %v2893 = vunpack.c.l.b16 %v702
    %v2894 = vunpack.c.h.b16 %v702
    %v2895 = vunpack.c.l.b16 %v703
    %v2896 = vunpack.c.h.b16 %v703
    %v2897 = vunpack.c.l.b16 %v704
    %v2898 = vunpack.c.h.b16 %v704
    %v2899 = vunpack.c.l.b16 %v705
    %v2900 = vunpack.c.l.b16 %v706
    %v2901 = vunpack.c.h.b16 %v706
    %v2902 = vunpack.c.l.b16 %v707
    %v2903 = vunpack.c.h.b16 %v707
    %v2904 = vunpack.c.l.b16 %v708
    %v2905 = vunpack.c.h.b16 %v708
    %v2906 = vunpack.c.l.b16 %v709
    %v2907 = vunpack.c.l.b16 %v710
    %v2908 = vunpack.c.h.b16 %v710
    %v2909 = vunpack.c.l.b16 %v711
    %v2910 = vunpack.c.h.b16 %v711
    %v2911 = vunpack.c.l.b16 %v712
    %v2912 = vunpack.c.h.b16 %v712
    %v2913 = vunpack.c.l.b16 %v713
    %v2914 = vunpack.c.l.b16 %v714
    %v2915 = vunpack.c.h.b16 %v714
    %v2916 = vunpack.c.l.b16 %v715
    %v2917 = vunpack.c.h.b16 %v715
    %v2918 = vunpack.c.l.b16 %v716
    %v2919 = vunpack.c.h.b16 %v716
    %v2920 = vunpack.c.l.b16 %v717
    %v2921 = vunpack.c.l.b16 %v718
    %v2922 = vunpack.c.h.b16 %v718
    %v2923 = vunpack.c.l.b16 %v719
    %v2924 = vunpack.c.h.b16 %v719
    %v2925 = vunpack.c.l.b16 %v720
    %v2926 = vunpack.c.h.b16 %v720
    %v2927 = vunpack.c.l.b16 %v721
    %v2928 = vunpack.c.l.b16 %v722
    %v2929 = vunpack.c.h.b16 %v722
    %v2930 = vunpack.c.l.b16 %v723
    %v2931 = vunpack.c.h.b16 %v723
    %v2932 = vunpack.c.l.b16 %v724
    %v2933 = vunpack.c.h.b16 %v724
    %v2934 = vunpack.c.l.b16 %v725
    %v2935 = vunpack.c.l.b16 %v726
    %v2936 = vunpack.c.h.b16 %v726
    %v2937 = vunpack.c.l.b16 %v727
    %v2938 = vunpack.c.h.b16 %v727
    %v2939 = vunpack.c.l.b16 %v728
    %v2940 = vunpack.c.h.b16 %v728
    %v2941 = vunpack.c.l.b16 %v729
    %v2942 = vunpack.c.l.b16 %v730
    %v2943 = vunpack.c.h.b16 %v730
    %v2944 = vunpack.c.l.b16 %v731
    %v2945 = vunpack.c.h.b16 %v731
    %v2946 = vunpack.c.l.b16 %v732
    %v2947 = vunpack.c.h.b16 %v732
    %v2948 = vunpack.c.l.b16 %v733
    %v2949 = vunpack.c.l.b16 %v734
    %v2950 = vunpack.c.h.b16 %v734
    %v2951 = vunpack.c.l.b16 %v735
    %v2952 = vunpack.c.h.b16 %v735
    %v2953 = vunpack.c.l.b16 %v736
    %v2954 = vunpack.c.h.b16 %v736
    %v2955 = vunpack.c.l.b16 %v737
    %v2956 = vunpack.c.l.b16 %v738
    %v2957 = vunpack.c.h.b16 %v738
    %v2958 = vunpack.c.l.b16 %v739
    %v2959 = vunpack.c.h.b16 %v739
    %v2960 = vunpack.c.l.b16 %v740
    %v2961 = vunpack.c.h.b16 %v740
    %v2962 = vunpack.c.l.b16 %v741
    %v2963 = vunpack.c.l.b16 %v742
    %v2964 = vunpack.c.h.b16 %v742
    %v2965 = vunpack.c.l.b16 %v743
    %v2966 = vunpack.c.h.b16 %v743
    %v2967 = vunpack.c.l.b16 %v744
    %v2968 = vunpack.c.h.b16 %v744
    %v2969 = vunpack.c.l.b16 %v745
    %v2970 = vunpack.c.l.b16 %v746
    %v2971 = vunpack.c.h.b16 %v746
    %v2972 = vunpack.c.l.b16 %v747
    %v2973 = vunpack.c.h.b16 %v747
    %v2974 = vunpack.c.l.b16 %v748
    %v2975 = vunpack.c.h.b16 %v748
    %v2976 = vunpack.c.l.b16 %v749
    %v2977 = vunpack.c.l.b16 %v750
    %v2978 = vunpack.c.h.b16 %v750
    %v2979 = vunpack.c.l.b16 %v751
    %v2980 = vunpack.c.h.b16 %v751
    %v2981 = vunpack.c.l.b16 %v752
    %v2982 = vunpack.c.h.b16 %v752
    %v2983 = vunpack.c.l.b16 %v753
    %v2984 = vunpack.c.l.b16 %v754
    %v2985 = vunpack.c.h.b16 %v754
    %v2986 = vunpack.c.l.b16 %v755
    %v2987 = vunpack.c.h.b16 %v755
    %v2988 = vunpack.c.l.b16 %v756
    %v2989 = vunpack.c.h.b16 %v756
    %v2990 = vunpack.c.l.b16 %v757
    %v2991 = vunpack.c.l.b16 %v758
    %v2992 = vunpack.c.h.b16 %v758
    %v2993 = vunpack.c.l.b16 %v759
    %v2994 = vunpack.c.h.b16 %v759
    %v2995 = vunpack.c.l.b16 %v760
    %v2996 = vunpack.c.h.b16 %v760
    %v2997 = vunpack.c.l.b16 %v761
    %v2998 = vunpack.c.l.b16 %v762
    %v2999 = vunpack.c.h.b16 %v762
    %v3000 = vunpack.c.l.b16 %v763
    %v3001 = vunpack.c.h.b16 %v763
    %v3002 = vunpack.c.l.b16 %v764
    %v3003 = vunpack.c.h.b16 %v764
    %v3004 = vunpack.c.l.b16 %v765
    %v3005 = vunpack.c.l.b16 %v766
    %v3006 = vunpack.c.h.b16 %v766
    %v3007 = vunpack.c.l.b16 %v767
    %v3008 = vunpack.c.h.b16 %v767
    %v3009 = vunpack.c.l.b16 %v768
    %v3010 = vunpack.c.h.b16 %v768
    %v3011 = vunpack.c.l.b16 %v769
    %v3012 = vunpack.c.l.b16 %v770
    %v3013 = vunpack.c.h.b16 %v770
    %v3014 = vunpack.c.l.b16 %v771
    %v3015 = vunpack.c.h.b16 %v771
    %v3016 = vunpack.c.l.b16 %v772
    %v3017 = vunpack.c.h.b16 %v772
    %v3018 = vunpack.c.l.b16 %v773
    %v3019 = vunpack.c.l.b16 %v774
    %v3020 = vunpack.c.h.b16 %v774
    %v3021 = vunpack.c.l.b16 %v775
    %v3022 = vunpack.c.h.b16 %v775
    %v3023 = vunpack.c.l.b16 %v776
    %v3024 = vunpack.c.h.b16 %v776
    %v3025 = vunpack.c.l.b16 %v777
    %v3026 = vunpack.c.l.b16 %v778
    %v3027 = vunpack.c.h.b16 %v778
    %v3028 = vunpack.c.l.b16 %v779
    %v3029 = vunpack.c.h.b16 %v779
    %v3030 = vunpack.c.l.b16 %v780
    %v3031 = vunpack.c.h.b16 %v780
    %v3032 = vunpack.c.l.b16 %v781
    %v3033 = vunpack.c.l.b16 %v782
    %v3034 = vunpack.c.h.b16 %v782
    %v3035 = vunpack.c.l.b16 %v783
    %v3036 = vunpack.c.h.b16 %v783
    %v3037 = vunpack.c.l.b16 %v784
    %v3038 = vunpack.c.h.b16 %v784
    %v3039 = vunpack.c.l.b16 %v785
    %v3040 = vunpack.c.l.b16 %v786
    %v3041 = vunpack.c.h.b16 %v786
    %v3042 = vunpack.c.l.b16 %v787
    %v3043 = vunpack.c.h.b16 %v787
    %v3044 = vunpack.c.l.b16 %v788
    %v3045 = vunpack.c.h.b16 %v788
    %v3046 = vunpack.c.l.b16 %v789
    %v3047 = vunpack.c.l.b16 %v790
    %v3048 = vunpack.c.h.b16 %v790
    %v3049 = vunpack.c.l.b16 %v791
    %v3050 = vunpack.c.h.b16 %v791
    %v3051 = vunpack.c.l.b16 %v792
    %v3052 = vunpack.c.h.b16 %v792
    %v3053 = vunpack.c.l.b16 %v793
    %v3054 = vunpack.c.l.b16 %v794
    %v3055 = vunpack.c.h.b16 %v794
    %v3056 = vunpack.c.l.b16 %v795
    %v3057 = vunpack.c.h.b16 %v795
    %v3058 = vunpack.c.l.b16 %v796
    %v3059 = vunpack.c.h.b16 %v796
    %v3060 = vunpack.c.l.b16 %v797
    %v3061 = vunpack.c.l.b16 %v798
    %v3062 = vunpack.c.h.b16 %v798
    %v3063 = vunpack.c.l.b16 %v799
    %v3064 = vunpack.c.h.b16 %v799
    %v3065 = vunpack.c.l.b16 %v800
    %v3066 = vunpack.c.h.b16 %v800
    %v3067 = vunpack.c.l.b16 %v801
    %v3068 = vunpack.c.l.b16 %v802
    %v3069 = vunpack.c.h.b16 %v802
    %v3070 = vunpack.c.l.b16 %v803
    %v3071 = vunpack.c.h.b16 %v803
    %v3072 = vunpack.c.l.b16 %v804
    %v3073 = vunpack.c.h.b16 %v804
    %v3074 = vunpack.c.l.b16 %v805
    %v3075 = vunpack.c.l.b16 %v806
    %v3076 = vunpack.c.h.b16 %v806
    %v3077 = vunpack.c.l.b16 %v807
    %v3078 = vunpack.c.h.b16 %v807
    %v3079 = vunpack.c.l.b16 %v808
    %v3080 = vunpack.c.h.b16 %v808
    %v3081 = vunpack.c.l.b16 %v809
    %v3082 = vunpack.c.l.b16 %v810
    %v3083 = vunpack.c.h.b16 %v810
    %v3084 = vunpack.c.l.b16 %v811
    %v3085 = vunpack.c.h.b16 %v811
    %v3086 = vunpack.c.l.b16 %v812
    %v3087 = vunpack.c.h.b16 %v812
    %v3088 = vunpack.c.l.b16 %v813
    %v3089 = vunpack.c.l.b16 %v814
    %v3090 = vunpack.c.h.b16 %v814
    %v3091 = vunpack.c.l.b16 %v815
    %v3092 = vunpack.c.h.b16 %v815
    %v3093 = vunpack.c.l.b16 %v816
    %v3094 = vunpack.c.h.b16 %v816
    %v3095 = vunpack.c.l.b16 %v817
    %v3096 = vunpack.c.l.b16 %v818
    %v3097 = vunpack.c.h.b16 %v818
    %v3098 = vunpack.c.l.b16 %v819
    %v3099 = vunpack.c.h.b16 %v819
    %v3100 = vunpack.c.l.b16 %v820
    %v3101 = vunpack.c.h.b16 %v820
    %v3102 = vunpack.c.l.b16 %v821
    %v3103 = vunpack.c.l.b16 %v822
    %v3104 = vunpack.c.h.b16 %v822
    %v3105 = vunpack.c.l.b16 %v823
    %v3106 = vunpack.c.h.b16 %v823
    %v3107 = vunpack.c.l.b16 %v824
    %v3108 = vunpack.c.h.b16 %v824
    %v3109 = vunpack.c.l.b16 %v825
    %v3110 = vunpack.c.l.b16 %v826
    %v3111 = vunpack.c.h.b16 %v826
    %v3112 = vunpack.c.l.b16 %v827
    %v3113 = vunpack.c.h.b16 %v827
    %v3114 = vunpack.c.l.b16 %v828
    %v3115 = vunpack.c.h.b16 %v828
    %v3116 = vunpack.c.l.b16 %v829
    %v3117 = vunpack.c.l.b16 %v830
    %v3118 = vunpack.c.h.b16 %v830
    %v3119 = vunpack.c.l.b16 %v831
    %v3120 = vunpack.c.h.b16 %v831
    %v3121 = vunpack.c.l.b16 %v832
    %v3122 = vunpack.c.h.b16 %v832
    %v3123 = vunpack.c.l.b16 %v833
    %v3124 = vunpack.c.l.b16 %v834
    %v3125 = vunpack.c.h.b16 %v834
    %v3126 = vunpack.c.l.b16 %v835
    %v3127 = vunpack.c.h.b16 %v835
    %v3128 = vunpack.c.l.b16 %v836
    %v3129 = vunpack.c.h.b16 %v836
    %v3130 = vunpack.c.l.b16 %v837
    %v3131 = vunpack.c.l.b16 %v838
    %v3132 = vunpack.c.h.b16 %v838
    %v3133 = vunpack.c.l.b16 %v839
    %v3134 = vunpack.c.h.b16 %v839
    %v3135 = vunpack.c.l.b16 %v840
    %v3136 = vunpack.c.h.b16 %v840
    %v3137 = vunpack.c.l.b16 %v841
    %v3138 = vunpack.c.l.b16 %v842
    %v3139 = vunpack.c.h.b16 %v842
    %v3140 = vunpack.c.l.b16 %v843
    %v3141 = vunpack.c.h.b16 %v843
    %v3142 = vunpack.c.l.b16 %v844
    %v3143 = vunpack.c.h.b16 %v844
    %v3144 = vunpack.c.l.b16 %v845
    %v3145 = vunpack.c.l.b16 %v846
    %v3146 = vunpack.c.h.b16 %v846
    %v3147 = vunpack.c.l.b16 %v847
    %v3148 = vunpack.c.h.b16 %v847
    %v3149 = vunpack.c.l.b16 %v848
    %v3150 = vunpack.c.h.b16 %v848
    %v3151 = vunpack.c.l.b16 %v849
    %v3152 = vpack.c.b16 %v1759, %v1752
    %v3153 = vpack.c.b16 %v1760, %v1753
    %v3154 = vpack.c.b16 %v1761, %v1754
    %v3155 = vpack.c.b16 %v1762, %v1755
    %v3156 = vpack.c.b16 %v1763, %v1756
    %v3157 = vpack.c.b16 %v1764, %v1757
    %v3158 = vpack.c.b16 %v1765, %v1758
    %v3159 = vpack.c.b16 %v1773, %v1766
    %v3160 = vpack.c.b16 %v1774, %v1767
    %v3161 = vpack.c.b16 %v1775, %v1768
    %v3162 = vpack.c.b16 %v1776, %v1769
    %v3163 = vpack.c.b16 %v1777, %v1770
    %v3164 = vpack.c.b16 %v1778, %v1771
    %v3165 = vpack.c.b16 %v1779, %v1772
    %v3166 = vpack.c.b16 %v1787, %v1780
    %v3167 = vpack.c.b16 %v1788, %v1781
    %v3168 = vpack.c.b16 %v1789, %v1782
    %v3169 = vpack.c.b16 %v1790, %v1783
    %v3170 = vpack.c.b16 %v1791, %v1784
    %v3171 = vpack.c.b16 %v1792, %v1785
    %v3172 = vpack.c.b16 %v1793, %v1786
    %v3173 = vpack.c.b16 %v1801, %v1794
    %v3174 = vpack.c.b16 %v1802, %v1795
    %v3175 = vpack.c.b16 %v1803, %v1796
    %v3176 = vpack.c.b16 %v1804, %v1797
    %v3177 = vpack.c.b16 %v1805, %v1798
    %v3178 = vpack.c.b16 %v1806, %v1799
    %v3179 = vpack.c.b16 %v1807, %v1800
    %v3180 = vpack.c.b16 %v1815, %v1808
    %v3181 = vpack.c.b16 %v1816, %v1809
    %v3182 = vpack.c.b16 %v1817, %v1810
    %v3183 = vpack.c.b16 %v1818, %v1811
    %v3184 = vpack.c.b16 %v1819, %v1812
    %v3185 = vpack.c.b16 %v1820, %v1813
    %v3186 = vpack.c.b16 %v1821, %v1814
    %v3187 = vpack.c.b16 %v1829, %v1822
    %v3188 = vpack.c.b16 %v1830, %v1823
    %v3189 = vpack.c.b16 %v1831, %v1824
    %v3190 = vpack.c.b16 %v1832, %v1825
    %v3191 = vpack.c.b16 %v1833, %v1826
    %v3192 = vpack.c.b16 %v1834, %v1827
    %v3193 = vpack.c.b16 %v1835, %v1828
    %v3194 = vpack.c.b16 %v1843, %v1836
    %v3195 = vpack.c.b16 %v1844, %v1837
    %v3196 = vpack.c.b16 %v1845, %v1838
    %v3197 = vpack.c.b16 %v1846, %v1839
    %v3198 = vpack.c.b16 %v1847, %v1840
    %v3199 = vpack.c.b16 %v1848, %v1841
    %v3200 = vpack.c.b16 %v1849, %v1842
    %v3201 = vpack.c.b16 %v1857, %v1850
    %v3202 = vpack.c.b16 %v1858, %v1851
    %v3203 = vpack.c.b16 %v1859, %v1852
    %v3204 = vpack.c.b16 %v1860, %v1853
    %v3205 = vpack.c.b16 %v1861, %v1854
    %v3206 = vpack.c.b16 %v1862, %v1855
    %v3207 = vpack.c.b16 %v1863, %v1856
    %v3208 = vpack.c.b16 %v1871, %v1864
    %v3209 = vpack.c.b16 %v1872, %v1865
    %v3210 = vpack.c.b16 %v1873, %v1866
    %v3211 = vpack.c.b16 %v1874, %v1867
    %v3212 = vpack.c.b16 %v1875, %v1868
    %v3213 = vpack.c.b16 %v1876, %v1869
    %v3214 = vpack.c.b16 %v1877, %v1870
    %v3215 = vpack.c.b16 %v1885, %v1878
    %v3216 = vpack.c.b16 %v1886, %v1879
    %v3217 = vpack.c.b16 %v1887, %v1880
    %v3218 = vpack.c.b16 %v1888, %v1881
    %v3219 = vpack.c.b16 %v1889, %v1882
    %v3220 = vpack.c.b16 %v1890, %v1883
    %v3221 = vpack.c.b16 %v1891, %v1884
    %v3222 = vpack.c.b16 %v1899, %v1892
    %v3223 = vpack.c.b16 %v1900, %v1893
    %v3224 = vpack.c.b16 %v1901, %v1894
    %v3225 = vpack.c.b16 %v1902, %v1895
    %v3226 = vpack.c.b16 %v1903, %v1896
    %v3227 = vpack.c.b16 %v1904, %v1897
    %v3228 = vpack.c.b16 %v1905, %v1898
    %v3229 = vpack.c.b16 %v1913, %v1906
    %v3230 = vpack.c.b16 %v1914, %v1907
    %v3231 = vpack.c.b16 %v1915, %v1908
    %v3232 = vpack.c.b16 %v1916, %v1909
    %v3233 = vpack.c.b16 %v1917, %v1910
    %v3234 = vpack.c.b16 %v1918, %v1911
    %v3235 = vpack.c.b16 %v1919, %v1912
    %v3236 = vpack.c.b16 %v1927, %v1920
    %v3237 = vpack.c.b16 %v1928, %v1921
    %v3238 = vpack.c.b16 %v1929, %v1922
    %v3239 = vpack.c.b16 %v1930, %v1923
    %v3240 = vpack.c.b16 %v1931, %v1924
    %v3241 = vpack.c.b16 %v1932, %v1925
    %v3242 = vpack.c.b16 %v1933, %v1926
    %v3243 = vpack.c.b16 %v1941, %v1934
    %v3244 = vpack.c.b16 %v1942, %v1935
    %v3245 = vpack.c.b16 %v1943, %v1936
    %v3246 = vpack.c.b16 %v1944, %v1937
    %v3247 = vpack.c.b16 %v1945, %v1938
    %v3248 = vpack.c.b16 %v1946, %v1939
    %v3249 = vpack.c.b16 %v1947, %v1940
    %v3250 = vpack.c.b16 %v1955, %v1948
    %v3251 = vpack.c.b16 %v1956, %v1949
    %v3252 = vpack.c.b16 %v1957, %v1950
    %v3253 = vpack.c.b16 %v1958, %v1951
    %v3254 = vpack.c.b16 %v1959, %v1952
    %v3255 = vpack.c.b16 %v1960, %v1953
    %v3256 = vpack.c.b16 %v1961, %v1954
    %v3257 = vpack.c.b16 %v1969, %v1962
    %v3258 = vpack.c.b16 %v1970, %v1963
    %v3259 = vpack.c.b16 %v1971, %v1964
    %v3260 = vpack.c.b16 %v1972, %v1965
    %v3261 = vpack.c.b16 %v1973, %v1966
    %v3262 = vpack.c.b16 %v1974, %v1967
    %v3263 = vpack.c.b16 %v1975, %v1968
    %v3264 = vpack.c.b16 %v1983, %v1976
    %v3265 = vpack.c.b16 %v1984, %v1977
    %v3266 = vpack.c.b16 %v1985, %v1978
    %v3267 = vpack.c.b16 %v1986, %v1979
    %v3268 = vpack.c.b16 %v1987, %v1980
    %v3269 = vpack.c.b16 %v1988, %v1981
    %v3270 = vpack.c.b16 %v1989, %v1982
    %v3271 = vpack.c.b16 %v1997, %v1990
    %v3272 = vpack.c.b16 %v1998, %v1991
    %v3273 = vpack.c.b16 %v1999, %v1992
    %v3274 = vpack.c.b16 %v2000, %v1993
    %v3275 = vpack.c.b16 %v2001, %v1994
    %v3276 = vpack.c.b16 %v2002, %v1995
    %v3277 = vpack.c.b16 %v2003, %v1996
    %v3278 = vpack.c.b16 %v2011, %v2004
    %v3279 = vpack.c.b16 %v2012, %v2005
    %v3280 = vpack.c.b16 %v2013, %v2006
    %v3281 = vpack.c.b16 %v2014, %v2007
    %v3282 = vpack.c.b16 %v2015, %v2008
    %v3283 = vpack.c.b16 %v2016, %v2009
    %v3284 = vpack.c.b16 %v2017, %v2010
    %v3285 = vpack.c.b16 %v2025, %v2018
    %v3286 = vpack.c.b16 %v2026, %v2019
    %v3287 = vpack.c.b16 %v2027, %v2020
    %v3288 = vpack.c.b16 %v2028, %v2021
    %v3289 = vpack.c.b16 %v2029, %v2022
    %v3290 = vpack.c.b16 %v2030, %v2023
    %v3291 = vpack.c.b16 %v2031, %v2024
    %v3292 = vpack.c.b16 %v2039, %v2032
    %v3293 = vpack.c.b16 %v2040, %v2033
    %v3294 = vpack.c.b16 %v2041, %v2034
    %v3295 = vpack.c.b16 %v2042, %v2035
    %v3296 = vpack.c.b16 %v2043, %v2036
    %v3297 = vpack.c.b16 %v2044, %v2037
    %v3298 = vpack.c.b16 %v2045, %v2038
    %v3299 = vpack.c.b16 %v2053, %v2046
    %v3300 = vpack.c.b16 %v2054, %v2047
    %v3301 = vpack.c.b16 %v2055, %v2048
    %v3302 = vpack.c.b16 %v2056, %v2049
    %v3303 = vpack.c.b16 %v2057, %v2050
    %v3304 = vpack.c.b16 %v2058, %v2051
    %v3305 = vpack.c.b16 %v2059, %v2052
    %v3306 = vpack.c.b16 %v2067, %v2060
    %v3307 = vpack.c.b16 %v2068, %v2061
    %v3308 = vpack.c.b16 %v2069, %v2062
    %v3309 = vpack.c.b16 %v2070, %v2063
    %v3310 = vpack.c.b16 %v2071, %v2064
    %v3311 = vpack.c.b16 %v2072, %v2065
    %v3312 = vpack.c.b16 %v2073, %v2066
    %v3313 = vpack.c.b16 %v2081, %v2074
    %v3314 = vpack.c.b16 %v2082, %v2075
    %v3315 = vpack.c.b16 %v2083, %v2076
    %v3316 = vpack.c.b16 %v2084, %v2077
    %v3317 = vpack.c.b16 %v2085, %v2078
    %v3318 = vpack.c.b16 %v2086, %v2079
    %v3319 = vpack.c.b16 %v2087, %v2080
    %v3320 = vpack.c.b16 %v2095, %v2088
    %v3321 = vpack.c.b16 %v2096, %v2089
    %v3322 = vpack.c.b16 %v2097, %v2090
    %v3323 = vpack.c.b16 %v2098, %v2091
    %v3324 = vpack.c.b16 %v2099, %v2092
    %v3325 = vpack.c.b16 %v2100, %v2093
    %v3326 = vpack.c.b16 %v2101, %v2094
    %v3327 = vpack.c.b16 %v2109, %v2102
    %v3328 = vpack.c.b16 %v2110, %v2103
    %v3329 = vpack.c.b16 %v2111, %v2104
    %v3330 = vpack.c.b16 %v2112, %v2105
    %v3331 = vpack.c.b16 %v2113, %v2106
    %v3332 = vpack.c.b16 %v2114, %v2107
    %v3333 = vpack.c.b16 %v2115, %v2108
    %v3334 = vpack.c.b16 %v2123, %v2116
    %v3335 = vpack.c.b16 %v2124, %v2117
    %v3336 = vpack.c.b16 %v2125, %v2118
    %v3337 = vpack.c.b16 %v2126, %v2119
    %v3338 = vpack.c.b16 %v2127, %v2120
    %v3339 = vpack.c.b16 %v2128, %v2121
    %v3340 = vpack.c.b16 %v2129, %v2122
    %v3341 = vpack.c.b16 %v2137, %v2130
    %v3342 = vpack.c.b16 %v2138, %v2131
    %v3343 = vpack.c.b16 %v2139, %v2132
    %v3344 = vpack.c.b16 %v2140, %v2133
    %v3345 = vpack.c.b16 %v2141, %v2134
    %v3346 = vpack.c.b16 %v2142, %v2135
    %v3347 = vpack.c.b16 %v2143, %v2136
    %v3348 = vpack.c.b16 %v2151, %v2144
    %v3349 = vpack.c.b16 %v2152, %v2145
    %v3350 = vpack.c.b16 %v2153, %v2146
    %v3351 = vpack.c.b16 %v2154, %v2147
    %v3352 = vpack.c.b16 %v2155, %v2148
    %v3353 = vpack.c.b16 %v2156, %v2149
    %v3354 = vpack.c.b16 %v2157, %v2150
    %v3355 = vpack.c.b16 %v2165, %v2158
    %v3356 = vpack.c.b16 %v2166, %v2159
    %v3357 = vpack.c.b16 %v2167, %v2160
    %v3358 = vpack.c.b16 %v2168, %v2161
    %v3359 = vpack.c.b16 %v2169, %v2162
    %v3360 = vpack.c.b16 %v2170, %v2163
    %v3361 = vpack.c.b16 %v2171, %v2164
    %v3362 = vpack.c.b16 %v2179, %v2172
    %v3363 = vpack.c.b16 %v2180, %v2173
    %v3364 = vpack.c.b16 %v2181, %v2174
    %v3365 = vpack.c.b16 %v2182, %v2175
    %v3366 = vpack.c.b16 %v2183, %v2176
    %v3367 = vpack.c.b16 %v2184, %v2177
    %v3368 = vpack.c.b16 %v2185, %v2178
    %v3369 = vpack.c.b16 %v2193, %v2186
    %v3370 = vpack.c.b16 %v2194, %v2187
    %v3371 = vpack.c.b16 %v2195, %v2188
    %v3372 = vpack.c.b16 %v2196, %v2189
    %v3373 = vpack.c.b16 %v2197, %v2190
    %v3374 = vpack.c.b16 %v2198, %v2191
    %v3375 = vpack.c.b16 %v2199, %v2192
    %v3376 = vpack.c.b16 %v2207, %v2200
    %v3377 = vpack.c.b16 %v2208, %v2201
    %v3378 = vpack.c.b16 %v2209, %v2202
    %v3379 = vpack.c.b16 %v2210, %v2203
    %v3380 = vpack.c.b16 %v2211, %v2204
    %v3381 = vpack.c.b16 %v2212, %v2205
    %v3382 = vpack.c.b16 %v2213, %v2206
    %v3383 = vpack.c.b16 %v2221, %v2214
    %v3384 = vpack.c.b16 %v2222, %v2215
    %v3385 = vpack.c.b16 %v2223, %v2216
    %v3386 = vpack.c.b16 %v2224, %v2217
    %v3387 = vpack.c.b16 %v2225, %v2218
    %v3388 = vpack.c.b16 %v2226, %v2219
    %v3389 = vpack.c.b16 %v2227, %v2220
    %v3390 = vpack.c.b16 %v2235, %v2228
    %v3391 = vpack.c.b16 %v2236, %v2229
    %v3392 = vpack.c.b16 %v2237, %v2230
    %v3393 = vpack.c.b16 %v2238, %v2231
    %v3394 = vpack.c.b16 %v2239, %v2232
    %v3395 = vpack.c.b16 %v2240, %v2233
    %v3396 = vpack.c.b16 %v2241, %v2234
    %v3397 = vpack.c.b16 %v2249, %v2242
    %v3398 = vpack.c.b16 %v2250, %v2243
    %v3399 = vpack.c.b16 %v2251, %v2244
    %v3400 = vpack.c.b16 %v2252, %v2245
    %v3401 = vpack.c.b16 %v2253, %v2246
    %v3402 = vpack.c.b16 %v2254, %v2247
    %v3403 = vpack.c.b16 %v2255, %v2248
    %v3404 = vpack.c.b16 %v2263, %v2256
    %v3405 = vpack.c.b16 %v2264, %v2257
    %v3406 = vpack.c.b16 %v2265, %v2258
    %v3407 = vpack.c.b16 %v2266, %v2259
    %v3408 = vpack.c.b16 %v2267, %v2260
    %v3409 = vpack.c.b16 %v2268, %v2261
    %v3410 = vpack.c.b16 %v2269, %v2262
    %v3411 = vpack.c.b16 %v2277, %v2270
    %v3412 = vpack.c.b16 %v2278, %v2271
    %v3413 = vpack.c.b16 %v2279, %v2272
    %v3414 = vpack.c.b16 %v2280, %v2273
    %v3415 = vpack.c.b16 %v2281, %v2274
    %v3416 = vpack.c.b16 %v2282, %v2275
    %v3417 = vpack.c.b16 %v2283, %v2276
    %v3418 = vpack.c.b16 %v2291, %v2284
    %v3419 = vpack.c.b16 %v2292, %v2285
    %v3420 = vpack.c.b16 %v2293, %v2286
    %v3421 = vpack.c.b16 %v2294, %v2287
    %v3422 = vpack.c.b16 %v2295, %v2288
    %v3423 = vpack.c.b16 %v2296, %v2289
    %v3424 = vpack.c.b16 %v2297, %v2290
    %v3425 = vpack.c.b16 %v2305, %v2298
    %v3426 = vpack.c.b16 %v2306, %v2299
    %v3427 = vpack.c.b16 %v2307, %v2300
    %v3428 = vpack.c.b16 %v2308, %v2301
    %v3429 = vpack.c.b16 %v2309, %v2302
    %v3430 = vpack.c.b16 %v2310, %v2303
    %v3431 = vpack.c.b16 %v2311, %v2304
    %v3432 = vpack.c.b16 %v2319, %v2312
    %v3433 = vpack.c.b16 %v2320, %v2313
    %v3434 = vpack.c.b16 %v2321, %v2314
    %v3435 = vpack.c.b16 %v2322, %v2315
    %v3436 = vpack.c.b16 %v2323, %v2316
    %v3437 = vpack.c.b16 %v2324, %v2317
    %v3438 = vpack.c.b16 %v2325, %v2318
    %v3439 = vpack.c.b16 %v2333, %v2326
    %v3440 = vpack.c.b16 %v2334, %v2327
    %v3441 = vpack.c.b16 %v2335, %v2328
    %v3442 = vpack.c.b16 %v2336, %v2329
    %v3443 = vpack.c.b16 %v2337, %v2330
    %v3444 = vpack.c.b16 %v2338, %v2331
    %v3445 = vpack.c.b16 %v2339, %v2332
    %v3446 = vpack.c.b16 %v2347, %v2340
    %v3447 = vpack.c.b16 %v2348, %v2341
    %v3448 = vpack.c.b16 %v2349, %v2342
    %v3449 = vpack.c.b16 %v2350, %v2343
    %v3450 = vpack.c.b16 %v2351, %v2344
    %v3451 = vpack.c.b16 %v2352, %v2345
    %v3452 = vpack.c.b16 %v2353, %v2346
    %v3453 = vpack.c.b16 %v2361, %v2354
    %v3454 = vpack.c.b16 %v2362, %v2355
    %v3455 = vpack.c.b16 %v2363, %v2356
    %v3456 = vpack.c.b16 %v2364, %v2357
    %v3457 = vpack.c.b16 %v2365, %v2358
    %v3458 = vpack.c.b16 %v2366, %v2359
    %v3459 = vpack.c.b16 %v2367, %v2360
    %v3460 = vpack.c.b16 %v2375, %v2368
    %v3461 = vpack.c.b16 %v2376, %v2369
    %v3462 = vpack.c.b16 %v2377, %v2370
    %v3463 = vpack.c.b16 %v2378, %v2371
    %v3464 = vpack.c.b16 %v2379, %v2372
    %v3465 = vpack.c.b16 %v2380, %v2373
    %v3466 = vpack.c.b16 %v2381, %v2374
    %v3467 = vpack.c.b16 %v2389, %v2382
    %v3468 = vpack.c.b16 %v2390, %v2383
    %v3469 = vpack.c.b16 %v2391, %v2384
    %v3470 = vpack.c.b16 %v2392, %v2385
    %v3471 = vpack.c.b16 %v2393, %v2386
    %v3472 = vpack.c.b16 %v2394, %v2387
    %v3473 = vpack.c.b16 %v2395, %v2388
    %v3474 = vpack.c.b16 %v2403, %v2396
    %v3475 = vpack.c.b16 %v2404, %v2397
    %v3476 = vpack.c.b16 %v2405, %v2398
    %v3477 = vpack.c.b16 %v2406, %v2399
    %v3478 = vpack.c.b16 %v2407, %v2400
    %v3479 = vpack.c.b16 %v2408, %v2401
    %v3480 = vpack.c.b16 %v2409, %v2402
    %v3481 = vpack.c.b16 %v2417, %v2410
    %v3482 = vpack.c.b16 %v2418, %v2411
    %v3483 = vpack.c.b16 %v2419, %v2412
    %v3484 = vpack.c.b16 %v2420, %v2413
    %v3485 = vpack.c.b16 %v2421, %v2414
    %v3486 = vpack.c.b16 %v2422, %v2415
    %v3487 = vpack.c.b16 %v2423, %v2416
    %v3488 = vpack.c.b16 %v2431, %v2424
    %v3489 = vpack.c.b16 %v2432, %v2425
    %v3490 = vpack.c.b16 %v2433, %v2426
    %v3491 = vpack.c.b16 %v2434, %v2427
    %v3492 = vpack.c.b16 %v2435, %v2428
    %v3493 = vpack.c.b16 %v2436, %v2429
    %v3494 = vpack.c.b16 %v2437, %v2430
    %v3495 = vpack.c.b16 %v2445, %v2438
    %v3496 = vpack.c.b16 %v2446, %v2439
    %v3497 = vpack.c.b16 %v2447, %v2440
    %v3498 = vpack.c.b16 %v2448, %v2441
    %v3499 = vpack.c.b16 %v2449, %v2442
    %v3500 = vpack.c.b16 %v2450, %v2443
    %v3501 = vpack.c.b16 %v2451, %v2444
    %v3502 = vpack.c.b16 %v2459, %v2452
    %v3503 = vpack.c.b16 %v2460, %v2453
    %v3504 = vpack.c.b16 %v2461, %v2454
    %v3505 = vpack.c.b16 %v2462, %v2455
    %v3506 = vpack.c.b16 %v2463, %v2456
    %v3507 = vpack.c.b16 %v2464, %v2457
    %v3508 = vpack.c.b16 %v2465, %v2458
    %v3509 = vpack.c.b16 %v2473, %v2466
    %v3510 = vpack.c.b16 %v2474, %v2467
    %v3511 = vpack.c.b16 %v2475, %v2468
    %v3512 = vpack.c.b16 %v2476, %v2469
    %v3513 = vpack.c.b16 %v2477, %v2470
    %v3514 = vpack.c.b16 %v2478, %v2471
    %v3515 = vpack.c.b16 %v2479, %v2472
    %v3516 = vpack.c.b16 %v2487, %v2480
    %v3517 = vpack.c.b16 %v2488, %v2481
    %v3518 = vpack.c.b16 %v2489, %v2482
    %v3519 = vpack.c.b16 %v2490, %v2483
    %v3520 = vpack.c.b16 %v2491, %v2484
    %v3521 = vpack.c.b16 %v2492, %v2485
    %v3522 = vpack.c.b16 %v2493, %v2486
    %v3523 = vpack.c.b16 %v2501, %v2494
    %v3524 = vpack.c.b16 %v2502, %v2495
    %v3525 = vpack.c.b16 %v2503, %v2496
    %v3526 = vpack.c.b16 %v2504, %v2497
    %v3527 = vpack.c.b16 %v2505, %v2498
    %v3528 = vpack.c.b16 %v2506, %v2499
    %v3529 = vpack.c.b16 %v2507, %v2500
    %v3530 = vpack.c.b16 %v2515, %v2508
    %v3531 = vpack.c.b16 %v2516, %v2509
    %v3532 = vpack.c.b16 %v2517, %v2510
    %v3533 = vpack.c.b16 %v2518, %v2511
    %v3534 = vpack.c.b16 %v2519, %v2512
    %v3535 = vpack.c.b16 %v2520, %v2513
    %v3536 = vpack.c.b16 %v2521, %v2514
    %v3537 = vpack.c.b16 %v2529, %v2522
    %v3538 = vpack.c.b16 %v2530, %v2523
    %v3539 = vpack.c.b16 %v2531, %v2524
    %v3540 = vpack.c.b16 %v2532, %v2525
    %v3541 = vpack.c.b16 %v2533, %v2526
    %v3542 = vpack.c.b16 %v2534, %v2527
    %v3543 = vpack.c.b16 %v2535, %v2528
    %v3544 = vpack.c.b16 %v2543, %v2536
    %v3545 = vpack.c.b16 %v2544, %v2537
    %v3546 = vpack.c.b16 %v2545, %v2538
    %v3547 = vpack.c.b16 %v2546, %v2539
    %v3548 = vpack.c.b16 %v2547, %v2540
    %v3549 = vpack.c.b16 %v2548, %v2541
    %v3550 = vpack.c.b16 %v2549, %v2542
    %v3551 = vpack.c.b16 %v2557, %v2550
    %v3552 = vpack.c.b16 %v2558, %v2551
    %v3553 = vpack.c.b16 %v2559, %v2552
    %v3554 = vpack.c.b16 %v2560, %v2553
    %v3555 = vpack.c.b16 %v2561, %v2554
    %v3556 = vpack.c.b16 %v2562, %v2555
    %v3557 = vpack.c.b16 %v2563, %v2556
    %v3558 = vpack.c.b16 %v2571, %v2564
    %v3559 = vpack.c.b16 %v2572, %v2565
    %v3560 = vpack.c.b16 %v2573, %v2566
    %v3561 = vpack.c.b16 %v2574, %v2567
    %v3562 = vpack.c.b16 %v2575, %v2568
    %v3563 = vpack.c.b16 %v2576, %v2569
    %v3564 = vpack.c.b16 %v2577, %v2570
    %v3565 = vpack.c.b16 %v2585, %v2578
    %v3566 = vpack.c.b16 %v2586, %v2579
    %v3567 = vpack.c.b16 %v2587, %v2580
    %v3568 = vpack.c.b16 %v2588, %v2581
    %v3569 = vpack.c.b16 %v2589, %v2582
    %v3570 = vpack.c.b16 %v2590, %v2583
    %v3571 = vpack.c.b16 %v2591, %v2584
    %v3572 = vpack.c.b16 %v2599, %v2592
    %v3573 = vpack.c.b16 %v2600, %v2593
    %v3574 = vpack.c.b16 %v2601, %v2594
    %v3575 = vpack.c.b16 %v2602, %v2595
    %v3576 = vpack.c.b16 %v2603, %v2596
    %v3577 = vpack.c.b16 %v2604, %v2597
    %v3578 = vpack.c.b16 %v2605, %v2598
    %v3579 = vpack.c.b16 %v2613, %v2606
    %v3580 = vpack.c.b16 %v2614, %v2607
    %v3581 = vpack.c.b16 %v2615, %v2608
    %v3582 = vpack.c.b16 %v2616, %v2609
    %v3583 = vpack.c.b16 %v2617, %v2610
    %v3584 = vpack.c.b16 %v2618, %v2611
    %v3585 = vpack.c.b16 %v2619, %v2612
    %v3586 = vpack.c.b16 %v2627, %v2620
    %v3587 = vpack.c.b16 %v2628, %v2621
    %v3588 = vpack.c.b16 %v2629, %v2622
    %v3589 = vpack.c.b16 %v2630, %v2623
    %v3590 = vpack.c.b16 %v2631, %v2624
    %v3591 = vpack.c.b16 %v2632, %v2625
    %v3592 = vpack.c.b16 %v2633, %v2626
    %v3593 = vpack.c.b16 %v2641, %v2634
    %v3594 = vpack.c.b16 %v2642, %v2635
    %v3595 = vpack.c.b16 %v2643, %v2636
    %v3596 = vpack.c.b16 %v2644, %v2637
    %v3597 = vpack.c.b16 %v2645, %v2638
    %v3598 = vpack.c.b16 %v2646, %v2639
    %v3599 = vpack.c.b16 %v2647, %v2640
    %v3600 = vpack.c.b16 %v2655, %v2648
    %v3601 = vpack.c.b16 %v2656, %v2649
    %v3602 = vpack.c.b16 %v2657, %v2650
    %v3603 = vpack.c.b16 %v2658, %v2651
    %v3604 = vpack.c.b16 %v2659, %v2652
    %v3605 = vpack.c.b16 %v2660, %v2653
    %v3606 = vpack.c.b16 %v2661, %v2654
    %v3607 = vpack.c.b16 %v2669, %v2662
    %v3608 = vpack.c.b16 %v2670, %v2663
    %v3609 = vpack.c.b16 %v2671, %v2664
    %v3610 = vpack.c.b16 %v2672, %v2665
    %v3611 = vpack.c.b16 %v2673, %v2666
    %v3612 = vpack.c.b16 %v2674, %v2667
    %v3613 = vpack.c.b16 %v2675, %v2668
    %v3614 = vpack.c.b16 %v2683, %v2676
    %v3615 = vpack.c.b16 %v2684, %v2677
    %v3616 = vpack.c.b16 %v2685, %v2678
    %v3617 = vpack.c.b16 %v2686, %v2679
    %v3618 = vpack.c.b16 %v2687, %v2680
    %v3619 = vpack.c.b16 %v2688, %v2681
    %v3620 = vpack.c.b16 %v2689, %v2682
    %v3621 = vpack.c.b16 %v2697, %v2690
    %v3622 = vpack.c.b16 %v2698, %v2691
    %v3623 = vpack.c.b16 %v2699, %v2692
    %v3624 = vpack.c.b16 %v2700, %v2693
    %v3625 = vpack.c.b16 %v2701, %v2694
    %v3626 = vpack.c.b16 %v2702, %v2695
    %v3627 = vpack.c.b16 %v2703, %v2696
    %v3628 = vpack.c.b16 %v2711, %v2704
    %v3629 = vpack.c.b16 %v2712, %v2705
    %v3630 = vpack.c.b16 %v2713, %v2706
    %v3631 = vpack.c.b16 %v2714, %v2707
    %v3632 = vpack.c.b16 %v2715, %v2708
    %v3633 = vpack.c.b16 %v2716, %v2709
    %v3634 = vpack.c.b16 %v2717, %v2710
    %v3635 = vpack.c.b16 %v2725, %v2718
    %v3636 = vpack.c.b16 %v2726, %v2719
    %v3637 = vpack.c.b16 %v2727, %v2720
    %v3638 = vpack.c.b16 %v2728, %v2721
    %v3639 = vpack.c.b16 %v2729, %v2722
    %v3640 = vpack.c.b16 %v2730, %v2723
    %v3641 = vpack.c.b16 %v2731, %v2724
    %v3642 = vpack.c.b16 %v2739, %v2732
    %v3643 = vpack.c.b16 %v2740, %v2733
    %v3644 = vpack.c.b16 %v2741, %v2734
    %v3645 = vpack.c.b16 %v2742, %v2735
    %v3646 = vpack.c.b16 %v2743, %v2736
    %v3647 = vpack.c.b16 %v2744, %v2737
    %v3648 = vpack.c.b16 %v2745, %v2738
    %v3649 = vpack.c.b16 %v2753, %v2746
    %v3650 = vpack.c.b16 %v2754, %v2747
    %v3651 = vpack.c.b16 %v2755, %v2748
    %v3652 = vpack.c.b16 %v2756, %v2749
    %v3653 = vpack.c.b16 %v2757, %v2750
    %v3654 = vpack.c.b16 %v2758, %v2751
    %v3655 = vpack.c.b16 %v2759, %v2752
    %v3656 = vpack.c.b16 %v2767, %v2760
    %v3657 = vpack.c.b16 %v2768, %v2761
    %v3658 = vpack.c.b16 %v2769, %v2762
    %v3659 = vpack.c.b16 %v2770, %v2763
    %v3660 = vpack.c.b16 %v2771, %v2764
    %v3661 = vpack.c.b16 %v2772, %v2765
    %v3662 = vpack.c.b16 %v2773, %v2766
    %v3663 = vpack.c.b16 %v2781, %v2774
    %v3664 = vpack.c.b16 %v2782, %v2775
    %v3665 = vpack.c.b16 %v2783, %v2776
    %v3666 = vpack.c.b16 %v2784, %v2777
    %v3667 = vpack.c.b16 %v2785, %v2778
    %v3668 = vpack.c.b16 %v2786, %v2779
    %v3669 = vpack.c.b16 %v2787, %v2780
    %v3670 = vpack.c.b16 %v2795, %v2788
    %v3671 = vpack.c.b16 %v2796, %v2789
    %v3672 = vpack.c.b16 %v2797, %v2790
    %v3673 = vpack.c.b16 %v2798, %v2791
    %v3674 = vpack.c.b16 %v2799, %v2792
    %v3675 = vpack.c.b16 %v2800, %v2793
    %v3676 = vpack.c.b16 %v2801, %v2794
    %v3677 = vpack.c.b16 %v2809, %v2802
    %v3678 = vpack.c.b16 %v2810, %v2803
    %v3679 = vpack.c.b16 %v2811, %v2804
    %v3680 = vpack.c.b16 %v2812, %v2805
    %v3681 = vpack.c.b16 %v2813, %v2806
    %v3682 = vpack.c.b16 %v2814, %v2807
    %v3683 = vpack.c.b16 %v2815, %v2808
    %v3684 = vpack.c.b16 %v2823, %v2816
    %v3685 = vpack.c.b16 %v2824, %v2817
    %v3686 = vpack.c.b16 %v2825, %v2818
    %v3687 = vpack.c.b16 %v2826, %v2819
    %v3688 = vpack.c.b16 %v2827, %v2820
    %v3689 = vpack.c.b16 %v2828, %v2821
    %v3690 = vpack.c.b16 %v2829, %v2822
    %v3691 = vpack.c.b16 %v2837, %v2830
    %v3692 = vpack.c.b16 %v2838, %v2831
    %v3693 = vpack.c.b16 %v2839, %v2832
    %v3694 = vpack.c.b16 %v2840, %v2833
    %v3695 = vpack.c.b16 %v2841, %v2834
    %v3696 = vpack.c.b16 %v2842, %v2835
    %v3697 = vpack.c.b16 %v2843, %v2836
    %v3698 = vpack.c.b16 %v2851, %v2844
    %v3699 = vpack.c.b16 %v2852, %v2845
    %v3700 = vpack.c.b16 %v2853, %v2846
    %v3701 = vpack.c.b16 %v2854, %v2847
    %v3702 = vpack.c.b16 %v2855, %v2848
    %v3703 = vpack.c.b16 %v2856, %v2849
    %v3704 = vpack.c.b16 %v2857, %v2850
    %v3705 = vpack.c.b16 %v2865, %v2858
    %v3706 = vpack.c.b16 %v2866, %v2859
    %v3707 = vpack.c.b16 %v2867, %v2860
    %v3708 = vpack.c.b16 %v2868, %v2861
    %v3709 = vpack.c.b16 %v2869, %v2862
    %v3710 = vpack.c.b16 %v2870, %v2863
    %v3711 = vpack.c.b16 %v2871, %v2864
    %v3712 = vpack.c.b16 %v2879, %v2872
    %v3713 = vpack.c.b16 %v2880, %v2873
    %v3714 = vpack.c.b16 %v2881, %v2874
    %v3715 = vpack.c.b16 %v2882, %v2875
    %v3716 = vpack.c.b16 %v2883, %v2876
    %v3717 = vpack.c.b16 %v2884, %v2877
    %v3718 = vpack.c.b16 %v2885, %v2878
    %v3719 = vpack.c.b16 %v2893, %v2886
    %v3720 = vpack.c.b16 %v2894, %v2887
    %v3721 = vpack.c.b16 %v2895, %v2888
    %v3722 = vpack.c.b16 %v2896, %v2889
    %v3723 = vpack.c.b16 %v2897, %v2890
    %v3724 = vpack.c.b16 %v2898, %v2891
    %v3725 = vpack.c.b16 %v2899, %v2892
    %v3726 = vpack.c.b16 %v2907, %v2900
    %v3727 = vpack.c.b16 %v2908, %v2901
    %v3728 = vpack.c.b16 %v2909, %v2902
    %v3729 = vpack.c.b16 %v2910, %v2903
    %v3730 = vpack.c.b16 %v2911, %v2904
    %v3731 = vpack.c.b16 %v2912, %v2905
    %v3732 = vpack.c.b16 %v2913, %v2906
    %v3733 = vpack.c.b16 %v2921, %v2914
    %v3734 = vpack.c.b16 %v2922, %v2915
    %v3735 = vpack.c.b16 %v2923, %v2916
    %v3736 = vpack.c.b16 %v2924, %v2917
    %v3737 = vpack.c.b16 %v2925, %v2918
    %v3738 = vpack.c.b16 %v2926, %v2919
    %v3739 = vpack.c.b16 %v2927, %v2920
    %v3740 = vpack.c.b16 %v2935, %v2928
    %v3741 = vpack.c.b16 %v2936, %v2929
    %v3742 = vpack.c.b16 %v2937, %v2930
    %v3743 = vpack.c.b16 %v2938, %v2931
    %v3744 = vpack.c.b16 %v2939, %v2932
    %v3745 = vpack.c.b16 %v2940, %v2933
    %v3746 = vpack.c.b16 %v2941, %v2934
    %v3747 = vpack.c.b16 %v2949, %v2942
    %v3748 = vpack.c.b16 %v2950, %v2943
    %v3749 = vpack.c.b16 %v2951, %v2944
    %v3750 = vpack.c.b16 %v2952, %v2945
    %v3751 = vpack.c.b16 %v2953, %v2946
    %v3752 = vpack.c.b16 %v2954, %v2947
    %v3753 = vpack.c.b16 %v2955, %v2948
    %v3754 = vpack.c.b16 %v2963, %v2956
    %v3755 = vpack.c.b16 %v2964, %v2957
    %v3756 = vpack.c.b16 %v2965, %v2958
    %v3757 = vpack.c.b16 %v2966, %v2959
    %v3758 = vpack.c.b16 %v2967, %v2960
    %v3759 = vpack.c.b16 %v2968, %v2961
    %v3760 = vpack.c.b16 %v2969, %v2962
    %v3761 = vpack.c.b16 %v2977, %v2970
    %v3762 = vpack.c.b16 %v2978, %v2971
    %v3763 = vpack.c.b16 %v2979, %v2972
    %v3764 = vpack.c.b16 %v2980, %v2973
    %v3765 = vpack.c.b16 %v2981, %v2974
    %v3766 = vpack.c.b16 %v2982, %v2975
    %v3767 = vpack.c.b16 %v2983, %v2976
    %v3768 = vpack.c.b16 %v2991, %v2984
    %v3769 = vpack.c.b16 %v2992, %v2985
    %v3770 = vpack.c.b16 %v2993, %v2986
    %v3771 = vpack.c.b16 %v2994, %v2987
    %v3772 = vpack.c.b16 %v2995, %v2988
    %v3773 = vpack.c.b16 %v2996, %v2989
    %v3774 = vpack.c.b16 %v2997, %v2990
    %v3775 = vpack.c.b16 %v3005, %v2998
    %v3776 = vpack.c.b16 %v3006, %v2999
    %v3777 = vpack.c.b16 %v3007, %v3000
    %v3778 = vpack.c.b16 %v3008, %v3001
    %v3779 = vpack.c.b16 %v3009, %v3002
    %v3780 = vpack.c.b16 %v3010, %v3003
    %v3781 = vpack.c.b16 %v3011, %v3004
    %v3782 = vpack.c.b16 %v3019, %v3012
    %v3783 = vpack.c.b16 %v3020, %v3013
    %v3784 = vpack.c.b16 %v3021, %v3014
    %v3785 = vpack.c.b16 %v3022, %v3015
    %v3786 = vpack.c.b16 %v3023, %v3016
    %v3787 = vpack.c.b16 %v3024, %v3017
    %v3788 = vpack.c.b16 %v3025, %v3018
    %v3789 = vpack.c.b16 %v3033, %v3026
    %v3790 = vpack.c.b16 %v3034, %v3027
    %v3791 = vpack.c.b16 %v3035, %v3028
    %v3792 = vpack.c.b16 %v3036, %v3029
    %v3793 = vpack.c.b16 %v3037, %v3030
    %v3794 = vpack.c.b16 %v3038, %v3031
    %v3795 = vpack.c.b16 %v3039, %v3032
    %v3796 = vpack.c.b16 %v3047, %v3040
    %v3797 = vpack.c.b16 %v3048, %v3041
    %v3798 = vpack.c.b16 %v3049, %v3042
    %v3799 = vpack.c.b16 %v3050, %v3043
    %v3800 = vpack.c.b16 %v3051, %v3044
    %v3801 = vpack.c.b16 %v3052, %v3045
    %v3802 = vpack.c.b16 %v3053, %v3046
    %v3803 = vpack.c.b16 %v3061, %v3054
    %v3804 = vpack.c.b16 %v3062, %v3055
    %v3805 = vpack.c.b16 %v3063, %v3056
    %v3806 = vpack.c.b16 %v3064, %v3057
    %v3807 = vpack.c.b16 %v3065, %v3058
    %v3808 = vpack.c.b16 %v3066, %v3059
    %v3809 = vpack.c.b16 %v3067, %v3060
    %v3810 = vpack.c.b16 %v3075, %v3068
    %v3811 = vpack.c.b16 %v3076, %v3069
    %v3812 = vpack.c.b16 %v3077, %v3070
    %v3813 = vpack.c.b16 %v3078, %v3071
    %v3814 = vpack.c.b16 %v3079, %v3072
    %v3815 = vpack.c.b16 %v3080, %v3073
    %v3816 = vpack.c.b16 %v3081, %v3074
    %v3817 = vpack.c.b16 %v3089, %v3082
    %v3818 = vpack.c.b16 %v3090, %v3083
    %v3819 = vpack.c.b16 %v3091, %v3084
    %v3820 = vpack.c.b16 %v3092, %v3085
    %v3821 = vpack.c.b16 %v3093, %v3086
    %v3822 = vpack.c.b16 %v3094, %v3087
    %v3823 = vpack.c.b16 %v3095, %v3088
    %v3824 = vpack.c.b16 %v3103, %v3096
    %v3825 = vpack.c.b16 %v3104, %v3097
    %v3826 = vpack.c.b16 %v3105, %v3098
    %v3827 = vpack.c.b16 %v3106, %v3099
    %v3828 = vpack.c.b16 %v3107, %v3100
    %v3829 = vpack.c.b16 %v3108, %v3101
    %v3830 = vpack.c.b16 %v3109, %v3102
    %v3831 = vpack.c.b16 %v3117, %v3110
    %v3832 = vpack.c.b16 %v3118, %v3111
    %v3833 = vpack.c.b16 %v3119, %v3112
    %v3834 = vpack.c.b16 %v3120, %v3113
    %v3835 = vpack.c.b16 %v3121, %v3114
    %v3836 = vpack.c.b16 %v3122, %v3115
    %v3837 = vpack.c.b16 %v3123, %v3116
    %v3838 = vpack.c.b16 %v3131, %v3124
    %v3839 = vpack.c.b16 %v3132, %v3125
    %v3840 = vpack.c.b16 %v3133, %v3126
    %v3841 = vpack.c.b16 %v3134, %v3127
    %v3842 = vpack.c.b16 %v3135, %v3128
    %v3843 = vpack.c.b16 %v3136, %v3129
    %v3844 = vpack.c.b16 %v3137, %v3130
    %v3845 = vpack.c.b16 %v3145, %v3138
    %v3846 = vpack.c.b16 %v3146, %v3139
    %v3847 = vpack.c.b16 %v3147, %v3140
    %v3848 = vpack.c.b16 %v3148, %v3141
    %v3849 = vpack.c.b16 %v3149, %v3142
    %v3850 = vpack.c.b16 %v3150, %v3143
    %v3851 = vpack.c.b16 %v3151, %v3144
    %vm4552 = vcmask 523264
    %v4554 = vsel %vm4552, %v939, 0
    %4556 = vmatprep.subr.bf16.mxu0 %v3153
    %4557 = vmatpush1.bf16.msra.mxu0 %v3152
    %4558 = vmatprep.subr.bf16.mxu0 %v3160
    %4559 = vmatpush1.bf16.msra.mxu0 %v3159
    %4560 = vmatprep.subr.bf16.mxu0 %v3167
    %4561 = vmatpush1.bf16.msra.mxu0 %v3166
    %4562 = vmatprep.subr.bf16.mxu0 %v3174
    %4563 = vmatpush1.bf16.msra.mxu0 %v3173
    %4564 = vmatprep.subr.bf16.mxu0 %v3181
    %4565 = vmatpush1.bf16.msra.mxu0 %v3180
    %4566 = vmatprep.subr.bf16.mxu0 %v3188
    %4567 = vmatpush1.bf16.msra.mxu0 %v3187
    %4568 = vmatprep.subr.bf16.mxu0 %v3195
    %4569 = vmatpush1.bf16.msra.mxu0 %v3194
    %4570 = vmatprep.subr.bf16.mxu0 %v3202
    %4571 = vmatpush1.bf16.msra.mxu0 %v3201
    %4572 = vmatprep.subr.bf16.mxu0 %v3209
    %4573 = vmatpush1.bf16.msra.mxu0 %v3208
    %4574 = vmatprep.subr.bf16.mxu0 %v3216
    %4575 = vmatpush1.bf16.msra.mxu0 %v3215
    %4576 = vmatprep.subr.bf16.mxu0 %v3223
    %4577 = vmatpush1.bf16.msra.mxu0 %v3222
    %4578 = vmatprep.subr.bf16.mxu0 %v3230
    %4579 = vmatpush1.bf16.msra.mxu0 %v3229
    %4580 = vmatprep.subr.bf16.mxu0 %v3237
    %4581 = vmatpush1.bf16.msra.mxu0 %v3236
    %4582 = vmatprep.subr.bf16.mxu0 %v3244
    %4583 = vmatpush1.bf16.msra.mxu0 %v3243
    %4584 = vmatprep.subr.bf16.mxu0 %v3251
    %4585 = vmatpush1.bf16.msra.mxu0 %v3250
    %4586 = vmatprep.subr.bf16.mxu0 %v3258
    %4587 = vmatpush1.bf16.msra.mxu0 %v3257
    %4588 = vmatprep.mubr.bf16.mxu0 %v928
    %4589 = vmatmul.mubr.bf16.gmra.mrb[0].mxu0 %v927
    %v4590 = vpop.f32.mrb[0].mxu0
    %v4591 = vadd.f32 %v855, %v4590
    %v4592 = vpop.f32.mrb[0].mxu0
    %v4593 = vadd.f32 %v859, %v4592
    %v4594 = vpop.f32.mrb[0].mxu0
    %v4595 = vadd.f32 %v855, %v4594
    %v4596 = vpop.f32.mrb[0].mxu0
    %v4597 = vadd.f32 %v859, %v4596
    %4598 = vdwg.mxu0
    %4599 = vmatprep.subr.bf16.mxu0 %v3265
    %4600 = vmatpush1.bf16.msra.mxu0 %v3264
    %4601 = vmatprep.subr.bf16.mxu0 %v3272
    %4602 = vmatpush1.bf16.msra.mxu0 %v3271
    %4603 = vmatprep.subr.bf16.mxu0 %v3279
    %4604 = vmatpush1.bf16.msra.mxu0 %v3278
    %4605 = vmatprep.subr.bf16.mxu0 %v3286
    %4606 = vmatpush1.bf16.msra.mxu0 %v3285
    %4607 = vmatprep.subr.bf16.mxu0 %v3293
    %4608 = vmatpush1.bf16.msra.mxu0 %v3292
    %4609 = vmatprep.subr.bf16.mxu0 %v3300
    %4610 = vmatpush1.bf16.msra.mxu0 %v3299
    %4611 = vmatprep.subr.bf16.mxu0 %v3307
    %4612 = vmatpush1.bf16.msra.mxu0 %v3306
    %4613 = vmatprep.subr.bf16.mxu0 %v3314
    %4614 = vmatpush1.bf16.msra.mxu0 %v3313
    %4615 = vmatprep.subr.bf16.mxu0 %v3321
    %4616 = vmatpush1.bf16.msra.mxu0 %v3320
    %4617 = vmatprep.subr.bf16.mxu0 %v3328
    %4618 = vmatpush1.bf16.msra.mxu0 %v3327
    %4619 = vmatprep.subr.bf16.mxu0 %v3335
    %4620 = vmatpush1.bf16.msra.mxu0 %v3334
    %4621 = vmatprep.subr.bf16.mxu0 %v3342
    %4622 = vmatpush1.bf16.msra.mxu0 %v3341
    %4623 = vmatprep.subr.bf16.mxu0 %v3349
    %4624 = vmatpush1.bf16.msra.mxu0 %v3348
    %4625 = vmatprep.subr.bf16.mxu0 %v3356
    %4626 = vmatpush1.bf16.msra.mxu0 %v3355
    %4627 = vmatprep.subr.bf16.mxu0 %v3363
    %4628 = vmatpush1.bf16.msra.mxu0 %v3362
    %4629 = vmatprep.subr.bf16.mxu0 %v3370
    %4630 = vmatpush1.bf16.msra.mxu0 %v3369
    %4631 = vmatprep.mubr.bf16.mxu0 %v930
    %4632 = vmatmul.mubr.bf16.gmra.mrb[0].mxu0 %v929
    %v4633 = vpop.f32.mrb[0].mxu0
    %v4634 = vadd.f32 %v4591, %v4633
    %v4635 = vpop.f32.mrb[0].mxu0
    %v4636 = vadd.f32 %v4593, %v4635
    %v4637 = vpop.f32.mrb[0].mxu0
    %v4638 = vadd.f32 %v4595, %v4637
    %v4639 = vpop.f32.mrb[0].mxu0
    %v4640 = vadd.f32 %v4597, %v4639
    %4641 = vdwg.mxu0
    %4642 = vmatprep.subr.bf16.mxu0 %v3377
    %4643 = vmatpush1.bf16.msra.mxu0 %v3376
    %4644 = vmatprep.subr.bf16.mxu0 %v3384
    %4645 = vmatpush1.bf16.msra.mxu0 %v3383
    %4646 = vmatprep.subr.bf16.mxu0 %v3391
    %4647 = vmatpush1.bf16.msra.mxu0 %v3390
    %4648 = vmatprep.subr.bf16.mxu0 %v3398
    %4649 = vmatpush1.bf16.msra.mxu0 %v3397
    %4650 = vmatprep.subr.bf16.mxu0 %v3405
    %4651 = vmatpush1.bf16.msra.mxu0 %v3404
    %4652 = vmatprep.subr.bf16.mxu0 %v3412
    %4653 = vmatpush1.bf16.msra.mxu0 %v3411
    %4654 = vmatprep.subr.bf16.mxu0 %v3419
    %4655 = vmatpush1.bf16.msra.mxu0 %v3418
    %4656 = vmatprep.subr.bf16.mxu0 %v3426
    %4657 = vmatpush1.bf16.msra.mxu0 %v3425
    %4658 = vmatprep.subr.bf16.mxu0 %v3433
    %4659 = vmatpush1.bf16.msra.mxu0 %v3432
    %4660 = vmatprep.subr.bf16.mxu0 %v3440
    %4661 = vmatpush1.bf16.msra.mxu0 %v3439
    %4662 = vmatprep.subr.bf16.mxu0 %v3447
    %4663 = vmatpush1.bf16.msra.mxu0 %v3446
    %4664 = vmatprep.subr.bf16.mxu0 %v3454
    %4665 = vmatpush1.bf16.msra.mxu0 %v3453
    %4666 = vmatprep.subr.bf16.mxu0 %v3461
    %4667 = vmatpush1.bf16.msra.mxu0 %v3460
    %4668 = vmatprep.subr.bf16.mxu0 %v3468
    %4669 = vmatpush1.bf16.msra.mxu0 %v3467
    %4670 = vmatprep.subr.bf16.mxu0 %v3475
    %4671 = vmatpush1.bf16.msra.mxu0 %v3474
    %4672 = vmatprep.subr.bf16.mxu0 %v3482
    %4673 = vmatpush1.bf16.msra.mxu0 %v3481
    %4674 = vmatprep.mubr.bf16.mxu0 %v932
    %4675 = vmatmul.mubr.bf16.gmra.mrb[0].mxu0 %v931
    %v4676 = vpop.f32.mrb[0].mxu0
    %v4677 = vadd.f32 %v4634, %v4676
    %v4678 = vpop.f32.mrb[0].mxu0
    %v4679 = vadd.f32 %v4636, %v4678
    %v4680 = vpop.f32.mrb[0].mxu0
    %v4681 = vadd.f32 %v4638, %v4680
    %v4682 = vpop.f32.mrb[0].mxu0
    %v4683 = vadd.f32 %v4640, %v4682
    %4684 = vdwg.mxu0
    %4685 = vmatprep.subr.bf16.mxu0 %v3489
    %4686 = vmatpush1.bf16.msra.mxu0 %v3488
    %4687 = vmatprep.subr.bf16.mxu0 %v3496
    %4688 = vmatpush1.bf16.msra.mxu0 %v3495
    %4689 = vmatprep.subr.bf16.mxu0 %v3503
    %4690 = vmatpush1.bf16.msra.mxu0 %v3502
    %4691 = vmatprep.subr.bf16.mxu0 %v3510
    %4692 = vmatpush1.bf16.msra.mxu0 %v3509
    %4693 = vmatprep.subr.bf16.mxu0 %v3517
    %4694 = vmatpush1.bf16.msra.mxu0 %v3516
    %4695 = vmatprep.subr.bf16.mxu0 %v3524
    %4696 = vmatpush1.bf16.msra.mxu0 %v3523
    %4697 = vmatprep.subr.bf16.mxu0 %v3531
    %4698 = vmatpush1.bf16.msra.mxu0 %v3530
    %4699 = vmatprep.subr.bf16.mxu0 %v3538
    %4700 = vmatpush1.bf16.msra.mxu0 %v3537
    %4701 = vmatprep.subr.bf16.mxu0 %v3545
    %4702 = vmatpush1.bf16.msra.mxu0 %v3544
    %4703 = vmatprep.subr.bf16.mxu0 %v3552
    %4704 = vmatpush1.bf16.msra.mxu0 %v3551
    %4705 = vmatprep.subr.bf16.mxu0 %v3559
    %4706 = vmatpush1.bf16.msra.mxu0 %v3558
    %4707 = vmatprep.subr.bf16.mxu0 %v3566
    %4708 = vmatpush1.bf16.msra.mxu0 %v3565
    %4709 = vmatprep.subr.bf16.mxu0 %v3573
    %4710 = vmatpush1.bf16.msra.mxu0 %v3572
    %4711 = vmatprep.subr.bf16.mxu0 %v3580
    %4712 = vmatpush1.bf16.msra.mxu0 %v3579
    %4713 = vmatprep.subr.bf16.mxu0 %v3587
    %4714 = vmatpush1.bf16.msra.mxu0 %v3586
    %4715 = vmatprep.subr.bf16.mxu0 %v3594
    %4716 = vmatpush1.bf16.msra.mxu0 %v3593
    %4717 = vmatprep.mubr.bf16.mxu0 %v934
    %4718 = vmatmul.mubr.bf16.gmra.mrb[0].mxu0 %v933
    %v4719 = vpop.f32.mrb[0].mxu0
    %v4720 = vadd.f32 %v4677, %v4719
    %v4721 = vpop.f32.mrb[0].mxu0
    %v4722 = vadd.f32 %v4679, %v4721
    %v4723 = vpop.f32.mrb[0].mxu0
    %v4724 = vadd.f32 %v4681, %v4723
    %v4725 = vpop.f32.mrb[0].mxu0
    %v4726 = vadd.f32 %v4683, %v4725
    %4727 = vdwg.mxu0
    %4728 = vmatprep.subr.bf16.mxu0 %v3601
    %4729 = vmatpush1.bf16.msra.mxu0 %v3600
    %4730 = vmatprep.subr.bf16.mxu0 %v3608
    %4731 = vmatpush1.bf16.msra.mxu0 %v3607
    %4732 = vmatprep.subr.bf16.mxu0 %v3615
    %4733 = vmatpush1.bf16.msra.mxu0 %v3614
    %4734 = vmatprep.subr.bf16.mxu0 %v3622
    %4735 = vmatpush1.bf16.msra.mxu0 %v3621
    %4736 = vmatprep.subr.bf16.mxu0 %v3629
    %4737 = vmatpush1.bf16.msra.mxu0 %v3628
    %4738 = vmatprep.subr.bf16.mxu0 %v3636
    %4739 = vmatpush1.bf16.msra.mxu0 %v3635
    %4740 = vmatprep.subr.bf16.mxu0 %v3643
    %4741 = vmatpush1.bf16.msra.mxu0 %v3642
    %4742 = vmatprep.subr.bf16.mxu0 %v3650
    %4743 = vmatpush1.bf16.msra.mxu0 %v3649
    %4744 = vmatprep.subr.bf16.mxu0 %v3657
    %4745 = vmatpush1.bf16.msra.mxu0 %v3656
    %4746 = vmatprep.subr.bf16.mxu0 %v3664
    %4747 = vmatpush1.bf16.msra.mxu0 %v3663
    %4748 = vmatprep.subr.bf16.mxu0 %v3671
    %4749 = vmatpush1.bf16.msra.mxu0 %v3670
    %4750 = vmatprep.subr.bf16.mxu0 %v3678
    %4751 = vmatpush1.bf16.msra.mxu0 %v3677
    %4752 = vmatprep.subr.bf16.mxu0 %v3685
    %4753 = vmatpush1.bf16.msra.mxu0 %v3684
    %4754 = vmatprep.subr.bf16.mxu0 %v3692
    %4755 = vmatpush1.bf16.msra.mxu0 %v3691
    %4756 = vmatprep.subr.bf16.mxu0 %v3699
    %4757 = vmatpush1.bf16.msra.mxu0 %v3698
    %4758 = vmatprep.subr.bf16.mxu0 %v3706
    %4759 = vmatpush1.bf16.msra.mxu0 %v3705
    %4760 = vmatprep.mubr.bf16.mxu0 %v936
    %4761 = vmatmul.mubr.bf16.gmra.mrb[0].mxu0 %v935
    %v4762 = vpop.f32.mrb[0].mxu0
    %v4763 = vadd.f32 %v4720, %v4762
    %v4764 = vpop.f32.mrb[0].mxu0
    %v4765 = vadd.f32 %v4722, %v4764
    %v4766 = vpop.f32.mrb[0].mxu0
    %v4767 = vadd.f32 %v4724, %v4766
    %v4768 = vpop.f32.mrb[0].mxu0
    %v4769 = vadd.f32 %v4726, %v4768
    %4770 = vdwg.mxu0
    %4771 = vmatprep.subr.bf16.mxu0 %v3713
    %4772 = vmatpush1.bf16.msra.mxu0 %v3712
    %4773 = vmatprep.subr.bf16.mxu0 %v3720
    %4774 = vmatpush1.bf16.msra.mxu0 %v3719
    %4775 = vmatprep.subr.bf16.mxu0 %v3727
    %4776 = vmatpush1.bf16.msra.mxu0 %v3726
    %4777 = vmatprep.subr.bf16.mxu0 %v3734
    %4778 = vmatpush1.bf16.msra.mxu0 %v3733
    %4779 = vmatprep.subr.bf16.mxu0 %v3741
    %4780 = vmatpush1.bf16.msra.mxu0 %v3740
    %4781 = vmatprep.subr.bf16.mxu0 %v3748
    %4782 = vmatpush1.bf16.msra.mxu0 %v3747
    %4783 = vmatprep.subr.bf16.mxu0 %v3755
    %4784 = vmatpush1.bf16.msra.mxu0 %v3754
    %4785 = vmatprep.subr.bf16.mxu0 %v3762
    %4786 = vmatpush1.bf16.msra.mxu0 %v3761
    %4787 = vmatprep.subr.bf16.mxu0 %v3769
    %4788 = vmatpush1.bf16.msra.mxu0 %v3768
    %4789 = vmatprep.subr.bf16.mxu0 %v3776
    %4790 = vmatpush1.bf16.msra.mxu0 %v3775
    %4791 = vmatprep.subr.bf16.mxu0 %v3783
    %4792 = vmatpush1.bf16.msra.mxu0 %v3782
    %4793 = vmatprep.subr.bf16.mxu0 %v3790
    %4794 = vmatpush1.bf16.msra.mxu0 %v3789
    %4795 = vmatprep.subr.bf16.mxu0 %v3797
    %4796 = vmatpush1.bf16.msra.mxu0 %v3796
    %4797 = vmatprep.subr.bf16.mxu0 %v3804
    %4798 = vmatpush1.bf16.msra.mxu0 %v3803
    %4799 = vmatprep.subr.bf16.mxu0 %v3811
    %4800 = vmatpush1.bf16.msra.mxu0 %v3810
    %4801 = vmatprep.subr.bf16.mxu0 %v3818
    %4802 = vmatpush1.bf16.msra.mxu0 %v3817
    %4803 = vmatprep.mubr.bf16.mxu0 %v938
    %4804 = vmatmul.mubr.bf16.gmra.mrb[0].mxu0 %v937
    %v4805 = vpop.f32.mrb[0].mxu0
    %v4806 = vadd.f32 %v4763, %v4805
    %v4807 = vpop.f32.mrb[0].mxu0
    %v4808 = vadd.f32 %v4765, %v4807
    %v4809 = vpop.f32.mrb[0].mxu0
    %v4810 = vadd.f32 %v4767, %v4809
    %v4811 = vpop.f32.mrb[0].mxu0
    %v4812 = vadd.f32 %v4769, %v4811
    %4813 = vdwg.mxu0
    %4814 = vmatprep.subr.bf16.mxu0 %v3825
    %4815 = vmatpush1.bf16.msra.mxu0 %v3824
    %4816 = vmatprep.subr.bf16.mxu0 %v3832
    %4817 = vmatpush1.bf16.msra.mxu0 %v3831
    %4818 = vmatprep.subr.bf16.mxu0 %v3839
    %4819 = vmatpush1.bf16.msra.mxu0 %v3838
    %4820 = vmatprep.subr.bf16.mxu0 %v3846
    %4821 = vmatpush1.bf16.msra.mxu0 %v3845
    %4822 = vmatprep.subr.bf16.mxu0 0
    %4823 = vmatpush1.bf16.msra.mxu0 0
    %4824 = vmatprep.subr.bf16.mxu0 0
    %4825 = vmatpush1.bf16.msra.mxu0 0
    %4826 = vmatprep.subr.bf16.mxu0 0
    %4827 = vmatpush1.bf16.msra.mxu0 0
    %4828 = vmatprep.subr.bf16.mxu0 0
    %4829 = vmatpush1.bf16.msra.mxu0 0
    %4830 = vmatprep.subr.bf16.mxu0 0
    %4831 = vmatpush1.bf16.msra.mxu0 0
    %4832 = vmatprep.subr.bf16.mxu0 0
    %4833 = vmatpush1.bf16.msra.mxu0 0
    %4834 = vmatprep.subr.bf16.mxu0 0
    %4835 = vmatpush1.bf16.msra.mxu0 0
    %4836 = vmatprep.subr.bf16.mxu0 0
    %4837 = vmatpush1.bf16.msra.mxu0 0
    %4838 = vmatprep.subr.bf16.mxu0 0
    %4839 = vmatpush1.bf16.msra.mxu0 0
    %4840 = vmatprep.subr.bf16.mxu0 0
    %4841 = vmatpush1.bf16.msra.mxu0 0
    %4842 = vmatprep.subr.bf16.mxu0 0
    %4843 = vmatpush1.bf16.msra.mxu0 0
    %4844 = vmatprep.subr.bf16.mxu0 0
    %4845 = vmatpush1.bf16.msra.mxu0 0
    %4846 = vmatprep.mubr.bf16.mxu0 0
    %4847 = vmatmul.mubr.bf16.gmra.mrb[0].mxu0 %v4554
    %v4848 = vpop.f32.mrb[0].mxu0
    %v4849 = vadd.f32 %v4806, %v4848
    %v4850 = vpop.f32.mrb[0].mxu0
    %v4851 = vadd.f32 %v4808, %v4850
    %v4852 = vpop.f32.mrb[0].mxu0
    %v4853 = vadd.f32 %v4810, %v4852
    %v4854 = vpop.f32.mrb[0].mxu0
    %v4855 = vadd.f32 %v4812, %v4854
    %4856 = vdwg.mxu0
    %4857 = vmatprep.subr.bf16.mxu0 %v3155
    %4858 = vmatpush1.bf16.msra.mxu0 %v3154
    %4859 = vmatprep.subr.bf16.mxu0 %v3162
    %4860 = vmatpush1.bf16.msra.mxu0 %v3161
    %4861 = vmatprep.subr.bf16.mxu0 %v3169
    %4862 = vmatpush1.bf16.msra.mxu0 %v3168
    %4863 = vmatprep.subr.bf16.mxu0 %v3176
    %4864 = vmatpush1.bf16.msra.mxu0 %v3175
    %4865 = vmatprep.subr.bf16.mxu0 %v3183
    %4866 = vmatpush1.bf16.msra.mxu0 %v3182
    %4867 = vmatprep.subr.bf16.mxu0 %v3190
    %4868 = vmatpush1.bf16.msra.mxu0 %v3189
    %4869 = vmatprep.subr.bf16.mxu0 %v3197
    %4870 = vmatpush1.bf16.msra.mxu0 %v3196
    %4871 = vmatprep.subr.bf16.mxu0 %v3204
    %4872 = vmatpush1.bf16.msra.mxu0 %v3203
    %4873 = vmatprep.subr.bf16.mxu0 %v3211
    %4874 = vmatpush1.bf16.msra.mxu0 %v3210
    %4875 = vmatprep.subr.bf16.mxu0 %v3218
    %4876 = vmatpush1.bf16.msra.mxu0 %v3217
    %4877 = vmatprep.subr.bf16.mxu0 %v3225
    %4878 = vmatpush1.bf16.msra.mxu0 %v3224
    %4879 = vmatprep.subr.bf16.mxu0 %v3232
    %4880 = vmatpush1.bf16.msra.mxu0 %v3231
    %4881 = vmatprep.subr.bf16.mxu0 %v3239
    %4882 = vmatpush1.bf16.msra.mxu0 %v3238
    %4883 = vmatprep.subr.bf16.mxu0 %v3246
    %4884 = vmatpush1.bf16.msra.mxu0 %v3245
    %4885 = vmatprep.subr.bf16.mxu0 %v3253
    %4886 = vmatpush1.bf16.msra.mxu0 %v3252
    %4887 = vmatprep.subr.bf16.mxu0 %v3260
    %4888 = vmatpush1.bf16.msra.mxu0 %v3259
    %4889 = vmatprep.mubr.bf16.mxu0 %v928
    %4890 = vmatmul.mubr.bf16.gmra.mrb[0].mxu0 %v927
    %v4891 = vpop.f32.mrb[0].mxu0
    %v4892 = vadd.f32 %v863, %v4891
    %v4893 = vpop.f32.mrb[0].mxu0
    %v4894 = vadd.f32 %v867, %v4893
    %v4895 = vpop.f32.mrb[0].mxu0
    %v4896 = vadd.f32 %v863, %v4895
    %v4897 = vpop.f32.mrb[0].mxu0
    %v4898 = vadd.f32 %v867, %v4897
    %4899 = vdwg.mxu0
    %4900 = vmatprep.subr.bf16.mxu0 %v3267
    %4901 = vmatpush1.bf16.msra.mxu0 %v3266
    %4902 = vmatprep.subr.bf16.mxu0 %v3274
    %4903 = vmatpush1.bf16.msra.mxu0 %v3273
    %4904 = vmatprep.subr.bf16.mxu0 %v3281
    %4905 = vmatpush1.bf16.msra.mxu0 %v3280
    %4906 = vmatprep.subr.bf16.mxu0 %v3288
    %4907 = vmatpush1.bf16.msra.mxu0 %v3287
    %4908 = vmatprep.subr.bf16.mxu0 %v3295
    %4909 = vmatpush1.bf16.msra.mxu0 %v3294
    %4910 = vmatprep.subr.bf16.mxu0 %v3302
    %4911 = vmatpush1.bf16.msra.mxu0 %v3301
    %4912 = vmatprep.subr.bf16.mxu0 %v3309
    %4913 = vmatpush1.bf16.msra.mxu0 %v3308
    %4914 = vmatprep.subr.bf16.mxu0 %v3316
    %4915 = vmatpush1.bf16.msra.mxu0 %v3315
    %4916 = vmatprep.subr.bf16.mxu0 %v3323
    %4917 = vmatpush1.bf16.msra.mxu0 %v3322
    %4918 = vmatprep.subr.bf16.mxu0 %v3330
    %4919 = vmatpush1.bf16.msra.mxu0 %v3329
    %4920 = vmatprep.subr.bf16.mxu0 %v3337
    %4921 = vmatpush1.bf16.msra.mxu0 %v3336
    %4922 = vmatprep.subr.bf16.mxu0 %v3344
    %4923 = vmatpush1.bf16.msra.mxu0 %v3343
    %4924 = vmatprep.subr.bf16.mxu0 %v3351
    %4925 = vmatpush1.bf16.msra.mxu0 %v3350
    %4926 = vmatprep.subr.bf16.mxu0 %v3358
    %4927 = vmatpush1.bf16.msra.mxu0 %v3357
    %4928 = vmatprep.subr.bf16.mxu0 %v3365
    %4929 = vmatpush1.bf16.msra.mxu0 %v3364
    %4930 = vmatprep.subr.bf16.mxu0 %v3372
    %4931 = vmatpush1.bf16.msra.mxu0 %v3371
    %4932 = vmatprep.mubr.bf16.mxu0 %v930
    %4933 = vmatmul.mubr.bf16.gmra.mrb[0].mxu0 %v929
    %v4934 = vpop.f32.mrb[0].mxu0
    %v4935 = vadd.f32 %v4892, %v4934
    %v4936 = vpop.f32.mrb[0].mxu0
    %v4937 = vadd.f32 %v4894, %v4936
    %v4938 = vpop.f32.mrb[0].mxu0
    %v4939 = vadd.f32 %v4896, %v4938
    %v4940 = vpop.f32.mrb[0].mxu0
    %v4941 = vadd.f32 %v4898, %v4940
    %4942 = vdwg.mxu0
    %4943 = vmatprep.subr.bf16.mxu0 %v3379
    %4944 = vmatpush1.bf16.msra.mxu0 %v3378
    %4945 = vmatprep.subr.bf16.mxu0 %v3386
    %4946 = vmatpush1.bf16.msra.mxu0 %v3385
    %4947 = vmatprep.subr.bf16.mxu0 %v3393
    %4948 = vmatpush1.bf16.msra.mxu0 %v3392
    %4949 = vmatprep.subr.bf16.mxu0 %v3400
    %4950 = vmatpush1.bf16.msra.mxu0 %v3399
    %4951 = vmatprep.subr.bf16.mxu0 %v3407
    %4952 = vmatpush1.bf16.msra.mxu0 %v3406
    %4953 = vmatprep.subr.bf16.mxu0 %v3414
    %4954 = vmatpush1.bf16.msra.mxu0 %v3413
    %4955 = vmatprep.subr.bf16.mxu0 %v3421
    %4956 = vmatpush1.bf16.msra.mxu0 %v3420
    %4957 = vmatprep.subr.bf16.mxu0 %v3428
    %4958 = vmatpush1.bf16.msra.mxu0 %v3427
    %4959 = vmatprep.subr.bf16.mxu0 %v3435
    %4960 = vmatpush1.bf16.msra.mxu0 %v3434
    %4961 = vmatprep.subr.bf16.mxu0 %v3442
    %4962 = vmatpush1.bf16.msra.mxu0 %v3441
    %4963 = vmatprep.subr.bf16.mxu0 %v3449
    %4964 = vmatpush1.bf16.msra.mxu0 %v3448
    %4965 = vmatprep.subr.bf16.mxu0 %v3456
    %4966 = vmatpush1.bf16.msra.mxu0 %v3455
    %4967 = vmatprep.subr.bf16.mxu0 %v3463
    %4968 = vmatpush1.bf16.msra.mxu0 %v3462
    %4969 = vmatprep.subr.bf16.mxu0 %v3470
    %4970 = vmatpush1.bf16.msra.mxu0 %v3469
    %4971 = vmatprep.subr.bf16.mxu0 %v3477
    %4972 = vmatpush1.bf16.msra.mxu0 %v3476
    %4973 = vmatprep.subr.bf16.mxu0 %v3484
    %4974 = vmatpush1.bf16.msra.mxu0 %v3483
    %4975 = vmatprep.mubr.bf16.mxu0 %v932
    %4976 = vmatmul.mubr.bf16.gmra.mrb[0].mxu0 %v931
    %v4977 = vpop.f32.mrb[0].mxu0
    %v4978 = vadd.f32 %v4935, %v4977
    %v4979 = vpop.f32.mrb[0].mxu0
    %v4980 = vadd.f32 %v4937, %v4979
    %v4981 = vpop.f32.mrb[0].mxu0
    %v4982 = vadd.f32 %v4939, %v4981
    %v4983 = vpop.f32.mrb[0].mxu0
    %v4984 = vadd.f32 %v4941, %v4983
    %4985 = vdwg.mxu0
    %4986 = vmatprep.subr.bf16.mxu0 %v3491
    %4987 = vmatpush1.bf16.msra.mxu0 %v3490
    %4988 = vmatprep.subr.bf16.mxu0 %v3498
    %4989 = vmatpush1.bf16.msra.mxu0 %v3497
    %4990 = vmatprep.subr.bf16.mxu0 %v3505
    %4991 = vmatpush1.bf16.msra.mxu0 %v3504
    %4992 = vmatprep.subr.bf16.mxu0 %v3512
    %4993 = vmatpush1.bf16.msra.mxu0 %v3511
    %4994 = vmatprep.subr.bf16.mxu0 %v3519
    %4995 = vmatpush1.bf16.msra.mxu0 %v3518
    %4996 = vmatprep.subr.bf16.mxu0 %v3526
    %4997 = vmatpush1.bf16.msra.mxu0 %v3525
    %4998 = vmatprep.subr.bf16.mxu0 %v3533
    %4999 = vmatpush1.bf16.msra.mxu0 %v3532
    %5000 = vmatprep.subr.bf16.mxu0 %v3540
    %5001 = vmatpush1.bf16.msra.mxu0 %v3539
    %5002 = vmatprep.subr.bf16.mxu0 %v3547
    %5003 = vmatpush1.bf16.msra.mxu0 %v3546
    %5004 = vmatprep.subr.bf16.mxu0 %v3554
    %5005 = vmatpush1.bf16.msra.mxu0 %v3553
    %5006 = vmatprep.subr.bf16.mxu0 %v3561
    %5007 = vmatpush1.bf16.msra.mxu0 %v3560
    %5008 = vmatprep.subr.bf16.mxu0 %v3568
    %5009 = vmatpush1.bf16.msra.mxu0 %v3567
    %5010 = vmatprep.subr.bf16.mxu0 %v3575
    %5011 = vmatpush1.bf16.msra.mxu0 %v3574
    %5012 = vmatprep.subr.bf16.mxu0 %v3582
    %5013 = vmatpush1.bf16.msra.mxu0 %v3581
    %5014 = vmatprep.subr.bf16.mxu0 %v3589
    %5015 = vmatpush1.bf16.msra.mxu0 %v3588
    %5016 = vmatprep.subr.bf16.mxu0 %v3596
    %5017 = vmatpush1.bf16.msra.mxu0 %v3595
    %5018 = vmatprep.mubr.bf16.mxu0 %v934
    %5019 = vmatmul.mubr.bf16.gmra.mrb[0].mxu0 %v933
    %v5020 = vpop.f32.mrb[0].mxu0
    %v5021 = vadd.f32 %v4978, %v5020
    %v5022 = vpop.f32.mrb[0].mxu0
    %v5023 = vadd.f32 %v4980, %v5022
    %v5024 = vpop.f32.mrb[0].mxu0
    %v5025 = vadd.f32 %v4982, %v5024
    %v5026 = vpop.f32.mrb[0].mxu0
    %v5027 = vadd.f32 %v4984, %v5026
    %5028 = vdwg.mxu0
    %5029 = vmatprep.subr.bf16.mxu0 %v3603
    %5030 = vmatpush1.bf16.msra.mxu0 %v3602
    %5031 = vmatprep.subr.bf16.mxu0 %v3610
    %5032 = vmatpush1.bf16.msra.mxu0 %v3609
    %5033 = vmatprep.subr.bf16.mxu0 %v3617
    %5034 = vmatpush1.bf16.msra.mxu0 %v3616
    %5035 = vmatprep.subr.bf16.mxu0 %v3624
    %5036 = vmatpush1.bf16.msra.mxu0 %v3623
    %5037 = vmatprep.subr.bf16.mxu0 %v3631
    %5038 = vmatpush1.bf16.msra.mxu0 %v3630
    %5039 = vmatprep.subr.bf16.mxu0 %v3638
    %5040 = vmatpush1.bf16.msra.mxu0 %v3637
    %5041 = vmatprep.subr.bf16.mxu0 %v3645
    %5042 = vmatpush1.bf16.msra.mxu0 %v3644
    %5043 = vmatprep.subr.bf16.mxu0 %v3652
    %5044 = vmatpush1.bf16.msra.mxu0 %v3651
    %5045 = vmatprep.subr.bf16.mxu0 %v3659
    %5046 = vmatpush1.bf16.msra.mxu0 %v3658
    %5047 = vmatprep.subr.bf16.mxu0 %v3666
    %5048 = vmatpush1.bf16.msra.mxu0 %v3665
    %5049 = vmatprep.subr.bf16.mxu0 %v3673
    %5050 = vmatpush1.bf16.msra.mxu0 %v3672
    %5051 = vmatprep.subr.bf16.mxu0 %v3680
    %5052 = vmatpush1.bf16.msra.mxu0 %v3679
    %5053 = vmatprep.subr.bf16.mxu0 %v3687
    %5054 = vmatpush1.bf16.msra.mxu0 %v3686
    %5055 = vmatprep.subr.bf16.mxu0 %v3694
    %5056 = vmatpush1.bf16.msra.mxu0 %v3693
    %5057 = vmatprep.subr.bf16.mxu0 %v3701
    %5058 = vmatpush1.bf16.msra.mxu0 %v3700
    %5059 = vmatprep.subr.bf16.mxu0 %v3708
    %5060 = vmatpush1.bf16.msra.mxu0 %v3707
    %5061 = vmatprep.mubr.bf16.mxu0 %v936
    %5062 = vmatmul.mubr.bf16.gmra.mrb[0].mxu0 %v935
    %v5063 = vpop.f32.mrb[0].mxu0
    %v5064 = vadd.f32 %v5021, %v5063
    %v5065 = vpop.f32.mrb[0].mxu0
    %v5066 = vadd.f32 %v5023, %v5065
    %v5067 = vpop.f32.mrb[0].mxu0
    %v5068 = vadd.f32 %v5025, %v5067
    %v5069 = vpop.f32.mrb[0].mxu0
    %v5070 = vadd.f32 %v5027, %v5069
    %5071 = vdwg.mxu0
    %5072 = vmatprep.subr.bf16.mxu0 %v3715
    %5073 = vmatpush1.bf16.msra.mxu0 %v3714
    %5074 = vmatprep.subr.bf16.mxu0 %v3722
    %5075 = vmatpush1.bf16.msra.mxu0 %v3721
    %5076 = vmatprep.subr.bf16.mxu0 %v3729
    %5077 = vmatpush1.bf16.msra.mxu0 %v3728
    %5078 = vmatprep.subr.bf16.mxu0 %v3736
    %5079 = vmatpush1.bf16.msra.mxu0 %v3735
    %5080 = vmatprep.subr.bf16.mxu0 %v3743
    %5081 = vmatpush1.bf16.msra.mxu0 %v3742
    %5082 = vmatprep.subr.bf16.mxu0 %v3750
    %5083 = vmatpush1.bf16.msra.mxu0 %v3749
    %5084 = vmatprep.subr.bf16.mxu0 %v3757
    %5085 = vmatpush1.bf16.msra.mxu0 %v3756
    %5086 = vmatprep.subr.bf16.mxu0 %v3764
    %5087 = vmatpush1.bf16.msra.mxu0 %v3763
    %5088 = vmatprep.subr.bf16.mxu0 %v3771
    %5089 = vmatpush1.bf16.msra.mxu0 %v3770
    %5090 = vmatprep.subr.bf16.mxu0 %v3778
    %5091 = vmatpush1.bf16.msra.mxu0 %v3777
    %5092 = vmatprep.subr.bf16.mxu0 %v3785
    %5093 = vmatpush1.bf16.msra.mxu0 %v3784
    %5094 = vmatprep.subr.bf16.mxu0 %v3792
    %5095 = vmatpush1.bf16.msra.mxu0 %v3791
    %5096 = vmatprep.subr.bf16.mxu0 %v3799
    %5097 = vmatpush1.bf16.msra.mxu0 %v3798
    %5098 = vmatprep.subr.bf16.mxu0 %v3806
    %5099 = vmatpush1.bf16.msra.mxu0 %v3805
    %5100 = vmatprep.subr.bf16.mxu0 %v3813
    %5101 = vmatpush1.bf16.msra.mxu0 %v3812
    %5102 = vmatprep.subr.bf16.mxu0 %v3820
    %5103 = vmatpush1.bf16.msra.mxu0 %v3819
    %5104 = vmatprep.mubr.bf16.mxu0 %v938
    %5105 = vmatmul.mubr.bf16.gmra.mrb[0].mxu0 %v937
    %v5106 = vpop.f32.mrb[0].mxu0
    %v5107 = vadd.f32 %v5064, %v5106
    %v5108 = vpop.f32.mrb[0].mxu0
    %v5109 = vadd.f32 %v5066, %v5108
    %v5110 = vpop.f32.mrb[0].mxu0
    %v5111 = vadd.f32 %v5068, %v5110
    %v5112 = vpop.f32.mrb[0].mxu0
    %v5113 = vadd.f32 %v5070, %v5112
    %5114 = vdwg.mxu0
    %5115 = vmatprep.subr.bf16.mxu0 %v3827
    %5116 = vmatpush1.bf16.msra.mxu0 %v3826
    %5117 = vmatprep.subr.bf16.mxu0 %v3834
    %5118 = vmatpush1.bf16.msra.mxu0 %v3833
    %5119 = vmatprep.subr.bf16.mxu0 %v3841
    %5120 = vmatpush1.bf16.msra.mxu0 %v3840
    %5121 = vmatprep.subr.bf16.mxu0 %v3848
    %5122 = vmatpush1.bf16.msra.mxu0 %v3847
    %5123 = vmatprep.subr.bf16.mxu0 0
    %5124 = vmatpush1.bf16.msra.mxu0 0
    %5125 = vmatprep.subr.bf16.mxu0 0
    %5126 = vmatpush1.bf16.msra.mxu0 0
    %5127 = vmatprep.subr.bf16.mxu0 0
    %5128 = vmatpush1.bf16.msra.mxu0 0
    %5129 = vmatprep.subr.bf16.mxu0 0
    %5130 = vmatpush1.bf16.msra.mxu0 0
    %5131 = vmatprep.subr.bf16.mxu0 0
    %5132 = vmatpush1.bf16.msra.mxu0 0
    %5133 = vmatprep.subr.bf16.mxu0 0
    %5134 = vmatpush1.bf16.msra.mxu0 0
    %5135 = vmatprep.subr.bf16.mxu0 0
    %5136 = vmatpush1.bf16.msra.mxu0 0
    %5137 = vmatprep.subr.bf16.mxu0 0
    %5138 = vmatpush1.bf16.msra.mxu0 0
    %5139 = vmatprep.subr.bf16.mxu0 0
    %5140 = vmatpush1.bf16.msra.mxu0 0
    %5141 = vmatprep.subr.bf16.mxu0 0
    %5142 = vmatpush1.bf16.msra.mxu0 0
    %5143 = vmatprep.subr.bf16.mxu0 0
    %5144 = vmatpush1.bf16.msra.mxu0 0
    %5145 = vmatprep.subr.bf16.mxu0 0
    %5146 = vmatpush1.bf16.msra.mxu0 0
    %5147 = vmatprep.mubr.bf16.mxu0 0
    %5148 = vmatmul.mubr.bf16.gmra.mrb[0].mxu0 %v4554
    %v5149 = vpop.f32.mrb[0].mxu0
    %v5150 = vadd.f32 %v5107, %v5149
    %v5151 = vpop.f32.mrb[0].mxu0
    %v5152 = vadd.f32 %v5109, %v5151
    %v5153 = vpop.f32.mrb[0].mxu0
    %v5154 = vadd.f32 %v5111, %v5153
    %v5155 = vpop.f32.mrb[0].mxu0
    %v5156 = vadd.f32 %v5113, %v5155
    %5157 = vdwg.mxu0
    %5158 = vmatprep.subr.bf16.mxu0 %v3157
    %5159 = vmatpush1.bf16.msra.mxu0 %v3156
    %5160 = vmatprep.subr.bf16.mxu0 %v3164
    %5161 = vmatpush1.bf16.msra.mxu0 %v3163
    %5162 = vmatprep.subr.bf16.mxu0 %v3171
    %5163 = vmatpush1.bf16.msra.mxu0 %v3170
    %5164 = vmatprep.subr.bf16.mxu0 %v3178
    %5165 = vmatpush1.bf16.msra.mxu0 %v3177
    %5166 = vmatprep.subr.bf16.mxu0 %v3185
    %5167 = vmatpush1.bf16.msra.mxu0 %v3184
    %5168 = vmatprep.subr.bf16.mxu0 %v3192
    %5169 = vmatpush1.bf16.msra.mxu0 %v3191
    %5170 = vmatprep.subr.bf16.mxu0 %v3199
    %5171 = vmatpush1.bf16.msra.mxu0 %v3198
    %5172 = vmatprep.subr.bf16.mxu0 %v3206
    %5173 = vmatpush1.bf16.msra.mxu0 %v3205
    %5174 = vmatprep.subr.bf16.mxu0 %v3213
    %5175 = vmatpush1.bf16.msra.mxu0 %v3212
    %5176 = vmatprep.subr.bf16.mxu0 %v3220
    %5177 = vmatpush1.bf16.msra.mxu0 %v3219
    %5178 = vmatprep.subr.bf16.mxu0 %v3227
    %5179 = vmatpush1.bf16.msra.mxu0 %v3226
    %5180 = vmatprep.subr.bf16.mxu0 %v3234
    %5181 = vmatpush1.bf16.msra.mxu0 %v3233
    %5182 = vmatprep.subr.bf16.mxu0 %v3241
    %5183 = vmatpush1.bf16.msra.mxu0 %v3240
    %5184 = vmatprep.subr.bf16.mxu0 %v3248
    %5185 = vmatpush1.bf16.msra.mxu0 %v3247
    %5186 = vmatprep.subr.bf16.mxu0 %v3255
    %5187 = vmatpush1.bf16.msra.mxu0 %v3254
    %5188 = vmatprep.subr.bf16.mxu0 %v3262
    %5189 = vmatpush1.bf16.msra.mxu0 %v3261
    %5190 = vmatprep.mubr.bf16.mxu0 %v928
    %5191 = vmatmul.mubr.bf16.gmra.mrb[0].mxu0 %v927
    %v5192 = vpop.f32.mrb[0].mxu0
    %v5193 = vadd.f32 %v871, %v5192
    %v5194 = vpop.f32.mrb[0].mxu0
    %v5195 = vadd.f32 %v875, %v5194
    %v5196 = vpop.f32.mrb[0].mxu0
    %v5197 = vadd.f32 %v871, %v5196
    %v5198 = vpop.f32.mrb[0].mxu0
    %v5199 = vadd.f32 %v875, %v5198
    %5200 = vdwg.mxu0
    %5201 = vmatprep.subr.bf16.mxu0 %v3269
    %5202 = vmatpush1.bf16.msra.mxu0 %v3268
    %5203 = vmatprep.subr.bf16.mxu0 %v3276
    %5204 = vmatpush1.bf16.msra.mxu0 %v3275
    %5205 = vmatprep.subr.bf16.mxu0 %v3283
    %5206 = vmatpush1.bf16.msra.mxu0 %v3282
    %5207 = vmatprep.subr.bf16.mxu0 %v3290
    %5208 = vmatpush1.bf16.msra.mxu0 %v3289
    %5209 = vmatprep.subr.bf16.mxu0 %v3297
    %5210 = vmatpush1.bf16.msra.mxu0 %v3296
    %5211 = vmatprep.subr.bf16.mxu0 %v3304
    %5212 = vmatpush1.bf16.msra.mxu0 %v3303
    %5213 = vmatprep.subr.bf16.mxu0 %v3311
    %5214 = vmatpush1.bf16.msra.mxu0 %v3310
    %5215 = vmatprep.subr.bf16.mxu0 %v3318
    %5216 = vmatpush1.bf16.msra.mxu0 %v3317
    %5217 = vmatprep.subr.bf16.mxu0 %v3325
    %5218 = vmatpush1.bf16.msra.mxu0 %v3324
    %5219 = vmatprep.subr.bf16.mxu0 %v3332
    %5220 = vmatpush1.bf16.msra.mxu0 %v3331
    %5221 = vmatprep.subr.bf16.mxu0 %v3339
    %5222 = vmatpush1.bf16.msra.mxu0 %v3338
    %5223 = vmatprep.subr.bf16.mxu0 %v3346
    %5224 = vmatpush1.bf16.msra.mxu0 %v3345
    %5225 = vmatprep.subr.bf16.mxu0 %v3353
    %5226 = vmatpush1.bf16.msra.mxu0 %v3352
    %5227 = vmatprep.subr.bf16.mxu0 %v3360
    %5228 = vmatpush1.bf16.msra.mxu0 %v3359
    %5229 = vmatprep.subr.bf16.mxu0 %v3367
    %5230 = vmatpush1.bf16.msra.mxu0 %v3366
    %5231 = vmatprep.subr.bf16.mxu0 %v3374
    %5232 = vmatpush1.bf16.msra.mxu0 %v3373
    %5233 = vmatprep.mubr.bf16.mxu0 %v930
    %5234 = vmatmul.mubr.bf16.gmra.mrb[0].mxu0 %v929
    %v5235 = vpop.f32.mrb[0].mxu0
    %v5236 = vadd.f32 %v5193, %v5235
    %v5237 = vpop.f32.mrb[0].mxu0
    %v5238 = vadd.f32 %v5195, %v5237
    %v5239 = vpop.f32.mrb[0].mxu0
    %v5240 = vadd.f32 %v5197, %v5239
    %v5241 = vpop.f32.mrb[0].mxu0
    %v5242 = vadd.f32 %v5199, %v5241
    %5243 = vdwg.mxu0
    %5244 = vmatprep.subr.bf16.mxu0 %v3381
    %5245 = vmatpush1.bf16.msra.mxu0 %v3380
    %5246 = vmatprep.subr.bf16.mxu0 %v3388
    %5247 = vmatpush1.bf16.msra.mxu0 %v3387
    %5248 = vmatprep.subr.bf16.mxu0 %v3395
    %5249 = vmatpush1.bf16.msra.mxu0 %v3394
    %5250 = vmatprep.subr.bf16.mxu0 %v3402
    %5251 = vmatpush1.bf16.msra.mxu0 %v3401
    %5252 = vmatprep.subr.bf16.mxu0 %v3409
    %5253 = vmatpush1.bf16.msra.mxu0 %v3408
    %5254 = vmatprep.subr.bf16.mxu0 %v3416
    %5255 = vmatpush1.bf16.msra.mxu0 %v3415
    %5256 = vmatprep.subr.bf16.mxu0 %v3423
    %5257 = vmatpush1.bf16.msra.mxu0 %v3422
    %5258 = vmatprep.subr.bf16.mxu0 %v3430
    %5259 = vmatpush1.bf16.msra.mxu0 %v3429
    %5260 = vmatprep.subr.bf16.mxu0 %v3437
    %5261 = vmatpush1.bf16.msra.mxu0 %v3436
    %5262 = vmatprep.subr.bf16.mxu0 %v3444
    %5263 = vmatpush1.bf16.msra.mxu0 %v3443
    %5264 = vmatprep.subr.bf16.mxu0 %v3451
    %5265 = vmatpush1.bf16.msra.mxu0 %v3450
    %5266 = vmatprep.subr.bf16.mxu0 %v3458
    %5267 = vmatpush1.bf16.msra.mxu0 %v3457
    %5268 = vmatprep.subr.bf16.mxu0 %v3465
    %5269 = vmatpush1.bf16.msra.mxu0 %v3464
    %5270 = vmatprep.subr.bf16.mxu0 %v3472
    %5271 = vmatpush1.bf16.msra.mxu0 %v3471
    %5272 = vmatprep.subr.bf16.mxu0 %v3479
    %5273 = vmatpush1.bf16.msra.mxu0 %v3478
    %5274 = vmatprep.subr.bf16.mxu0 %v3486
    %5275 = vmatpush1.bf16.msra.mxu0 %v3485
    %5276 = vmatprep.mubr.bf16.mxu0 %v932
    %5277 = vmatmul.mubr.bf16.gmra.mrb[0].mxu0 %v931
    %v5278 = vpop.f32.mrb[0].mxu0
    %v5279 = vadd.f32 %v5236, %v5278
    %v5280 = vpop.f32.mrb[0].mxu0
    %v5281 = vadd.f32 %v5238, %v5280
    %v5282 = vpop.f32.mrb[0].mxu0
    %v5283 = vadd.f32 %v5240, %v5282
    %v5284 = vpop.f32.mrb[0].mxu0
    %v5285 = vadd.f32 %v5242, %v5284
    %5286 = vdwg.mxu0
    %5287 = vmatprep.subr.bf16.mxu0 %v3493
    %5288 = vmatpush1.bf16.msra.mxu0 %v3492
    %5289 = vmatprep.subr.bf16.mxu0 %v3500
    %5290 = vmatpush1.bf16.msra.mxu0 %v3499
    %5291 = vmatprep.subr.bf16.mxu0 %v3507
    %5292 = vmatpush1.bf16.msra.mxu0 %v3506
    %5293 = vmatprep.subr.bf16.mxu0 %v3514
    %5294 = vmatpush1.bf16.msra.mxu0 %v3513
    %5295 = vmatprep.subr.bf16.mxu0 %v3521
    %5296 = vmatpush1.bf16.msra.mxu0 %v3520
    %5297 = vmatprep.subr.bf16.mxu0 %v3528
    %5298 = vmatpush1.bf16.msra.mxu0 %v3527
    %5299 = vmatprep.subr.bf16.mxu0 %v3535
    %5300 = vmatpush1.bf16.msra.mxu0 %v3534
    %5301 = vmatprep.subr.bf16.mxu0 %v3542
    %5302 = vmatpush1.bf16.msra.mxu0 %v3541
    %5303 = vmatprep.subr.bf16.mxu0 %v3549
    %5304 = vmatpush1.bf16.msra.mxu0 %v3548
    %5305 = vmatprep.subr.bf16.mxu0 %v3556
    %5306 = vmatpush1.bf16.msra.mxu0 %v3555
    %5307 = vmatprep.subr.bf16.mxu0 %v3563
    %5308 = vmatpush1.bf16.msra.mxu0 %v3562
    %5309 = vmatprep.subr.bf16.mxu0 %v3570
    %5310 = vmatpush1.bf16.msra.mxu0 %v3569
    %5311 = vmatprep.subr.bf16.mxu0 %v3577
    %5312 = vmatpush1.bf16.msra.mxu0 %v3576
    %5313 = vmatprep.subr.bf16.mxu0 %v3584
    %5314 = vmatpush1.bf16.msra.mxu0 %v3583
    %5315 = vmatprep.subr.bf16.mxu0 %v3591
    %5316 = vmatpush1.bf16.msra.mxu0 %v3590
    %5317 = vmatprep.subr.bf16.mxu0 %v3598
    %5318 = vmatpush1.bf16.msra.mxu0 %v3597
    %5319 = vmatprep.mubr.bf16.mxu0 %v934
    %5320 = vmatmul.mubr.bf16.gmra.mrb[0].mxu0 %v933
    %v5321 = vpop.f32.mrb[0].mxu0
    %v5322 = vadd.f32 %v5279, %v5321
    %v5323 = vpop.f32.mrb[0].mxu0
    %v5324 = vadd.f32 %v5281, %v5323
    %v5325 = vpop.f32.mrb[0].mxu0
    %v5326 = vadd.f32 %v5283, %v5325
    %v5327 = vpop.f32.mrb[0].mxu0
    %v5328 = vadd.f32 %v5285, %v5327
    %5329 = vdwg.mxu0
    %5330 = vmatprep.subr.bf16.mxu0 %v3605
    %5331 = vmatpush1.bf16.msra.mxu0 %v3604
    %5332 = vmatprep.subr.bf16.mxu0 %v3612
    %5333 = vmatpush1.bf16.msra.mxu0 %v3611
    %5334 = vmatprep.subr.bf16.mxu0 %v3619
    %5335 = vmatpush1.bf16.msra.mxu0 %v3618
    %5336 = vmatprep.subr.bf16.mxu0 %v3626
    %5337 = vmatpush1.bf16.msra.mxu0 %v3625
    %5338 = vmatprep.subr.bf16.mxu0 %v3633
    %5339 = vmatpush1.bf16.msra.mxu0 %v3632
    %5340 = vmatprep.subr.bf16.mxu0 %v3640
    %5341 = vmatpush1.bf16.msra.mxu0 %v3639
    %5342 = vmatprep.subr.bf16.mxu0 %v3647
    %5343 = vmatpush1.bf16.msra.mxu0 %v3646
    %5344 = vmatprep.subr.bf16.mxu0 %v3654
    %5345 = vmatpush1.bf16.msra.mxu0 %v3653
    %5346 = vmatprep.subr.bf16.mxu0 %v3661
    %5347 = vmatpush1.bf16.msra.mxu0 %v3660
    %5348 = vmatprep.subr.bf16.mxu0 %v3668
    %5349 = vmatpush1.bf16.msra.mxu0 %v3667
    %5350 = vmatprep.subr.bf16.mxu0 %v3675
    %5351 = vmatpush1.bf16.msra.mxu0 %v3674
    %5352 = vmatprep.subr.bf16.mxu0 %v3682
    %5353 = vmatpush1.bf16.msra.mxu0 %v3681
    %5354 = vmatprep.subr.bf16.mxu0 %v3689
    %5355 = vmatpush1.bf16.msra.mxu0 %v3688
    %5356 = vmatprep.subr.bf16.mxu0 %v3696
    %5357 = vmatpush1.bf16.msra.mxu0 %v3695
    %5358 = vmatprep.subr.bf16.mxu0 %v3703
    %5359 = vmatpush1.bf16.msra.mxu0 %v3702
    %5360 = vmatprep.subr.bf16.mxu0 %v3710
    %5361 = vmatpush1.bf16.msra.mxu0 %v3709
    %5362 = vmatprep.mubr.bf16.mxu0 %v936
    %5363 = vmatmul.mubr.bf16.gmra.mrb[0].mxu0 %v935
    %v5364 = vpop.f32.mrb[0].mxu0
    %v5365 = vadd.f32 %v5322, %v5364
    %v5366 = vpop.f32.mrb[0].mxu0
    %v5367 = vadd.f32 %v5324, %v5366
    %v5368 = vpop.f32.mrb[0].mxu0
    %v5369 = vadd.f32 %v5326, %v5368
    %v5370 = vpop.f32.mrb[0].mxu0
    %v5371 = vadd.f32 %v5328, %v5370
    %5372 = vdwg.mxu0
    %5373 = vmatprep.subr.bf16.mxu0 %v3717
    %5374 = vmatpush1.bf16.msra.mxu0 %v3716
    %5375 = vmatprep.subr.bf16.mxu0 %v3724
    %5376 = vmatpush1.bf16.msra.mxu0 %v3723
    %5377 = vmatprep.subr.bf16.mxu0 %v3731
    %5378 = vmatpush1.bf16.msra.mxu0 %v3730
    %5379 = vmatprep.subr.bf16.mxu0 %v3738
    %5380 = vmatpush1.bf16.msra.mxu0 %v3737
    %5381 = vmatprep.subr.bf16.mxu0 %v3745
    %5382 = vmatpush1.bf16.msra.mxu0 %v3744
    %5383 = vmatprep.subr.bf16.mxu0 %v3752
    %5384 = vmatpush1.bf16.msra.mxu0 %v3751
    %5385 = vmatprep.subr.bf16.mxu0 %v3759
    %5386 = vmatpush1.bf16.msra.mxu0 %v3758
    %5387 = vmatprep.subr.bf16.mxu0 %v3766
    %5388 = vmatpush1.bf16.msra.mxu0 %v3765
    %5389 = vmatprep.subr.bf16.mxu0 %v3773
    %5390 = vmatpush1.bf16.msra.mxu0 %v3772
    %5391 = vmatprep.subr.bf16.mxu0 %v3780
    %5392 = vmatpush1.bf16.msra.mxu0 %v3779
    %5393 = vmatprep.subr.bf16.mxu0 %v3787
    %5394 = vmatpush1.bf16.msra.mxu0 %v3786
    %5395 = vmatprep.subr.bf16.mxu0 %v3794
    %5396 = vmatpush1.bf16.msra.mxu0 %v3793
    %5397 = vmatprep.subr.bf16.mxu0 %v3801
    %5398 = vmatpush1.bf16.msra.mxu0 %v3800
    %5399 = vmatprep.subr.bf16.mxu0 %v3808
    %5400 = vmatpush1.bf16.msra.mxu0 %v3807
    %5401 = vmatprep.subr.bf16.mxu0 %v3815
    %5402 = vmatpush1.bf16.msra.mxu0 %v3814
    %5403 = vmatprep.subr.bf16.mxu0 %v3822
    %5404 = vmatpush1.bf16.msra.mxu0 %v3821
    %5405 = vmatprep.mubr.bf16.mxu0 %v938
    %5406 = vmatmul.mubr.bf16.gmra.mrb[0].mxu0 %v937
    %v5407 = vpop.f32.mrb[0].mxu0
    %v5408 = vadd.f32 %v5365, %v5407
    %v5409 = vpop.f32.mrb[0].mxu0
    %v5410 = vadd.f32 %v5367, %v5409
    %v5411 = vpop.f32.mrb[0].mxu0
    %v5412 = vadd.f32 %v5369, %v5411
    %v5413 = vpop.f32.mrb[0].mxu0
    %v5414 = vadd.f32 %v5371, %v5413
    %5415 = vdwg.mxu0
    %5416 = vmatprep.subr.bf16.mxu0 %v3829
    %5417 = vmatpush1.bf16.msra.mxu0 %v3828
    %5418 = vmatprep.subr.bf16.mxu0 %v3836
    %5419 = vmatpush1.bf16.msra.mxu0 %v3835
    %5420 = vmatprep.subr.bf16.mxu0 %v3843
    %5421 = vmatpush1.bf16.msra.mxu0 %v3842
    %5422 = vmatprep.subr.bf16.mxu0 %v3850
    %5423 = vmatpush1.bf16.msra.mxu0 %v3849
    %5424 = vmatprep.subr.bf16.mxu0 0
    %5425 = vmatpush1.bf16.msra.mxu0 0
    %5426 = vmatprep.subr.bf16.mxu0 0
    %5427 = vmatpush1.bf16.msra.mxu0 0
    %5428 = vmatprep.subr.bf16.mxu0 0
    %5429 = vmatpush1.bf16.msra.mxu0 0
    %5430 = vmatprep.subr.bf16.mxu0 0
    %5431 = vmatpush1.bf16.msra.mxu0 0
    %5432 = vmatprep.subr.bf16.mxu0 0
    %5433 = vmatpush1.bf16.msra.mxu0 0
    %5434 = vmatprep.subr.bf16.mxu0 0
    %5435 = vmatpush1.bf16.msra.mxu0 0
    %5436 = vmatprep.subr.bf16.mxu0 0
    %5437 = vmatpush1.bf16.msra.mxu0 0
    %5438 = vmatprep.subr.bf16.mxu0 0
    %5439 = vmatpush1.bf16.msra.mxu0 0
    %5440 = vmatprep.subr.bf16.mxu0 0
    %5441 = vmatpush1.bf16.msra.mxu0 0
    %5442 = vmatprep.subr.bf16.mxu0 0
    %5443 = vmatpush1.bf16.msra.mxu0 0
    %5444 = vmatprep.subr.bf16.mxu0 0
    %5445 = vmatpush1.bf16.msra.mxu0 0
    %5446 = vmatprep.subr.bf16.mxu0 0
    %5447 = vmatpush1.bf16.msra.mxu0 0
    %5448 = vmatprep.mubr.bf16.mxu0 0
    %5449 = vmatmul.mubr.bf16.gmra.mrb[0].mxu0 %v4554
    %v5450 = vpop.f32.mrb[0].mxu0
    %v5451 = vadd.f32 %v5408, %v5450
    %v5452 = vpop.f32.mrb[0].mxu0
    %v5453 = vadd.f32 %v5410, %v5452
    %v5454 = vpop.f32.mrb[0].mxu0
    %v5455 = vadd.f32 %v5412, %v5454
    %v5456 = vpop.f32.mrb[0].mxu0
    %v5457 = vadd.f32 %v5414, %v5456
    %5458 = vdwg.mxu0
    %5459 = vmatprep.subr.bf16.mxu0 0
    %5460 = vmatpush1.bf16.msra.mxu0 %v3158
    %5461 = vmatprep.subr.bf16.mxu0 0
    %5462 = vmatpush1.bf16.msra.mxu0 %v3165
    %5463 = vmatprep.subr.bf16.mxu0 0
    %5464 = vmatpush1.bf16.msra.mxu0 %v3172
    %5465 = vmatprep.subr.bf16.mxu0 0
    %5466 = vmatpush1.bf16.msra.mxu0 %v3179
    %5467 = vmatprep.subr.bf16.mxu0 0
    %5468 = vmatpush1.bf16.msra.mxu0 %v3186
    %5469 = vmatprep.subr.bf16.mxu0 0
    %5470 = vmatpush1.bf16.msra.mxu0 %v3193
    %5471 = vmatprep.subr.bf16.mxu0 0
    %5472 = vmatpush1.bf16.msra.mxu0 %v3200
    %5473 = vmatprep.subr.bf16.mxu0 0
    %5474 = vmatpush1.bf16.msra.mxu0 %v3207
    %5475 = vmatprep.subr.bf16.mxu0 0
    %5476 = vmatpush1.bf16.msra.mxu0 %v3214
    %5477 = vmatprep.subr.bf16.mxu0 0
    %5478 = vmatpush1.bf16.msra.mxu0 %v3221
    %5479 = vmatprep.subr.bf16.mxu0 0
    %5480 = vmatpush1.bf16.msra.mxu0 %v3228
    %5481 = vmatprep.subr.bf16.mxu0 0
    %5482 = vmatpush1.bf16.msra.mxu0 %v3235
    %5483 = vmatprep.subr.bf16.mxu0 0
    %5484 = vmatpush1.bf16.msra.mxu0 %v3242
    %5485 = vmatprep.subr.bf16.mxu0 0
    %5486 = vmatpush1.bf16.msra.mxu0 %v3249
    %5487 = vmatprep.subr.bf16.mxu0 0
    %5488 = vmatpush1.bf16.msra.mxu0 %v3256
    %5489 = vmatprep.subr.bf16.mxu0 0
    %5490 = vmatpush1.bf16.msra.mxu0 %v3263
    %5491 = vmatprep.mubr.bf16.mxu0 %v928
    %5492 = vmatmul.mubr.bf16.gmra.mrb[0].mxu0 %v927
    %v5493 = vpop.f32.mrb[0].mxu0
    %v5494 = vadd.f32 %v879, %v5493
    %v5495 = vpop.f32.mrb[0].mxu0
    %v5496 = vpop.f32.mrb[0].mxu0
    %v5497 = vadd.f32 %v879, %v5496
    %v5498 = vpop.f32.mrb[0].mxu0
    %5499 = vdwg.mxu0
    %5500 = vmatprep.subr.bf16.mxu0 0
    %5501 = vmatpush1.bf16.msra.mxu0 %v3270
    %5502 = vmatprep.subr.bf16.mxu0 0
    %5503 = vmatpush1.bf16.msra.mxu0 %v3277
    %5504 = vmatprep.subr.bf16.mxu0 0
    %5505 = vmatpush1.bf16.msra.mxu0 %v3284
    %5506 = vmatprep.subr.bf16.mxu0 0
    %5507 = vmatpush1.bf16.msra.mxu0 %v3291
    %5508 = vmatprep.subr.bf16.mxu0 0
    %5509 = vmatpush1.bf16.msra.mxu0 %v3298
    %5510 = vmatprep.subr.bf16.mxu0 0
    %5511 = vmatpush1.bf16.msra.mxu0 %v3305
    %5512 = vmatprep.subr.bf16.mxu0 0
    %5513 = vmatpush1.bf16.msra.mxu0 %v3312
    %5514 = vmatprep.subr.bf16.mxu0 0
    %5515 = vmatpush1.bf16.msra.mxu0 %v3319
    %5516 = vmatprep.subr.bf16.mxu0 0
    %5517 = vmatpush1.bf16.msra.mxu0 %v3326
    %5518 = vmatprep.subr.bf16.mxu0 0
    %5519 = vmatpush1.bf16.msra.mxu0 %v3333
    %5520 = vmatprep.subr.bf16.mxu0 0
    %5521 = vmatpush1.bf16.msra.mxu0 %v3340
    %5522 = vmatprep.subr.bf16.mxu0 0
    %5523 = vmatpush1.bf16.msra.mxu0 %v3347
    %5524 = vmatprep.subr.bf16.mxu0 0
    %5525 = vmatpush1.bf16.msra.mxu0 %v3354
    %5526 = vmatprep.subr.bf16.mxu0 0
    %5527 = vmatpush1.bf16.msra.mxu0 %v3361
    %5528 = vmatprep.subr.bf16.mxu0 0
    %5529 = vmatpush1.bf16.msra.mxu0 %v3368
    %5530 = vmatprep.subr.bf16.mxu0 0
    %5531 = vmatpush1.bf16.msra.mxu0 %v3375
    %5532 = vmatprep.mubr.bf16.mxu0 %v930
    %5533 = vmatmul.mubr.bf16.gmra.mrb[0].mxu0 %v929
    %v5534 = vpop.f32.mrb[0].mxu0
    %v5535 = vadd.f32 %v5494, %v5534
    %v5536 = vpop.f32.mrb[0].mxu0
    %v5537 = vpop.f32.mrb[0].mxu0
    %v5538 = vadd.f32 %v5497, %v5537
    %v5539 = vpop.f32.mrb[0].mxu0
    %5540 = vdwg.mxu0
    %5541 = vmatprep.subr.bf16.mxu0 0
    %5542 = vmatpush1.bf16.msra.mxu0 %v3382
    %5543 = vmatprep.subr.bf16.mxu0 0
    %5544 = vmatpush1.bf16.msra.mxu0 %v3389
    %5545 = vmatprep.subr.bf16.mxu0 0
    %5546 = vmatpush1.bf16.msra.mxu0 %v3396
    %5547 = vmatprep.subr.bf16.mxu0 0
    %5548 = vmatpush1.bf16.msra.mxu0 %v3403
    %5549 = vmatprep.subr.bf16.mxu0 0
    %5550 = vmatpush1.bf16.msra.mxu0 %v3410
    %5551 = vmatprep.subr.bf16.mxu0 0
    %5552 = vmatpush1.bf16.msra.mxu0 %v3417
    %5553 = vmatprep.subr.bf16.mxu0 0
    %5554 = vmatpush1.bf16.msra.mxu0 %v3424
    %5555 = vmatprep.subr.bf16.mxu0 0
    %5556 = vmatpush1.bf16.msra.mxu0 %v3431
    %5557 = vmatprep.subr.bf16.mxu0 0
    %5558 = vmatpush1.bf16.msra.mxu0 %v3438
    %5559 = vmatprep.subr.bf16.mxu0 0
    %5560 = vmatpush1.bf16.msra.mxu0 %v3445
    %5561 = vmatprep.subr.bf16.mxu0 0
    %5562 = vmatpush1.bf16.msra.mxu0 %v3452
    %5563 = vmatprep.subr.bf16.mxu0 0
    %5564 = vmatpush1.bf16.msra.mxu0 %v3459
    %5565 = vmatprep.subr.bf16.mxu0 0
    %5566 = vmatpush1.bf16.msra.mxu0 %v3466
    %5567 = vmatprep.subr.bf16.mxu0 0
    %5568 = vmatpush1.bf16.msra.mxu0 %v3473
    %5569 = vmatprep.subr.bf16.mxu0 0
    %5570 = vmatpush1.bf16.msra.mxu0 %v3480
    %5571 = vmatprep.subr.bf16.mxu0 0
    %5572 = vmatpush1.bf16.msra.mxu0 %v3487
    %5573 = vmatprep.mubr.bf16.mxu0 %v932
    %5574 = vmatmul.mubr.bf16.gmra.mrb[0].mxu0 %v931
    %v5575 = vpop.f32.mrb[0].mxu0
    %v5576 = vadd.f32 %v5535, %v5575
    %v5577 = vpop.f32.mrb[0].mxu0
    %v5578 = vpop.f32.mrb[0].mxu0
    %v5579 = vadd.f32 %v5538, %v5578
    %v5580 = vpop.f32.mrb[0].mxu0
    %5581 = vdwg.mxu0
    %5582 = vmatprep.subr.bf16.mxu0 0
    %5583 = vmatpush1.bf16.msra.mxu0 %v3494
    %5584 = vmatprep.subr.bf16.mxu0 0
    %5585 = vmatpush1.bf16.msra.mxu0 %v3501
    %5586 = vmatprep.subr.bf16.mxu0 0
    %5587 = vmatpush1.bf16.msra.mxu0 %v3508
    %5588 = vmatprep.subr.bf16.mxu0 0
    %5589 = vmatpush1.bf16.msra.mxu0 %v3515
    %5590 = vmatprep.subr.bf16.mxu0 0
    %5591 = vmatpush1.bf16.msra.mxu0 %v3522
    %5592 = vmatprep.subr.bf16.mxu0 0
    %5593 = vmatpush1.bf16.msra.mxu0 %v3529
    %5594 = vmatprep.subr.bf16.mxu0 0
    %5595 = vmatpush1.bf16.msra.mxu0 %v3536
    %5596 = vmatprep.subr.bf16.mxu0 0
    %5597 = vmatpush1.bf16.msra.mxu0 %v3543
    %5598 = vmatprep.subr.bf16.mxu0 0
    %5599 = vmatpush1.bf16.msra.mxu0 %v3550
    %5600 = vmatprep.subr.bf16.mxu0 0
    %5601 = vmatpush1.bf16.msra.mxu0 %v3557
    %5602 = vmatprep.subr.bf16.mxu0 0
    %5603 = vmatpush1.bf16.msra.mxu0 %v3564
    %5604 = vmatprep.subr.bf16.mxu0 0
    %5605 = vmatpush1.bf16.msra.mxu0 %v3571
    %5606 = vmatprep.subr.bf16.mxu0 0
    %5607 = vmatpush1.bf16.msra.mxu0 %v3578
    %5608 = vmatprep.subr.bf16.mxu0 0
    %5609 = vmatpush1.bf16.msra.mxu0 %v3585
    %5610 = vmatprep.subr.bf16.mxu0 0
    %5611 = vmatpush1.bf16.msra.mxu0 %v3592
    %5612 = vmatprep.subr.bf16.mxu0 0
    %5613 = vmatpush1.bf16.msra.mxu0 %v3599
    %5614 = vmatprep.mubr.bf16.mxu0 %v934
    %5615 = vmatmul.mubr.bf16.gmra.mrb[0].mxu0 %v933
    %v5616 = vpop.f32.mrb[0].mxu0
    %v5617 = vadd.f32 %v5576, %v5616
    %v5618 = vpop.f32.mrb[0].mxu0
    %v5619 = vpop.f32.mrb[0].mxu0
    %v5620 = vadd.f32 %v5579, %v5619
    %v5621 = vpop.f32.mrb[0].mxu0
    %5622 = vdwg.mxu0
    %5623 = vmatprep.subr.bf16.mxu0 0
    %5624 = vmatpush1.bf16.msra.mxu0 %v3606
    %5625 = vmatprep.subr.bf16.mxu0 0
    %5626 = vmatpush1.bf16.msra.mxu0 %v3613
    %5627 = vmatprep.subr.bf16.mxu0 0
    %5628 = vmatpush1.bf16.msra.mxu0 %v3620
    %5629 = vmatprep.subr.bf16.mxu0 0
    %5630 = vmatpush1.bf16.msra.mxu0 %v3627
    %5631 = vmatprep.subr.bf16.mxu0 0
    %5632 = vmatpush1.bf16.msra.mxu0 %v3634
    %5633 = vmatprep.subr.bf16.mxu0 0
    %5634 = vmatpush1.bf16.msra.mxu0 %v3641
    %5635 = vmatprep.subr.bf16.mxu0 0
    %5636 = vmatpush1.bf16.msra.mxu0 %v3648
    %5637 = vmatprep.subr.bf16.mxu0 0
    %5638 = vmatpush1.bf16.msra.mxu0 %v3655
    %5639 = vmatprep.subr.bf16.mxu0 0
    %5640 = vmatpush1.bf16.msra.mxu0 %v3662
    %5641 = vmatprep.subr.bf16.mxu0 0
    %5642 = vmatpush1.bf16.msra.mxu0 %v3669
    %5643 = vmatprep.subr.bf16.mxu0 0
    %5644 = vmatpush1.bf16.msra.mxu0 %v3676
    %5645 = vmatprep.subr.bf16.mxu0 0
    %5646 = vmatpush1.bf16.msra.mxu0 %v3683
    %5647 = vmatprep.subr.bf16.mxu0 0
    %5648 = vmatpush1.bf16.msra.mxu0 %v3690
    %5649 = vmatprep.subr.bf16.mxu0 0
    %5650 = vmatpush1.bf16.msra.mxu0 %v3697
    %5651 = vmatprep.subr.bf16.mxu0 0
    %5652 = vmatpush1.bf16.msra.mxu0 %v3704
    %5653 = vmatprep.subr.bf16.mxu0 0
    %5654 = vmatpush1.bf16.msra.mxu0 %v3711
    %5655 = vmatprep.mubr.bf16.mxu0 %v936
    %5656 = vmatmul.mubr.bf16.gmra.mrb[0].mxu0 %v935
    %v5657 = vpop.f32.mrb[0].mxu0
    %v5658 = vadd.f32 %v5617, %v5657
    %v5659 = vpop.f32.mrb[0].mxu0
    %v5660 = vpop.f32.mrb[0].mxu0
    %v5661 = vadd.f32 %v5620, %v5660
    %v5662 = vpop.f32.mrb[0].mxu0
    %5663 = vdwg.mxu0
    %5664 = vmatprep.subr.bf16.mxu0 0
    %5665 = vmatpush1.bf16.msra.mxu0 %v3718
    %5666 = vmatprep.subr.bf16.mxu0 0
    %5667 = vmatpush1.bf16.msra.mxu0 %v3725
    %5668 = vmatprep.subr.bf16.mxu0 0
    %5669 = vmatpush1.bf16.msra.mxu0 %v3732
    %5670 = vmatprep.subr.bf16.mxu0 0
    %5671 = vmatpush1.bf16.msra.mxu0 %v3739
    %5672 = vmatprep.subr.bf16.mxu0 0
    %5673 = vmatpush1.bf16.msra.mxu0 %v3746
    %5674 = vmatprep.subr.bf16.mxu0 0
    %5675 = vmatpush1.bf16.msra.mxu0 %v3753
    %5676 = vmatprep.subr.bf16.mxu0 0
    %5677 = vmatpush1.bf16.msra.mxu0 %v3760
    %5678 = vmatprep.subr.bf16.mxu0 0
    %5679 = vmatpush1.bf16.msra.mxu0 %v3767
    %5680 = vmatprep.subr.bf16.mxu0 0
    %5681 = vmatpush1.bf16.msra.mxu0 %v3774
    %5682 = vmatprep.subr.bf16.mxu0 0
    %5683 = vmatpush1.bf16.msra.mxu0 %v3781
    %5684 = vmatprep.subr.bf16.mxu0 0
    %5685 = vmatpush1.bf16.msra.mxu0 %v3788
    %5686 = vmatprep.subr.bf16.mxu0 0
    %5687 = vmatpush1.bf16.msra.mxu0 %v3795
    %5688 = vmatprep.subr.bf16.mxu0 0
    %5689 = vmatpush1.bf16.msra.mxu0 %v3802
    %5690 = vmatprep.subr.bf16.mxu0 0
    %5691 = vmatpush1.bf16.msra.mxu0 %v3809
    %5692 = vmatprep.subr.bf16.mxu0 0
    %5693 = vmatpush1.bf16.msra.mxu0 %v3816
    %5694 = vmatprep.subr.bf16.mxu0 0
    %5695 = vmatpush1.bf16.msra.mxu0 %v3823
    %5696 = vmatprep.mubr.bf16.mxu0 %v938
    %5697 = vmatmul.mubr.bf16.gmra.mrb[0].mxu0 %v937
    %v5698 = vpop.f32.mrb[0].mxu0
    %v5699 = vadd.f32 %v5658, %v5698
    %v5700 = vpop.f32.mrb[0].mxu0
    %v5701 = vpop.f32.mrb[0].mxu0
    %v5702 = vadd.f32 %v5661, %v5701
    %v5703 = vpop.f32.mrb[0].mxu0
    %5704 = vdwg.mxu0
    %5705 = vmatprep.subr.bf16.mxu0 0
    %5706 = vmatpush1.bf16.msra.mxu0 %v3830
    %5707 = vmatprep.subr.bf16.mxu0 0
    %5708 = vmatpush1.bf16.msra.mxu0 %v3837
    %5709 = vmatprep.subr.bf16.mxu0 0
    %5710 = vmatpush1.bf16.msra.mxu0 %v3844
    %5711 = vmatprep.subr.bf16.mxu0 0
    %5712 = vmatpush1.bf16.msra.mxu0 %v3851
    %5713 = vmatprep.subr.bf16.mxu0 0
    %5714 = vmatpush1.bf16.msra.mxu0 0
    %5715 = vmatprep.subr.bf16.mxu0 0
    %5716 = vmatpush1.bf16.msra.mxu0 0
    %5717 = vmatprep.subr.bf16.mxu0 0
    %5718 = vmatpush1.bf16.msra.mxu0 0
    %5719 = vmatprep.subr.bf16.mxu0 0
    %5720 = vmatpush1.bf16.msra.mxu0 0
    %5721 = vmatprep.subr.bf16.mxu0 0
    %5722 = vmatpush1.bf16.msra.mxu0 0
    %5723 = vmatprep.subr.bf16.mxu0 0
    %5724 = vmatpush1.bf16.msra.mxu0 0
    %5725 = vmatprep.subr.bf16.mxu0 0
    %5726 = vmatpush1.bf16.msra.mxu0 0
    %5727 = vmatprep.subr.bf16.mxu0 0
    %5728 = vmatpush1.bf16.msra.mxu0 0
    %5729 = vmatprep.subr.bf16.mxu0 0
    %5730 = vmatpush1.bf16.msra.mxu0 0
    %5731 = vmatprep.subr.bf16.mxu0 0
    %5732 = vmatpush1.bf16.msra.mxu0 0
    %5733 = vmatprep.subr.bf16.mxu0 0
    %5734 = vmatpush1.bf16.msra.mxu0 0
    %5735 = vmatprep.subr.bf16.mxu0 0
    %5736 = vmatpush1.bf16.msra.mxu0 0
    %5737 = vmatprep.mubr.bf16.mxu0 0
    %5738 = vmatmul.mubr.bf16.gmra.mrb[0].mxu0 %v4554
    %v5739 = vpop.f32.mrb[0].mxu0
    %v5740 = vadd.f32 %v5699, %v5739
    %v5741 = vpop.f32.mrb[0].mxu0
    %v5742 = vpop.f32.mrb[0].mxu0
    %v5743 = vadd.f32 %v5702, %v5742
    %v5744 = vpop.f32.mrb[0].mxu0
    %5745 = vdwg.mxu0
    %v5746 = vmax.f32 %v4849, 0.0
    %v5747 = vmax.f32 %v4851, 0.0
    %v5748 = vmax.f32 %v5150, 0.0
    %v5749 = vmax.f32 %v5152, 0.0
    %v5750 = vmax.f32 %v5451, 0.0
    %v5751 = vmax.f32 %v5453, 0.0
    %v5752 = vmax.f32 %v5740, 0.0
    %v5753 = vmax.f32 %v4853, 0.0
    %v5754 = vmax.f32 %v4855, 0.0
    %v5755 = vmax.f32 %v5154, 0.0
    %v5756 = vmax.f32 %v5156, 0.0
    %v5757 = vmax.f32 %v5455, 0.0
    %v5758 = vmax.f32 %v5457, 0.0
    %v5759 = vmax.f32 %v5743, 0.0
    %v5760 = vpack.c.bf16 %v5753, %v5746
    %v5761 = vpack.c.bf16 %v5754, %v5747
    %v5762 = vpack.c.bf16 %v5755, %v5748
    %v5763 = vpack.c.bf16 %v5756, %v5749
    %v5764 = vpack.c.bf16 %v5757, %v5750
    %v5765 = vpack.c.bf16 %v5758, %v5751
    %v5766 = vpack.c.bf16 %v5759, %v5752
    %v5767 = vld [vmem:[%s3] sm:$0xff]
    %v5768 = vld [vmem:[%s3 + $0x8] sm:$0xff]
    %v5769 = vld [vmem:[%s3 + $0x10] sm:$0xff]
    %v5770 = vld [vmem:[%s3 + $0x18] sm:$0xff]
    %v5771 = vld [vmem:[%s3 + $0x20] sm:$0xff]
    %v5772 = vld [vmem:[%s3 + $0x28] sm:$0xff]
    %v5773 = vld [vmem:[%s3 + $0x30] sm:$0xff]
    %v5774 = vld [vmem:[%s3 + $0x38] sm:$0xff]
    %v5775 = vld [vmem:[%s3 + $0x40] sm:$0xff]
    %v5776 = vld [vmem:[%s3 + $0x48] sm:$0xff]
    %v5777 = vld [vmem:[%s3 + $0x50] sm:$0xff]
    %v5778 = vld [vmem:[%s3 + $0x58] sm:$0xff]
    %v5779 = vld [vmem:[%s3 + $0x60] sm:$0xff]
    %v5780 = vld [vmem:[%s3 + $0x68] sm:$0xff]
    %v5781 = vld [vmem:[%s3 + $0x70] sm:$0xff]
    %v5782 = vld [vmem:[%s3 + $0x78] sm:$0xff]
    %v5783 = vld [vmem:[%s3 + $0x80] sm:$0xff]
    %v5784 = vld [vmem:[%s3 + $0x88] sm:$0xff]
    %v5785 = vld [vmem:[%s3 + $0x90] sm:$0xff]
    %v5786 = vld [vmem:[%s3 + $0x98] sm:$0xff]
    %v5787 = vld [vmem:[%s3 + $0xa0] sm:$0xff]
    %v5788 = vld [vmem:[%s3 + $0xa8] sm:$0xff]
    %v5789 = vld [vmem:[%s3 + $0xb0] sm:$0xff]
    %v5790 = vld [vmem:[%s3 + $0xb8] sm:$0xff]
    %v5791 = vld [vmem:[%s3 + $0xc0] sm:$0xff]
    %v5792 = vld [vmem:[%s3 + $0xc8] sm:$0xff]
    %v5793 = vld [vmem:[%s3 + $0xd0] sm:$0xff]
    %v5794 = vld [vmem:[%s3 + $0xd8] sm:$0xff]
    %v5795 = vld [vmem:[%s3 + $0xe0] sm:$0xff]
    %v5796 = vld [vmem:[%s3 + $0xe8] sm:$0xff]
    %v5797 = vld [vmem:[%s3 + $0xf0] sm:$0xff]
    %v5798 = vld [vmem:[%s3 + $0xf8] sm:$0xff]
    %v5799 = vld [vmem:[%s3 + $0x100] sm:$0xff]
    %v5800 = vld [vmem:[%s3 + $0x108] sm:$0xff]
    %v5801 = vld [vmem:[%s3 + $0x110] sm:$0xff]
    %v5802 = vld [vmem:[%s3 + $0x118] sm:$0xff]
    %v5803 = vld [vmem:[%s3 + $0x120] sm:$0xff]
    %v5804 = vld [vmem:[%s3 + $0x128] sm:$0xff]
    %v5805 = vld [vmem:[%s3 + $0x130] sm:$0xff]
    %v5806 = vld [vmem:[%s3 + $0x138] sm:$0xff]
    %v5807 = vld [vmem:[%s3 + $0x140] sm:$0xff]
    %v5808 = vld [vmem:[%s3 + $0x148] sm:$0xff]
    %v5809 = vld [vmem:[%s3 + $0x150] sm:$0xff]
    %v5810 = vld [vmem:[%s3 + $0x158] sm:$0xff]
    %v5811 = vld [vmem:[%s3 + $0x160] sm:$0xff]
    %v5812 = vld [vmem:[%s3 + $0x168] sm:$0xff]
    %v5813 = vld [vmem:[%s3 + $0x170] sm:$0xff]
    %v5814 = vld [vmem:[%s3 + $0x178] sm:$0xff]
    %v5815 = vld [vmem:[%s3 + $0x180] sm:$0xff]
    %v5816 = vld [vmem:[%s3 + $0x188] sm:$0xff]
    %v5817 = vld [vmem:[%s3 + $0x190] sm:$0xff]
    %v5818 = vld [vmem:[%s3 + $0x198] sm:$0xff]
    %v5819 = vld [vmem:[%s3 + $0x1a0] sm:$0xff]
    %v5820 = vld [vmem:[%s3 + $0x1a8] sm:$0xff]
    %v5821 = vld [vmem:[%s3 + $0x1b0] sm:$0xff]
    %v5822 = vld [vmem:[%s3 + $0x1b8] sm:$0xff]
    %v5823 = vld [vmem:[%s3 + $0x1c0] sm:$0xff]
    %v5824 = vld [vmem:[%s3 + $0x1c8] sm:$0xff]
    %v5825 = vld [vmem:[%s3 + $0x1d0] sm:$0xff]
    %v5826 = vld [vmem:[%s3 + $0x1d8] sm:$0xff]
    %v5827 = vld [vmem:[%s3 + $0x1e0] sm:$0xff]
    %v5828 = vld [vmem:[%s3 + $0x1e8] sm:$0xff]
    %v5829 = vld [vmem:[%s3 + $0x1f0] sm:$0xff]
    %v5830 = vld [vmem:[%s3 + $0x1f8] sm:$0xff]
    %v5831 = vld [vmem:[%s3 + $0x200] sm:$0xff]
    %v5832 = vld [vmem:[%s3 + $0x208] sm:$0xff]
    %v5833 = vld [vmem:[%s3 + $0x210] sm:$0xff]
    %v5834 = vld [vmem:[%s3 + $0x218] sm:$0xff]
    %v5835 = vld [vmem:[%s3 + $0x220] sm:$0xff]
    %v5836 = vld [vmem:[%s3 + $0x228] sm:$0xff]
    %v5837 = vld [vmem:[%s3 + $0x230] sm:$0xff]
    %v5838 = vld [vmem:[%s3 + $0x238] sm:$0xff]
    %v5839 = vld [vmem:[%s3 + $0x240] sm:$0xff]
    %v5840 = vld [vmem:[%s3 + $0x248] sm:$0xff]
    %v5841 = vld [vmem:[%s3 + $0x250] sm:$0xff]
    %v5842 = vld [vmem:[%s3 + $0x258] sm:$0xff]
    %v5843 = vld [vmem:[%s3 + $0x260] sm:$0xff]
    %v5844 = vld [vmem:[%s3 + $0x268] sm:$0xff]
    %v5845 = vld [vmem:[%s3 + $0x270] sm:$0xff]
    %v5846 = vld [vmem:[%s3 + $0x278] sm:$0xff]
    %v5847 = vld [vmem:[%s3 + $0x280] sm:$0xff]
    %v5848 = vld [vmem:[%s3 + $0x288] sm:$0xff]
    %v5849 = vld [vmem:[%s3 + $0x290] sm:$0xff]
    %v5850 = vld [vmem:[%s3 + $0x298] sm:$0xff]
    %v5851 = vld [vmem:[%s3 + $0x2a0] sm:$0xff]
    %v5852 = vld [vmem:[%s3 + $0x2a8] sm:$0xff]
    %v5853 = vld [vmem:[%s3 + $0x2b0] sm:$0xff]
    %v5854 = vld [vmem:[%s3 + $0x2b8] sm:$0xff]
    %v5855 = vld [vmem:[%s3 + $0x2c0] sm:$0xff]
    %v5856 = vld [vmem:[%s3 + $0x2c8] sm:$0xff]
    %v5857 = vld [vmem:[%s3 + $0x2d0] sm:$0xff]
    %v5858 = vld [vmem:[%s3 + $0x2d8] sm:$0xff]
    %v5859 = vld [vmem:[%s3 + $0x2e0] sm:$0xff]
    %v5860 = vld [vmem:[%s3 + $0x2e8] sm:$0xff]
    %v5861 = vld [vmem:[%s3 + $0x2f0] sm:$0xff]
    %v5862 = vld [vmem:[%s3 + $0x2f8] sm:$0xff]
    %v5863 = vld [vmem:[%s3 + $0x300] sm:$0xff]
    %v5864 = vld [vmem:[%s3 + $0x308] sm:$0xff]
    %v5865 = vld [vmem:[%s3 + $0x310] sm:$0xff]
    %v5866 = vld [vmem:[%s3 + $0x318] sm:$0xff]
    %v5867 = vld [vmem:[%s4] sm:$0x3]
    %v5869 = vlaneseq
    %v5870 = vshrl.u32 %v5869, 7
    %v5871 = vsub.s32 0, %v5870
    %v5872 = vrot.slane %v5867, %v5871
    %v5873 = vlaneseq
    %v5874 = vshrl.u32 %v5873, 7
    %v5875 = vsub.s32 1, %v5874
    %v5876 = vrot.slane %v5867, %v5875
    %v5979 = vunpack.c.l.b16 %v5767
    %v5980 = vunpack.c.h.b16 %v5767
    %v5981 = vunpack.c.l.b16 %v5768
    %v5982 = vunpack.c.h.b16 %v5768
    %v5983 = vunpack.c.l.b16 %v5769
    %v5984 = vunpack.c.h.b16 %v5769
    %v5985 = vunpack.c.l.b16 %v5770
    %v5986 = vunpack.c.h.b16 %v5770
    %v5987 = vunpack.c.l.b16 %v5771
    %v5988 = vunpack.c.h.b16 %v5771
    %v5989 = vunpack.c.l.b16 %v5772
    %v5990 = vunpack.c.h.b16 %v5772
    %v5991 = vunpack.c.l.b16 %v5773
    %v5992 = vunpack.c.h.b16 %v5773
    %v5993 = vunpack.c.l.b16 %v5774
    %v5994 = vunpack.c.h.b16 %v5774
    %v5995 = vunpack.c.l.b16 %v5775
    %v5996 = vunpack.c.h.b16 %v5775
    %v5997 = vunpack.c.l.b16 %v5776
    %v5998 = vunpack.c.h.b16 %v5776
    %v5999 = vunpack.c.l.b16 %v5777
    %v6000 = vunpack.c.h.b16 %v5777
    %v6001 = vunpack.c.l.b16 %v5778
    %v6002 = vunpack.c.h.b16 %v5778
    %v6003 = vunpack.c.l.b16 %v5779
    %v6004 = vunpack.c.h.b16 %v5779
    %v6005 = vunpack.c.l.b16 %v5780
    %v6006 = vunpack.c.h.b16 %v5780
    %v6007 = vunpack.c.l.b16 %v5781
    %v6008 = vunpack.c.h.b16 %v5781
    %v6009 = vunpack.c.l.b16 %v5782
    %v6010 = vunpack.c.h.b16 %v5782
    %v6011 = vunpack.c.l.b16 %v5783
    %v6012 = vunpack.c.h.b16 %v5783
    %v6013 = vunpack.c.l.b16 %v5784
    %v6014 = vunpack.c.h.b16 %v5784
    %v6015 = vunpack.c.l.b16 %v5785
    %v6016 = vunpack.c.h.b16 %v5785
    %v6017 = vunpack.c.l.b16 %v5786
    %v6018 = vunpack.c.h.b16 %v5786
    %v6019 = vunpack.c.l.b16 %v5787
    %v6020 = vunpack.c.h.b16 %v5787
    %v6021 = vunpack.c.l.b16 %v5788
    %v6022 = vunpack.c.h.b16 %v5788
    %v6023 = vunpack.c.l.b16 %v5789
    %v6024 = vunpack.c.h.b16 %v5789
    %v6025 = vunpack.c.l.b16 %v5790
    %v6026 = vunpack.c.h.b16 %v5790
    %v6027 = vunpack.c.l.b16 %v5791
    %v6028 = vunpack.c.h.b16 %v5791
    %v6029 = vunpack.c.l.b16 %v5792
    %v6030 = vunpack.c.h.b16 %v5792
    %v6031 = vunpack.c.l.b16 %v5793
    %v6032 = vunpack.c.h.b16 %v5793
    %v6033 = vunpack.c.l.b16 %v5794
    %v6034 = vunpack.c.h.b16 %v5794
    %v6035 = vunpack.c.l.b16 %v5795
    %v6036 = vunpack.c.h.b16 %v5795
    %v6037 = vunpack.c.l.b16 %v5796
    %v6038 = vunpack.c.h.b16 %v5796
    %v6039 = vunpack.c.l.b16 %v5797
    %v6040 = vunpack.c.h.b16 %v5797
    %v6041 = vunpack.c.l.b16 %v5798
    %v6042 = vunpack.c.h.b16 %v5798
    %v6043 = vunpack.c.l.b16 %v5799
    %v6044 = vunpack.c.h.b16 %v5799
    %v6045 = vunpack.c.l.b16 %v5800
    %v6046 = vunpack.c.h.b16 %v5800
    %v6047 = vunpack.c.l.b16 %v5801
    %v6048 = vunpack.c.h.b16 %v5801
    %v6049 = vunpack.c.l.b16 %v5802
    %v6050 = vunpack.c.h.b16 %v5802
    %v6051 = vunpack.c.l.b16 %v5803
    %v6052 = vunpack.c.h.b16 %v5803
    %v6053 = vunpack.c.l.b16 %v5804
    %v6054 = vunpack.c.h.b16 %v5804
    %v6055 = vunpack.c.l.b16 %v5805
    %v6056 = vunpack.c.h.b16 %v5805
    %v6057 = vunpack.c.l.b16 %v5806
    %v6058 = vunpack.c.h.b16 %v5806
    %v6059 = vunpack.c.l.b16 %v5807
    %v6060 = vunpack.c.h.b16 %v5807
    %v6061 = vunpack.c.l.b16 %v5808
    %v6062 = vunpack.c.h.b16 %v5808
    %v6063 = vunpack.c.l.b16 %v5809
    %v6064 = vunpack.c.h.b16 %v5809
    %v6065 = vunpack.c.l.b16 %v5810
    %v6066 = vunpack.c.h.b16 %v5810
    %v6067 = vunpack.c.l.b16 %v5811
    %v6068 = vunpack.c.h.b16 %v5811
    %v6069 = vunpack.c.l.b16 %v5812
    %v6070 = vunpack.c.h.b16 %v5812
    %v6071 = vunpack.c.l.b16 %v5813
    %v6072 = vunpack.c.h.b16 %v5813
    %v6073 = vunpack.c.l.b16 %v5814
    %v6074 = vunpack.c.h.b16 %v5814
    %v6075 = vunpack.c.l.b16 %v5815
    %v6076 = vunpack.c.h.b16 %v5815
    %v6077 = vunpack.c.l.b16 %v5816
    %v6078 = vunpack.c.h.b16 %v5816
    %v6079 = vunpack.c.l.b16 %v5817
    %v6080 = vunpack.c.h.b16 %v5817
    %v6081 = vunpack.c.l.b16 %v5818
    %v6082 = vunpack.c.h.b16 %v5818
    %v6083 = vunpack.c.l.b16 %v5819
    %v6084 = vunpack.c.h.b16 %v5819
    %v6085 = vunpack.c.l.b16 %v5820
    %v6086 = vunpack.c.h.b16 %v5820
    %v6087 = vunpack.c.l.b16 %v5821
    %v6088 = vunpack.c.h.b16 %v5821
    %v6089 = vunpack.c.l.b16 %v5822
    %v6090 = vunpack.c.h.b16 %v5822
    %v6091 = vunpack.c.l.b16 %v5823
    %v6092 = vunpack.c.h.b16 %v5823
    %v6093 = vunpack.c.l.b16 %v5824
    %v6094 = vunpack.c.h.b16 %v5824
    %v6095 = vunpack.c.l.b16 %v5825
    %v6096 = vunpack.c.h.b16 %v5825
    %v6097 = vunpack.c.l.b16 %v5826
    %v6098 = vunpack.c.h.b16 %v5826
    %v6099 = vunpack.c.l.b16 %v5827
    %v6100 = vunpack.c.h.b16 %v5827
    %v6101 = vunpack.c.l.b16 %v5828
    %v6102 = vunpack.c.h.b16 %v5828
    %v6103 = vunpack.c.l.b16 %v5829
    %v6104 = vunpack.c.h.b16 %v5829
    %v6105 = vunpack.c.l.b16 %v5830
    %v6106 = vunpack.c.h.b16 %v5830
    %v6107 = vunpack.c.l.b16 %v5831
    %v6108 = vunpack.c.h.b16 %v5831
    %v6109 = vunpack.c.l.b16 %v5832
    %v6110 = vunpack.c.h.b16 %v5832
    %v6111 = vunpack.c.l.b16 %v5833
    %v6112 = vunpack.c.h.b16 %v5833
    %v6113 = vunpack.c.l.b16 %v5834
    %v6114 = vunpack.c.h.b16 %v5834
    %v6115 = vunpack.c.l.b16 %v5835
    %v6116 = vunpack.c.h.b16 %v5835
    %v6117 = vunpack.c.l.b16 %v5836
    %v6118 = vunpack.c.h.b16 %v5836
    %v6119 = vunpack.c.l.b16 %v5837
    %v6120 = vunpack.c.h.b16 %v5837
    %v6121 = vunpack.c.l.b16 %v5838
    %v6122 = vunpack.c.h.b16 %v5838
    %v6123 = vunpack.c.l.b16 %v5839
    %v6124 = vunpack.c.h.b16 %v5839
    %v6125 = vunpack.c.l.b16 %v5840
    %v6126 = vunpack.c.h.b16 %v5840
    %v6127 = vunpack.c.l.b16 %v5841
    %v6128 = vunpack.c.h.b16 %v5841
    %v6129 = vunpack.c.l.b16 %v5842
    %v6130 = vunpack.c.h.b16 %v5842
    %v6131 = vunpack.c.l.b16 %v5843
    %v6132 = vunpack.c.h.b16 %v5843
    %v6133 = vunpack.c.l.b16 %v5844
    %v6134 = vunpack.c.h.b16 %v5844
    %v6135 = vunpack.c.l.b16 %v5845
    %v6136 = vunpack.c.h.b16 %v5845
    %v6137 = vunpack.c.l.b16 %v5846
    %v6138 = vunpack.c.h.b16 %v5846
    %v6139 = vunpack.c.l.b16 %v5847
    %v6140 = vunpack.c.h.b16 %v5847
    %v6141 = vunpack.c.l.b16 %v5848
    %v6142 = vunpack.c.h.b16 %v5848
    %v6143 = vunpack.c.l.b16 %v5849
    %v6144 = vunpack.c.h.b16 %v5849
    %v6145 = vunpack.c.l.b16 %v5850
    %v6146 = vunpack.c.h.b16 %v5850
    %v6147 = vunpack.c.l.b16 %v5851
    %v6148 = vunpack.c.h.b16 %v5851
    %v6149 = vunpack.c.l.b16 %v5852
    %v6150 = vunpack.c.h.b16 %v5852
    %v6151 = vunpack.c.l.b16 %v5853
    %v6152 = vunpack.c.h.b16 %v5853
    %v6153 = vunpack.c.l.b16 %v5854
    %v6154 = vunpack.c.h.b16 %v5854
    %v6155 = vunpack.c.l.b16 %v5855
    %v6156 = vunpack.c.h.b16 %v5855
    %v6157 = vunpack.c.l.b16 %v5856
    %v6158 = vunpack.c.h.b16 %v5856
    %v6159 = vunpack.c.l.b16 %v5857
    %v6160 = vunpack.c.h.b16 %v5857
    %v6161 = vunpack.c.l.b16 %v5858
    %v6162 = vunpack.c.h.b16 %v5858
    %v6163 = vunpack.c.l.b16 %v5859
    %v6164 = vunpack.c.h.b16 %v5859
    %v6165 = vunpack.c.l.b16 %v5860
    %v6166 = vunpack.c.h.b16 %v5860
    %v6167 = vunpack.c.l.b16 %v5861
    %v6168 = vunpack.c.h.b16 %v5861
    %v6169 = vunpack.c.l.b16 %v5862
    %v6170 = vunpack.c.h.b16 %v5862
    %v6171 = vunpack.c.l.b16 %v5863
    %v6172 = vunpack.c.h.b16 %v5863
    %v6173 = vunpack.c.l.b16 %v5864
    %v6174 = vunpack.c.h.b16 %v5864
    %v6175 = vunpack.c.l.b16 %v5865
    %v6176 = vunpack.c.h.b16 %v5865
    %v6177 = vunpack.c.l.b16 %v5866
    %v6178 = vunpack.c.h.b16 %v5866
    %v6179 = vpack.c.b16 %v5981, %v5979
    %v6180 = vpack.c.b16 %v5982, %v5980
    %v6181 = vpack.c.b16 %v5985, %v5983
    %v6182 = vpack.c.b16 %v5986, %v5984
    %v6183 = vpack.c.b16 %v5989, %v5987
    %v6184 = vpack.c.b16 %v5990, %v5988
    %v6185 = vpack.c.b16 %v5993, %v5991
    %v6186 = vpack.c.b16 %v5994, %v5992
    %v6187 = vpack.c.b16 %v5997, %v5995
    %v6188 = vpack.c.b16 %v5998, %v5996
    %v6189 = vpack.c.b16 %v6001, %v5999
    %v6190 = vpack.c.b16 %v6002, %v6000
    %v6191 = vpack.c.b16 %v6005, %v6003
    %v6192 = vpack.c.b16 %v6006, %v6004
    %v6193 = vpack.c.b16 %v6009, %v6007
    %v6194 = vpack.c.b16 %v6010, %v6008
    %v6195 = vpack.c.b16 %v6013, %v6011
    %v6196 = vpack.c.b16 %v6014, %v6012
    %v6197 = vpack.c.b16 %v6017, %v6015
    %v6198 = vpack.c.b16 %v6018, %v6016
    %v6199 = vpack.c.b16 %v6021, %v6019
    %v6200 = vpack.c.b16 %v6022, %v6020
    %v6201 = vpack.c.b16 %v6025, %v6023
    %v6202 = vpack.c.b16 %v6026, %v6024
    %v6203 = vpack.c.b16 %v6029, %v6027
    %v6204 = vpack.c.b16 %v6030, %v6028
    %v6205 = vpack.c.b16 %v6033, %v6031
    %v6206 = vpack.c.b16 %v6034, %v6032
    %v6207 = vpack.c.b16 %v6037, %v6035
    %v6208 = vpack.c.b16 %v6038, %v6036
    %v6209 = vpack.c.b16 %v6041, %v6039
    %v6210 = vpack.c.b16 %v6042, %v6040
    %v6211 = vpack.c.b16 %v6045, %v6043
    %v6212 = vpack.c.b16 %v6046, %v6044
    %v6213 = vpack.c.b16 %v6049, %v6047
    %v6214 = vpack.c.b16 %v6050, %v6048
    %v6215 = vpack.c.b16 %v6053, %v6051
    %v6216 = vpack.c.b16 %v6054, %v6052
    %v6217 = vpack.c.b16 %v6057, %v6055
    %v6218 = vpack.c.b16 %v6058, %v6056
    %v6219 = vpack.c.b16 %v6061, %v6059
    %v6220 = vpack.c.b16 %v6062, %v6060
    %v6221 = vpack.c.b16 %v6065, %v6063
    %v6222 = vpack.c.b16 %v6066, %v6064
    %v6223 = vpack.c.b16 %v6069, %v6067
    %v6224 = vpack.c.b16 %v6070, %v6068
    %v6225 = vpack.c.b16 %v6073, %v6071
    %v6226 = vpack.c.b16 %v6074, %v6072
    %v6227 = vpack.c.b16 %v6077, %v6075
    %v6228 = vpack.c.b16 %v6078, %v6076
    %v6229 = vpack.c.b16 %v6081, %v6079
    %v6230 = vpack.c.b16 %v6082, %v6080
    %v6231 = vpack.c.b16 %v6085, %v6083
    %v6232 = vpack.c.b16 %v6086, %v6084
    %v6233 = vpack.c.b16 %v6089, %v6087
    %v6234 = vpack.c.b16 %v6090, %v6088
    %v6235 = vpack.c.b16 %v6093, %v6091
    %v6236 = vpack.c.b16 %v6094, %v6092
    %v6237 = vpack.c.b16 %v6097, %v6095
    %v6238 = vpack.c.b16 %v6098, %v6096
    %v6239 = vpack.c.b16 %v6101, %v6099
    %v6240 = vpack.c.b16 %v6102, %v6100
    %v6241 = vpack.c.b16 %v6105, %v6103
    %v6242 = vpack.c.b16 %v6106, %v6104
    %v6243 = vpack.c.b16 %v6109, %v6107
    %v6244 = vpack.c.b16 %v6110, %v6108
    %v6245 = vpack.c.b16 %v6113, %v6111
    %v6246 = vpack.c.b16 %v6114, %v6112
    %v6247 = vpack.c.b16 %v6117, %v6115
    %v6248 = vpack.c.b16 %v6118, %v6116
    %v6249 = vpack.c.b16 %v6121, %v6119
    %v6250 = vpack.c.b16 %v6122, %v6120
    %v6251 = vpack.c.b16 %v6125, %v6123
    %v6252 = vpack.c.b16 %v6126, %v6124
    %v6253 = vpack.c.b16 %v6129, %v6127
    %v6254 = vpack.c.b16 %v6130, %v6128
    %v6255 = vpack.c.b16 %v6133, %v6131
    %v6256 = vpack.c.b16 %v6134, %v6132
    %v6257 = vpack.c.b16 %v6137, %v6135
    %v6258 = vpack.c.b16 %v6138, %v6136
    %v6259 = vpack.c.b16 %v6141, %v6139
    %v6260 = vpack.c.b16 %v6142, %v6140
    %v6261 = vpack.c.b16 %v6145, %v6143
    %v6262 = vpack.c.b16 %v6146, %v6144
    %v6263 = vpack.c.b16 %v6149, %v6147
    %v6264 = vpack.c.b16 %v6150, %v6148
    %v6265 = vpack.c.b16 %v6153, %v6151
    %v6266 = vpack.c.b16 %v6154, %v6152
    %v6267 = vpack.c.b16 %v6157, %v6155
    %v6268 = vpack.c.b16 %v6158, %v6156
    %v6269 = vpack.c.b16 %v6161, %v6159
    %v6270 = vpack.c.b16 %v6162, %v6160
    %v6271 = vpack.c.b16 %v6165, %v6163
    %v6272 = vpack.c.b16 %v6166, %v6164
    %v6273 = vpack.c.b16 %v6169, %v6167
    %v6274 = vpack.c.b16 %v6170, %v6168
    %v6275 = vpack.c.b16 %v6173, %v6171
    %v6276 = vpack.c.b16 %v6174, %v6172
    %v6277 = vpack.c.b16 %v6177, %v6175
    %v6278 = vpack.c.b16 %v6178, %v6176
    %vm6379 = vcmask 261120
    %v6381 = vsel %vm6379, %v5766, 0
    %6383 = vmatprep.subr.bf16.mxu0 %v6180
    %6384 = vmatpush1.bf16.msra.mxu0 %v6179
    %6385 = vmatprep.subr.bf16.mxu0 %v6182
    %6386 = vmatpush1.bf16.msra.mxu0 %v6181
    %6387 = vmatprep.subr.bf16.mxu0 %v6184
    %6388 = vmatpush1.bf16.msra.mxu0 %v6183
    %6389 = vmatprep.subr.bf16.mxu0 %v6186
    %6390 = vmatpush1.bf16.msra.mxu0 %v6185
    %6391 = vmatprep.subr.bf16.mxu0 %v6188
    %6392 = vmatpush1.bf16.msra.mxu0 %v6187
    %6393 = vmatprep.subr.bf16.mxu0 %v6190
    %6394 = vmatpush1.bf16.msra.mxu0 %v6189
    %6395 = vmatprep.subr.bf16.mxu0 %v6192
    %6396 = vmatpush1.bf16.msra.mxu0 %v6191
    %6397 = vmatprep.subr.bf16.mxu0 %v6194
    %6398 = vmatpush1.bf16.msra.mxu0 %v6193
    %6399 = vmatprep.subr.bf16.mxu0 %v6196
    %6400 = vmatpush1.bf16.msra.mxu0 %v6195
    %6401 = vmatprep.subr.bf16.mxu0 %v6198
    %6402 = vmatpush1.bf16.msra.mxu0 %v6197
    %6403 = vmatprep.subr.bf16.mxu0 %v6200
    %6404 = vmatpush1.bf16.msra.mxu0 %v6199
    %6405 = vmatprep.subr.bf16.mxu0 %v6202
    %6406 = vmatpush1.bf16.msra.mxu0 %v6201
    %6407 = vmatprep.subr.bf16.mxu0 %v6204
    %6408 = vmatpush1.bf16.msra.mxu0 %v6203
    %6409 = vmatprep.subr.bf16.mxu0 %v6206
    %6410 = vmatpush1.bf16.msra.mxu0 %v6205
    %6411 = vmatprep.subr.bf16.mxu0 %v6208
    %6412 = vmatpush1.bf16.msra.mxu0 %v6207
    %6413 = vmatprep.subr.bf16.mxu0 %v6210
    %6414 = vmatpush1.bf16.msra.mxu0 %v6209
    %6415 = vmatprep.mubr.bf16.mxu0 %v5761
    %6416 = vmatmul.mubr.bf16.gmra.mrb[0].mxu0 %v5760
    %v6417 = vpop.f32.mrb[0].mxu0
    %v6418 = vadd.f32 %v5872, %v6417
    %v6419 = vpop.f32.mrb[0].mxu0
    %v6420 = vadd.f32 %v5876, %v6419
    %v6421 = vpop.f32.mrb[0].mxu0
    %v6422 = vadd.f32 %v5872, %v6421
    %v6423 = vpop.f32.mrb[0].mxu0
    %v6424 = vadd.f32 %v5876, %v6423
    %6425 = vdwg.mxu0
    %6426 = vmatprep.subr.bf16.mxu0 %v6212
    %6427 = vmatpush1.bf16.msra.mxu0 %v6211
    %6428 = vmatprep.subr.bf16.mxu0 %v6214
    %6429 = vmatpush1.bf16.msra.mxu0 %v6213
    %6430 = vmatprep.subr.bf16.mxu0 %v6216
    %6431 = vmatpush1.bf16.msra.mxu0 %v6215
    %6432 = vmatprep.subr.bf16.mxu0 %v6218
    %6433 = vmatpush1.bf16.msra.mxu0 %v6217
    %6434 = vmatprep.subr.bf16.mxu0 %v6220
    %6435 = vmatpush1.bf16.msra.mxu0 %v6219
    %6436 = vmatprep.subr.bf16.mxu0 %v6222
    %6437 = vmatpush1.bf16.msra.mxu0 %v6221
    %6438 = vmatprep.subr.bf16.mxu0 %v6224
    %6439 = vmatpush1.bf16.msra.mxu0 %v6223
    %6440 = vmatprep.subr.bf16.mxu0 %v6226
    %6441 = vmatpush1.bf16.msra.mxu0 %v6225
    %6442 = vmatprep.subr.bf16.mxu0 %v6228
    %6443 = vmatpush1.bf16.msra.mxu0 %v6227
    %6444 = vmatprep.subr.bf16.mxu0 %v6230
    %6445 = vmatpush1.bf16.msra.mxu0 %v6229
    %6446 = vmatprep.subr.bf16.mxu0 %v6232
    %6447 = vmatpush1.bf16.msra.mxu0 %v6231
    %6448 = vmatprep.subr.bf16.mxu0 %v6234
    %6449 = vmatpush1.bf16.msra.mxu0 %v6233
    %6450 = vmatprep.subr.bf16.mxu0 %v6236
    %6451 = vmatpush1.bf16.msra.mxu0 %v6235
    %6452 = vmatprep.subr.bf16.mxu0 %v6238
    %6453 = vmatpush1.bf16.msra.mxu0 %v6237
    %6454 = vmatprep.subr.bf16.mxu0 %v6240
    %6455 = vmatpush1.bf16.msra.mxu0 %v6239
    %6456 = vmatprep.subr.bf16.mxu0 %v6242
    %6457 = vmatpush1.bf16.msra.mxu0 %v6241
    %6458 = vmatprep.mubr.bf16.mxu0 %v5763
    %6459 = vmatmul.mubr.bf16.gmra.mrb[0].mxu0 %v5762
    %v6460 = vpop.f32.mrb[0].mxu0
    %v6461 = vadd.f32 %v6418, %v6460
    %v6462 = vpop.f32.mrb[0].mxu0
    %v6463 = vadd.f32 %v6420, %v6462
    %v6464 = vpop.f32.mrb[0].mxu0
    %v6465 = vadd.f32 %v6422, %v6464
    %v6466 = vpop.f32.mrb[0].mxu0
    %v6467 = vadd.f32 %v6424, %v6466
    %6468 = vdwg.mxu0
    %6469 = vmatprep.subr.bf16.mxu0 %v6244
    %6470 = vmatpush1.bf16.msra.mxu0 %v6243
    %6471 = vmatprep.subr.bf16.mxu0 %v6246
    %6472 = vmatpush1.bf16.msra.mxu0 %v6245
    %6473 = vmatprep.subr.bf16.mxu0 %v6248
    %6474 = vmatpush1.bf16.msra.mxu0 %v6247
    %6475 = vmatprep.subr.bf16.mxu0 %v6250
    %6476 = vmatpush1.bf16.msra.mxu0 %v6249
    %6477 = vmatprep.subr.bf16.mxu0 %v6252
    %6478 = vmatpush1.bf16.msra.mxu0 %v6251
    %6479 = vmatprep.subr.bf16.mxu0 %v6254
    %6480 = vmatpush1.bf16.msra.mxu0 %v6253
    %6481 = vmatprep.subr.bf16.mxu0 %v6256
    %6482 = vmatpush1.bf16.msra.mxu0 %v6255
    %6483 = vmatprep.subr.bf16.mxu0 %v6258
    %6484 = vmatpush1.bf16.msra.mxu0 %v6257
    %6485 = vmatprep.subr.bf16.mxu0 %v6260
    %6486 = vmatpush1.bf16.msra.mxu0 %v6259
    %6487 = vmatprep.subr.bf16.mxu0 %v6262
    %6488 = vmatpush1.bf16.msra.mxu0 %v6261
    %6489 = vmatprep.subr.bf16.mxu0 %v6264
    %6490 = vmatpush1.bf16.msra.mxu0 %v6263
    %6491 = vmatprep.subr.bf16.mxu0 %v6266
    %6492 = vmatpush1.bf16.msra.mxu0 %v6265
    %6493 = vmatprep.subr.bf16.mxu0 %v6268
    %6494 = vmatpush1.bf16.msra.mxu0 %v6267
    %6495 = vmatprep.subr.bf16.mxu0 %v6270
    %6496 = vmatpush1.bf16.msra.mxu0 %v6269
    %6497 = vmatprep.subr.bf16.mxu0 %v6272
    %6498 = vmatpush1.bf16.msra.mxu0 %v6271
    %6499 = vmatprep.subr.bf16.mxu0 %v6274
    %6500 = vmatpush1.bf16.msra.mxu0 %v6273
    %6501 = vmatprep.mubr.bf16.mxu0 %v5765
    %6502 = vmatmul.mubr.bf16.gmra.mrb[0].mxu0 %v5764
    %v6503 = vpop.f32.mrb[0].mxu0
    %v6504 = vadd.f32 %v6461, %v6503
    %v6505 = vpop.f32.mrb[0].mxu0
    %v6506 = vadd.f32 %v6463, %v6505
    %v6507 = vpop.f32.mrb[0].mxu0
    %v6508 = vadd.f32 %v6465, %v6507
    %v6509 = vpop.f32.mrb[0].mxu0
    %v6510 = vadd.f32 %v6467, %v6509
    %6511 = vdwg.mxu0
    %6512 = vmatprep.subr.bf16.mxu0 %v6276
    %6513 = vmatpush1.bf16.msra.mxu0 %v6275
    %6514 = vmatprep.subr.bf16.mxu0 %v6278
    %6515 = vmatpush1.bf16.msra.mxu0 %v6277
    %6516 = vmatprep.subr.bf16.mxu0 0
    %6517 = vmatpush1.bf16.msra.mxu0 0
    %6518 = vmatprep.subr.bf16.mxu0 0
    %6519 = vmatpush1.bf16.msra.mxu0 0
    %6520 = vmatprep.subr.bf16.mxu0 0
    %6521 = vmatpush1.bf16.msra.mxu0 0
    %6522 = vmatprep.subr.bf16.mxu0 0
    %6523 = vmatpush1.bf16.msra.mxu0 0
    %6524 = vmatprep.subr.bf16.mxu0 0
    %6525 = vmatpush1.bf16.msra.mxu0 0
    %6526 = vmatprep.subr.bf16.mxu0 0
    %6527 = vmatpush1.bf16.msra.mxu0 0
    %6528 = vmatprep.subr.bf16.mxu0 0
    %6529 = vmatpush1.bf16.msra.mxu0 0
    %6530 = vmatprep.subr.bf16.mxu0 0
    %6531 = vmatpush1.bf16.msra.mxu0 0
    %6532 = vmatprep.subr.bf16.mxu0 0
    %6533 = vmatpush1.bf16.msra.mxu0 0
    %6534 = vmatprep.subr.bf16.mxu0 0
    %6535 = vmatpush1.bf16.msra.mxu0 0
    %6536 = vmatprep.subr.bf16.mxu0 0
    %6537 = vmatpush1.bf16.msra.mxu0 0
    %6538 = vmatprep.subr.bf16.mxu0 0
    %6539 = vmatpush1.bf16.msra.mxu0 0
    %6540 = vmatprep.subr.bf16.mxu0 0
    %6541 = vmatpush1.bf16.msra.mxu0 0
    %6542 = vmatprep.subr.bf16.mxu0 0
    %6543 = vmatpush1.bf16.msra.mxu0 0
    %6544 = vmatprep.mubr.bf16.mxu0 0
    %6545 = vmatmul.mubr.bf16.gmra.mrb[0].mxu0 %v6381
    %v6546 = vpop.f32.mrb[0].mxu0
    %v6547 = vadd.f32 %v6504, %v6546
    %v6548 = vpop.f32.mrb[0].mxu0
    %v6549 = vadd.f32 %v6506, %v6548
    %v6550 = vpop.f32.mrb[0].mxu0
    %v6551 = vadd.f32 %v6508, %v6550
    %v6552 = vpop.f32.mrb[0].mxu0
    %v6553 = vadd.f32 %v6510, %v6552
    %6554 = vdwg.mxu0
    %v6555 = vmax.f32 %v6547, 0.0
    %v6556 = vmax.f32 %v6549, 0.0
    %v6557 = vmax.f32 %v6551, 0.0
    %v6558 = vmax.f32 %v6553, 0.0
    %v6559 = vpack.c.bf16 %v6557, %v6555
    %v6560 = vpack.c.bf16 %v6558, %v6556
    %v6561 = vld [vmem:[%s5] sm:$0xf]
    %v6562 = vld [vmem:[%s5 + $0x4] sm:$0xf]
    %v6563 = vld [vmem:[%s5 + $0x8] sm:$0xf]
    %v6564 = vld [vmem:[%s5 + $0xc] sm:$0xf]
    %v6565 = vld [vmem:[%s5 + $0x10] sm:$0xf]
    %v6566 = vld [vmem:[%s5 + $0x14] sm:$0xf]
    %v6567 = vld [vmem:[%s5 + $0x18] sm:$0xf]
    %v6568 = vld [vmem:[%s5 + $0x1c] sm:$0xf]
    %v6569 = vld [vmem:[%s5 + $0x20] sm:$0xf]
    %v6570 = vld [vmem:[%s5 + $0x24] sm:$0xf]
    %v6571 = vld [vmem:[%s5 + $0x28] sm:$0xf]
    %v6572 = vld [vmem:[%s5 + $0x2c] sm:$0xf]
    %v6573 = vld [vmem:[%s5 + $0x30] sm:$0xf]
    %v6574 = vld [vmem:[%s5 + $0x34] sm:$0xf]
    %v6575 = vld [vmem:[%s5 + $0x38] sm:$0xf]
    %v6576 = vld [vmem:[%s5 + $0x3c] sm:$0xf]
    %v6577 = vld [vmem:[%s5 + $0x40] sm:$0xf]
    %v6578 = vld [vmem:[%s5 + $0x44] sm:$0xf]
    %v6579 = vld [vmem:[%s5 + $0x48] sm:$0xf]
    %v6580 = vld [vmem:[%s5 + $0x4c] sm:$0xf]
    %v6581 = vld [vmem:[%s5 + $0x50] sm:$0xf]
    %v6582 = vld [vmem:[%s5 + $0x54] sm:$0xf]
    %v6583 = vld [vmem:[%s5 + $0x58] sm:$0xf]
    %v6584 = vld [vmem:[%s5 + $0x5c] sm:$0xf]
    %v6585 = vld [vmem:[%s5 + $0x60] sm:$0xf]
    %v6586 = vld [vmem:[%s6] sm:$0x1]
    %v6588 = vlaneseq
    %v6589 = vshrl.u32 %v6588, 7
    %v6590 = vsub.s32 0, %v6589
    %v6591 = vrot.slane %v6586, %v6590
    %v6618 = vunpack.c.l.b16 %v6561
    %v6619 = vunpack.c.l.b16 %v6562
    %v6620 = vunpack.c.l.b16 %v6563
    %v6621 = vunpack.c.l.b16 %v6564
    %v6622 = vunpack.c.l.b16 %v6565
    %v6623 = vunpack.c.l.b16 %v6566
    %v6624 = vunpack.c.l.b16 %v6567
    %v6625 = vunpack.c.l.b16 %v6568
    %v6626 = vunpack.c.l.b16 %v6569
    %v6627 = vunpack.c.l.b16 %v6570
    %v6628 = vunpack.c.l.b16 %v6571
    %v6629 = vunpack.c.l.b16 %v6572
    %v6630 = vunpack.c.l.b16 %v6573
    %v6631 = vunpack.c.l.b16 %v6574
    %v6632 = vunpack.c.l.b16 %v6575
    %v6633 = vunpack.c.l.b16 %v6576
    %v6634 = vunpack.c.l.b16 %v6577
    %v6635 = vunpack.c.l.b16 %v6578
    %v6636 = vunpack.c.l.b16 %v6579
    %v6637 = vunpack.c.l.b16 %v6580
    %v6638 = vunpack.c.l.b16 %v6581
    %v6639 = vunpack.c.l.b16 %v6582
    %v6640 = vunpack.c.l.b16 %v6583
    %v6641 = vunpack.c.l.b16 %v6584
    %v6642 = vunpack.c.l.b16 %v6585
    %v6643 = vpack.c.b16 %v6619, %v6618
    %v6644 = vpack.c.b16 %v6621, %v6620
    %v6645 = vpack.c.b16 %v6623, %v6622
    %v6646 = vpack.c.b16 %v6625, %v6624
    %v6647 = vpack.c.b16 %v6627, %v6626
    %v6648 = vpack.c.b16 %v6629, %v6628
    %v6649 = vpack.c.b16 %v6631, %v6630
    %v6650 = vpack.c.b16 %v6633, %v6632
    %v6651 = vpack.c.b16 %v6635, %v6634
    %v6652 = vpack.c.b16 %v6637, %v6636
    %v6653 = vpack.c.b16 %v6639, %v6638
    %v6654 = vpack.c.b16 %v6641, %v6640
    %v6655 = vpack.c.b16 %v6642, %v6642
    %vm6668 = vcmask 588800
    %v6670 = vsel %vm6668, %v6560, 0
    %vm6672 = vcmask 1043456
    %v6674 = vsel %vm6672, %v6655, 0
    %6676 = vmatprep.subr.bf16.mxu0 0
    %6677 = vmatpush1.bf16.msra.mxu0 %v6643
    %6678 = vmatprep.subr.bf16.mxu0 0
    %6679 = vmatpush1.bf16.msra.mxu0 %v6644
    %6680 = vmatprep.subr.bf16.mxu0 0
    %6681 = vmatpush1.bf16.msra.mxu0 %v6645
    %6682 = vmatprep.subr.bf16.mxu0 0
    %6683 = vmatpush1.bf16.msra.mxu0 %v6646
    %6684 = vmatprep.subr.bf16.mxu0 0
    %6685 = vmatpush1.bf16.msra.mxu0 %v6647
    %6686 = vmatprep.subr.bf16.mxu0 0
    %6687 = vmatpush1.bf16.msra.mxu0 %v6648
    %6688 = vmatprep.subr.bf16.mxu0 0
    %6689 = vmatpush1.bf16.msra.mxu0 %v6649
    %6690 = vmatprep.subr.bf16.mxu0 0
    %6691 = vmatpush1.bf16.msra.mxu0 %v6650
    %6692 = vmatprep.subr.bf16.mxu0 0
    %6693 = vmatpush1.bf16.msra.mxu0 %v6651
    %6694 = vmatprep.subr.bf16.mxu0 0
    %6695 = vmatpush1.bf16.msra.mxu0 %v6652
    %6696 = vmatprep.subr.bf16.mxu0 0
    %6697 = vmatpush1.bf16.msra.mxu0 %v6653
    %6698 = vmatprep.subr.bf16.mxu0 0
    %6699 = vmatpush1.bf16.msra.mxu0 %v6654
    %6700 = vmatprep.subr.bf16.mxu0 0
    %6701 = vmatpush1.bf16.msra.mxu0 %v6674
    %6702 = vmatprep.subr.bf16.mxu0 0
    %6703 = vmatpush1.bf16.msra.mxu0 0
    %6704 = vmatprep.subr.bf16.mxu0 0
    %6705 = vmatpush1.bf16.msra.mxu0 0
    %6706 = vmatprep.subr.bf16.mxu0 0
    %6707 = vmatpush1.bf16.msra.mxu0 0
    %6708 = vmatprep.mubr.bf16.mxu0 %v6670
    %6709 = vmatmul.mubr.bf16.gmra.mrb[0].mxu0 %v6559
    %v6710 = vpop.f32.mrb[0].mxu0
    %v6711 = vadd.f32 %v6591, %v6710
    %v6712 = vpop.f32.mrb[0].mxu0
    %v6713 = vpop.f32.mrb[0].mxu0
    %v6714 = vadd.f32 %v6591, %v6713
    %v6715 = vpop.f32.mrb[0].mxu0
    %6716 = vdwg.mxu0
    %v6717 = vmax.f32 %v6711, 0.0
    %v6718 = vmax.f32 %v6714, 0.0
    %v6719 = vld [vmem:[%s7] sm:$0x1]
    %v6720 = vpack.c.bf16 %v6719, %v6719
    %v6721 = vpack.c.bf16 %v6718, %v6717
    %v6722 = vld [vmem:[#allocation2] sm:$0x1]
    %6724 = vset.pattern.permute.xlu0 0
    %6725 = vperm.xlu0 %6724, %v6722
    %v6726 = vpop.permute.xlu0 %6725
    %v6728 = vlaneseq
    %v6729 = vshrl.u32 %v6728, 7
    %v6730 = vsub.s32 0, %v6729
    %v6731 = vrot.slane %v6726, %v6730
    %vm6732 = vcmask 162816
    %v6734 = vsel %vm6732, %v6720, 0
    %v6737 = vsel %vm6732, %v6721, 0
    %6739 = vmatprep.subr.bf16.mxu0 0
    %6740 = vmatpush1.bf16.xpose.msra.mxu0 %v6737
    %6741 = vmatprep.subr.bf16.mxu0 0
    %6742 = vmatpush1.bf16.xpose.msra.mxu0 0
    %6743 = vmatprep.subr.bf16.mxu0 0
    %6744 = vmatpush1.bf16.xpose.msra.mxu0 0
    %6745 = vmatprep.subr.bf16.mxu0 0
    %6746 = vmatpush1.bf16.xpose.msra.mxu0 0
    %6747 = vmatprep.subr.bf16.mxu0 0
    %6748 = vmatpush1.bf16.xpose.msra.mxu0 0
    %6749 = vmatprep.subr.bf16.mxu0 0
    %6750 = vmatpush1.bf16.xpose.msra.mxu0 0
    %6751 = vmatprep.subr.bf16.mxu0 0
    %6752 = vmatpush1.bf16.xpose.msra.mxu0 0
    %6753 = vmatprep.subr.bf16.mxu0 0
    %6754 = vmatpush1.bf16.xpose.msra.mxu0 0
    %6755 = vmatprep.subr.bf16.mxu0 0
    %6756 = vmatpush1.bf16.xpose.msra.mxu0 0
    %6757 = vmatprep.subr.bf16.mxu0 0
    %6758 = vmatpush1.bf16.xpose.msra.mxu0 0
    %6759 = vmatprep.subr.bf16.mxu0 0
    %6760 = vmatpush1.bf16.xpose.msra.mxu0 0
    %6761 = vmatprep.subr.bf16.mxu0 0
    %6762 = vmatpush1.bf16.xpose.msra.mxu0 0
    %6763 = vmatprep.subr.bf16.mxu0 0
    %6764 = vmatpush1.bf16.xpose.msra.mxu0 0
    %6765 = vmatprep.subr.bf16.mxu0 0
    %6766 = vmatpush1.bf16.xpose.msra.mxu0 0
    %6767 = vmatprep.subr.bf16.mxu0 0
    %6768 = vmatpush1.bf16.xpose.msra.mxu0 0
    %6769 = vmatprep.subr.bf16.mxu0 0
    %6770 = vmatpush1.bf16.xpose.msra.mxu0 0
    %6771 = vmatprep.mubr.bf16.mxu0 0
    %6772 = vmatmul.mubr.bf16.gmra.mrb[0].mxu0 %v6734
    %v6773 = vpop.f32.mrb[0].mxu0
    %v6774 = vadd.f32 %v6731, %v6773
    %v6775 = vpop.f32.mrb[0].mxu0
    %v6776 = vpop.f32.mrb[0].mxu0
    %v6777 = vpop.f32.mrb[0].mxu0
    %6778 = vdwg.mxu0
    %v6779 = vmax.f32 %v6774, 0.0
    %v6780 = vsub.f32 0.0, %v6779
    %v6781 = vmul.f32 %v6780, 1.442695
    %v6782 = vpow.pop %v6781
    %v6783 = vadd.f32 %v6782, 1.0
    %v6784 = vrcp.pop %v6783
    %vm6785 = vcmask 122880
    %6786 = vst.msk [vmem:[#allocation3] sm:$0x1] %vm6785, %v6784
    // Predicated region
    $region38: #{tpu_custom_call.1} parent=1 // pred_check
      _
    $region39: #{tpu_custom_call.1} parent=1 // pred_check_branch
      %6788 = sbr.rel (0) target = $region41
    $region40: #{tpu_custom_call.1} parent=1 // pred_region
      %s6790 = ssub.s32 16, 16
      %6791 = vsyncadd [#allocation4], %s6790
      %s6793 = sshll.u32 [#allocation3], 4
      %s6794 = int_to_ptr.vmem [resolvable:$true] %s6793
      %6796 = dma.vmem_to_hbm [thread:$0]  %s6794, 16, %s9, [#allocation4]
    $region41: #{tpu_custom_call.1} parent=1 // pred_fallthru
      _
    // Predicated region
    $region42: #{tpu_custom_call.1} parent=1 // pred_check
      _
    $region43: #{tpu_custom_call.1} parent=1 // pred_check_branch
      %6798 = sbr.rel (0) target = $region45
    $region44: #{tpu_custom_call.1} parent=1 // pred_region
      %6799 = dma.done [#allocation4], 16
    $region45: #{tpu_custom_call.1} parent=1 // pred_fallthru
      _
    %6800 = vsyncpa [#allocation4], 1

</llo_original>
